<compile_context>
chip_gen: v5e
topology: v5e:2x2
jax: 0.10.0
libtpu: 0.0.40
codegen_flags: <defaults>
</compile_context>

<pallas_src>
import functools

import jax
import jax.numpy as jnp
from jax.experimental import pallas as pl
from jax.experimental.pallas import tpu as pltpu

# ---------------- static LeNet front-end geometry ----------------
H0 = 28                      # input spatial
PAD = 2
HP = H0 + 2 * PAD            # 32 padded input width
K = 5                        # conv kernel size
C1 = 6                       # conv1 out channels
H1 = HP - K + 1              # 28 conv1 output spatial
P1 = H1 // 2                 # 14 after pool1
C2 = 16                      # conv2 out channels
H2 = P1 - K + 1              # 10 conv2 output spatial
P2 = H2 // 2                 # 5  after pool2

R1IMG = 16                   # rows reserved per image after pool1 (14 valid)
L1 = H1 * C1                 # 168 conv1 lane width  (wo*C1 + co)
LP1 = P1 * C1                # 84  pool1 lane width  (pw*C1 + ci)
L2 = H2 * C2                 # 160 conv2 lane width  (wo2*C2 + co)
LP2 = P2 * C2                # 80  pool2 lane width  (pw2*C2 + co)
K1 = K * HP                  # 160 conv1 contraction (kh*HP + wi)
K2 = K * LP1                 # 420 conv2 contraction (kh*LP1 + pw*C1 + ci)

BLOCK_B = 32                 # images per grid step
SUB1 = 4                     # images per conv1+pool1 chunk (matmul M = 128)
SUB2 = 8                     # images per conv2+pool2 chunk (matmul M = 128)


# ----------------------------- fused Pallas kernel ---------------------------

def _lenet_front_kernel(lhs1_ref, w1_ref, b1_ref, w2_ref, b2_ref,
                        pc1e_ref, pc1o_ref, pc2e_ref, pc2o_ref,
                        o_ref, p1_scr):
    f32 = jnp.float32
    bf16 = jnp.bfloat16
    B = BLOCK_B

    # Shift-slack tail rows of the pool1 scratch (only ever read for rows whose
    # conv2 output is discarded, but keep them deterministic).
    p1_scr[B * R1IMG:B * R1IMG + 8, :] = jnp.zeros((8, LP1), bf16)

    # ---- conv1 (+bias) -> 2x2 maxpool -> ReLU, chunked over 4-image groups ----
    # lhs1 rows per chunk: [64 rows of even conv1-output rows | 64 odd rows].
    rows1 = 2 * SUB1 * R1IMG                 # 128
    half = SUB1 * R1IMG                      # 64
    for c in range(B // SUB1):
        g = jnp.dot(lhs1_ref[c * rows1:(c + 1) * rows1, :], w1_ref[...],
                    preferred_element_type=f32)                       # (128, 168)
        m = jnp.maximum(jnp.maximum(g[:half], g[half:]) + b1_ref[...], 0.0)
        m = m.astype(bf16)                                            # (64, 168)
        p1 = jnp.maximum(
            jnp.dot(m, pc1e_ref[...], preferred_element_type=f32),
            jnp.dot(m, pc1o_ref[...], preferred_element_type=f32))    # (64, 84)
        p1_scr[c * half:(c + 1) * half, :] = p1.astype(bf16)

    # ---- conv2 (+bias) -> width-pair max (row max + ReLU in wrapper) ----------
    rows2 = SUB2 * R1IMG                     # 128
    for c in range(B // SUB2):
        base = c * rows2
        lhs2 = jnp.concatenate(
            [p1_scr[base + kh:base + kh + rows2, :] for kh in range(K)],
            axis=1)                                                   # (128, 420)
        g2 = jnp.dot(lhs2, w2_ref[...],
                     preferred_element_type=f32) + b2_ref[...]        # (128, 160)
        cp = jnp.maximum(
            jnp.dot(g2, pc2e_ref[...], preferred_element_type=f32),
            jnp.dot(g2, pc2o_ref[...], preferred_element_type=f32))   # (128, 80)
        o_ref[base:base + rows2, :] = cp


# ----------------------- one-time parameter packing (JAX) ---------------------

def pack_params(w1, b1, w2, b2):
    f32 = jnp.float32
    bf16 = jnp.bfloat16

    # conv1 lowered weight: W1cat[kh*HP + wi, wo*C1 + co] = w1[co, 0, kh, wi-wo]
    kk = (jnp.arange(K1) // HP)[:, None]
    wi = (jnp.arange(K1) % HP)[:, None]
    wo = (jnp.arange(L1) // C1)[None, :]
    co = (jnp.arange(L1) % C1)[None, :]
    kw = wi - wo
    w1cat = jnp.where((kw >= 0) & (kw < K),
                      w1[:, 0][co, kk, jnp.clip(kw, 0, K - 1)],
                      0.0).astype(bf16)
    b1row = jnp.tile(b1, H1).reshape(1, L1).astype(f32)

    # conv2 lowered weight: W2cat[kh*LP1 + pw*C1 + ci, wo2*C2 + co]
    #                         = w2[co, ci, kh, pw - wo2]
    kk2 = (jnp.arange(K2) // LP1)[:, None]
    rem = jnp.arange(K2) % LP1
    pw = (rem // C1)[:, None]
    ci = (rem % C1)[:, None]
    wo2 = (jnp.arange(L2) // C2)[None, :]
    co2 = (jnp.arange(L2) % C2)[None, :]
    kw2 = pw - wo2
    w2cat = jnp.where((kw2 >= 0) & (kw2 < K),
                      w2[co2, ci, kk2, jnp.clip(kw2, 0, K - 1)],
                      0.0).astype(bf16)
    b2row = jnp.tile(b2, H2).reshape(1, L2).astype(f32)

    # 0/1 width-pair selectors for the fused pools (exact in bf16 / f32).
    wo_ = jnp.arange(L1)[:, None] // C1
    co_ = jnp.arange(L1)[:, None] % C1
    pw_ = jnp.arange(LP1)[None, :] // C1
    ci_ = jnp.arange(LP1)[None, :] % C1
    pc1e = ((wo_ == 2 * pw_) & (co_ == ci_)).astype(bf16)
    pc1o = ((wo_ == 2 * pw_ + 1) & (co_ == ci_)).astype(bf16)

    wo2_ = jnp.arange(L2)[:, None] // C2
    co2_ = jnp.arange(L2)[:, None] % C2
    pw2_ = jnp.arange(LP2)[None, :] // C2
    c2_ = jnp.arange(LP2)[None, :] % C2
    pc2e = ((wo2_ == 2 * pw2_) & (co2_ == c2_)).astype(f32)
    pc2o = ((wo2_ == 2 * pw2_ + 1) & (co2_ == c2_)).astype(f32)

    return (w1cat, b1row, w2cat, b2row, pc1e, pc1o, pc2e, pc2o)


# --------------------------------- forward -----------------------------------

@jax.jit
def ann_forward(x_nchw, packed):
    (w1cat, b1row, w2cat, b2row, pc1e, pc1o, pc2e, pc2o) = packed
    n = x_nchw.shape[0]
    nblk = -(-n // BLOCK_B)
    npad = nblk * BLOCK_B

    # Pad (batch to a block multiple, spatial padding=2) and build the per-row
    # im2col in bf16.  Even / odd conv1-output rows are laid out as separate
    # 64-row half-blocks per 4-image group so the kernel's pool1 row max is a
    # plain aligned slice + max (no strided access, no selection matmul).
    xpad = jnp.pad(x_nchw[:, 0],
                   ((0, npad - n), (PAD, PAD), (PAD, PAD)))            # (npad,32,32)
    col = jnp.concatenate([xpad[:, kh:kh + H1, :] for kh in range(K)],
                          axis=-1)                                     # (npad,28,160)
    ev = jnp.pad(col[:, 0::2, :], ((0, 0), (0, R1IMG - P1), (0, 0)))   # (npad,16,160)
    od = jnp.pad(col[:, 1::2, :], ((0, 0), (0, R1IMG - P1), (0, 0)))
    ngrp = npad // SUB1
    ev = ev.reshape(ngrp, SUB1 * R1IMG, K1)
    od = od.reshape(ngrp, SUB1 * R1IMG, K1)
    lhs1 = jnp.stack([ev, od], axis=1).reshape(npad * 2 * R1IMG, K1)
    lhs1 = lhs1.astype(jnp.bfloat16)

    const2 = lambda i: (0, 0)
    out = pl.pallas_call(
        _lenet_front_kernel,
        out_shape=jax.ShapeDtypeStruct((npad * R1IMG, LP2), jnp.float32),
        grid=(nblk,),
        in_specs=[
            pl.BlockSpec((BLOCK_B * 2 * R1IMG, K1), lambda i: (i, 0)),  # im2col rows
            pl.BlockSpec((K1, L1), const2),            # conv1 lowered weight
            pl.BlockSpec((1, L1), const2),             # conv1 bias row
            pl.BlockSpec((K2, L2), const2),            # conv2 lowered weight
            pl.BlockSpec((1, L2), const2),             # conv2 bias row
            pl.BlockSpec((L1, LP1), const2),           # pool1 even-width selector
            pl.BlockSpec((L1, LP1), const2),           # pool1 odd-width selector
            pl.BlockSpec((L2, LP2), const2),           # pool2 even-width selector
            pl.BlockSpec((L2, LP2), const2),           # pool2 odd-width selector
        ],
        out_specs=pl.BlockSpec((BLOCK_B * R1IMG, LP2), lambda i: (i, 0)),
        scratch_shapes=[
            pltpu.VMEM((BLOCK_B * R1IMG + 8, LP1), jnp.bfloat16)],      # pool1 out
        compiler_params=pltpu.CompilerParams(
            dimension_semantics=("parallel",)),
    )(lhs1, w1cat, b1row, w2cat, b2row, pc1e, pc1o, pc2e, pc2o)

    # out: (npad*16, 80); rows n*16 + ho2 (ho2 < 10 valid), lanes pw2*C2 + co.
    out = out.reshape(npad, R1IMG, P2, C2)[:n, :H2]        # (n, 10, 5, 16)
    out = jnp.max(out.reshape(n, P2, 2, P2, C2), axis=2)   # pool2 row pairs
    out = jnp.maximum(out, 0.0)                            # ReLU
    return jnp.transpose(out, (0, 3, 1, 2))                # (n, 16, 5, 5) NCHW


# ------------------------------ params / reference ---------------------------

def init_params(key):
    k1, k2, k3, k4 = jax.random.split(key, 4)
    w1 = jax.random.normal(k1, (C1, 1, K, K), jnp.float32) * 0.1
    b1 = jax.random.normal(k2, (C1,), jnp.float32) * 0.1
    w2 = jax.random.normal(k3, (C2, C1, K, K), jnp.float32) * 0.1
    b2 = jax.random.normal(k4, (C2,), jnp.float32) * 0.1
    return w1, b1, w2, b2


def _reference(x, w1, b1, w2, b2):
    def conv(y, w, b, pad):
        dn = jax.lax.conv_dimension_numbers(y.shape, w.shape,
                                            ('NCHW', 'OIHW', 'NCHW'))
        out = jax.lax.conv_general_dilated(
            y, w, (1, 1), ((pad, pad), (pad, pad)), dimension_numbers=dn,
            precision=jax.lax.Precision.HIGHEST)
        return out + b[None, :, None, None]

    def pool_relu(y):
        y = jax.lax.reduce_window(y, -jnp.inf, jax.lax.max,
                                  (1, 1, 2, 2), (1, 1, 2, 2), 'VALID')
        return jnp.maximum(y, 0.0)

    y = pool_relu(conv(x, w1, b1, PAD))
    y = pool_relu(conv(y, w2, b2, 0))
    return y


if __name__ == "__main__":
    key = jax.random.PRNGKey(0)
    kx, kp = jax.random.split(key)
    # LeNet-style input: batch=2, 1 channel, 28x28
    x = jax.random.normal(kx, (2, 1, 28, 28), jnp.float32)
    w1, b1, w2, b2 = init_params(kp)
    packed = pack_params(w1, b1, w2, b2)

    out = ann_forward(x, packed)
    out = jax.block_until_ready(out)
    assert out.shape == (2, C2, P2, P2), out.shape

    ref = _reference(x, w1, b1, w2, b2)
    err = float(jnp.max(jnp.abs(out - ref)))
    # bf16 matmul operands with f32 accumulation -> a few e-3 expected error.
    assert jnp.allclose(out, ref, atol=3e-2, rtol=2e-2), ("max abs err", err)

    print("KERNEL_OK")
</pallas_src>

<mosaic_0001>
module attributes {stable_mosaic.version = 11 : i64} {
  func.func @_lenet_front_kernel(%arg0: i32, %arg1: memref<1024x160xbf16, #tpu.memory_space<vmem>>, %arg2: memref<160x168xbf16, #tpu.memory_space<vmem>>, %arg3: memref<1x168xf32, #tpu.memory_space<vmem>>, %arg4: memref<420x160xbf16, #tpu.memory_space<vmem>>, %arg5: memref<1x160xf32, #tpu.memory_space<vmem>>, %arg6: memref<168x84xbf16, #tpu.memory_space<vmem>>, %arg7: memref<168x84xbf16, #tpu.memory_space<vmem>>, %arg8: memref<160x80xf32, #tpu.memory_space<vmem>>, %arg9: memref<160x80xf32, #tpu.memory_space<vmem>>, %arg10: memref<512x80xf32, #tpu.memory_space<vmem>>, %arg11: memref<520x84xbf16, #tpu.memory_space<vmem>>) attributes {dimension_semantics = [#tpu.dimension_semantics<parallel>], iteration_bounds = array<i64: 1>, scalar_prefetch = 0 : i64, scratch_operands = 1 : i64, tpu.core_type = #tpu.core_type<tc>, window_params = [{transform_indices = @transform_0, window_bounds = array<i64: 1024, 160>}, {pipeline_mode = #tpu.pipeline_mode<synchronous>, transform_indices = @transform_1, window_bounds = array<i64: 160, 168>}, {pipeline_mode = #tpu.pipeline_mode<synchronous>, transform_indices = @transform_2, window_bounds = array<i64: 1, 168>}, {pipeline_mode = #tpu.pipeline_mode<synchronous>, transform_indices = @transform_3, window_bounds = array<i64: 420, 160>}, {pipeline_mode = #tpu.pipeline_mode<synchronous>, transform_indices = @transform_4, window_bounds = array<i64: 1, 160>}, {pipeline_mode = #tpu.pipeline_mode<synchronous>, transform_indices = @transform_5, window_bounds = array<i64: 168, 84>}, {pipeline_mode = #tpu.pipeline_mode<synchronous>, transform_indices = @transform_6, window_bounds = array<i64: 168, 84>}, {pipeline_mode = #tpu.pipeline_mode<synchronous>, transform_indices = @transform_7, window_bounds = array<i64: 160, 80>}, {pipeline_mode = #tpu.pipeline_mode<synchronous>, transform_indices = @transform_8, window_bounds = array<i64: 160, 80>}, {transform_indices = @transform_9, window_bounds = array<i64: 512, 80>}]} {
    %cst = arith.constant 0.000000e+00 : bf16
    %0 = vector.broadcast %cst : bf16 to vector<8x84xbf16>
    %c512 = arith.constant 512 : index
    %c0 = arith.constant 0 : index
    %1 = vector.load %arg11[%c512, %c0] : memref<520x84xbf16, #tpu.memory_space<vmem>>, vector<8x84xbf16>
    tpu.vector_store %arg11[%c512, %c0], %0 {strides = array<i32>} : memref<520x84xbf16, #tpu.memory_space<vmem>>, vector<8x84xbf16>,
    %c0_0 = arith.constant 0 : index
    %c0_1 = arith.constant 0 : index
    %2 = vector.load %arg1[%c0_0, %c0_1] : memref<1024x160xbf16, #tpu.memory_space<vmem>>, vector<128x160xbf16>
    %c0_2 = arith.constant 0 : index
    %c0_3 = arith.constant 0 : index
    %3 = vector.load %arg2[%c0_2, %c0_3] : memref<160x168xbf16, #tpu.memory_space<vmem>>, vector<160x168xbf16>
    %cst_4 = arith.constant dense<0.000000e+00> : vector<128x168xf32>
    %4 = tpu.matmul %2, %3, %cst_4 {dimension_numbers = #tpu.dot_dimension_numbers<[1], [0], [0], [1], [0, 0, 1, 1], [], []>} : vector<128x160xbf16>, vector<160x168xbf16>, vector<128x168xf32> -> vector<128x168xf32>
    %5 = vector.extract_strided_slice %4 {offsets = [0, 0], sizes = [64, 168], strides = [1, 1]} : vector<128x168xf32> to vector<64x168xf32>
    %6 = vector.extract_strided_slice %4 {offsets = [64, 0], sizes = [64, 168], strides = [1, 1]} : vector<128x168xf32> to vector<64x168xf32>
    %7 = arith.maximumf %5, %6 : vector<64x168xf32>
    %c0_5 = arith.constant 0 : index
    %c0_6 = arith.constant 0 : index
    %8 = vector.load %arg3[%c0_5, %c0_6] : memref<1x168xf32, #tpu.memory_space<vmem>>, vector<1x168xf32>
    %9 = vector.broadcast %8 : vector<1x168xf32> to vector<64x168xf32>
    %10 = arith.addf %7, %9 : vector<64x168xf32>
    %cst_7 = arith.constant 0.000000e+00 : f32
    %11 = vector.broadcast %cst_7 : f32 to vector<64x168xf32>
    %12 = arith.maximumf %10, %11 : vector<64x168xf32>
    %13 = arith.truncf %12 : vector<64x168xf32> to vector<64x168xbf16>
    %c0_8 = arith.constant 0 : index
    %c0_9 = arith.constant 0 : index
    %14 = vector.load %arg6[%c0_8, %c0_9] : memref<168x84xbf16, #tpu.memory_space<vmem>>, vector<168x84xbf16>
    %cst_10 = arith.constant dense<0.000000e+00> : vector<64x84xf32>
    %15 = tpu.matmul %13, %14, %cst_10 {dimension_numbers = #tpu.dot_dimension_numbers<[1], [0], [0], [1], [0, 0, 1, 1], [], []>} : vector<64x168xbf16>, vector<168x84xbf16>, vector<64x84xf32> -> vector<64x84xf32>
    %c0_11 = arith.constant 0 : index
    %c0_12 = arith.constant 0 : index
    %16 = vector.load %arg7[%c0_11, %c0_12] : memref<168x84xbf16, #tpu.memory_space<vmem>>, vector<168x84xbf16>
    %cst_13 = arith.constant dense<0.000000e+00> : vector<64x84xf32>
    %17 = tpu.matmul %13, %16, %cst_13 {dimension_numbers = #tpu.dot_dimension_numbers<[1], [0], [0], [1], [0, 0, 1, 1], [], []>} : vector<64x168xbf16>, vector<168x84xbf16>, vector<64x84xf32> -> vector<64x84xf32>
    %18 = arith.maximumf %15, %17 : vector<64x84xf32>
    %19 = arith.truncf %18 : vector<64x84xf32> to vector<64x84xbf16>
    %c0_14 = arith.constant 0 : index
    %c0_15 = arith.constant 0 : index
    %20 = vector.load %arg11[%c0_14, %c0_15] : memref<520x84xbf16, #tpu.memory_space<vmem>>, vector<64x84xbf16>
    tpu.vector_store %arg11[%c0_14, %c0_15], %19 {strides = array<i32>} : memref<520x84xbf16, #tpu.memory_space<vmem>>, vector<64x84xbf16>,
    %c128 = arith.constant 128 : index
    %c0_16 = arith.constant 0 : index
    %21 = vector.load %arg1[%c128, %c0_16] : memref<1024x160xbf16, #tpu.memory_space<vmem>>, vector<128x160xbf16>
    %c0_17 = arith.constant 0 : index
    %c0_18 = arith.constant 0 : index
    %22 = vector.load %arg2[%c0_17, %c0_18] : memref<160x168xbf16, #tpu.memory_space<vmem>>, vector<160x168xbf16>
    %cst_19 = arith.constant dense<0.000000e+00> : vector<128x168xf32>
    %23 = tpu.matmul %21, %22, %cst_19 {dimension_numbers = #tpu.dot_dimension_numbers<[1], [0], [0], [1], [0, 0, 1, 1], [], []>} : vector<128x160xbf16>, vector<160x168xbf16>, vector<128x168xf32> -> vector<128x168xf32>
    %24 = vector.extract_strided_slice %23 {offsets = [0, 0], sizes = [64, 168], strides = [1, 1]} : vector<128x168xf32> to vector<64x168xf32>
    %25 = vector.extract_strided_slice %23 {offsets = [64, 0], sizes = [64, 168], strides = [1, 1]} : vector<128x168xf32> to vector<64x168xf32>
    %26 = arith.maximumf %24, %25 : vector<64x168xf32>
    %c0_20 = arith.constant 0 : index
    %c0_21 = arith.constant 0 : index
    %27 = vector.load %arg3[%c0_20, %c0_21] : memref<1x168xf32, #tpu.memory_space<vmem>>, vector<1x168xf32>
    %28 = vector.broadcast %27 : vector<1x168xf32> to vector<64x168xf32>
    %29 = arith.addf %26, %28 : vector<64x168xf32>
    %cst_22 = arith.constant 0.000000e+00 : f32
    %30 = vector.broadcast %cst_22 : f32 to vector<64x168xf32>
    %31 = arith.maximumf %29, %30 : vector<64x168xf32>
    %32 = arith.truncf %31 : vector<64x168xf32> to vector<64x168xbf16>
    %c0_23 = arith.constant 0 : index
    %c0_24 = arith.constant 0 : index
    %33 = vector.load %arg6[%c0_23, %c0_24] : memref<168x84xbf16, #tpu.memory_space<vmem>>, vector<168x84xbf16>
    %cst_25 = arith.constant dense<0.000000e+00> : vector<64x84xf32>
    %34 = tpu.matmul %32, %33, %cst_25 {dimension_numbers = #tpu.dot_dimension_numbers<[1], [0], [0], [1], [0, 0, 1, 1], [], []>} : vector<64x168xbf16>, vector<168x84xbf16>, vector<64x84xf32> -> vector<64x84xf32>
    %c0_26 = arith.constant 0 : index
    %c0_27 = arith.constant 0 : index
    %35 = vector.load %arg7[%c0_26, %c0_27] : memref<168x84xbf16, #tpu.memory_space<vmem>>, vector<168x84xbf16>
    %cst_28 = arith.constant dense<0.000000e+00> : vector<64x84xf32>
    %36 = tpu.matmul %32, %35, %cst_28 {dimension_numbers = #tpu.dot_dimension_numbers<[1], [0], [0], [1], [0, 0, 1, 1], [], []>} : vector<64x168xbf16>, vector<168x84xbf16>, vector<64x84xf32> -> vector<64x84xf32>
    %37 = arith.maximumf %34, %36 : vector<64x84xf32>
    %38 = arith.truncf %37 : vector<64x84xf32> to vector<64x84xbf16>
    %c64 = arith.constant 64 : index
    %c0_29 = arith.constant 0 : index
    %39 = vector.load %arg11[%c64, %c0_29] : memref<520x84xbf16, #tpu.memory_space<vmem>>, vector<64x84xbf16>
    tpu.vector_store %arg11[%c64, %c0_29], %38 {strides = array<i32>} : memref<520x84xbf16, #tpu.memory_space<vmem>>, vector<64x84xbf16>,
    %c256 = arith.constant 256 : index
    %c0_30 = arith.constant 0 : index
    %40 = vector.load %arg1[%c256, %c0_30] : memref<1024x160xbf16, #tpu.memory_space<vmem>>, vector<128x160xbf16>
    %c0_31 = arith.constant 0 : index
    %c0_32 = arith.constant 0 : index
    %41 = vector.load %arg2[%c0_31, %c0_32] : memref<160x168xbf16, #tpu.memory_space<vmem>>, vector<160x168xbf16>
    %cst_33 = arith.constant dense<0.000000e+00> : vector<128x168xf32>
    %42 = tpu.matmul %40, %41, %cst_33 {dimension_numbers = #tpu.dot_dimension_numbers<[1], [0], [0], [1], [0, 0, 1, 1], [], []>} : vector<128x160xbf16>, vector<160x168xbf16>, vector<128x168xf32> -> vector<128x168xf32>
    %43 = vector.extract_strided_slice %42 {offsets = [0, 0], sizes = [64, 168], strides = [1, 1]} : vector<128x168xf32> to vector<64x168xf32>
    %44 = vector.extract_strided_slice %42 {offsets = [64, 0], sizes = [64, 168], strides = [1, 1]} : vector<128x168xf32> to vector<64x168xf32>
    %45 = arith.maximumf %43, %44 : vector<64x168xf32>
    %c0_34 = arith.constant 0 : index
    %c0_35 = arith.constant 0 : index
    %46 = vector.load %arg3[%c0_34, %c0_35] : memref<1x168xf32, #tpu.memory_space<vmem>>, vector<1x168xf32>
    %47 = vector.broadcast %46 : vector<1x168xf32> to vector<64x168xf32>
    %48 = arith.addf %45, %47 : vector<64x168xf32>
    %cst_36 = arith.constant 0.000000e+00 : f32
    %49 = vector.broadcast %cst_36 : f32 to vector<64x168xf32>
    %50 = arith.maximumf %48, %49 : vector<64x168xf32>
    %51 = arith.truncf %50 : vector<64x168xf32> to vector<64x168xbf16>
    %c0_37 = arith.constant 0 : index
    %c0_38 = arith.constant 0 : index
    %52 = vector.load %arg6[%c0_37, %c0_38] : memref<168x84xbf16, #tpu.memory_space<vmem>>, vector<168x84xbf16>
    %cst_39 = arith.constant dense<0.000000e+00> : vector<64x84xf32>
    %53 = tpu.matmul %51, %52, %cst_39 {dimension_numbers = #tpu.dot_dimension_numbers<[1], [0], [0], [1], [0, 0, 1, 1], [], []>} : vector<64x168xbf16>, vector<168x84xbf16>, vector<64x84xf32> -> vector<64x84xf32>
    %c0_40 = arith.constant 0 : index
    %c0_41 = arith.constant 0 : index
    %54 = vector.load %arg7[%c0_40, %c0_41] : memref<168x84xbf16, #tpu.memory_space<vmem>>, vector<168x84xbf16>
    %cst_42 = arith.constant dense<0.000000e+00> : vector<64x84xf32>
    %55 = tpu.matmul %51, %54, %cst_42 {dimension_numbers = #tpu.dot_dimension_numbers<[1], [0], [0], [1], [0, 0, 1, 1], [], []>} : vector<64x168xbf16>, vector<168x84xbf16>, vector<64x84xf32> -> vector<64x84xf32>
    %56 = arith.maximumf %53, %55 : vector<64x84xf32>
    %57 = arith.truncf %56 : vector<64x84xf32> to vector<64x84xbf16>
    %c128_43 = arith.constant 128 : index
    %c0_44 = arith.constant 0 : index
    %58 = vector.load %arg11[%c128_43, %c0_44] : memref<520x84xbf16, #tpu.memory_space<vmem>>, vector<64x84xbf16>
    tpu.vector_store %arg11[%c128_43, %c0_44], %57 {strides = array<i32>} : memref<520x84xbf16, #tpu.memory_space<vmem>>, vector<64x84xbf16>,
    %c384 = arith.constant 384 : index
    %c0_45 = arith.constant 0 : index
    %59 = vector.load %arg1[%c384, %c0_45] : memref<1024x160xbf16, #tpu.memory_space<vmem>>, vector<128x160xbf16>
    %c0_46 = arith.constant 0 : index
    %c0_47 = arith.constant 0 : index
    %60 = vector.load %arg2[%c0_46, %c0_47] : memref<160x168xbf16, #tpu.memory_space<vmem>>, vector<160x168xbf16>
    %cst_48 = arith.constant dense<0.000000e+00> : vector<128x168xf32>
    %61 = tpu.matmul %59, %60, %cst_48 {dimension_numbers = #tpu.dot_dimension_numbers<[1], [0], [0], [1], [0, 0, 1, 1], [], []>} : vector<128x160xbf16>, vector<160x168xbf16>, vector<128x168xf32> -> vector<128x168xf32>
    %62 = vector.extract_strided_slice %61 {offsets = [0, 0], sizes = [64, 168], strides = [1, 1]} : vector<128x168xf32> to vector<64x168xf32>
    %63 = vector.extract_strided_slice %61 {offsets = [64, 0], sizes = [64, 168], strides = [1, 1]} : vector<128x168xf32> to vector<64x168xf32>
    %64 = arith.maximumf %62, %63 : vector<64x168xf32>
    %c0_49 = arith.constant 0 : index
    %c0_50 = arith.constant 0 : index
    %65 = vector.load %arg3[%c0_49, %c0_50] : memref<1x168xf32, #tpu.memory_space<vmem>>, vector<1x168xf32>
    %66 = vector.broadcast %65 : vector<1x168xf32> to vector<64x168xf32>
    %67 = arith.addf %64, %66 : vector<64x168xf32>
    %cst_51 = arith.constant 0.000000e+00 : f32
    %68 = vector.broadcast %cst_51 : f32 to vector<64x168xf32>
    %69 = arith.maximumf %67, %68 : vector<64x168xf32>
    %70 = arith.truncf %69 : vector<64x168xf32> to vector<64x168xbf16>
    %c0_52 = arith.constant 0 : index
    %c0_53 = arith.constant 0 : index
    %71 = vector.load %arg6[%c0_52, %c0_53] : memref<168x84xbf16, #tpu.memory_space<vmem>>, vector<168x84xbf16>
    %cst_54 = arith.constant dense<0.000000e+00> : vector<64x84xf32>
    %72 = tpu.matmul %70, %71, %cst_54 {dimension_numbers = #tpu.dot_dimension_numbers<[1], [0], [0], [1], [0, 0, 1, 1], [], []>} : vector<64x168xbf16>, vector<168x84xbf16>, vector<64x84xf32> -> vector<64x84xf32>
    %c0_55 = arith.constant 0 : index
    %c0_56 = arith.constant 0 : index
    %73 = vector.load %arg7[%c0_55, %c0_56] : memref<168x84xbf16, #tpu.memory_space<vmem>>, vector<168x84xbf16>
    %cst_57 = arith.constant dense<0.000000e+00> : vector<64x84xf32>
    %74 = tpu.matmul %70, %73, %cst_57 {dimension_numbers = #tpu.dot_dimension_numbers<[1], [0], [0], [1], [0, 0, 1, 1], [], []>} : vector<64x168xbf16>, vector<168x84xbf16>, vector<64x84xf32> -> vector<64x84xf32>
    %75 = arith.maximumf %72, %74 : vector<64x84xf32>
    %76 = arith.truncf %75 : vector<64x84xf32> to vector<64x84xbf16>
    %c192 = arith.constant 192 : index
    %c0_58 = arith.constant 0 : index
    %77 = vector.load %arg11[%c192, %c0_58] : memref<520x84xbf16, #tpu.memory_space<vmem>>, vector<64x84xbf16>
    tpu.vector_store %arg11[%c192, %c0_58], %76 {strides = array<i32>} : memref<520x84xbf16, #tpu.memory_space<vmem>>, vector<64x84xbf16>,
    %c512_59 = arith.constant 512 : index
    %c0_60 = arith.constant 0 : index
    %78 = vector.load %arg1[%c512_59, %c0_60] : memref<1024x160xbf16, #tpu.memory_space<vmem>>, vector<128x160xbf16>
    %c0_61 = arith.constant 0 : index
    %c0_62 = arith.constant 0 : index
    %79 = vector.load %arg2[%c0_61, %c0_62] : memref<160x168xbf16, #tpu.memory_space<vmem>>, vector<160x168xbf16>
    %cst_63 = arith.constant dense<0.000000e+00> : vector<128x168xf32>
    %80 = tpu.matmul %78, %79, %cst_63 {dimension_numbers = #tpu.dot_dimension_numbers<[1], [0], [0], [1], [0, 0, 1, 1], [], []>} : vector<128x160xbf16>, vector<160x168xbf16>, vector<128x168xf32> -> vector<128x168xf32>
    %81 = vector.extract_strided_slice %80 {offsets = [0, 0], sizes = [64, 168], strides = [1, 1]} : vector<128x168xf32> to vector<64x168xf32>
    %82 = vector.extract_strided_slice %80 {offsets = [64, 0], sizes = [64, 168], strides = [1, 1]} : vector<128x168xf32> to vector<64x168xf32>
    %83 = arith.maximumf %81, %82 : vector<64x168xf32>
    %c0_64 = arith.constant 0 : index
    %c0_65 = arith.constant 0 : index
    %84 = vector.load %arg3[%c0_64, %c0_65] : memref<1x168xf32, #tpu.memory_space<vmem>>, vector<1x168xf32>
    %85 = vector.broadcast %84 : vector<1x168xf32> to vector<64x168xf32>
    %86 = arith.addf %83, %85 : vector<64x168xf32>
    %cst_66 = arith.constant 0.000000e+00 : f32
    %87 = vector.broadcast %cst_66 : f32 to vector<64x168xf32>
    %88 = arith.maximumf %86, %87 : vector<64x168xf32>
    %89 = arith.truncf %88 : vector<64x168xf32> to vector<64x168xbf16>
    %c0_67 = arith.constant 0 : index
    %c0_68 = arith.constant 0 : index
    %90 = vector.load %arg6[%c0_67, %c0_68] : memref<168x84xbf16, #tpu.memory_space<vmem>>, vector<168x84xbf16>
    %cst_69 = arith.constant dense<0.000000e+00> : vector<64x84xf32>
    %91 = tpu.matmul %89, %90, %cst_69 {dimension_numbers = #tpu.dot_dimension_numbers<[1], [0], [0], [1], [0, 0, 1, 1], [], []>} : vector<64x168xbf16>, vector<168x84xbf16>, vector<64x84xf32> -> vector<64x84xf32>
    %c0_70 = arith.constant 0 : index
    %c0_71 = arith.constant 0 : index
    %92 = vector.load %arg7[%c0_70, %c0_71] : memref<168x84xbf16, #tpu.memory_space<vmem>>, vector<168x84xbf16>
    %cst_72 = arith.constant dense<0.000000e+00> : vector<64x84xf32>
    %93 = tpu.matmul %89, %92, %cst_72 {dimension_numbers = #tpu.dot_dimension_numbers<[1], [0], [0], [1], [0, 0, 1, 1], [], []>} : vector<64x168xbf16>, vector<168x84xbf16>, vector<64x84xf32> -> vector<64x84xf32>
    %94 = arith.maximumf %91, %93 : vector<64x84xf32>
    %95 = arith.truncf %94 : vector<64x84xf32> to vector<64x84xbf16>
    %c256_73 = arith.constant 256 : index
    %c0_74 = arith.constant 0 : index
    %96 = vector.load %arg11[%c256_73, %c0_74] : memref<520x84xbf16, #tpu.memory_space<vmem>>, vector<64x84xbf16>
    tpu.vector_store %arg11[%c256_73, %c0_74], %95 {strides = array<i32>} : memref<520x84xbf16, #tpu.memory_space<vmem>>, vector<64x84xbf16>,
    %c640 = arith.constant 640 : index
    %c0_75 = arith.constant 0 : index
    %97 = vector.load %arg1[%c640, %c0_75] : memref<1024x160xbf16, #tpu.memory_space<vmem>>, vector<128x160xbf16>
    %c0_76 = arith.constant 0 : index
    %c0_77 = arith.constant 0 : index
    %98 = vector.load %arg2[%c0_76, %c0_77] : memref<160x168xbf16, #tpu.memory_space<vmem>>, vector<160x168xbf16>
    %cst_78 = arith.constant dense<0.000000e+00> : vector<128x168xf32>
    %99 = tpu.matmul %97, %98, %cst_78 {dimension_numbers = #tpu.dot_dimension_numbers<[1], [0], [0], [1], [0, 0, 1, 1], [], []>} : vector<128x160xbf16>, vector<160x168xbf16>, vector<128x168xf32> -> vector<128x168xf32>
    %100 = vector.extract_strided_slice %99 {offsets = [0, 0], sizes = [64, 168], strides = [1, 1]} : vector<128x168xf32> to vector<64x168xf32>
    %101 = vector.extract_strided_slice %99 {offsets = [64, 0], sizes = [64, 168], strides = [1, 1]} : vector<128x168xf32> to vector<64x168xf32>
    %102 = arith.maximumf %100, %101 : vector<64x168xf32>
    %c0_79 = arith.constant 0 : index
    %c0_80 = arith.constant 0 : index
    %103 = vector.load %arg3[%c0_79, %c0_80] : memref<1x168xf32, #tpu.memory_space<vmem>>, vector<1x168xf32>
    %104 = vector.broadcast %103 : vector<1x168xf32> to vector<64x168xf32>
    %105 = arith.addf %102, %104 : vector<64x168xf32>
    %cst_81 = arith.constant 0.000000e+00 : f32
    %106 = vector.broadcast %cst_81 : f32 to vector<64x168xf32>
    %107 = arith.maximumf %105, %106 : vector<64x168xf32>
    %108 = arith.truncf %107 : vector<64x168xf32> to vector<64x168xbf16>
    %c0_82 = arith.constant 0 : index
    %c0_83 = arith.constant 0 : index
    %109 = vector.load %arg6[%c0_82, %c0_83] : memref<168x84xbf16, #tpu.memory_space<vmem>>, vector<168x84xbf16>
    %cst_84 = arith.constant dense<0.000000e+00> : vector<64x84xf32>
    %110 = tpu.matmul %108, %109, %cst_84 {dimension_numbers = #tpu.dot_dimension_numbers<[1], [0], [0], [1], [0, 0, 1, 1], [], []>} : vector<64x168xbf16>, vector<168x84xbf16>, vector<64x84xf32> -> vector<64x84xf32>
    %c0_85 = arith.constant 0 : index
    %c0_86 = arith.constant 0 : index
    %111 = vector.load %arg7[%c0_85, %c0_86] : memref<168x84xbf16, #tpu.memory_space<vmem>>, vector<168x84xbf16>
    %cst_87 = arith.constant dense<0.000000e+00> : vector<64x84xf32>
    %112 = tpu.matmul %108, %111, %cst_87 {dimension_numbers = #tpu.dot_dimension_numbers<[1], [0], [0], [1], [0, 0, 1, 1], [], []>} : vector<64x168xbf16>, vector<168x84xbf16>, vector<64x84xf32> -> vector<64x84xf32>
    %113 = arith.maximumf %110, %112 : vector<64x84xf32>
    %114 = arith.truncf %113 : vector<64x84xf32> to vector<64x84xbf16>
    %c320 = arith.constant 320 : index
    %c0_88 = arith.constant 0 : index
    %115 = vector.load %arg11[%c320, %c0_88] : memref<520x84xbf16, #tpu.memory_space<vmem>>, vector<64x84xbf16>
    tpu.vector_store %arg11[%c320, %c0_88], %114 {strides = array<i32>} : memref<520x84xbf16, #tpu.memory_space<vmem>>, vector<64x84xbf16>,
    %c768 = arith.constant 768 : index
    %c0_89 = arith.constant 0 : index
    %116 = vector.load %arg1[%c768, %c0_89] : memref<1024x160xbf16, #tpu.memory_space<vmem>>, vector<128x160xbf16>
    %c0_90 = arith.constant 0 : index
    %c0_91 = arith.constant 0 : index
    %117 = vector.load %arg2[%c0_90, %c0_91] : memref<160x168xbf16, #tpu.memory_space<vmem>>, vector<160x168xbf16>
    %cst_92 = arith.constant dense<0.000000e+00> : vector<128x168xf32>
    %118 = tpu.matmul %116, %117, %cst_92 {dimension_numbers = #tpu.dot_dimension_numbers<[1], [0], [0], [1], [0, 0, 1, 1], [], []>} : vector<128x160xbf16>, vector<160x168xbf16>, vector<128x168xf32> -> vector<128x168xf32>
    %119 = vector.extract_strided_slice %118 {offsets = [0, 0], sizes = [64, 168], strides = [1, 1]} : vector<128x168xf32> to vector<64x168xf32>
    %120 = vector.extract_strided_slice %118 {offsets = [64, 0], sizes = [64, 168], strides = [1, 1]} : vector<128x168xf32> to vector<64x168xf32>
    %121 = arith.maximumf %119, %120 : vector<64x168xf32>
    %c0_93 = arith.constant 0 : index
    %c0_94 = arith.constant 0 : index
    %122 = vector.load %arg3[%c0_93, %c0_94] : memref<1x168xf32, #tpu.memory_space<vmem>>, vector<1x168xf32>
    %123 = vector.broadcast %122 : vector<1x168xf32> to vector<64x168xf32>
    %124 = arith.addf %121, %123 : vector<64x168xf32>
    %cst_95 = arith.constant 0.000000e+00 : f32
    %125 = vector.broadcast %cst_95 : f32 to vector<64x168xf32>
    %126 = arith.maximumf %124, %125 : vector<64x168xf32>
    %127 = arith.truncf %126 : vector<64x168xf32> to vector<64x168xbf16>
    %c0_96 = arith.constant 0 : index
    %c0_97 = arith.constant 0 : index
    %128 = vector.load %arg6[%c0_96, %c0_97] : memref<168x84xbf16, #tpu.memory_space<vmem>>, vector<168x84xbf16>
    %cst_98 = arith.constant dense<0.000000e+00> : vector<64x84xf32>
    %129 = tpu.matmul %127, %128, %cst_98 {dimension_numbers = #tpu.dot_dimension_numbers<[1], [0], [0], [1], [0, 0, 1, 1], [], []>} : vector<64x168xbf16>, vector<168x84xbf16>, vector<64x84xf32> -> vector<64x84xf32>
    %c0_99 = arith.constant 0 : index
    %c0_100 = arith.constant 0 : index
    %130 = vector.load %arg7[%c0_99, %c0_100] : memref<168x84xbf16, #tpu.memory_space<vmem>>, vector<168x84xbf16>
    %cst_101 = arith.constant dense<0.000000e+00> : vector<64x84xf32>
    %131 = tpu.matmul %127, %130, %cst_101 {dimension_numbers = #tpu.dot_dimension_numbers<[1], [0], [0], [1], [0, 0, 1, 1], [], []>} : vector<64x168xbf16>, vector<168x84xbf16>, vector<64x84xf32> -> vector<64x84xf32>
    %132 = arith.maximumf %129, %131 : vector<64x84xf32>
    %133 = arith.truncf %132 : vector<64x84xf32> to vector<64x84xbf16>
    %c384_102 = arith.constant 384 : index
    %c0_103 = arith.constant 0 : index
    %134 = vector.load %arg11[%c384_102, %c0_103] : memref<520x84xbf16, #tpu.memory_space<vmem>>, vector<64x84xbf16>
    tpu.vector_store %arg11[%c384_102, %c0_103], %133 {strides = array<i32>} : memref<520x84xbf16, #tpu.memory_space<vmem>>, vector<64x84xbf16>,
    %c896 = arith.constant 896 : index
    %c0_104 = arith.constant 0 : index
    %135 = vector.load %arg1[%c896, %c0_104] : memref<1024x160xbf16, #tpu.memory_space<vmem>>, vector<128x160xbf16>
    %c0_105 = arith.constant 0 : index
    %c0_106 = arith.constant 0 : index
    %136 = vector.load %arg2[%c0_105, %c0_106] : memref<160x168xbf16, #tpu.memory_space<vmem>>, vector<160x168xbf16>
    %cst_107 = arith.constant dense<0.000000e+00> : vector<128x168xf32>
    %137 = tpu.matmul %135, %136, %cst_107 {dimension_numbers = #tpu.dot_dimension_numbers<[1], [0], [0], [1], [0, 0, 1, 1], [], []>} : vector<128x160xbf16>, vector<160x168xbf16>, vector<128x168xf32> -> vector<128x168xf32>
    %138 = vector.extract_strided_slice %137 {offsets = [0, 0], sizes = [64, 168], strides = [1, 1]} : vector<128x168xf32> to vector<64x168xf32>
    %139 = vector.extract_strided_slice %137 {offsets = [64, 0], sizes = [64, 168], strides = [1, 1]} : vector<128x168xf32> to vector<64x168xf32>
    %140 = arith.maximumf %138, %139 : vector<64x168xf32>
    %c0_108 = arith.constant 0 : index
    %c0_109 = arith.constant 0 : index
    %141 = vector.load %arg3[%c0_108, %c0_109] : memref<1x168xf32, #tpu.memory_space<vmem>>, vector<1x168xf32>
    %142 = vector.broadcast %141 : vector<1x168xf32> to vector<64x168xf32>
    %143 = arith.addf %140, %142 : vector<64x168xf32>
    %cst_110 = arith.constant 0.000000e+00 : f32
    %144 = vector.broadcast %cst_110 : f32 to vector<64x168xf32>
    %145 = arith.maximumf %143, %144 : vector<64x168xf32>
    %146 = arith.truncf %145 : vector<64x168xf32> to vector<64x168xbf16>
    %c0_111 = arith.constant 0 : index
    %c0_112 = arith.constant 0 : index
    %147 = vector.load %arg6[%c0_111, %c0_112] : memref<168x84xbf16, #tpu.memory_space<vmem>>, vector<168x84xbf16>
    %cst_113 = arith.constant dense<0.000000e+00> : vector<64x84xf32>
    %148 = tpu.matmul %146, %147, %cst_113 {dimension_numbers = #tpu.dot_dimension_numbers<[1], [0], [0], [1], [0, 0, 1, 1], [], []>} : vector<64x168xbf16>, vector<168x84xbf16>, vector<64x84xf32> -> vector<64x84xf32>
    %c0_114 = arith.constant 0 : index
    %c0_115 = arith.constant 0 : index
    %149 = vector.load %arg7[%c0_114, %c0_115] : memref<168x84xbf16, #tpu.memory_space<vmem>>, vector<168x84xbf16>
    %cst_116 = arith.constant dense<0.000000e+00> : vector<64x84xf32>
    %150 = tpu.matmul %146, %149, %cst_116 {dimension_numbers = #tpu.dot_dimension_numbers<[1], [0], [0], [1], [0, 0, 1, 1], [], []>} : vector<64x168xbf16>, vector<168x84xbf16>, vector<64x84xf32> -> vector<64x84xf32>
    %151 = arith.maximumf %148, %150 : vector<64x84xf32>
    %152 = arith.truncf %151 : vector<64x84xf32> to vector<64x84xbf16>
    %c448 = arith.constant 448 : index
    %c0_117 = arith.constant 0 : index
    %153 = vector.load %arg11[%c448, %c0_117] : memref<520x84xbf16, #tpu.memory_space<vmem>>, vector<64x84xbf16>
    tpu.vector_store %arg11[%c448, %c0_117], %152 {strides = array<i32>} : memref<520x84xbf16, #tpu.memory_space<vmem>>, vector<64x84xbf16>,
    %c0_118 = arith.constant 0 : index
    %c0_119 = arith.constant 0 : index
    %154 = vector.load %arg11[%c0_118, %c0_119] : memref<520x84xbf16, #tpu.memory_space<vmem>>, vector<128x84xbf16>
    %c1 = arith.constant 1 : index
    %c0_120 = arith.constant 0 : index
    %155 = vector.load %arg11[%c1, %c0_120] : memref<520x84xbf16, #tpu.memory_space<vmem>>, vector<128x84xbf16>
    %c2 = arith.constant 2 : index
    %c0_121 = arith.constant 0 : index
    %156 = vector.load %arg11[%c2, %c0_121] : memref<520x84xbf16, #tpu.memory_space<vmem>>, vector<128x84xbf16>
    %c3 = arith.constant 3 : index
    %c0_122 = arith.constant 0 : index
    %157 = vector.load %arg11[%c3, %c0_122] : memref<520x84xbf16, #tpu.memory_space<vmem>>, vector<128x84xbf16>
    %c4 = arith.constant 4 : index
    %c0_123 = arith.constant 0 : index
    %158 = vector.load %arg11[%c4, %c0_123] : memref<520x84xbf16, #tpu.memory_space<vmem>>, vector<128x84xbf16>
    %159 = tpu.concatenate %154, %155, %156, %157, %158 in 1 : vector<128x84xbf16>, vector<128x84xbf16>, vector<128x84xbf16>, vector<128x84xbf16>, vector<128x84xbf16> -> vector<128x420xbf16>
    %c0_124 = arith.constant 0 : index
    %c0_125 = arith.constant 0 : index
    %160 = vector.load %arg4[%c0_124, %c0_125] : memref<420x160xbf16, #tpu.memory_space<vmem>>, vector<420x160xbf16>
    %cst_126 = arith.constant dense<0.000000e+00> : vector<128x160xf32>
    %161 = tpu.matmul %159, %160, %cst_126 {dimension_numbers = #tpu.dot_dimension_numbers<[1], [0], [0], [1], [0, 0, 1, 1], [], []>} : vector<128x420xbf16>, vector<420x160xbf16>, vector<128x160xf32> -> vector<128x160xf32>
    %c0_127 = arith.constant 0 : index
    %c0_128 = arith.constant 0 : index
    %162 = vector.load %arg5[%c0_127, %c0_128] : memref<1x160xf32, #tpu.memory_space<vmem>>, vector<1x160xf32>
    %163 = vector.broadcast %162 : vector<1x160xf32> to vector<128x160xf32>
    %164 = arith.addf %161, %163 : vector<128x160xf32>
    %c0_129 = arith.constant 0 : index
    %c0_130 = arith.constant 0 : index
    %165 = vector.load %arg8[%c0_129, %c0_130] : memref<160x80xf32, #tpu.memory_space<vmem>>, vector<160x80xf32>
    %cst_131 = arith.constant dense<0.000000e+00> : vector<128x80xf32>
    %166 = tpu.matmul %164, %165, %cst_131 {dimension_numbers = #tpu.dot_dimension_numbers<[1], [0], [0], [1], [0, 0, 1, 1], [], []>} : vector<128x160xf32>, vector<160x80xf32>, vector<128x80xf32> -> vector<128x80xf32>
    %c0_132 = arith.constant 0 : index
    %c0_133 = arith.constant 0 : index
    %167 = vector.load %arg9[%c0_132, %c0_133] : memref<160x80xf32, #tpu.memory_space<vmem>>, vector<160x80xf32>
    %cst_134 = arith.constant dense<0.000000e+00> : vector<128x80xf32>
    %168 = tpu.matmul %164, %167, %cst_134 {dimension_numbers = #tpu.dot_dimension_numbers<[1], [0], [0], [1], [0, 0, 1, 1], [], []>} : vector<128x160xf32>, vector<160x80xf32>, vector<128x80xf32> -> vector<128x80xf32>
    %169 = arith.maximumf %166, %168 : vector<128x80xf32>
    %c0_135 = arith.constant 0 : index
    %c0_136 = arith.constant 0 : index
    %170 = vector.load %arg10[%c0_135, %c0_136] : memref<512x80xf32, #tpu.memory_space<vmem>>, vector<128x80xf32>
    tpu.vector_store %arg10[%c0_135, %c0_136], %169 {strides = array<i32>} : memref<512x80xf32, #tpu.memory_space<vmem>>, vector<128x80xf32>,
    %c128_137 = arith.constant 128 : index
    %c0_138 = arith.constant 0 : index
    %171 = vector.load %arg11[%c128_137, %c0_138] : memref<520x84xbf16, #tpu.memory_space<vmem>>, vector<128x84xbf16>
    %c129 = arith.constant 129 : index
    %c0_139 = arith.constant 0 : index
    %172 = vector.load %arg11[%c129, %c0_139] : memref<520x84xbf16, #tpu.memory_space<vmem>>, vector<128x84xbf16>
    %c130 = arith.constant 130 : index
    %c0_140 = arith.constant 0 : index
    %173 = vector.load %arg11[%c130, %c0_140] : memref<520x84xbf16, #tpu.memory_space<vmem>>, vector<128x84xbf16>
    %c131 = arith.constant 131 : index
    %c0_141 = arith.constant 0 : index
    %174 = vector.load %arg11[%c131, %c0_141] : memref<520x84xbf16, #tpu.memory_space<vmem>>, vector<128x84xbf16>
    %c132 = arith.constant 132 : index
    %c0_142 = arith.constant 0 : index
    %175 = vector.load %arg11[%c132, %c0_142] : memref<520x84xbf16, #tpu.memory_space<vmem>>, vector<128x84xbf16>
    %176 = tpu.concatenate %171, %172, %173, %174, %175 in 1 : vector<128x84xbf16>, vector<128x84xbf16>, vector<128x84xbf16>, vector<128x84xbf16>, vector<128x84xbf16> -> vector<128x420xbf16>
    %c0_143 = arith.constant 0 : index
    %c0_144 = arith.constant 0 : index
    %177 = vector.load %arg4[%c0_143, %c0_144] : memref<420x160xbf16, #tpu.memory_space<vmem>>, vector<420x160xbf16>
    %cst_145 = arith.constant dense<0.000000e+00> : vector<128x160xf32>
    %178 = tpu.matmul %176, %177, %cst_145 {dimension_numbers = #tpu.dot_dimension_numbers<[1], [0], [0], [1], [0, 0, 1, 1], [], []>} : vector<128x420xbf16>, vector<420x160xbf16>, vector<128x160xf32> -> vector<128x160xf32>
    %c0_146 = arith.constant 0 : index
    %c0_147 = arith.constant 0 : index
    %179 = vector.load %arg5[%c0_146, %c0_147] : memref<1x160xf32, #tpu.memory_space<vmem>>, vector<1x160xf32>
    %180 = vector.broadcast %179 : vector<1x160xf32> to vector<128x160xf32>
    %181 = arith.addf %178, %180 : vector<128x160xf32>
    %c0_148 = arith.constant 0 : index
    %c0_149 = arith.constant 0 : index
    %182 = vector.load %arg8[%c0_148, %c0_149] : memref<160x80xf32, #tpu.memory_space<vmem>>, vector<160x80xf32>
    %cst_150 = arith.constant dense<0.000000e+00> : vector<128x80xf32>
    %183 = tpu.matmul %181, %182, %cst_150 {dimension_numbers = #tpu.dot_dimension_numbers<[1], [0], [0], [1], [0, 0, 1, 1], [], []>} : vector<128x160xf32>, vector<160x80xf32>, vector<128x80xf32> -> vector<128x80xf32>
    %c0_151 = arith.constant 0 : index
    %c0_152 = arith.constant 0 : index
    %184 = vector.load %arg9[%c0_151, %c0_152] : memref<160x80xf32, #tpu.memory_space<vmem>>, vector<160x80xf32>
    %cst_153 = arith.constant dense<0.000000e+00> : vector<128x80xf32>
    %185 = tpu.matmul %181, %184, %cst_153 {dimension_numbers = #tpu.dot_dimension_numbers<[1], [0], [0], [1], [0, 0, 1, 1], [], []>} : vector<128x160xf32>, vector<160x80xf32>, vector<128x80xf32> -> vector<128x80xf32>
    %186 = arith.maximumf %183, %185 : vector<128x80xf32>
    %c128_154 = arith.constant 128 : index
    %c0_155 = arith.constant 0 : index
    %187 = vector.load %arg10[%c128_154, %c0_155] : memref<512x80xf32, #tpu.memory_space<vmem>>, vector<128x80xf32>
    tpu.vector_store %arg10[%c128_154, %c0_155], %186 {strides = array<i32>} : memref<512x80xf32, #tpu.memory_space<vmem>>, vector<128x80xf32>,
    %c256_156 = arith.constant 256 : index
    %c0_157 = arith.constant 0 : index
    %188 = vector.load %arg11[%c256_156, %c0_157] : memref<520x84xbf16, #tpu.memory_space<vmem>>, vector<128x84xbf16>
    %c257 = arith.constant 257 : index
    %c0_158 = arith.constant 0 : index
    %189 = vector.load %arg11[%c257, %c0_158] : memref<520x84xbf16, #tpu.memory_space<vmem>>, vector<128x84xbf16>
    %c258 = arith.constant 258 : index
    %c0_159 = arith.constant 0 : index
    %190 = vector.load %arg11[%c258, %c0_159] : memref<520x84xbf16, #tpu.memory_space<vmem>>, vector<128x84xbf16>
    %c259 = arith.constant 259 : index
    %c0_160 = arith.constant 0 : index
    %191 = vector.load %arg11[%c259, %c0_160] : memref<520x84xbf16, #tpu.memory_space<vmem>>, vector<128x84xbf16>
    %c260 = arith.constant 260 : index
    %c0_161 = arith.constant 0 : index
    %192 = vector.load %arg11[%c260, %c0_161] : memref<520x84xbf16, #tpu.memory_space<vmem>>, vector<128x84xbf16>
    %193 = tpu.concatenate %188, %189, %190, %191, %192 in 1 : vector<128x84xbf16>, vector<128x84xbf16>, vector<128x84xbf16>, vector<128x84xbf16>, vector<128x84xbf16> -> vector<128x420xbf16>
    %c0_162 = arith.constant 0 : index
    %c0_163 = arith.constant 0 : index
    %194 = vector.load %arg4[%c0_162, %c0_163] : memref<420x160xbf16, #tpu.memory_space<vmem>>, vector<420x160xbf16>
    %cst_164 = arith.constant dense<0.000000e+00> : vector<128x160xf32>
    %195 = tpu.matmul %193, %194, %cst_164 {dimension_numbers = #tpu.dot_dimension_numbers<[1], [0], [0], [1], [0, 0, 1, 1], [], []>} : vector<128x420xbf16>, vector<420x160xbf16>, vector<128x160xf32> -> vector<128x160xf32>
    %c0_165 = arith.constant 0 : index
    %c0_166 = arith.constant 0 : index
    %196 = vector.load %arg5[%c0_165, %c0_166] : memref<1x160xf32, #tpu.memory_space<vmem>>, vector<1x160xf32>
    %197 = vector.broadcast %196 : vector<1x160xf32> to vector<128x160xf32>
    %198 = arith.addf %195, %197 : vector<128x160xf32>
    %c0_167 = arith.constant 0 : index
    %c0_168 = arith.constant 0 : index
    %199 = vector.load %arg8[%c0_167, %c0_168] : memref<160x80xf32, #tpu.memory_space<vmem>>, vector<160x80xf32>
    %cst_169 = arith.constant dense<0.000000e+00> : vector<128x80xf32>
    %200 = tpu.matmul %198, %199, %cst_169 {dimension_numbers = #tpu.dot_dimension_numbers<[1], [0], [0], [1], [0, 0, 1, 1], [], []>} : vector<128x160xf32>, vector<160x80xf32>, vector<128x80xf32> -> vector<128x80xf32>
    %c0_170 = arith.constant 0 : index
    %c0_171 = arith.constant 0 : index
    %201 = vector.load %arg9[%c0_170, %c0_171] : memref<160x80xf32, #tpu.memory_space<vmem>>, vector<160x80xf32>
    %cst_172 = arith.constant dense<0.000000e+00> : vector<128x80xf32>
    %202 = tpu.matmul %198, %201, %cst_172 {dimension_numbers = #tpu.dot_dimension_numbers<[1], [0], [0], [1], [0, 0, 1, 1], [], []>} : vector<128x160xf32>, vector<160x80xf32>, vector<128x80xf32> -> vector<128x80xf32>
    %203 = arith.maximumf %200, %202 : vector<128x80xf32>
    %c256_173 = arith.constant 256 : index
    %c0_174 = arith.constant 0 : index
    %204 = vector.load %arg10[%c256_173, %c0_174] : memref<512x80xf32, #tpu.memory_space<vmem>>, vector<128x80xf32>
    tpu.vector_store %arg10[%c256_173, %c0_174], %203 {strides = array<i32>} : memref<512x80xf32, #tpu.memory_space<vmem>>, vector<128x80xf32>,
    %c384_175 = arith.constant 384 : index
    %c0_176 = arith.constant 0 : index
    %205 = vector.load %arg11[%c384_175, %c0_176] : memref<520x84xbf16, #tpu.memory_space<vmem>>, vector<128x84xbf16>
    %c385 = arith.constant 385 : index
    %c0_177 = arith.constant 0 : index
    %206 = vector.load %arg11[%c385, %c0_177] : memref<520x84xbf16, #tpu.memory_space<vmem>>, vector<128x84xbf16>
    %c386 = arith.constant 386 : index
    %c0_178 = arith.constant 0 : index
    %207 = vector.load %arg11[%c386, %c0_178] : memref<520x84xbf16, #tpu.memory_space<vmem>>, vector<128x84xbf16>
    %c387 = arith.constant 387 : index
    %c0_179 = arith.constant 0 : index
    %208 = vector.load %arg11[%c387, %c0_179] : memref<520x84xbf16, #tpu.memory_space<vmem>>, vector<128x84xbf16>
    %c388 = arith.constant 388 : index
    %c0_180 = arith.constant 0 : index
    %209 = vector.load %arg11[%c388, %c0_180] : memref<520x84xbf16, #tpu.memory_space<vmem>>, vector<128x84xbf16>
    %210 = tpu.concatenate %205, %206, %207, %208, %209 in 1 : vector<128x84xbf16>, vector<128x84xbf16>, vector<128x84xbf16>, vector<128x84xbf16>, vector<128x84xbf16> -> vector<128x420xbf16>
    %c0_181 = arith.constant 0 : index
    %c0_182 = arith.constant 0 : index
    %211 = vector.load %arg4[%c0_181, %c0_182] : memref<420x160xbf16, #tpu.memory_space<vmem>>, vector<420x160xbf16>
    %cst_183 = arith.constant dense<0.000000e+00> : vector<128x160xf32>
    %212 = tpu.matmul %210, %211, %cst_183 {dimension_numbers = #tpu.dot_dimension_numbers<[1], [0], [0], [1], [0, 0, 1, 1], [], []>} : vector<128x420xbf16>, vector<420x160xbf16>, vector<128x160xf32> -> vector<128x160xf32>
    %c0_184 = arith.constant 0 : index
    %c0_185 = arith.constant 0 : index
    %213 = vector.load %arg5[%c0_184, %c0_185] : memref<1x160xf32, #tpu.memory_space<vmem>>, vector<1x160xf32>
    %214 = vector.broadcast %213 : vector<1x160xf32> to vector<128x160xf32>
    %215 = arith.addf %212, %214 : vector<128x160xf32>
    %c0_186 = arith.constant 0 : index
    %c0_187 = arith.constant 0 : index
    %216 = vector.load %arg8[%c0_186, %c0_187] : memref<160x80xf32, #tpu.memory_space<vmem>>, vector<160x80xf32>
    %cst_188 = arith.constant dense<0.000000e+00> : vector<128x80xf32>
    %217 = tpu.matmul %215, %216, %cst_188 {dimension_numbers = #tpu.dot_dimension_numbers<[1], [0], [0], [1], [0, 0, 1, 1], [], []>} : vector<128x160xf32>, vector<160x80xf32>, vector<128x80xf32> -> vector<128x80xf32>
    %c0_189 = arith.constant 0 : index
    %c0_190 = arith.constant 0 : index
    %218 = vector.load %arg9[%c0_189, %c0_190] : memref<160x80xf32, #tpu.memory_space<vmem>>, vector<160x80xf32>
    %cst_191 = arith.constant dense<0.000000e+00> : vector<128x80xf32>
    %219 = tpu.matmul %215, %218, %cst_191 {dimension_numbers = #tpu.dot_dimension_numbers<[1], [0], [0], [1], [0, 0, 1, 1], [], []>} : vector<128x160xf32>, vector<160x80xf32>, vector<128x80xf32> -> vector<128x80xf32>
    %220 = arith.maximumf %217, %219 : vector<128x80xf32>
    %c384_192 = arith.constant 384 : index
    %c0_193 = arith.constant 0 : index
    %221 = vector.load %arg10[%c384_192, %c0_193] : memref<512x80xf32, #tpu.memory_space<vmem>>, vector<128x80xf32>
    tpu.vector_store %arg10[%c384_192, %c0_193], %220 {strides = array<i32>} : memref<512x80xf32, #tpu.memory_space<vmem>>, vector<128x80xf32>,
    return
  }
  func.func @transform_0(%arg0: i32) -> (i32, i32) {
    %c0_i32 = arith.constant 0 : i32
    %c0_i32_0 = arith.constant 0 : i32
    return %arg0, %c0_i32 : i32, i32
  }
  func.func @transform_1(%arg0: i32) -> (i32, i32) {
    %c0_i32 = arith.constant 0 : i32
    %c0_i32_0 = arith.constant 0 : i32
    %c0_i32_1 = arith.constant 0 : i32
    return %c0_i32, %c0_i32_0 : i32, i32
  }
  func.func @transform_2(%arg0: i32) -> (i32, i32) {
    %c0_i32 = arith.constant 0 : i32
    %c0_i32_0 = arith.constant 0 : i32
    %c0_i32_1 = arith.constant 0 : i32
    return %c0_i32, %c0_i32_0 : i32, i32
  }
  func.func @transform_3(%arg0: i32) -> (i32, i32) {
    %c0_i32 = arith.constant 0 : i32
    %c0_i32_0 = arith.constant 0 : i32
    %c0_i32_1 = arith.constant 0 : i32
    return %c0_i32, %c0_i32_0 : i32, i32
  }
  func.func @transform_4(%arg0: i32) -> (i32, i32) {
    %c0_i32 = arith.constant 0 : i32
    %c0_i32_0 = arith.constant 0 : i32
    %c0_i32_1 = arith.constant 0 : i32
    return %c0_i32, %c0_i32_0 : i32, i32
  }
  func.func @transform_5(%arg0: i32) -> (i32, i32) {
    %c0_i32 = arith.constant 0 : i32
    %c0_i32_0 = arith.constant 0 : i32
    %c0_i32_1 = arith.constant 0 : i32
    return %c0_i32, %c0_i32_0 : i32, i32
  }
  func.func @transform_6(%arg0: i32) -> (i32, i32) {
    %c0_i32 = arith.constant 0 : i32
    %c0_i32_0 = arith.constant 0 : i32
    %c0_i32_1 = arith.constant 0 : i32
    return %c0_i32, %c0_i32_0 : i32, i32
  }
  func.func @transform_7(%arg0: i32) -> (i32, i32) {
    %c0_i32 = arith.constant 0 : i32
    %c0_i32_0 = arith.constant 0 : i32
    %c0_i32_1 = arith.constant 0 : i32
    return %c0_i32, %c0_i32_0 : i32, i32
  }
  func.func @transform_8(%arg0: i32) -> (i32, i32) {
    %c0_i32 = arith.constant 0 : i32
    %c0_i32_0 = arith.constant 0 : i32
    %c0_i32_1 = arith.constant 0 : i32
    return %c0_i32, %c0_i32_0 : i32, i32
  }
  func.func @transform_9(%arg0: i32) -> (i32, i32) {
    %c0_i32 = arith.constant 0 : i32
    %c0_i32_0 = arith.constant 0 : i32
    return %arg0, %c0_i32 : i32, i32
  }
}

</mosaic_0001>

<llo_original>
// kernel: ann_forward.1
$region0: #{ann_forward.1}
  #allocation0 [shape = 'u32[]', space=smem, size = 0x4, offset = 0x4, fixed_abs, tag = 'smem constant byte address 0x4 - core index']
  #allocation1 [shape = 'u32[72,128]{1,0:T(1,128)}', space=vmem, size = 0x9000, scoped, tag = 'internal scratch']
  #allocation2 [shape = 'bf16[520,84]{1,0:T(8,128)(2,1)}', space=vmem, size = 0x20800, scoped, tag = 'scratch operand']
  %s0 = inlined_call_operand.vmem [shape: bf16[1024,160], index: 0, kind: input, shape index: {}]
  %s1 = inlined_call_operand.vmem [shape: bf16[160,168], index: 1, kind: input, shape index: {}]
  %s2 = inlined_call_operand.vmem [shape: f32[1,168], index: 2, kind: input, shape index: {}]
  %s3 = inlined_call_operand.vmem [shape: bf16[420,160], index: 3, kind: input, shape index: {}]
  %s4 = inlined_call_operand.vmem [shape: f32[1,160], index: 4, kind: input, shape index: {}]
  %s5 = inlined_call_operand.vmem [shape: bf16[168,84], index: 5, kind: input, shape index: {}]
  %s6 = inlined_call_operand.vmem [shape: bf16[168,84], index: 6, kind: input, shape index: {}]
  %s7 = inlined_call_operand.vmem [shape: f32[160,80], index: 7, kind: input, shape index: {}]
  %s8 = inlined_call_operand.vmem [shape: f32[160,80], index: 8, kind: input, shape index: {}]
  %s9 = inlined_call_operand.vmem [shape: f32[512,80], index: 9, kind: output, shape index: {}]
  %s10 = sld [smem:[#allocation0]]
  $region46: #{ann_forward.1} parent=0
    _
  %s12 = ssub.s32 1, %s10
  %s13 = scalar_select 0, %s12, %s10
  // Predicated region
  $region2: #{ann_forward.1} parent=0 // pred_check
    _
  $region3: #{ann_forward.1} parent=0 // pred_check_branch
    %15 = sbr.rel (0) target = $region5
  $region4: #{ann_forward.1} parent=0 // pred_region
    _
  $region5: #{ann_forward.1} parent=0 // pred_fallthru
    _
  // Predicated region
  $region6: #{ann_forward.1} parent=0 // pred_check
    _
  $region7: #{ann_forward.1} parent=0 // pred_check_branch
    %17 = sbr.rel (0) target = $region9
  $region8: #{ann_forward.1} parent=0 // pred_region
    _
  $region9: #{ann_forward.1} parent=0 // pred_fallthru
    _
  // Predicated region
  $region10: #{ann_forward.1} parent=0 // pred_check
    _
  $region11: #{ann_forward.1} parent=0 // pred_check_branch
    %19 = sbr.rel (0) target = $region13
  $region12: #{ann_forward.1} parent=0 // pred_region
    _
  $region13: #{ann_forward.1} parent=0 // pred_fallthru
    _
  // Predicated region
  $region14: #{ann_forward.1} parent=0 // pred_check
    _
  $region15: #{ann_forward.1} parent=0 // pred_check_branch
    %21 = sbr.rel (0) target = $region17
  $region16: #{ann_forward.1} parent=0 // pred_region
    _
  $region17: #{ann_forward.1} parent=0 // pred_fallthru
    _
  // Predicated region
  $region18: #{ann_forward.1} parent=0 // pred_check
    _
  $region19: #{ann_forward.1} parent=0 // pred_check_branch
    %23 = sbr.rel (0) target = $region21
  $region20: #{ann_forward.1} parent=0 // pred_region
    _
  $region21: #{ann_forward.1} parent=0 // pred_fallthru
    _
  // Predicated region
  $region22: #{ann_forward.1} parent=0 // pred_check
    _
  $region23: #{ann_forward.1} parent=0 // pred_check_branch
    %25 = sbr.rel (0) target = $region25
  $region24: #{ann_forward.1} parent=0 // pred_region
    _
  $region25: #{ann_forward.1} parent=0 // pred_fallthru
    _
  // Predicated region
  $region26: #{ann_forward.1} parent=0 // pred_check
    _
  $region27: #{ann_forward.1} parent=0 // pred_check_branch
    %27 = sbr.rel (0) target = $region29
  $region28: #{ann_forward.1} parent=0 // pred_region
    _
  $region29: #{ann_forward.1} parent=0 // pred_fallthru
    _
  // Predicated region
  $region30: #{ann_forward.1} parent=0 // pred_check
    _
  $region31: #{ann_forward.1} parent=0 // pred_check_branch
    %29 = sbr.rel (0) target = $region33
  $region32: #{ann_forward.1} parent=0 // pred_region
    _
  $region33: #{ann_forward.1} parent=0 // pred_fallthru
    _
  // Predicated region
  $region34: #{ann_forward.1} parent=0 // pred_check
    _
  $region35: #{ann_forward.1} parent=0 // pred_check_branch
    %31 = sbr.rel (0) target = $region37
  $region36: #{ann_forward.1} parent=0 // pred_region
    _
  $region37: #{ann_forward.1} parent=0 // pred_fallthru
    _
  %vm33 = vcmask 683008
  %34 = vst.msk [vmem:[#allocation2 + $0x100] sm:$0xf] %vm33, 0
  %v35 = vld [vmem:[%s0] sm:$0xff]
  %v36 = vld [vmem:[%s0 + $0x8] sm:$0xff]
  %v37 = vld [vmem:[%s0 + $0x10] sm:$0xff]
  %v38 = vld [vmem:[%s0 + $0x18] sm:$0xff]
  %v39 = vld [vmem:[%s0 + $0x20] sm:$0xff]
  %v40 = vld [vmem:[%s0 + $0x28] sm:$0xff]
  %v41 = vld [vmem:[%s0 + $0x30] sm:$0xff]
  %v42 = vld [vmem:[%s0 + $0x38] sm:$0xff]
  %v43 = vld [vmem:[%s0 + $0x40] sm:$0xff]
  %v44 = vld [vmem:[%s0 + $0x48] sm:$0xff]
  %v45 = vld [vmem:[%s0 + $0x50] sm:$0xff]
  %v46 = vld [vmem:[%s0 + $0x58] sm:$0xff]
  %v47 = vld [vmem:[%s0 + $0x60] sm:$0xff]
  %v48 = vld [vmem:[%s0 + $0x68] sm:$0xff]
  %v49 = vld [vmem:[%s0 + $0x70] sm:$0xff]
  %v50 = vld [vmem:[%s0 + $0x78] sm:$0xff]
  %v51 = vld [vmem:[%s1] sm:$0xff]
  %v52 = vld [vmem:[%s1 + $0x8] sm:$0xff]
  %v53 = vld [vmem:[%s1 + $0x10] sm:$0xff]
  %v54 = vld [vmem:[%s1 + $0x18] sm:$0xff]
  %v55 = vld [vmem:[%s1 + $0x20] sm:$0xff]
  %v56 = vld [vmem:[%s1 + $0x28] sm:$0xff]
  %v57 = vld [vmem:[%s1 + $0x30] sm:$0xff]
  %v58 = vld [vmem:[%s1 + $0x38] sm:$0xff]
  %v59 = vld [vmem:[%s1 + $0x40] sm:$0xff]
  %v60 = vld [vmem:[%s1 + $0x48] sm:$0xff]
  %v61 = vld [vmem:[%s1 + $0x50] sm:$0xff]
  %v62 = vld [vmem:[%s1 + $0x58] sm:$0xff]
  %v63 = vld [vmem:[%s1 + $0x60] sm:$0xff]
  %v64 = vld [vmem:[%s1 + $0x68] sm:$0xff]
  %v65 = vld [vmem:[%s1 + $0x70] sm:$0xff]
  %v66 = vld [vmem:[%s1 + $0x78] sm:$0xff]
  %v67 = vld [vmem:[%s1 + $0x80] sm:$0xff]
  %v68 = vld [vmem:[%s1 + $0x88] sm:$0xff]
  %v69 = vld [vmem:[%s1 + $0x90] sm:$0xff]
  %v70 = vld [vmem:[%s1 + $0x98] sm:$0xff]
  %v87 = vunpack.c.l.b16 %v35
  %v88 = vunpack.c.h.b16 %v35
  %v89 = vunpack.c.l.b16 %v36
  %v90 = vunpack.c.h.b16 %v36
  %v91 = vunpack.c.l.b16 %v37
  %v92 = vunpack.c.h.b16 %v37
  %v93 = vunpack.c.l.b16 %v38
  %v94 = vunpack.c.h.b16 %v38
  %v95 = vunpack.c.l.b16 %v39
  %v96 = vunpack.c.h.b16 %v39
  %v97 = vunpack.c.l.b16 %v40
  %v98 = vunpack.c.h.b16 %v40
  %v99 = vunpack.c.l.b16 %v41
  %v100 = vunpack.c.h.b16 %v41
  %v101 = vunpack.c.l.b16 %v42
  %v102 = vunpack.c.h.b16 %v42
  %v103 = vunpack.c.l.b16 %v43
  %v104 = vunpack.c.h.b16 %v43
  %v105 = vunpack.c.l.b16 %v44
  %v106 = vunpack.c.h.b16 %v44
  %v107 = vunpack.c.l.b16 %v45
  %v108 = vunpack.c.h.b16 %v45
  %v109 = vunpack.c.l.b16 %v46
  %v110 = vunpack.c.h.b16 %v46
  %v111 = vunpack.c.l.b16 %v47
  %v112 = vunpack.c.h.b16 %v47
  %v113 = vunpack.c.l.b16 %v48
  %v114 = vunpack.c.h.b16 %v48
  %v115 = vunpack.c.l.b16 %v49
  %v116 = vunpack.c.h.b16 %v49
  %v117 = vunpack.c.l.b16 %v50
  %v118 = vunpack.c.h.b16 %v50
  %v119 = vpack.c.b16 %v89, %v87
  %v120 = vpack.c.b16 %v90, %v88
  %v121 = vpack.c.b16 %v93, %v91
  %v122 = vpack.c.b16 %v94, %v92
  %v123 = vpack.c.b16 %v97, %v95
  %v124 = vpack.c.b16 %v98, %v96
  %v125 = vpack.c.b16 %v101, %v99
  %v126 = vpack.c.b16 %v102, %v100
  %v127 = vpack.c.b16 %v105, %v103
  %v128 = vpack.c.b16 %v106, %v104
  %v129 = vpack.c.b16 %v109, %v107
  %v130 = vpack.c.b16 %v110, %v108
  %v131 = vpack.c.b16 %v113, %v111
  %v132 = vpack.c.b16 %v114, %v112
  %v133 = vpack.c.b16 %v117, %v115
  %v134 = vpack.c.b16 %v118, %v116
  %v163 = vunpack.c.l.b16 %v51
  %v164 = vunpack.c.h.b16 %v51
  %v165 = vunpack.c.l.b16 %v52
  %v166 = vunpack.c.h.b16 %v52
  %v167 = vunpack.c.l.b16 %v53
  %v168 = vunpack.c.h.b16 %v53
  %v169 = vunpack.c.l.b16 %v54
  %v170 = vunpack.c.h.b16 %v54
  %v171 = vunpack.c.l.b16 %v55
  %v172 = vunpack.c.h.b16 %v55
  %v173 = vunpack.c.l.b16 %v56
  %v174 = vunpack.c.h.b16 %v56
  %v175 = vunpack.c.l.b16 %v57
  %v176 = vunpack.c.h.b16 %v57
  %v177 = vunpack.c.l.b16 %v58
  %v178 = vunpack.c.h.b16 %v58
  %v179 = vunpack.c.l.b16 %v59
  %v180 = vunpack.c.h.b16 %v59
  %v181 = vunpack.c.l.b16 %v60
  %v182 = vunpack.c.h.b16 %v60
  %v183 = vunpack.c.l.b16 %v61
  %v184 = vunpack.c.h.b16 %v61
  %v185 = vunpack.c.l.b16 %v62
  %v186 = vunpack.c.h.b16 %v62
  %v187 = vunpack.c.l.b16 %v63
  %v188 = vunpack.c.h.b16 %v63
  %v189 = vunpack.c.l.b16 %v64
  %v190 = vunpack.c.h.b16 %v64
  %v191 = vunpack.c.l.b16 %v65
  %v192 = vunpack.c.h.b16 %v65
  %v193 = vunpack.c.l.b16 %v66
  %v194 = vunpack.c.h.b16 %v66
  %v195 = vunpack.c.l.b16 %v67
  %v196 = vunpack.c.h.b16 %v67
  %v197 = vunpack.c.l.b16 %v68
  %v198 = vunpack.c.h.b16 %v68
  %v199 = vunpack.c.l.b16 %v69
  %v200 = vunpack.c.h.b16 %v69
  %v201 = vunpack.c.l.b16 %v70
  %v202 = vunpack.c.h.b16 %v70
  %v203 = vpack.c.b16 %v165, %v163
  %v204 = vpack.c.b16 %v166, %v164
  %v205 = vpack.c.b16 %v169, %v167
  %v206 = vpack.c.b16 %v170, %v168
  %v207 = vpack.c.b16 %v173, %v171
  %v208 = vpack.c.b16 %v174, %v172
  %v209 = vpack.c.b16 %v177, %v175
  %v210 = vpack.c.b16 %v178, %v176
  %v211 = vpack.c.b16 %v181, %v179
  %v212 = vpack.c.b16 %v182, %v180
  %v213 = vpack.c.b16 %v185, %v183
  %v214 = vpack.c.b16 %v186, %v184
  %v215 = vpack.c.b16 %v189, %v187
  %v216 = vpack.c.b16 %v190, %v188
  %v217 = vpack.c.b16 %v193, %v191
  %v218 = vpack.c.b16 %v194, %v192
  %v219 = vpack.c.b16 %v197, %v195
  %v220 = vpack.c.b16 %v198, %v196
  %v221 = vpack.c.b16 %v201, %v199
  %v222 = vpack.c.b16 %v202, %v200
  %vm243 = vcmask 261120
  %v245 = vsel %vm243, %v120, 0
  %v248 = vsel %vm243, %v122, 0
  %v251 = vsel %vm243, %v124, 0
  %v254 = vsel %vm243, %v126, 0
  %v257 = vsel %vm243, %v128, 0
  %v260 = vsel %vm243, %v130, 0
  %v263 = vsel %vm243, %v132, 0
  %v266 = vsel %vm243, %v134, 0
  %268 = vmatpush.bf16.msra.mxu0 %v217
  %269 = vmatpush.bf16.msra.mxu0 %v215
  %270 = vmatpush.bf16.msra.mxu0 %v213
  %271 = vmatpush.bf16.msra.mxu0 %v211
  %272 = vmatpush.bf16.msra.mxu0 %v209
  %273 = vmatpush.bf16.msra.mxu0 %v207
  %274 = vmatpush.bf16.msra.mxu0 %v205
  %275 = vmatpush.bf16.msra.mxu0 %v203
  %276 = vmatmul.bf16.gmra.mxu0 %v119
  %v277 = vpop.f32.mrf.mxu0
  %v278 = vadd.f32 0.0, %v277
  %v279 = vpop.f32.mrf.mxu0
  %v280 = vadd.f32 0.0, %v279
  %281 = vmatmul.bf16.gmra.mxu0 %v121
  %v282 = vpop.f32.mrf.mxu0
  %v283 = vadd.f32 0.0, %v282
  %v284 = vpop.f32.mrf.mxu0
  %v285 = vadd.f32 0.0, %v284
  %286 = vmatmul.bf16.gmra.mxu0 %v123
  %v287 = vpop.f32.mrf.mxu0
  %v288 = vadd.f32 0.0, %v287
  %v289 = vpop.f32.mrf.mxu0
  %v290 = vadd.f32 0.0, %v289
  %291 = vmatmul.bf16.gmra.mxu0 %v125
  %v292 = vpop.f32.mrf.mxu0
  %v293 = vadd.f32 0.0, %v292
  %v294 = vpop.f32.mrf.mxu0
  %v295 = vadd.f32 0.0, %v294
  %296 = vmatmul.bf16.gmra.mxu0 %v127
  %v297 = vpop.f32.mrf.mxu0
  %v298 = vadd.f32 0.0, %v297
  %v299 = vpop.f32.mrf.mxu0
  %v300 = vadd.f32 0.0, %v299
  %301 = vmatmul.bf16.gmra.mxu0 %v129
  %v302 = vpop.f32.mrf.mxu0
  %v303 = vadd.f32 0.0, %v302
  %v304 = vpop.f32.mrf.mxu0
  %v305 = vadd.f32 0.0, %v304
  %306 = vmatmul.bf16.gmra.mxu0 %v131
  %v307 = vpop.f32.mrf.mxu0
  %v308 = vadd.f32 0.0, %v307
  %v309 = vpop.f32.mrf.mxu0
  %v310 = vadd.f32 0.0, %v309
  %311 = vmatmul.bf16.gmra.mxu0 %v133
  %v312 = vpop.f32.mrf.mxu0
  %v313 = vadd.f32 0.0, %v312
  %v314 = vpop.f32.mrf.mxu0
  %v315 = vadd.f32 0.0, %v314
  %316 = vdwg.mxu0
  %317 = vmatpush.bf16.msra.mxu0 0
  %318 = vmatpush.bf16.msra.mxu0 0
  %319 = vmatpush.bf16.msra.mxu0 0
  %320 = vmatpush.bf16.msra.mxu0 0
  %321 = vmatpush.bf16.msra.mxu0 0
  %322 = vmatpush.bf16.msra.mxu0 0
  %323 = vmatpush.bf16.msra.mxu0 %v221
  %324 = vmatpush.bf16.msra.mxu0 %v219
  %325 = vmatmul.bf16.gmra.mxu0 %v245
  %v326 = vpop.f32.mrf.mxu0
  %v327 = vadd.f32 %v278, %v326
  %v328 = vpop.f32.mrf.mxu0
  %v329 = vadd.f32 %v280, %v328
  %330 = vmatmul.bf16.gmra.mxu0 %v248
  %v331 = vpop.f32.mrf.mxu0
  %v332 = vadd.f32 %v283, %v331
  %v333 = vpop.f32.mrf.mxu0
  %v334 = vadd.f32 %v285, %v333
  %335 = vmatmul.bf16.gmra.mxu0 %v251
  %v336 = vpop.f32.mrf.mxu0
  %v337 = vadd.f32 %v288, %v336
  %v338 = vpop.f32.mrf.mxu0
  %v339 = vadd.f32 %v290, %v338
  %340 = vmatmul.bf16.gmra.mxu0 %v254
  %v341 = vpop.f32.mrf.mxu0
  %v342 = vadd.f32 %v293, %v341
  %v343 = vpop.f32.mrf.mxu0
  %v344 = vadd.f32 %v295, %v343
  %345 = vmatmul.bf16.gmra.mxu0 %v257
  %v346 = vpop.f32.mrf.mxu0
  %v347 = vadd.f32 %v298, %v346
  %v348 = vpop.f32.mrf.mxu0
  %v349 = vadd.f32 %v300, %v348
  %350 = vmatmul.bf16.gmra.mxu0 %v260
  %v351 = vpop.f32.mrf.mxu0
  %v352 = vadd.f32 %v303, %v351
  %v353 = vpop.f32.mrf.mxu0
  %v354 = vadd.f32 %v305, %v353
  %355 = vmatmul.bf16.gmra.mxu0 %v263
  %v356 = vpop.f32.mrf.mxu0
  %v357 = vadd.f32 %v308, %v356
  %v358 = vpop.f32.mrf.mxu0
  %v359 = vadd.f32 %v310, %v358
  %360 = vmatmul.bf16.gmra.mxu0 %v266
  %v361 = vpop.f32.mrf.mxu0
  %v362 = vadd.f32 %v313, %v361
  %v363 = vpop.f32.mrf.mxu0
  %v364 = vadd.f32 %v315, %v363
  %365 = vdwg.mxu0
  %366 = vmatpush.bf16.msra.mxu0 %v218
  %367 = vmatpush.bf16.msra.mxu0 %v216
  %368 = vmatpush.bf16.msra.mxu0 %v214
  %369 = vmatpush.bf16.msra.mxu0 %v212
  %370 = vmatpush.bf16.msra.mxu0 %v210
  %371 = vmatpush.bf16.msra.mxu0 %v208
  %372 = vmatpush.bf16.msra.mxu0 %v206
  %373 = vmatpush.bf16.msra.mxu0 %v204
  %374 = vmatmul.bf16.gmra.mxu0 %v119
  %v375 = vpop.f32.mrf.mxu0
  %v376 = vadd.f32 0.0, %v375
  %v377 = vpop.f32.mrf.mxu0
  %v378 = vadd.f32 0.0, %v377
  %379 = vmatmul.bf16.gmra.mxu0 %v121
  %v380 = vpop.f32.mrf.mxu0
  %v381 = vadd.f32 0.0, %v380
  %v382 = vpop.f32.mrf.mxu0
  %v383 = vadd.f32 0.0, %v382
  %384 = vmatmul.bf16.gmra.mxu0 %v123
  %v385 = vpop.f32.mrf.mxu0
  %v386 = vadd.f32 0.0, %v385
  %v387 = vpop.f32.mrf.mxu0
  %v388 = vadd.f32 0.0, %v387
  %389 = vmatmul.bf16.gmra.mxu0 %v125
  %v390 = vpop.f32.mrf.mxu0
  %v391 = vadd.f32 0.0, %v390
  %v392 = vpop.f32.mrf.mxu0
  %v393 = vadd.f32 0.0, %v392
  %394 = vmatmul.bf16.gmra.mxu0 %v127
  %v395 = vpop.f32.mrf.mxu0
  %v396 = vadd.f32 0.0, %v395
  %v397 = vpop.f32.mrf.mxu0
  %v398 = vadd.f32 0.0, %v397
  %399 = vmatmul.bf16.gmra.mxu0 %v129
  %v400 = vpop.f32.mrf.mxu0
  %v401 = vadd.f32 0.0, %v400
  %v402 = vpop.f32.mrf.mxu0
  %v403 = vadd.f32 0.0, %v402
  %404 = vmatmul.bf16.gmra.mxu0 %v131
  %v405 = vpop.f32.mrf.mxu0
  %v406 = vadd.f32 0.0, %v405
  %v407 = vpop.f32.mrf.mxu0
  %v408 = vadd.f32 0.0, %v407
  %409 = vmatmul.bf16.gmra.mxu0 %v133
  %v410 = vpop.f32.mrf.mxu0
  %v411 = vadd.f32 0.0, %v410
  %v412 = vpop.f32.mrf.mxu0
  %v413 = vadd.f32 0.0, %v412
  %414 = vdwg.mxu0
  %415 = vmatpush.bf16.msra.mxu0 0
  %416 = vmatpush.bf16.msra.mxu0 0
  %417 = vmatpush.bf16.msra.mxu0 0
  %418 = vmatpush.bf16.msra.mxu0 0
  %419 = vmatpush.bf16.msra.mxu0 0
  %420 = vmatpush.bf16.msra.mxu0 0
  %421 = vmatpush.bf16.msra.mxu0 %v222
  %422 = vmatpush.bf16.msra.mxu0 %v220
  %423 = vmatmul.bf16.gmra.mxu0 %v245
  %v424 = vpop.f32.mrf.mxu0
  %v425 = vadd.f32 %v376, %v424
  %v426 = vpop.f32.mrf.mxu0
  %v427 = vadd.f32 %v378, %v426
  %428 = vmatmul.bf16.gmra.mxu0 %v248
  %v429 = vpop.f32.mrf.mxu0
  %v430 = vadd.f32 %v381, %v429
  %v431 = vpop.f32.mrf.mxu0
  %v432 = vadd.f32 %v383, %v431
  %433 = vmatmul.bf16.gmra.mxu0 %v251
  %v434 = vpop.f32.mrf.mxu0
  %v435 = vadd.f32 %v386, %v434
  %v436 = vpop.f32.mrf.mxu0
  %v437 = vadd.f32 %v388, %v436
  %438 = vmatmul.bf16.gmra.mxu0 %v254
  %v439 = vpop.f32.mrf.mxu0
  %v440 = vadd.f32 %v391, %v439
  %v441 = vpop.f32.mrf.mxu0
  %v442 = vadd.f32 %v393, %v441
  %443 = vmatmul.bf16.gmra.mxu0 %v257
  %v444 = vpop.f32.mrf.mxu0
  %v445 = vadd.f32 %v396, %v444
  %v446 = vpop.f32.mrf.mxu0
  %v447 = vadd.f32 %v398, %v446
  %448 = vmatmul.bf16.gmra.mxu0 %v260
  %v449 = vpop.f32.mrf.mxu0
  %v450 = vadd.f32 %v401, %v449
  %v451 = vpop.f32.mrf.mxu0
  %v452 = vadd.f32 %v403, %v451
  %453 = vmatmul.bf16.gmra.mxu0 %v263
  %v454 = vpop.f32.mrf.mxu0
  %v455 = vadd.f32 %v406, %v454
  %v456 = vpop.f32.mrf.mxu0
  %v457 = vadd.f32 %v408, %v456
  %458 = vmatmul.bf16.gmra.mxu0 %v266
  %v459 = vpop.f32.mrf.mxu0
  %v460 = vadd.f32 %v411, %v459
  %v461 = vpop.f32.mrf.mxu0
  %v462 = vadd.f32 %v413, %v461
  %463 = vdwg.mxu0
  %v464 = vmax.f32 %v327, %v347
  %v465 = vmax.f32 %v425, %v445
  %v466 = vmax.f32 %v329, %v349
  %v467 = vmax.f32 %v427, %v447
  %v468 = vmax.f32 %v332, %v352
  %v469 = vmax.f32 %v430, %v450
  %v470 = vmax.f32 %v334, %v354
  %v471 = vmax.f32 %v432, %v452
  %v472 = vmax.f32 %v337, %v357
  %v473 = vmax.f32 %v435, %v455
  %v474 = vmax.f32 %v339, %v359
  %v475 = vmax.f32 %v437, %v457
  %v476 = vmax.f32 %v342, %v362
  %v477 = vmax.f32 %v440, %v460
  %v478 = vmax.f32 %v344, %v364
  %v479 = vmax.f32 %v442, %v462
  %v480 = vld [vmem:[%s2] sm:$0x3]
  %v482 = vperm.slane %v480, 0
  %v483 = vperm.slane %v480, 1
  %v486 = vadd.f32 %v464, %v482
  %v487 = vadd.f32 %v465, %v483
  %v488 = vadd.f32 %v466, %v482
  %v489 = vadd.f32 %v467, %v483
  %v490 = vadd.f32 %v468, %v482
  %v491 = vadd.f32 %v469, %v483
  %v492 = vadd.f32 %v470, %v482
  %v493 = vadd.f32 %v471, %v483
  %v494 = vadd.f32 %v472, %v482
  %v495 = vadd.f32 %v473, %v483
  %v496 = vadd.f32 %v474, %v482
  %v497 = vadd.f32 %v475, %v483
  %v498 = vadd.f32 %v476, %v482
  %v499 = vadd.f32 %v477, %v483
  %v500 = vadd.f32 %v478, %v482
  %v501 = vadd.f32 %v479, %v483
  %v502 = vmax.f32 %v486, 0.0
  %v503 = vmax.f32 %v487, 0.0
  %v504 = vmax.f32 %v488, 0.0
  %v505 = vmax.f32 %v489, 0.0
  %v506 = vmax.f32 %v490, 0.0
  %v507 = vmax.f32 %v491, 0.0
  %v508 = vmax.f32 %v492, 0.0
  %v509 = vmax.f32 %v493, 0.0
  %v510 = vmax.f32 %v494, 0.0
  %v511 = vmax.f32 %v495, 0.0
  %v512 = vmax.f32 %v496, 0.0
  %v513 = vmax.f32 %v497, 0.0
  %v514 = vmax.f32 %v498, 0.0
  %v515 = vmax.f32 %v499, 0.0
  %v516 = vmax.f32 %v500, 0.0
  %v517 = vmax.f32 %v501, 0.0
  %v518 = vpack.c.bf16 %v504, %v502
  %v519 = vpack.c.bf16 %v505, %v503
  %v520 = vpack.c.bf16 %v508, %v506
  %v521 = vpack.c.bf16 %v509, %v507
  %v522 = vpack.c.bf16 %v512, %v510
  %v523 = vpack.c.bf16 %v513, %v511
  %v524 = vpack.c.bf16 %v516, %v514
  %v525 = vpack.c.bf16 %v517, %v515
  %v526 = vld [vmem:[%s5] sm:$0xf]
  %v527 = vld [vmem:[%s5 + $0x4] sm:$0xf]
  %v528 = vld [vmem:[%s5 + $0x8] sm:$0xf]
  %v529 = vld [vmem:[%s5 + $0xc] sm:$0xf]
  %v530 = vld [vmem:[%s5 + $0x10] sm:$0xf]
  %v531 = vld [vmem:[%s5 + $0x14] sm:$0xf]
  %v532 = vld [vmem:[%s5 + $0x18] sm:$0xf]
  %v533 = vld [vmem:[%s5 + $0x1c] sm:$0xf]
  %v534 = vld [vmem:[%s5 + $0x20] sm:$0xf]
  %v535 = vld [vmem:[%s5 + $0x24] sm:$0xf]
  %v536 = vld [vmem:[%s5 + $0x28] sm:$0xf]
  %v537 = vld [vmem:[%s5 + $0x2c] sm:$0xf]
  %v538 = vld [vmem:[%s5 + $0x30] sm:$0xf]
  %v539 = vld [vmem:[%s5 + $0x34] sm:$0xf]
  %v540 = vld [vmem:[%s5 + $0x38] sm:$0xf]
  %v541 = vld [vmem:[%s5 + $0x3c] sm:$0xf]
  %v542 = vld [vmem:[%s5 + $0x40] sm:$0xf]
  %v543 = vld [vmem:[%s5 + $0x44] sm:$0xf]
  %v544 = vld [vmem:[%s5 + $0x48] sm:$0xf]
  %v545 = vld [vmem:[%s5 + $0x4c] sm:$0xf]
  %v546 = vld [vmem:[%s5 + $0x50] sm:$0xf]
  %v568 = vunpack.c.l.b16 %v526
  %v569 = vunpack.c.l.b16 %v527
  %v570 = vunpack.c.l.b16 %v528
  %v571 = vunpack.c.l.b16 %v529
  %v572 = vunpack.c.l.b16 %v530
  %v573 = vunpack.c.l.b16 %v531
  %v574 = vunpack.c.l.b16 %v532
  %v575 = vunpack.c.l.b16 %v533
  %v576 = vunpack.c.l.b16 %v534
  %v577 = vunpack.c.l.b16 %v535
  %v578 = vunpack.c.l.b16 %v536
  %v579 = vunpack.c.l.b16 %v537
  %v580 = vunpack.c.l.b16 %v538
  %v581 = vunpack.c.l.b16 %v539
  %v582 = vunpack.c.l.b16 %v540
  %v583 = vunpack.c.l.b16 %v541
  %v584 = vunpack.c.l.b16 %v542
  %v585 = vunpack.c.l.b16 %v543
  %v586 = vunpack.c.l.b16 %v544
  %v587 = vunpack.c.l.b16 %v545
  %v588 = vunpack.c.l.b16 %v546
  %v589 = vpack.c.b16 %v569, %v568
  %v590 = vpack.c.b16 %v571, %v570
  %v591 = vpack.c.b16 %v573, %v572
  %v592 = vpack.c.b16 %v575, %v574
  %v593 = vpack.c.b16 %v577, %v576
  %v594 = vpack.c.b16 %v579, %v578
  %v595 = vpack.c.b16 %v581, %v580
  %v596 = vpack.c.b16 %v583, %v582
  %v597 = vpack.c.b16 %v585, %v584
  %v598 = vpack.c.b16 %v587, %v586
  %v599 = vpack.c.b16 %v588, %v588
  %vm610 = vcmask 326656
  %v612 = vsel %vm610, %v519, 0
  %v615 = vsel %vm610, %v521, 0
  %v618 = vsel %vm610, %v523, 0
  %v621 = vsel %vm610, %v525, 0
  %vm623 = vcmask 1043456
  %v625 = vsel %vm623, %v599, 0
  %627 = vmatpush.bf16.msra.mxu0 %v596
  %628 = vmatpush.bf16.msra.mxu0 %v595
  %629 = vmatpush.bf16.msra.mxu0 %v594
  %630 = vmatpush.bf16.msra.mxu0 %v593
  %631 = vmatpush.bf16.msra.mxu0 %v592
  %632 = vmatpush.bf16.msra.mxu0 %v591
  %633 = vmatpush.bf16.msra.mxu0 %v590
  %634 = vmatpush.bf16.msra.mxu0 %v589
  %635 = vmatmul.bf16.gmra.mxu0 %v518
  %v636 = vpop.f32.mrf.mxu0
  %v637 = vadd.f32 0.0, %v636
  %v638 = vpop.f32.mrf.mxu0
  %v639 = vadd.f32 0.0, %v638
  %640 = vmatmul.bf16.gmra.mxu0 %v520
  %v641 = vpop.f32.mrf.mxu0
  %v642 = vadd.f32 0.0, %v641
  %v643 = vpop.f32.mrf.mxu0
  %v644 = vadd.f32 0.0, %v643
  %645 = vmatmul.bf16.gmra.mxu0 %v522
  %v646 = vpop.f32.mrf.mxu0
  %v647 = vadd.f32 0.0, %v646
  %v648 = vpop.f32.mrf.mxu0
  %v649 = vadd.f32 0.0, %v648
  %650 = vmatmul.bf16.gmra.mxu0 %v524
  %v651 = vpop.f32.mrf.mxu0
  %v652 = vadd.f32 0.0, %v651
  %v653 = vpop.f32.mrf.mxu0
  %v654 = vadd.f32 0.0, %v653
  %655 = vdwg.mxu0
  %656 = vmatpush.bf16.msra.mxu0 0
  %657 = vmatpush.bf16.msra.mxu0 0
  %658 = vmatpush.bf16.msra.mxu0 0
  %659 = vmatpush.bf16.msra.mxu0 0
  %660 = vmatpush.bf16.msra.mxu0 0
  %661 = vmatpush.bf16.msra.mxu0 %v625
  %662 = vmatpush.bf16.msra.mxu0 %v598
  %663 = vmatpush.bf16.msra.mxu0 %v597
  %664 = vmatmul.bf16.gmra.mxu0 %v612
  %v665 = vpop.f32.mrf.mxu0
  %v666 = vadd.f32 %v637, %v665
  %v667 = vpop.f32.mrf.mxu0
  %v668 = vadd.f32 %v639, %v667
  %669 = vmatmul.bf16.gmra.mxu0 %v615
  %v670 = vpop.f32.mrf.mxu0
  %v671 = vadd.f32 %v642, %v670
  %v672 = vpop.f32.mrf.mxu0
  %v673 = vadd.f32 %v644, %v672
  %674 = vmatmul.bf16.gmra.mxu0 %v618
  %v675 = vpop.f32.mrf.mxu0
  %v676 = vadd.f32 %v647, %v675
  %v677 = vpop.f32.mrf.mxu0
  %v678 = vadd.f32 %v649, %v677
  %679 = vmatmul.bf16.gmra.mxu0 %v621
  %v680 = vpop.f32.mrf.mxu0
  %v681 = vadd.f32 %v652, %v680
  %v682 = vpop.f32.mrf.mxu0
  %v683 = vadd.f32 %v654, %v682
  %684 = vdwg.mxu0
  %v685 = vld [vmem:[%s6] sm:$0xf]
  %v686 = vld [vmem:[%s6 + $0x4] sm:$0xf]
  %v687 = vld [vmem:[%s6 + $0x8] sm:$0xf]
  %v688 = vld [vmem:[%s6 + $0xc] sm:$0xf]
  %v689 = vld [vmem:[%s6 + $0x10] sm:$0xf]
  %v690 = vld [vmem:[%s6 + $0x14] sm:$0xf]
  %v691 = vld [vmem:[%s6 + $0x18] sm:$0xf]
  %v692 = vld [vmem:[%s6 + $0x1c] sm:$0xf]
  %v693 = vld [vmem:[%s6 + $0x20] sm:$0xf]
  %v694 = vld [vmem:[%s6 + $0x24] sm:$0xf]
  %v695 = vld [vmem:[%s6 + $0x28] sm:$0xf]
  %v696 = vld [vmem:[%s6 + $0x2c] sm:$0xf]
  %v697 = vld [vmem:[%s6 + $0x30] sm:$0xf]
  %v698 = vld [vmem:[%s6 + $0x34] sm:$0xf]
  %v699 = vld [vmem:[%s6 + $0x38] sm:$0xf]
  %v700 = vld [vmem:[%s6 + $0x3c] sm:$0xf]
  %v701 = vld [vmem:[%s6 + $0x40] sm:$0xf]
  %v702 = vld [vmem:[%s6 + $0x44] sm:$0xf]
  %v703 = vld [vmem:[%s6 + $0x48] sm:$0xf]
  %v704 = vld [vmem:[%s6 + $0x4c] sm:$0xf]
  %v705 = vld [vmem:[%s6 + $0x50] sm:$0xf]
  %v727 = vunpack.c.l.b16 %v685
  %v728 = vunpack.c.l.b16 %v686
  %v729 = vunpack.c.l.b16 %v687
  %v730 = vunpack.c.l.b16 %v688
  %v731 = vunpack.c.l.b16 %v689
  %v732 = vunpack.c.l.b16 %v690
  %v733 = vunpack.c.l.b16 %v691
  %v734 = vunpack.c.l.b16 %v692
  %v735 = vunpack.c.l.b16 %v693
  %v736 = vunpack.c.l.b16 %v694
  %v737 = vunpack.c.l.b16 %v695
  %v738 = vunpack.c.l.b16 %v696
  %v739 = vunpack.c.l.b16 %v697
  %v740 = vunpack.c.l.b16 %v698
  %v741 = vunpack.c.l.b16 %v699
  %v742 = vunpack.c.l.b16 %v700
  %v743 = vunpack.c.l.b16 %v701
  %v744 = vunpack.c.l.b16 %v702
  %v745 = vunpack.c.l.b16 %v703
  %v746 = vunpack.c.l.b16 %v704
  %v747 = vunpack.c.l.b16 %v705
  %v748 = vpack.c.b16 %v728, %v727
  %v749 = vpack.c.b16 %v730, %v729
  %v750 = vpack.c.b16 %v732, %v731
  %v751 = vpack.c.b16 %v734, %v733
  %v752 = vpack.c.b16 %v736, %v735
  %v753 = vpack.c.b16 %v738, %v737
  %v754 = vpack.c.b16 %v740, %v739
  %v755 = vpack.c.b16 %v742, %v741
  %v756 = vpack.c.b16 %v744, %v743
  %v757 = vpack.c.b16 %v746, %v745
  %v758 = vpack.c.b16 %v747, %v747
  %v770 = vsel %vm623, %v758, 0
  %772 = vmatpush.bf16.msra.mxu0 %v755
  %773 = vmatpush.bf16.msra.mxu0 %v754
  %774 = vmatpush.bf16.msra.mxu0 %v753
  %775 = vmatpush.bf16.msra.mxu0 %v752
  %776 = vmatpush.bf16.msra.mxu0 %v751
  %777 = vmatpush.bf16.msra.mxu0 %v750
  %778 = vmatpush.bf16.msra.mxu0 %v749
  %779 = vmatpush.bf16.msra.mxu0 %v748
  %780 = vmatmul.bf16.gmra.mxu0 %v518
  %v781 = vpop.f32.mrf.mxu0
  %v782 = vadd.f32 0.0, %v781
  %v783 = vpop.f32.mrf.mxu0
  %v784 = vadd.f32 0.0, %v783
  %785 = vmatmul.bf16.gmra.mxu0 %v520
  %v786 = vpop.f32.mrf.mxu0
  %v787 = vadd.f32 0.0, %v786
  %v788 = vpop.f32.mrf.mxu0
  %v789 = vadd.f32 0.0, %v788
  %790 = vmatmul.bf16.gmra.mxu0 %v522
  %v791 = vpop.f32.mrf.mxu0
  %v792 = vadd.f32 0.0, %v791
  %v793 = vpop.f32.mrf.mxu0
  %v794 = vadd.f32 0.0, %v793
  %795 = vmatmul.bf16.gmra.mxu0 %v524
  %v796 = vpop.f32.mrf.mxu0
  %v797 = vadd.f32 0.0, %v796
  %v798 = vpop.f32.mrf.mxu0
  %v799 = vadd.f32 0.0, %v798
  %800 = vdwg.mxu0
  %801 = vmatpush.bf16.msra.mxu0 0
  %802 = vmatpush.bf16.msra.mxu0 0
  %803 = vmatpush.bf16.msra.mxu0 0
  %804 = vmatpush.bf16.msra.mxu0 0
  %805 = vmatpush.bf16.msra.mxu0 0
  %806 = vmatpush.bf16.msra.mxu0 %v770
  %807 = vmatpush.bf16.msra.mxu0 %v757
  %808 = vmatpush.bf16.msra.mxu0 %v756
  %809 = vmatmul.bf16.gmra.mxu0 %v612
  %v810 = vpop.f32.mrf.mxu0
  %v811 = vadd.f32 %v782, %v810
  %v812 = vpop.f32.mrf.mxu0
  %v813 = vadd.f32 %v784, %v812
  %814 = vmatmul.bf16.gmra.mxu0 %v615
  %v815 = vpop.f32.mrf.mxu0
  %v816 = vadd.f32 %v787, %v815
  %v817 = vpop.f32.mrf.mxu0
  %v818 = vadd.f32 %v789, %v817
  %819 = vmatmul.bf16.gmra.mxu0 %v618
  %v820 = vpop.f32.mrf.mxu0
  %v821 = vadd.f32 %v792, %v820
  %v822 = vpop.f32.mrf.mxu0
  %v823 = vadd.f32 %v794, %v822
  %824 = vmatmul.bf16.gmra.mxu0 %v621
  %v825 = vpop.f32.mrf.mxu0
  %v826 = vadd.f32 %v797, %v825
  %v827 = vpop.f32.mrf.mxu0
  %v828 = vadd.f32 %v799, %v827
  %829 = vdwg.mxu0
  %v830 = vmax.f32 %v666, %v811
  %v831 = vmax.f32 %v668, %v813
  %v832 = vmax.f32 %v671, %v816
  %v833 = vmax.f32 %v673, %v818
  %v834 = vmax.f32 %v676, %v821
  %v835 = vmax.f32 %v678, %v823
  %v836 = vmax.f32 %v681, %v826
  %v837 = vmax.f32 %v683, %v828
  %v838 = vpack.c.bf16 %v830, %v830
  %v839 = vpack.c.bf16 %v831, %v831
  %v840 = vpack.c.bf16 %v832, %v832
  %v841 = vpack.c.bf16 %v833, %v833
  %v842 = vpack.c.bf16 %v834, %v834
  %v843 = vpack.c.bf16 %v835, %v835
  %v844 = vpack.c.bf16 %v836, %v836
  %v845 = vpack.c.bf16 %v837, %v837
  %846 = vst.msk [vmem:[#allocation2] sm:$0xf] %vm33, %v838
  %847 = vst.msk [vmem:[#allocation2 + $0x4] sm:$0xf] %vm33, %v839
  %848 = vst.msk [vmem:[#allocation2 + $0x8] sm:$0xf] %vm33, %v840
  %849 = vst.msk [vmem:[#allocation2 + $0xc] sm:$0xf] %vm33, %v841
  %850 = vst.msk [vmem:[#allocation2 + $0x10] sm:$0xf] %vm33, %v842
  %851 = vst.msk [vmem:[#allocation2 + $0x14] sm:$0xf] %vm33, %v843
  %852 = vst.msk [vmem:[#allocation2 + $0x18] sm:$0xf] %vm33, %v844
  %853 = vst.msk [vmem:[#allocation2 + $0x1c] sm:$0xf] %vm33, %v845
  %v854 = vld [vmem:[%s0 + $0x80] sm:$0xff]
  %v855 = vld [vmem:[%s0 + $0x88] sm:$0xff]
  %v856 = vld [vmem:[%s0 + $0x90] sm:$0xff]
  %v857 = vld [vmem:[%s0 + $0x98] sm:$0xff]
  %v858 = vld [vmem:[%s0 + $0xa0] sm:$0xff]
  %v859 = vld [vmem:[%s0 + $0xa8] sm:$0xff]
  %v860 = vld [vmem:[%s0 + $0xb0] sm:$0xff]
  %v861 = vld [vmem:[%s0 + $0xb8] sm:$0xff]
  %v862 = vld [vmem:[%s0 + $0xc0] sm:$0xff]
  %v863 = vld [vmem:[%s0 + $0xc8] sm:$0xff]
  %v864 = vld [vmem:[%s0 + $0xd0] sm:$0xff]
  %v865 = vld [vmem:[%s0 + $0xd8] sm:$0xff]
  %v866 = vld [vmem:[%s0 + $0xe0] sm:$0xff]
  %v867 = vld [vmem:[%s0 + $0xe8] sm:$0xff]
  %v868 = vld [vmem:[%s0 + $0xf0] sm:$0xff]
  %v869 = vld [vmem:[%s0 + $0xf8] sm:$0xff]
  %v870 = vld [vmem:[%s1] sm:$0xff]
  %v871 = vld [vmem:[%s1 + $0x8] sm:$0xff]
  %v872 = vld [vmem:[%s1 + $0x10] sm:$0xff]
  %v873 = vld [vmem:[%s1 + $0x18] sm:$0xff]
  %v874 = vld [vmem:[%s1 + $0x20] sm:$0xff]
  %v875 = vld [vmem:[%s1 + $0x28] sm:$0xff]
  %v876 = vld [vmem:[%s1 + $0x30] sm:$0xff]
  %v877 = vld [vmem:[%s1 + $0x38] sm:$0xff]
  %v878 = vld [vmem:[%s1 + $0x40] sm:$0xff]
  %v879 = vld [vmem:[%s1 + $0x48] sm:$0xff]
  %v880 = vld [vmem:[%s1 + $0x50] sm:$0xff]
  %v881 = vld [vmem:[%s1 + $0x58] sm:$0xff]
  %v882 = vld [vmem:[%s1 + $0x60] sm:$0xff]
  %v883 = vld [vmem:[%s1 + $0x68] sm:$0xff]
  %v884 = vld [vmem:[%s1 + $0x70] sm:$0xff]
  %v885 = vld [vmem:[%s1 + $0x78] sm:$0xff]
  %v886 = vld [vmem:[%s1 + $0x80] sm:$0xff]
  %v887 = vld [vmem:[%s1 + $0x88] sm:$0xff]
  %v888 = vld [vmem:[%s1 + $0x90] sm:$0xff]
  %v889 = vld [vmem:[%s1 + $0x98] sm:$0xff]
  %v906 = vunpack.c.l.b16 %v854
  %v907 = vunpack.c.h.b16 %v854
  %v908 = vunpack.c.l.b16 %v855
  %v909 = vunpack.c.h.b16 %v855
  %v910 = vunpack.c.l.b16 %v856
  %v911 = vunpack.c.h.b16 %v856
  %v912 = vunpack.c.l.b16 %v857
  %v913 = vunpack.c.h.b16 %v857
  %v914 = vunpack.c.l.b16 %v858
  %v915 = vunpack.c.h.b16 %v858
  %v916 = vunpack.c.l.b16 %v859
  %v917 = vunpack.c.h.b16 %v859
  %v918 = vunpack.c.l.b16 %v860
  %v919 = vunpack.c.h.b16 %v860
  %v920 = vunpack.c.l.b16 %v861
  %v921 = vunpack.c.h.b16 %v861
  %v922 = vunpack.c.l.b16 %v862
  %v923 = vunpack.c.h.b16 %v862
  %v924 = vunpack.c.l.b16 %v863
  %v925 = vunpack.c.h.b16 %v863
  %v926 = vunpack.c.l.b16 %v864
  %v927 = vunpack.c.h.b16 %v864
  %v928 = vunpack.c.l.b16 %v865
  %v929 = vunpack.c.h.b16 %v865
  %v930 = vunpack.c.l.b16 %v866
  %v931 = vunpack.c.h.b16 %v866
  %v932 = vunpack.c.l.b16 %v867
  %v933 = vunpack.c.h.b16 %v867
  %v934 = vunpack.c.l.b16 %v868
  %v935 = vunpack.c.h.b16 %v868
  %v936 = vunpack.c.l.b16 %v869
  %v937 = vunpack.c.h.b16 %v869
  %v938 = vpack.c.b16 %v908, %v906
  %v939 = vpack.c.b16 %v909, %v907
  %v940 = vpack.c.b16 %v912, %v910
  %v941 = vpack.c.b16 %v913, %v911
  %v942 = vpack.c.b16 %v916, %v914
  %v943 = vpack.c.b16 %v917, %v915
  %v944 = vpack.c.b16 %v920, %v918
  %v945 = vpack.c.b16 %v921, %v919
  %v946 = vpack.c.b16 %v924, %v922
  %v947 = vpack.c.b16 %v925, %v923
  %v948 = vpack.c.b16 %v928, %v926
  %v949 = vpack.c.b16 %v929, %v927
  %v950 = vpack.c.b16 %v932, %v930
  %v951 = vpack.c.b16 %v933, %v931
  %v952 = vpack.c.b16 %v936, %v934
  %v953 = vpack.c.b16 %v937, %v935
  %v982 = vunpack.c.l.b16 %v870
  %v983 = vunpack.c.h.b16 %v870
  %v984 = vunpack.c.l.b16 %v871
  %v985 = vunpack.c.h.b16 %v871
  %v986 = vunpack.c.l.b16 %v872
  %v987 = vunpack.c.h.b16 %v872
  %v988 = vunpack.c.l.b16 %v873
  %v989 = vunpack.c.h.b16 %v873
  %v990 = vunpack.c.l.b16 %v874
  %v991 = vunpack.c.h.b16 %v874
  %v992 = vunpack.c.l.b16 %v875
  %v993 = vunpack.c.h.b16 %v875
  %v994 = vunpack.c.l.b16 %v876
  %v995 = vunpack.c.h.b16 %v876
  %v996 = vunpack.c.l.b16 %v877
  %v997 = vunpack.c.h.b16 %v877
  %v998 = vunpack.c.l.b16 %v878
  %v999 = vunpack.c.h.b16 %v878
  %v1000 = vunpack.c.l.b16 %v879
  %v1001 = vunpack.c.h.b16 %v879
  %v1002 = vunpack.c.l.b16 %v880
  %v1003 = vunpack.c.h.b16 %v880
  %v1004 = vunpack.c.l.b16 %v881
  %v1005 = vunpack.c.h.b16 %v881
  %v1006 = vunpack.c.l.b16 %v882
  %v1007 = vunpack.c.h.b16 %v882
  %v1008 = vunpack.c.l.b16 %v883
  %v1009 = vunpack.c.h.b16 %v883
  %v1010 = vunpack.c.l.b16 %v884
  %v1011 = vunpack.c.h.b16 %v884
  %v1012 = vunpack.c.l.b16 %v885
  %v1013 = vunpack.c.h.b16 %v885
  %v1014 = vunpack.c.l.b16 %v886
  %v1015 = vunpack.c.h.b16 %v886
  %v1016 = vunpack.c.l.b16 %v887
  %v1017 = vunpack.c.h.b16 %v887
  %v1018 = vunpack.c.l.b16 %v888
  %v1019 = vunpack.c.h.b16 %v888
  %v1020 = vunpack.c.l.b16 %v889
  %v1021 = vunpack.c.h.b16 %v889
  %v1022 = vpack.c.b16 %v984, %v982
  %v1023 = vpack.c.b16 %v985, %v983
  %v1024 = vpack.c.b16 %v988, %v986
  %v1025 = vpack.c.b16 %v989, %v987
  %v1026 = vpack.c.b16 %v992, %v990
  %v1027 = vpack.c.b16 %v993, %v991
  %v1028 = vpack.c.b16 %v996, %v994
  %v1029 = vpack.c.b16 %v997, %v995
  %v1030 = vpack.c.b16 %v1000, %v998
  %v1031 = vpack.c.b16 %v1001, %v999
  %v1032 = vpack.c.b16 %v1004, %v1002
  %v1033 = vpack.c.b16 %v1005, %v1003
  %v1034 = vpack.c.b16 %v1008, %v1006
  %v1035 = vpack.c.b16 %v1009, %v1007
  %v1036 = vpack.c.b16 %v1012, %v1010
  %v1037 = vpack.c.b16 %v1013, %v1011
  %v1038 = vpack.c.b16 %v1016, %v1014
  %v1039 = vpack.c.b16 %v1017, %v1015
  %v1040 = vpack.c.b16 %v1020, %v1018
  %v1041 = vpack.c.b16 %v1021, %v1019
  %v1063 = vsel %vm243, %v939, 0
  %v1066 = vsel %vm243, %v941, 0
  %v1069 = vsel %vm243, %v943, 0
  %v1072 = vsel %vm243, %v945, 0
  %v1075 = vsel %vm243, %v947, 0
  %v1078 = vsel %vm243, %v949, 0
  %v1081 = vsel %vm243, %v951, 0
  %v1084 = vsel %vm243, %v953, 0
  %1086 = vmatpush.bf16.msra.mxu0 %v1036
  %1087 = vmatpush.bf16.msra.mxu0 %v1034
  %1088 = vmatpush.bf16.msra.mxu0 %v1032
  %1089 = vmatpush.bf16.msra.mxu0 %v1030
  %1090 = vmatpush.bf16.msra.mxu0 %v1028
  %1091 = vmatpush.bf16.msra.mxu0 %v1026
  %1092 = vmatpush.bf16.msra.mxu0 %v1024
  %1093 = vmatpush.bf16.msra.mxu0 %v1022
  %1094 = vmatmul.bf16.gmra.mxu0 %v938
  %v1095 = vpop.f32.mrf.mxu0
  %v1096 = vadd.f32 0.0, %v1095
  %v1097 = vpop.f32.mrf.mxu0
  %v1098 = vadd.f32 0.0, %v1097
  %1099 = vmatmul.bf16.gmra.mxu0 %v940
  %v1100 = vpop.f32.mrf.mxu0
  %v1101 = vadd.f32 0.0, %v1100
  %v1102 = vpop.f32.mrf.mxu0
  %v1103 = vadd.f32 0.0, %v1102
  %1104 = vmatmul.bf16.gmra.mxu0 %v942
  %v1105 = vpop.f32.mrf.mxu0
  %v1106 = vadd.f32 0.0, %v1105
  %v1107 = vpop.f32.mrf.mxu0
  %v1108 = vadd.f32 0.0, %v1107
  %1109 = vmatmul.bf16.gmra.mxu0 %v944
  %v1110 = vpop.f32.mrf.mxu0
  %v1111 = vadd.f32 0.0, %v1110
  %v1112 = vpop.f32.mrf.mxu0
  %v1113 = vadd.f32 0.0, %v1112
  %1114 = vmatmul.bf16.gmra.mxu0 %v946
  %v1115 = vpop.f32.mrf.mxu0
  %v1116 = vadd.f32 0.0, %v1115
  %v1117 = vpop.f32.mrf.mxu0
  %v1118 = vadd.f32 0.0, %v1117
  %1119 = vmatmul.bf16.gmra.mxu0 %v948
  %v1120 = vpop.f32.mrf.mxu0
  %v1121 = vadd.f32 0.0, %v1120
  %v1122 = vpop.f32.mrf.mxu0
  %v1123 = vadd.f32 0.0, %v1122
  %1124 = vmatmul.bf16.gmra.mxu0 %v950
  %v1125 = vpop.f32.mrf.mxu0
  %v1126 = vadd.f32 0.0, %v1125
  %v1127 = vpop.f32.mrf.mxu0
  %v1128 = vadd.f32 0.0, %v1127
  %1129 = vmatmul.bf16.gmra.mxu0 %v952
  %v1130 = vpop.f32.mrf.mxu0
  %v1131 = vadd.f32 0.0, %v1130
  %v1132 = vpop.f32.mrf.mxu0
  %v1133 = vadd.f32 0.0, %v1132
  %1134 = vdwg.mxu0
  %1135 = vmatpush.bf16.msra.mxu0 0
  %1136 = vmatpush.bf16.msra.mxu0 0
  %1137 = vmatpush.bf16.msra.mxu0 0
  %1138 = vmatpush.bf16.msra.mxu0 0
  %1139 = vmatpush.bf16.msra.mxu0 0
  %1140 = vmatpush.bf16.msra.mxu0 0
  %1141 = vmatpush.bf16.msra.mxu0 %v1040
  %1142 = vmatpush.bf16.msra.mxu0 %v1038
  %1143 = vmatmul.bf16.gmra.mxu0 %v1063
  %v1144 = vpop.f32.mrf.mxu0
  %v1145 = vadd.f32 %v1096, %v1144
  %v1146 = vpop.f32.mrf.mxu0
  %v1147 = vadd.f32 %v1098, %v1146
  %1148 = vmatmul.bf16.gmra.mxu0 %v1066
  %v1149 = vpop.f32.mrf.mxu0
  %v1150 = vadd.f32 %v1101, %v1149
  %v1151 = vpop.f32.mrf.mxu0
  %v1152 = vadd.f32 %v1103, %v1151
  %1153 = vmatmul.bf16.gmra.mxu0 %v1069
  %v1154 = vpop.f32.mrf.mxu0
  %v1155 = vadd.f32 %v1106, %v1154
  %v1156 = vpop.f32.mrf.mxu0
  %v1157 = vadd.f32 %v1108, %v1156
  %1158 = vmatmul.bf16.gmra.mxu0 %v1072
  %v1159 = vpop.f32.mrf.mxu0
  %v1160 = vadd.f32 %v1111, %v1159
  %v1161 = vpop.f32.mrf.mxu0
  %v1162 = vadd.f32 %v1113, %v1161
  %1163 = vmatmul.bf16.gmra.mxu0 %v1075
  %v1164 = vpop.f32.mrf.mxu0
  %v1165 = vadd.f32 %v1116, %v1164
  %v1166 = vpop.f32.mrf.mxu0
  %v1167 = vadd.f32 %v1118, %v1166
  %1168 = vmatmul.bf16.gmra.mxu0 %v1078
  %v1169 = vpop.f32.mrf.mxu0
  %v1170 = vadd.f32 %v1121, %v1169
  %v1171 = vpop.f32.mrf.mxu0
  %v1172 = vadd.f32 %v1123, %v1171
  %1173 = vmatmul.bf16.gmra.mxu0 %v1081
  %v1174 = vpop.f32.mrf.mxu0
  %v1175 = vadd.f32 %v1126, %v1174
  %v1176 = vpop.f32.mrf.mxu0
  %v1177 = vadd.f32 %v1128, %v1176
  %1178 = vmatmul.bf16.gmra.mxu0 %v1084
  %v1179 = vpop.f32.mrf.mxu0
  %v1180 = vadd.f32 %v1131, %v1179
  %v1181 = vpop.f32.mrf.mxu0
  %v1182 = vadd.f32 %v1133, %v1181
  %1183 = vdwg.mxu0
  %1184 = vmatpush.bf16.msra.mxu0 %v1037
  %1185 = vmatpush.bf16.msra.mxu0 %v1035
  %1186 = vmatpush.bf16.msra.mxu0 %v1033
  %1187 = vmatpush.bf16.msra.mxu0 %v1031
  %1188 = vmatpush.bf16.msra.mxu0 %v1029
  %1189 = vmatpush.bf16.msra.mxu0 %v1027
  %1190 = vmatpush.bf16.msra.mxu0 %v1025
  %1191 = vmatpush.bf16.msra.mxu0 %v1023
  %1192 = vmatmul.bf16.gmra.mxu0 %v938
  %v1193 = vpop.f32.mrf.mxu0
  %v1194 = vadd.f32 0.0, %v1193
  %v1195 = vpop.f32.mrf.mxu0
  %v1196 = vadd.f32 0.0, %v1195
  %1197 = vmatmul.bf16.gmra.mxu0 %v940
  %v1198 = vpop.f32.mrf.mxu0
  %v1199 = vadd.f32 0.0, %v1198
  %v1200 = vpop.f32.mrf.mxu0
  %v1201 = vadd.f32 0.0, %v1200
  %1202 = vmatmul.bf16.gmra.mxu0 %v942
  %v1203 = vpop.f32.mrf.mxu0
  %v1204 = vadd.f32 0.0, %v1203
  %v1205 = vpop.f32.mrf.mxu0
  %v1206 = vadd.f32 0.0, %v1205
  %1207 = vmatmul.bf16.gmra.mxu0 %v944
  %v1208 = vpop.f32.mrf.mxu0
  %v1209 = vadd.f32 0.0, %v1208
  %v1210 = vpop.f32.mrf.mxu0
  %v1211 = vadd.f32 0.0, %v1210
  %1212 = vmatmul.bf16.gmra.mxu0 %v946
  %v1213 = vpop.f32.mrf.mxu0
  %v1214 = vadd.f32 0.0, %v1213
  %v1215 = vpop.f32.mrf.mxu0
  %v1216 = vadd.f32 0.0, %v1215
  %1217 = vmatmul.bf16.gmra.mxu0 %v948
  %v1218 = vpop.f32.mrf.mxu0
  %v1219 = vadd.f32 0.0, %v1218
  %v1220 = vpop.f32.mrf.mxu0
  %v1221 = vadd.f32 0.0, %v1220
  %1222 = vmatmul.bf16.gmra.mxu0 %v950
  %v1223 = vpop.f32.mrf.mxu0
  %v1224 = vadd.f32 0.0, %v1223
  %v1225 = vpop.f32.mrf.mxu0
  %v1226 = vadd.f32 0.0, %v1225
  %1227 = vmatmul.bf16.gmra.mxu0 %v952
  %v1228 = vpop.f32.mrf.mxu0
  %v1229 = vadd.f32 0.0, %v1228
  %v1230 = vpop.f32.mrf.mxu0
  %v1231 = vadd.f32 0.0, %v1230
  %1232 = vdwg.mxu0
  %1233 = vmatpush.bf16.msra.mxu0 0
  %1234 = vmatpush.bf16.msra.mxu0 0
  %1235 = vmatpush.bf16.msra.mxu0 0
  %1236 = vmatpush.bf16.msra.mxu0 0
  %1237 = vmatpush.bf16.msra.mxu0 0
  %1238 = vmatpush.bf16.msra.mxu0 0
  %1239 = vmatpush.bf16.msra.mxu0 %v1041
  %1240 = vmatpush.bf16.msra.mxu0 %v1039
  %1241 = vmatmul.bf16.gmra.mxu0 %v1063
  %v1242 = vpop.f32.mrf.mxu0
  %v1243 = vadd.f32 %v1194, %v1242
  %v1244 = vpop.f32.mrf.mxu0
  %v1245 = vadd.f32 %v1196, %v1244
  %1246 = vmatmul.bf16.gmra.mxu0 %v1066
  %v1247 = vpop.f32.mrf.mxu0
  %v1248 = vadd.f32 %v1199, %v1247
  %v1249 = vpop.f32.mrf.mxu0
  %v1250 = vadd.f32 %v1201, %v1249
  %1251 = vmatmul.bf16.gmra.mxu0 %v1069
  %v1252 = vpop.f32.mrf.mxu0
  %v1253 = vadd.f32 %v1204, %v1252
  %v1254 = vpop.f32.mrf.mxu0
  %v1255 = vadd.f32 %v1206, %v1254
  %1256 = vmatmul.bf16.gmra.mxu0 %v1072
  %v1257 = vpop.f32.mrf.mxu0
  %v1258 = vadd.f32 %v1209, %v1257
  %v1259 = vpop.f32.mrf.mxu0
  %v1260 = vadd.f32 %v1211, %v1259
  %1261 = vmatmul.bf16.gmra.mxu0 %v1075
  %v1262 = vpop.f32.mrf.mxu0
  %v1263 = vadd.f32 %v1214, %v1262
  %v1264 = vpop.f32.mrf.mxu0
  %v1265 = vadd.f32 %v1216, %v1264
  %1266 = vmatmul.bf16.gmra.mxu0 %v1078
  %v1267 = vpop.f32.mrf.mxu0
  %v1268 = vadd.f32 %v1219, %v1267
  %v1269 = vpop.f32.mrf.mxu0
  %v1270 = vadd.f32 %v1221, %v1269
  %1271 = vmatmul.bf16.gmra.mxu0 %v1081
  %v1272 = vpop.f32.mrf.mxu0
  %v1273 = vadd.f32 %v1224, %v1272
  %v1274 = vpop.f32.mrf.mxu0
  %v1275 = vadd.f32 %v1226, %v1274
  %1276 = vmatmul.bf16.gmra.mxu0 %v1084
  %v1277 = vpop.f32.mrf.mxu0
  %v1278 = vadd.f32 %v1229, %v1277
  %v1279 = vpop.f32.mrf.mxu0
  %v1280 = vadd.f32 %v1231, %v1279
  %1281 = vdwg.mxu0
  %v1282 = vmax.f32 %v1145, %v1165
  %v1283 = vmax.f32 %v1243, %v1263
  %v1284 = vmax.f32 %v1147, %v1167
  %v1285 = vmax.f32 %v1245, %v1265
  %v1286 = vmax.f32 %v1150, %v1170
  %v1287 = vmax.f32 %v1248, %v1268
  %v1288 = vmax.f32 %v1152, %v1172
  %v1289 = vmax.f32 %v1250, %v1270
  %v1290 = vmax.f32 %v1155, %v1175
  %v1291 = vmax.f32 %v1253, %v1273
  %v1292 = vmax.f32 %v1157, %v1177
  %v1293 = vmax.f32 %v1255, %v1275
  %v1294 = vmax.f32 %v1160, %v1180
  %v1295 = vmax.f32 %v1258, %v1278
  %v1296 = vmax.f32 %v1162, %v1182
  %v1297 = vmax.f32 %v1260, %v1280
  %v1298 = vld [vmem:[%s2] sm:$0x3]
  %v1300 = vperm.slane %v1298, 0
  %v1301 = vperm.slane %v1298, 1
  %v1304 = vadd.f32 %v1282, %v1300
  %v1305 = vadd.f32 %v1283, %v1301
  %v1306 = vadd.f32 %v1284, %v1300
  %v1307 = vadd.f32 %v1285, %v1301
  %v1308 = vadd.f32 %v1286, %v1300
  %v1309 = vadd.f32 %v1287, %v1301
  %v1310 = vadd.f32 %v1288, %v1300
  %v1311 = vadd.f32 %v1289, %v1301
  %v1312 = vadd.f32 %v1290, %v1300
  %v1313 = vadd.f32 %v1291, %v1301
  %v1314 = vadd.f32 %v1292, %v1300
  %v1315 = vadd.f32 %v1293, %v1301
  %v1316 = vadd.f32 %v1294, %v1300
  %v1317 = vadd.f32 %v1295, %v1301
  %v1318 = vadd.f32 %v1296, %v1300
  %v1319 = vadd.f32 %v1297, %v1301
  %v1320 = vmax.f32 %v1304, 0.0
  %v1321 = vmax.f32 %v1305, 0.0
  %v1322 = vmax.f32 %v1306, 0.0
  %v1323 = vmax.f32 %v1307, 0.0
  %v1324 = vmax.f32 %v1308, 0.0
  %v1325 = vmax.f32 %v1309, 0.0
  %v1326 = vmax.f32 %v1310, 0.0
  %v1327 = vmax.f32 %v1311, 0.0
  %v1328 = vmax.f32 %v1312, 0.0
  %v1329 = vmax.f32 %v1313, 0.0
  %v1330 = vmax.f32 %v1314, 0.0
  %v1331 = vmax.f32 %v1315, 0.0
  %v1332 = vmax.f32 %v1316, 0.0
  %v1333 = vmax.f32 %v1317, 0.0
  %v1334 = vmax.f32 %v1318, 0.0
  %v1335 = vmax.f32 %v1319, 0.0
  %v1336 = vpack.c.bf16 %v1322, %v1320
  %v1337 = vpack.c.bf16 %v1323, %v1321
  %v1338 = vpack.c.bf16 %v1326, %v1324
  %v1339 = vpack.c.bf16 %v1327, %v1325
  %v1340 = vpack.c.bf16 %v1330, %v1328
  %v1341 = vpack.c.bf16 %v1331, %v1329
  %v1342 = vpack.c.bf16 %v1334, %v1332
  %v1343 = vpack.c.bf16 %v1335, %v1333
  %v1344 = vld [vmem:[%s5] sm:$0xf]
  %v1345 = vld [vmem:[%s5 + $0x4] sm:$0xf]
  %v1346 = vld [vmem:[%s5 + $0x8] sm:$0xf]
  %v1347 = vld [vmem:[%s5 + $0xc] sm:$0xf]
  %v1348 = vld [vmem:[%s5 + $0x10] sm:$0xf]
  %v1349 = vld [vmem:[%s5 + $0x14] sm:$0xf]
  %v1350 = vld [vmem:[%s5 + $0x18] sm:$0xf]
  %v1351 = vld [vmem:[%s5 + $0x1c] sm:$0xf]
  %v1352 = vld [vmem:[%s5 + $0x20] sm:$0xf]
  %v1353 = vld [vmem:[%s5 + $0x24] sm:$0xf]
  %v1354 = vld [vmem:[%s5 + $0x28] sm:$0xf]
  %v1355 = vld [vmem:[%s5 + $0x2c] sm:$0xf]
  %v1356 = vld [vmem:[%s5 + $0x30] sm:$0xf]
  %v1357 = vld [vmem:[%s5 + $0x34] sm:$0xf]
  %v1358 = vld [vmem:[%s5 + $0x38] sm:$0xf]
  %v1359 = vld [vmem:[%s5 + $0x3c] sm:$0xf]
  %v1360 = vld [vmem:[%s5 + $0x40] sm:$0xf]
  %v1361 = vld [vmem:[%s5 + $0x44] sm:$0xf]
  %v1362 = vld [vmem:[%s5 + $0x48] sm:$0xf]
  %v1363 = vld [vmem:[%s5 + $0x4c] sm:$0xf]
  %v1364 = vld [vmem:[%s5 + $0x50] sm:$0xf]
  %v1386 = vunpack.c.l.b16 %v1344
  %v1387 = vunpack.c.l.b16 %v1345
  %v1388 = vunpack.c.l.b16 %v1346
  %v1389 = vunpack.c.l.b16 %v1347
  %v1390 = vunpack.c.l.b16 %v1348
  %v1391 = vunpack.c.l.b16 %v1349
  %v1392 = vunpack.c.l.b16 %v1350
  %v1393 = vunpack.c.l.b16 %v1351
  %v1394 = vunpack.c.l.b16 %v1352
  %v1395 = vunpack.c.l.b16 %v1353
  %v1396 = vunpack.c.l.b16 %v1354
  %v1397 = vunpack.c.l.b16 %v1355
  %v1398 = vunpack.c.l.b16 %v1356
  %v1399 = vunpack.c.l.b16 %v1357
  %v1400 = vunpack.c.l.b16 %v1358
  %v1401 = vunpack.c.l.b16 %v1359
  %v1402 = vunpack.c.l.b16 %v1360
  %v1403 = vunpack.c.l.b16 %v1361
  %v1404 = vunpack.c.l.b16 %v1362
  %v1405 = vunpack.c.l.b16 %v1363
  %v1406 = vunpack.c.l.b16 %v1364
  %v1407 = vpack.c.b16 %v1387, %v1386
  %v1408 = vpack.c.b16 %v1389, %v1388
  %v1409 = vpack.c.b16 %v1391, %v1390
  %v1410 = vpack.c.b16 %v1393, %v1392
  %v1411 = vpack.c.b16 %v1395, %v1394
  %v1412 = vpack.c.b16 %v1397, %v1396
  %v1413 = vpack.c.b16 %v1399, %v1398
  %v1414 = vpack.c.b16 %v1401, %v1400
  %v1415 = vpack.c.b16 %v1403, %v1402
  %v1416 = vpack.c.b16 %v1405, %v1404
  %v1417 = vpack.c.b16 %v1406, %v1406
  %v1429 = vsel %vm610, %v1337, 0
  %v1432 = vsel %vm610, %v1339, 0
  %v1435 = vsel %vm610, %v1341, 0
  %v1438 = vsel %vm610, %v1343, 0
  %v1441 = vsel %vm623, %v1417, 0
  %1443 = vmatpush.bf16.msra.mxu0 %v1414
  %1444 = vmatpush.bf16.msra.mxu0 %v1413
  %1445 = vmatpush.bf16.msra.mxu0 %v1412
  %1446 = vmatpush.bf16.msra.mxu0 %v1411
  %1447 = vmatpush.bf16.msra.mxu0 %v1410
  %1448 = vmatpush.bf16.msra.mxu0 %v1409
  %1449 = vmatpush.bf16.msra.mxu0 %v1408
  %1450 = vmatpush.bf16.msra.mxu0 %v1407
  %1451 = vmatmul.bf16.gmra.mxu0 %v1336
  %v1452 = vpop.f32.mrf.mxu0
  %v1453 = vadd.f32 0.0, %v1452
  %v1454 = vpop.f32.mrf.mxu0
  %v1455 = vadd.f32 0.0, %v1454
  %1456 = vmatmul.bf16.gmra.mxu0 %v1338
  %v1457 = vpop.f32.mrf.mxu0
  %v1458 = vadd.f32 0.0, %v1457
  %v1459 = vpop.f32.mrf.mxu0
  %v1460 = vadd.f32 0.0, %v1459
  %1461 = vmatmul.bf16.gmra.mxu0 %v1340
  %v1462 = vpop.f32.mrf.mxu0
  %v1463 = vadd.f32 0.0, %v1462
  %v1464 = vpop.f32.mrf.mxu0
  %v1465 = vadd.f32 0.0, %v1464
  %1466 = vmatmul.bf16.gmra.mxu0 %v1342
  %v1467 = vpop.f32.mrf.mxu0
  %v1468 = vadd.f32 0.0, %v1467
  %v1469 = vpop.f32.mrf.mxu0
  %v1470 = vadd.f32 0.0, %v1469
  %1471 = vdwg.mxu0
  %1472 = vmatpush.bf16.msra.mxu0 0
  %1473 = vmatpush.bf16.msra.mxu0 0
  %1474 = vmatpush.bf16.msra.mxu0 0
  %1475 = vmatpush.bf16.msra.mxu0 0
  %1476 = vmatpush.bf16.msra.mxu0 0
  %1477 = vmatpush.bf16.msra.mxu0 %v1441
  %1478 = vmatpush.bf16.msra.mxu0 %v1416
  %1479 = vmatpush.bf16.msra.mxu0 %v1415
  %1480 = vmatmul.bf16.gmra.mxu0 %v1429
  %v1481 = vpop.f32.mrf.mxu0
  %v1482 = vadd.f32 %v1453, %v1481
  %v1483 = vpop.f32.mrf.mxu0
  %v1484 = vadd.f32 %v1455, %v1483
  %1485 = vmatmul.bf16.gmra.mxu0 %v1432
  %v1486 = vpop.f32.mrf.mxu0
  %v1487 = vadd.f32 %v1458, %v1486
  %v1488 = vpop.f32.mrf.mxu0
  %v1489 = vadd.f32 %v1460, %v1488
  %1490 = vmatmul.bf16.gmra.mxu0 %v1435
  %v1491 = vpop.f32.mrf.mxu0
  %v1492 = vadd.f32 %v1463, %v1491
  %v1493 = vpop.f32.mrf.mxu0
  %v1494 = vadd.f32 %v1465, %v1493
  %1495 = vmatmul.bf16.gmra.mxu0 %v1438
  %v1496 = vpop.f32.mrf.mxu0
  %v1497 = vadd.f32 %v1468, %v1496
  %v1498 = vpop.f32.mrf.mxu0
  %v1499 = vadd.f32 %v1470, %v1498
  %1500 = vdwg.mxu0
  %v1501 = vld [vmem:[%s6] sm:$0xf]
  %v1502 = vld [vmem:[%s6 + $0x4] sm:$0xf]
  %v1503 = vld [vmem:[%s6 + $0x8] sm:$0xf]
  %v1504 = vld [vmem:[%s6 + $0xc] sm:$0xf]
  %v1505 = vld [vmem:[%s6 + $0x10] sm:$0xf]
  %v1506 = vld [vmem:[%s6 + $0x14] sm:$0xf]
  %v1507 = vld [vmem:[%s6 + $0x18] sm:$0xf]
  %v1508 = vld [vmem:[%s6 + $0x1c] sm:$0xf]
  %v1509 = vld [vmem:[%s6 + $0x20] sm:$0xf]
  %v1510 = vld [vmem:[%s6 + $0x24] sm:$0xf]
  %v1511 = vld [vmem:[%s6 + $0x28] sm:$0xf]
  %v1512 = vld [vmem:[%s6 + $0x2c] sm:$0xf]
  %v1513 = vld [vmem:[%s6 + $0x30] sm:$0xf]
  %v1514 = vld [vmem:[%s6 + $0x34] sm:$0xf]
  %v1515 = vld [vmem:[%s6 + $0x38] sm:$0xf]
  %v1516 = vld [vmem:[%s6 + $0x3c] sm:$0xf]
  %v1517 = vld [vmem:[%s6 + $0x40] sm:$0xf]
  %v1518 = vld [vmem:[%s6 + $0x44] sm:$0xf]
  %v1519 = vld [vmem:[%s6 + $0x48] sm:$0xf]
  %v1520 = vld [vmem:[%s6 + $0x4c] sm:$0xf]
  %v1521 = vld [vmem:[%s6 + $0x50] sm:$0xf]
  %v1543 = vunpack.c.l.b16 %v1501
  %v1544 = vunpack.c.l.b16 %v1502
  %v1545 = vunpack.c.l.b16 %v1503
  %v1546 = vunpack.c.l.b16 %v1504
  %v1547 = vunpack.c.l.b16 %v1505
  %v1548 = vunpack.c.l.b16 %v1506
  %v1549 = vunpack.c.l.b16 %v1507
  %v1550 = vunpack.c.l.b16 %v1508
  %v1551 = vunpack.c.l.b16 %v1509
  %v1552 = vunpack.c.l.b16 %v1510
  %v1553 = vunpack.c.l.b16 %v1511
  %v1554 = vunpack.c.l.b16 %v1512
  %v1555 = vunpack.c.l.b16 %v1513
  %v1556 = vunpack.c.l.b16 %v1514
  %v1557 = vunpack.c.l.b16 %v1515
  %v1558 = vunpack.c.l.b16 %v1516
  %v1559 = vunpack.c.l.b16 %v1517
  %v1560 = vunpack.c.l.b16 %v1518
  %v1561 = vunpack.c.l.b16 %v1519
  %v1562 = vunpack.c.l.b16 %v1520
  %v1563 = vunpack.c.l.b16 %v1521
  %v1564 = vpack.c.b16 %v1544, %v1543
  %v1565 = vpack.c.b16 %v1546, %v1545
  %v1566 = vpack.c.b16 %v1548, %v1547
  %v1567 = vpack.c.b16 %v1550, %v1549
  %v1568 = vpack.c.b16 %v1552, %v1551
  %v1569 = vpack.c.b16 %v1554, %v1553
  %v1570 = vpack.c.b16 %v1556, %v1555
  %v1571 = vpack.c.b16 %v1558, %v1557
  %v1572 = vpack.c.b16 %v1560, %v1559
  %v1573 = vpack.c.b16 %v1562, %v1561
  %v1574 = vpack.c.b16 %v1563, %v1563
  %v1586 = vsel %vm623, %v1574, 0
  %1588 = vmatpush.bf16.msra.mxu0 %v1571
  %1589 = vmatpush.bf16.msra.mxu0 %v1570
  %1590 = vmatpush.bf16.msra.mxu0 %v1569
  %1591 = vmatpush.bf16.msra.mxu0 %v1568
  %1592 = vmatpush.bf16.msra.mxu0 %v1567
  %1593 = vmatpush.bf16.msra.mxu0 %v1566
  %1594 = vmatpush.bf16.msra.mxu0 %v1565
  %1595 = vmatpush.bf16.msra.mxu0 %v1564
  %1596 = vmatmul.bf16.gmra.mxu0 %v1336
  %v1597 = vpop.f32.mrf.mxu0
  %v1598 = vadd.f32 0.0, %v1597
  %v1599 = vpop.f32.mrf.mxu0
  %v1600 = vadd.f32 0.0, %v1599
  %1601 = vmatmul.bf16.gmra.mxu0 %v1338
  %v1602 = vpop.f32.mrf.mxu0
  %v1603 = vadd.f32 0.0, %v1602
  %v1604 = vpop.f32.mrf.mxu0
  %v1605 = vadd.f32 0.0, %v1604
  %1606 = vmatmul.bf16.gmra.mxu0 %v1340
  %v1607 = vpop.f32.mrf.mxu0
  %v1608 = vadd.f32 0.0, %v1607
  %v1609 = vpop.f32.mrf.mxu0
  %v1610 = vadd.f32 0.0, %v1609
  %1611 = vmatmul.bf16.gmra.mxu0 %v1342
  %v1612 = vpop.f32.mrf.mxu0
  %v1613 = vadd.f32 0.0, %v1612
  %v1614 = vpop.f32.mrf.mxu0
  %v1615 = vadd.f32 0.0, %v1614
  %1616 = vdwg.mxu0
  %1617 = vmatpush.bf16.msra.mxu0 0
  %1618 = vmatpush.bf16.msra.mxu0 0
  %1619 = vmatpush.bf16.msra.mxu0 0
  %1620 = vmatpush.bf16.msra.mxu0 0
  %1621 = vmatpush.bf16.msra.mxu0 0
  %1622 = vmatpush.bf16.msra.mxu0 %v1586
  %1623 = vmatpush.bf16.msra.mxu0 %v1573
  %1624 = vmatpush.bf16.msra.mxu0 %v1572
  %1625 = vmatmul.bf16.gmra.mxu0 %v1429
  %v1626 = vpop.f32.mrf.mxu0
  %v1627 = vadd.f32 %v1598, %v1626
  %v1628 = vpop.f32.mrf.mxu0
  %v1629 = vadd.f32 %v1600, %v1628
  %1630 = vmatmul.bf16.gmra.mxu0 %v1432
  %v1631 = vpop.f32.mrf.mxu0
  %v1632 = vadd.f32 %v1603, %v1631
  %v1633 = vpop.f32.mrf.mxu0
  %v1634 = vadd.f32 %v1605, %v1633
  %1635 = vmatmul.bf16.gmra.mxu0 %v1435
  %v1636 = vpop.f32.mrf.mxu0
  %v1637 = vadd.f32 %v1608, %v1636
  %v1638 = vpop.f32.mrf.mxu0
  %v1639 = vadd.f32 %v1610, %v1638
  %1640 = vmatmul.bf16.gmra.mxu0 %v1438
  %v1641 = vpop.f32.mrf.mxu0
  %v1642 = vadd.f32 %v1613, %v1641
  %v1643 = vpop.f32.mrf.mxu0
  %v1644 = vadd.f32 %v1615, %v1643
  %1645 = vdwg.mxu0
  %v1646 = vmax.f32 %v1482, %v1627
  %v1647 = vmax.f32 %v1484, %v1629
  %v1648 = vmax.f32 %v1487, %v1632
  %v1649 = vmax.f32 %v1489, %v1634
  %v1650 = vmax.f32 %v1492, %v1637
  %v1651 = vmax.f32 %v1494, %v1639
  %v1652 = vmax.f32 %v1497, %v1642
  %v1653 = vmax.f32 %v1499, %v1644
  %v1654 = vpack.c.bf16 %v1646, %v1646
  %v1655 = vpack.c.bf16 %v1647, %v1647
  %v1656 = vpack.c.bf16 %v1648, %v1648
  %v1657 = vpack.c.bf16 %v1649, %v1649
  %v1658 = vpack.c.bf16 %v1650, %v1650
  %v1659 = vpack.c.bf16 %v1651, %v1651
  %v1660 = vpack.c.bf16 %v1652, %v1652
  %v1661 = vpack.c.bf16 %v1653, %v1653
  %1662 = vst.msk [vmem:[#allocation2 + $0x20] sm:$0xf] %vm33, %v1654
  %1663 = vst.msk [vmem:[#allocation2 + $0x24] sm:$0xf] %vm33, %v1655
  %1664 = vst.msk [vmem:[#allocation2 + $0x28] sm:$0xf] %vm33, %v1656
  %1665 = vst.msk [vmem:[#allocation2 + $0x2c] sm:$0xf] %vm33, %v1657
  %1666 = vst.msk [vmem:[#allocation2 + $0x30] sm:$0xf] %vm33, %v1658
  %1667 = vst.msk [vmem:[#allocation2 + $0x34] sm:$0xf] %vm33, %v1659
  %1668 = vst.msk [vmem:[#allocation2 + $0x38] sm:$0xf] %vm33, %v1660
  %1669 = vst.msk [vmem:[#allocation2 + $0x3c] sm:$0xf] %vm33, %v1661
  %v1670 = vld [vmem:[%s0 + $0x100] sm:$0xff]
  %v1671 = vld [vmem:[%s0 + $0x108] sm:$0xff]
  %v1672 = vld [vmem:[%s0 + $0x110] sm:$0xff]
  %v1673 = vld [vmem:[%s0 + $0x118] sm:$0xff]
  %v1674 = vld [vmem:[%s0 + $0x120] sm:$0xff]
  %v1675 = vld [vmem:[%s0 + $0x128] sm:$0xff]
  %v1676 = vld [vmem:[%s0 + $0x130] sm:$0xff]
  %v1677 = vld [vmem:[%s0 + $0x138] sm:$0xff]
  %v1678 = vld [vmem:[%s0 + $0x140] sm:$0xff]
  %v1679 = vld [vmem:[%s0 + $0x148] sm:$0xff]
  %v1680 = vld [vmem:[%s0 + $0x150] sm:$0xff]
  %v1681 = vld [vmem:[%s0 + $0x158] sm:$0xff]
  %v1682 = vld [vmem:[%s0 + $0x160] sm:$0xff]
  %v1683 = vld [vmem:[%s0 + $0x168] sm:$0xff]
  %v1684 = vld [vmem:[%s0 + $0x170] sm:$0xff]
  %v1685 = vld [vmem:[%s0 + $0x178] sm:$0xff]
  %v1686 = vld [vmem:[%s1] sm:$0xff]
  %v1687 = vld [vmem:[%s1 + $0x8] sm:$0xff]
  %v1688 = vld [vmem:[%s1 + $0x10] sm:$0xff]
  %v1689 = vld [vmem:[%s1 + $0x18] sm:$0xff]
  %v1690 = vld [vmem:[%s1 + $0x20] sm:$0xff]
  %v1691 = vld [vmem:[%s1 + $0x28] sm:$0xff]
  %v1692 = vld [vmem:[%s1 + $0x30] sm:$0xff]
  %v1693 = vld [vmem:[%s1 + $0x38] sm:$0xff]
  %v1694 = vld [vmem:[%s1 + $0x40] sm:$0xff]
  %v1695 = vld [vmem:[%s1 + $0x48] sm:$0xff]
  %v1696 = vld [vmem:[%s1 + $0x50] sm:$0xff]
  %v1697 = vld [vmem:[%s1 + $0x58] sm:$0xff]
  %v1698 = vld [vmem:[%s1 + $0x60] sm:$0xff]
  %v1699 = vld [vmem:[%s1 + $0x68] sm:$0xff]
  %v1700 = vld [vmem:[%s1 + $0x70] sm:$0xff]
  %v1701 = vld [vmem:[%s1 + $0x78] sm:$0xff]
  %v1702 = vld [vmem:[%s1 + $0x80] sm:$0xff]
  %v1703 = vld [vmem:[%s1 + $0x88] sm:$0xff]
  %v1704 = vld [vmem:[%s1 + $0x90] sm:$0xff]
  %v1705 = vld [vmem:[%s1 + $0x98] sm:$0xff]
  %v1722 = vunpack.c.l.b16 %v1670
  %v1723 = vunpack.c.h.b16 %v1670
  %v1724 = vunpack.c.l.b16 %v1671
  %v1725 = vunpack.c.h.b16 %v1671
  %v1726 = vunpack.c.l.b16 %v1672
  %v1727 = vunpack.c.h.b16 %v1672
  %v1728 = vunpack.c.l.b16 %v1673
  %v1729 = vunpack.c.h.b16 %v1673
  %v1730 = vunpack.c.l.b16 %v1674
  %v1731 = vunpack.c.h.b16 %v1674
  %v1732 = vunpack.c.l.b16 %v1675
  %v1733 = vunpack.c.h.b16 %v1675
  %v1734 = vunpack.c.l.b16 %v1676
  %v1735 = vunpack.c.h.b16 %v1676
  %v1736 = vunpack.c.l.b16 %v1677
  %v1737 = vunpack.c.h.b16 %v1677
  %v1738 = vunpack.c.l.b16 %v1678
  %v1739 = vunpack.c.h.b16 %v1678
  %v1740 = vunpack.c.l.b16 %v1679
  %v1741 = vunpack.c.h.b16 %v1679
  %v1742 = vunpack.c.l.b16 %v1680
  %v1743 = vunpack.c.h.b16 %v1680
  %v1744 = vunpack.c.l.b16 %v1681
  %v1745 = vunpack.c.h.b16 %v1681
  %v1746 = vunpack.c.l.b16 %v1682
  %v1747 = vunpack.c.h.b16 %v1682
  %v1748 = vunpack.c.l.b16 %v1683
  %v1749 = vunpack.c.h.b16 %v1683
  %v1750 = vunpack.c.l.b16 %v1684
  %v1751 = vunpack.c.h.b16 %v1684
  %v1752 = vunpack.c.l.b16 %v1685
  %v1753 = vunpack.c.h.b16 %v1685
  %v1754 = vpack.c.b16 %v1724, %v1722
  %v1755 = vpack.c.b16 %v1725, %v1723
  %v1756 = vpack.c.b16 %v1728, %v1726
  %v1757 = vpack.c.b16 %v1729, %v1727
  %v1758 = vpack.c.b16 %v1732, %v1730
  %v1759 = vpack.c.b16 %v1733, %v1731
  %v1760 = vpack.c.b16 %v1736, %v1734
  %v1761 = vpack.c.b16 %v1737, %v1735
  %v1762 = vpack.c.b16 %v1740, %v1738
  %v1763 = vpack.c.b16 %v1741, %v1739
  %v1764 = vpack.c.b16 %v1744, %v1742
  %v1765 = vpack.c.b16 %v1745, %v1743
  %v1766 = vpack.c.b16 %v1748, %v1746
  %v1767 = vpack.c.b16 %v1749, %v1747
  %v1768 = vpack.c.b16 %v1752, %v1750
  %v1769 = vpack.c.b16 %v1753, %v1751
  %v1798 = vunpack.c.l.b16 %v1686
  %v1799 = vunpack.c.h.b16 %v1686
  %v1800 = vunpack.c.l.b16 %v1687
  %v1801 = vunpack.c.h.b16 %v1687
  %v1802 = vunpack.c.l.b16 %v1688
  %v1803 = vunpack.c.h.b16 %v1688
  %v1804 = vunpack.c.l.b16 %v1689
  %v1805 = vunpack.c.h.b16 %v1689
  %v1806 = vunpack.c.l.b16 %v1690
  %v1807 = vunpack.c.h.b16 %v1690
  %v1808 = vunpack.c.l.b16 %v1691
  %v1809 = vunpack.c.h.b16 %v1691
  %v1810 = vunpack.c.l.b16 %v1692
  %v1811 = vunpack.c.h.b16 %v1692
  %v1812 = vunpack.c.l.b16 %v1693
  %v1813 = vunpack.c.h.b16 %v1693
  %v1814 = vunpack.c.l.b16 %v1694
  %v1815 = vunpack.c.h.b16 %v1694
  %v1816 = vunpack.c.l.b16 %v1695
  %v1817 = vunpack.c.h.b16 %v1695
  %v1818 = vunpack.c.l.b16 %v1696
  %v1819 = vunpack.c.h.b16 %v1696
  %v1820 = vunpack.c.l.b16 %v1697
  %v1821 = vunpack.c.h.b16 %v1697
  %v1822 = vunpack.c.l.b16 %v1698
  %v1823 = vunpack.c.h.b16 %v1698
  %v1824 = vunpack.c.l.b16 %v1699
  %v1825 = vunpack.c.h.b16 %v1699
  %v1826 = vunpack.c.l.b16 %v1700
  %v1827 = vunpack.c.h.b16 %v1700
  %v1828 = vunpack.c.l.b16 %v1701
  %v1829 = vunpack.c.h.b16 %v1701
  %v1830 = vunpack.c.l.b16 %v1702
  %v1831 = vunpack.c.h.b16 %v1702
  %v1832 = vunpack.c.l.b16 %v1703
  %v1833 = vunpack.c.h.b16 %v1703
  %v1834 = vunpack.c.l.b16 %v1704
  %v1835 = vunpack.c.h.b16 %v1704
  %v1836 = vunpack.c.l.b16 %v1705
  %v1837 = vunpack.c.h.b16 %v1705
  %v1838 = vpack.c.b16 %v1800, %v1798
  %v1839 = vpack.c.b16 %v1801, %v1799
  %v1840 = vpack.c.b16 %v1804, %v1802
  %v1841 = vpack.c.b16 %v1805, %v1803
  %v1842 = vpack.c.b16 %v1808, %v1806
  %v1843 = vpack.c.b16 %v1809, %v1807
  %v1844 = vpack.c.b16 %v1812, %v1810
  %v1845 = vpack.c.b16 %v1813, %v1811
  %v1846 = vpack.c.b16 %v1816, %v1814
  %v1847 = vpack.c.b16 %v1817, %v1815
  %v1848 = vpack.c.b16 %v1820, %v1818
  %v1849 = vpack.c.b16 %v1821, %v1819
  %v1850 = vpack.c.b16 %v1824, %v1822
  %v1851 = vpack.c.b16 %v1825, %v1823
  %v1852 = vpack.c.b16 %v1828, %v1826
  %v1853 = vpack.c.b16 %v1829, %v1827
  %v1854 = vpack.c.b16 %v1832, %v1830
  %v1855 = vpack.c.b16 %v1833, %v1831
  %v1856 = vpack.c.b16 %v1836, %v1834
  %v1857 = vpack.c.b16 %v1837, %v1835
  %v1879 = vsel %vm243, %v1755, 0
  %v1882 = vsel %vm243, %v1757, 0
  %v1885 = vsel %vm243, %v1759, 0
  %v1888 = vsel %vm243, %v1761, 0
  %v1891 = vsel %vm243, %v1763, 0
  %v1894 = vsel %vm243, %v1765, 0
  %v1897 = vsel %vm243, %v1767, 0
  %v1900 = vsel %vm243, %v1769, 0
  %1902 = vmatpush.bf16.msra.mxu0 %v1852
  %1903 = vmatpush.bf16.msra.mxu0 %v1850
  %1904 = vmatpush.bf16.msra.mxu0 %v1848
  %1905 = vmatpush.bf16.msra.mxu0 %v1846
  %1906 = vmatpush.bf16.msra.mxu0 %v1844
  %1907 = vmatpush.bf16.msra.mxu0 %v1842
  %1908 = vmatpush.bf16.msra.mxu0 %v1840
  %1909 = vmatpush.bf16.msra.mxu0 %v1838
  %1910 = vmatmul.bf16.gmra.mxu0 %v1754
  %v1911 = vpop.f32.mrf.mxu0
  %v1912 = vadd.f32 0.0, %v1911
  %v1913 = vpop.f32.mrf.mxu0
  %v1914 = vadd.f32 0.0, %v1913
  %1915 = vmatmul.bf16.gmra.mxu0 %v1756
  %v1916 = vpop.f32.mrf.mxu0
  %v1917 = vadd.f32 0.0, %v1916
  %v1918 = vpop.f32.mrf.mxu0
  %v1919 = vadd.f32 0.0, %v1918
  %1920 = vmatmul.bf16.gmra.mxu0 %v1758
  %v1921 = vpop.f32.mrf.mxu0
  %v1922 = vadd.f32 0.0, %v1921
  %v1923 = vpop.f32.mrf.mxu0
  %v1924 = vadd.f32 0.0, %v1923
  %1925 = vmatmul.bf16.gmra.mxu0 %v1760
  %v1926 = vpop.f32.mrf.mxu0
  %v1927 = vadd.f32 0.0, %v1926
  %v1928 = vpop.f32.mrf.mxu0
  %v1929 = vadd.f32 0.0, %v1928
  %1930 = vmatmul.bf16.gmra.mxu0 %v1762
  %v1931 = vpop.f32.mrf.mxu0
  %v1932 = vadd.f32 0.0, %v1931
  %v1933 = vpop.f32.mrf.mxu0
  %v1934 = vadd.f32 0.0, %v1933
  %1935 = vmatmul.bf16.gmra.mxu0 %v1764
  %v1936 = vpop.f32.mrf.mxu0
  %v1937 = vadd.f32 0.0, %v1936
  %v1938 = vpop.f32.mrf.mxu0
  %v1939 = vadd.f32 0.0, %v1938
  %1940 = vmatmul.bf16.gmra.mxu0 %v1766
  %v1941 = vpop.f32.mrf.mxu0
  %v1942 = vadd.f32 0.0, %v1941
  %v1943 = vpop.f32.mrf.mxu0
  %v1944 = vadd.f32 0.0, %v1943
  %1945 = vmatmul.bf16.gmra.mxu0 %v1768
  %v1946 = vpop.f32.mrf.mxu0
  %v1947 = vadd.f32 0.0, %v1946
  %v1948 = vpop.f32.mrf.mxu0
  %v1949 = vadd.f32 0.0, %v1948
  %1950 = vdwg.mxu0
  %1951 = vmatpush.bf16.msra.mxu0 0
  %1952 = vmatpush.bf16.msra.mxu0 0
  %1953 = vmatpush.bf16.msra.mxu0 0
  %1954 = vmatpush.bf16.msra.mxu0 0
  %1955 = vmatpush.bf16.msra.mxu0 0
  %1956 = vmatpush.bf16.msra.mxu0 0
  %1957 = vmatpush.bf16.msra.mxu0 %v1856
  %1958 = vmatpush.bf16.msra.mxu0 %v1854
  %1959 = vmatmul.bf16.gmra.mxu0 %v1879
  %v1960 = vpop.f32.mrf.mxu0
  %v1961 = vadd.f32 %v1912, %v1960
  %v1962 = vpop.f32.mrf.mxu0
  %v1963 = vadd.f32 %v1914, %v1962
  %1964 = vmatmul.bf16.gmra.mxu0 %v1882
  %v1965 = vpop.f32.mrf.mxu0
  %v1966 = vadd.f32 %v1917, %v1965
  %v1967 = vpop.f32.mrf.mxu0
  %v1968 = vadd.f32 %v1919, %v1967
  %1969 = vmatmul.bf16.gmra.mxu0 %v1885
  %v1970 = vpop.f32.mrf.mxu0
  %v1971 = vadd.f32 %v1922, %v1970
  %v1972 = vpop.f32.mrf.mxu0
  %v1973 = vadd.f32 %v1924, %v1972
  %1974 = vmatmul.bf16.gmra.mxu0 %v1888
  %v1975 = vpop.f32.mrf.mxu0
  %v1976 = vadd.f32 %v1927, %v1975
  %v1977 = vpop.f32.mrf.mxu0
  %v1978 = vadd.f32 %v1929, %v1977
  %1979 = vmatmul.bf16.gmra.mxu0 %v1891
  %v1980 = vpop.f32.mrf.mxu0
  %v1981 = vadd.f32 %v1932, %v1980
  %v1982 = vpop.f32.mrf.mxu0
  %v1983 = vadd.f32 %v1934, %v1982
  %1984 = vmatmul.bf16.gmra.mxu0 %v1894
  %v1985 = vpop.f32.mrf.mxu0
  %v1986 = vadd.f32 %v1937, %v1985
  %v1987 = vpop.f32.mrf.mxu0
  %v1988 = vadd.f32 %v1939, %v1987
  %1989 = vmatmul.bf16.gmra.mxu0 %v1897
  %v1990 = vpop.f32.mrf.mxu0
  %v1991 = vadd.f32 %v1942, %v1990
  %v1992 = vpop.f32.mrf.mxu0
  %v1993 = vadd.f32 %v1944, %v1992
  %1994 = vmatmul.bf16.gmra.mxu0 %v1900
  %v1995 = vpop.f32.mrf.mxu0
  %v1996 = vadd.f32 %v1947, %v1995
  %v1997 = vpop.f32.mrf.mxu0
  %v1998 = vadd.f32 %v1949, %v1997
  %1999 = vdwg.mxu0
  %2000 = vmatpush.bf16.msra.mxu0 %v1853
  %2001 = vmatpush.bf16.msra.mxu0 %v1851
  %2002 = vmatpush.bf16.msra.mxu0 %v1849
  %2003 = vmatpush.bf16.msra.mxu0 %v1847
  %2004 = vmatpush.bf16.msra.mxu0 %v1845
  %2005 = vmatpush.bf16.msra.mxu0 %v1843
  %2006 = vmatpush.bf16.msra.mxu0 %v1841
  %2007 = vmatpush.bf16.msra.mxu0 %v1839
  %2008 = vmatmul.bf16.gmra.mxu0 %v1754
  %v2009 = vpop.f32.mrf.mxu0
  %v2010 = vadd.f32 0.0, %v2009
  %v2011 = vpop.f32.mrf.mxu0
  %v2012 = vadd.f32 0.0, %v2011
  %2013 = vmatmul.bf16.gmra.mxu0 %v1756
  %v2014 = vpop.f32.mrf.mxu0
  %v2015 = vadd.f32 0.0, %v2014
  %v2016 = vpop.f32.mrf.mxu0
  %v2017 = vadd.f32 0.0, %v2016
  %2018 = vmatmul.bf16.gmra.mxu0 %v1758
  %v2019 = vpop.f32.mrf.mxu0
  %v2020 = vadd.f32 0.0, %v2019
  %v2021 = vpop.f32.mrf.mxu0
  %v2022 = vadd.f32 0.0, %v2021
  %2023 = vmatmul.bf16.gmra.mxu0 %v1760
  %v2024 = vpop.f32.mrf.mxu0
  %v2025 = vadd.f32 0.0, %v2024
  %v2026 = vpop.f32.mrf.mxu0
  %v2027 = vadd.f32 0.0, %v2026
  %2028 = vmatmul.bf16.gmra.mxu0 %v1762
  %v2029 = vpop.f32.mrf.mxu0
  %v2030 = vadd.f32 0.0, %v2029
  %v2031 = vpop.f32.mrf.mxu0
  %v2032 = vadd.f32 0.0, %v2031
  %2033 = vmatmul.bf16.gmra.mxu0 %v1764
  %v2034 = vpop.f32.mrf.mxu0
  %v2035 = vadd.f32 0.0, %v2034
  %v2036 = vpop.f32.mrf.mxu0
  %v2037 = vadd.f32 0.0, %v2036
  %2038 = vmatmul.bf16.gmra.mxu0 %v1766
  %v2039 = vpop.f32.mrf.mxu0
  %v2040 = vadd.f32 0.0, %v2039
  %v2041 = vpop.f32.mrf.mxu0
  %v2042 = vadd.f32 0.0, %v2041
  %2043 = vmatmul.bf16.gmra.mxu0 %v1768
  %v2044 = vpop.f32.mrf.mxu0
  %v2045 = vadd.f32 0.0, %v2044
  %v2046 = vpop.f32.mrf.mxu0
  %v2047 = vadd.f32 0.0, %v2046
  %2048 = vdwg.mxu0
  %2049 = vmatpush.bf16.msra.mxu0 0
  %2050 = vmatpush.bf16.msra.mxu0 0
  %2051 = vmatpush.bf16.msra.mxu0 0
  %2052 = vmatpush.bf16.msra.mxu0 0
  %2053 = vmatpush.bf16.msra.mxu0 0
  %2054 = vmatpush.bf16.msra.mxu0 0
  %2055 = vmatpush.bf16.msra.mxu0 %v1857
  %2056 = vmatpush.bf16.msra.mxu0 %v1855
  %2057 = vmatmul.bf16.gmra.mxu0 %v1879
  %v2058 = vpop.f32.mrf.mxu0
  %v2059 = vadd.f32 %v2010, %v2058
  %v2060 = vpop.f32.mrf.mxu0
  %v2061 = vadd.f32 %v2012, %v2060
  %2062 = vmatmul.bf16.gmra.mxu0 %v1882
  %v2063 = vpop.f32.mrf.mxu0
  %v2064 = vadd.f32 %v2015, %v2063
  %v2065 = vpop.f32.mrf.mxu0
  %v2066 = vadd.f32 %v2017, %v2065
  %2067 = vmatmul.bf16.gmra.mxu0 %v1885
  %v2068 = vpop.f32.mrf.mxu0
  %v2069 = vadd.f32 %v2020, %v2068
  %v2070 = vpop.f32.mrf.mxu0
  %v2071 = vadd.f32 %v2022, %v2070
  %2072 = vmatmul.bf16.gmra.mxu0 %v1888
  %v2073 = vpop.f32.mrf.mxu0
  %v2074 = vadd.f32 %v2025, %v2073
  %v2075 = vpop.f32.mrf.mxu0
  %v2076 = vadd.f32 %v2027, %v2075
  %2077 = vmatmul.bf16.gmra.mxu0 %v1891
  %v2078 = vpop.f32.mrf.mxu0
  %v2079 = vadd.f32 %v2030, %v2078
  %v2080 = vpop.f32.mrf.mxu0
  %v2081 = vadd.f32 %v2032, %v2080
  %2082 = vmatmul.bf16.gmra.mxu0 %v1894
  %v2083 = vpop.f32.mrf.mxu0
  %v2084 = vadd.f32 %v2035, %v2083
  %v2085 = vpop.f32.mrf.mxu0
  %v2086 = vadd.f32 %v2037, %v2085
  %2087 = vmatmul.bf16.gmra.mxu0 %v1897
  %v2088 = vpop.f32.mrf.mxu0
  %v2089 = vadd.f32 %v2040, %v2088
  %v2090 = vpop.f32.mrf.mxu0
  %v2091 = vadd.f32 %v2042, %v2090
  %2092 = vmatmul.bf16.gmra.mxu0 %v1900
  %v2093 = vpop.f32.mrf.mxu0
  %v2094 = vadd.f32 %v2045, %v2093
  %v2095 = vpop.f32.mrf.mxu0
  %v2096 = vadd.f32 %v2047, %v2095
  %2097 = vdwg.mxu0
  %v2098 = vmax.f32 %v1961, %v1981
  %v2099 = vmax.f32 %v2059, %v2079
  %v2100 = vmax.f32 %v1963, %v1983
  %v2101 = vmax.f32 %v2061, %v2081
  %v2102 = vmax.f32 %v1966, %v1986
  %v2103 = vmax.f32 %v2064, %v2084
  %v2104 = vmax.f32 %v1968, %v1988
  %v2105 = vmax.f32 %v2066, %v2086
  %v2106 = vmax.f32 %v1971, %v1991
  %v2107 = vmax.f32 %v2069, %v2089
  %v2108 = vmax.f32 %v1973, %v1993
  %v2109 = vmax.f32 %v2071, %v2091
  %v2110 = vmax.f32 %v1976, %v1996
  %v2111 = vmax.f32 %v2074, %v2094
  %v2112 = vmax.f32 %v1978, %v1998
  %v2113 = vmax.f32 %v2076, %v2096
  %v2114 = vld [vmem:[%s2] sm:$0x3]
  %v2116 = vperm.slane %v2114, 0
  %v2117 = vperm.slane %v2114, 1
  %v2120 = vadd.f32 %v2098, %v2116
  %v2121 = vadd.f32 %v2099, %v2117
  %v2122 = vadd.f32 %v2100, %v2116
  %v2123 = vadd.f32 %v2101, %v2117
  %v2124 = vadd.f32 %v2102, %v2116
  %v2125 = vadd.f32 %v2103, %v2117
  %v2126 = vadd.f32 %v2104, %v2116
  %v2127 = vadd.f32 %v2105, %v2117
  %v2128 = vadd.f32 %v2106, %v2116
  %v2129 = vadd.f32 %v2107, %v2117
  %v2130 = vadd.f32 %v2108, %v2116
  %v2131 = vadd.f32 %v2109, %v2117
  %v2132 = vadd.f32 %v2110, %v2116
  %v2133 = vadd.f32 %v2111, %v2117
  %v2134 = vadd.f32 %v2112, %v2116
  %v2135 = vadd.f32 %v2113, %v2117
  %v2136 = vmax.f32 %v2120, 0.0
  %v2137 = vmax.f32 %v2121, 0.0
  %v2138 = vmax.f32 %v2122, 0.0
  %v2139 = vmax.f32 %v2123, 0.0
  %v2140 = vmax.f32 %v2124, 0.0
  %v2141 = vmax.f32 %v2125, 0.0
  %v2142 = vmax.f32 %v2126, 0.0
  %v2143 = vmax.f32 %v2127, 0.0
  %v2144 = vmax.f32 %v2128, 0.0
  %v2145 = vmax.f32 %v2129, 0.0
  %v2146 = vmax.f32 %v2130, 0.0
  %v2147 = vmax.f32 %v2131, 0.0
  %v2148 = vmax.f32 %v2132, 0.0
  %v2149 = vmax.f32 %v2133, 0.0
  %v2150 = vmax.f32 %v2134, 0.0
  %v2151 = vmax.f32 %v2135, 0.0
  %v2152 = vpack.c.bf16 %v2138, %v2136
  %v2153 = vpack.c.bf16 %v2139, %v2137
  %v2154 = vpack.c.bf16 %v2142, %v2140
  %v2155 = vpack.c.bf16 %v2143, %v2141
  %v2156 = vpack.c.bf16 %v2146, %v2144
  %v2157 = vpack.c.bf16 %v2147, %v2145
  %v2158 = vpack.c.bf16 %v2150, %v2148
  %v2159 = vpack.c.bf16 %v2151, %v2149
  %v2160 = vld [vmem:[%s5] sm:$0xf]
  %v2161 = vld [vmem:[%s5 + $0x4] sm:$0xf]
  %v2162 = vld [vmem:[%s5 + $0x8] sm:$0xf]
  %v2163 = vld [vmem:[%s5 + $0xc] sm:$0xf]
  %v2164 = vld [vmem:[%s5 + $0x10] sm:$0xf]
  %v2165 = vld [vmem:[%s5 + $0x14] sm:$0xf]
  %v2166 = vld [vmem:[%s5 + $0x18] sm:$0xf]
  %v2167 = vld [vmem:[%s5 + $0x1c] sm:$0xf]
  %v2168 = vld [vmem:[%s5 + $0x20] sm:$0xf]
  %v2169 = vld [vmem:[%s5 + $0x24] sm:$0xf]
  %v2170 = vld [vmem:[%s5 + $0x28] sm:$0xf]
  %v2171 = vld [vmem:[%s5 + $0x2c] sm:$0xf]
  %v2172 = vld [vmem:[%s5 + $0x30] sm:$0xf]
  %v2173 = vld [vmem:[%s5 + $0x34] sm:$0xf]
  %v2174 = vld [vmem:[%s5 + $0x38] sm:$0xf]
  %v2175 = vld [vmem:[%s5 + $0x3c] sm:$0xf]
  %v2176 = vld [vmem:[%s5 + $0x40] sm:$0xf]
  %v2177 = vld [vmem:[%s5 + $0x44] sm:$0xf]
  %v2178 = vld [vmem:[%s5 + $0x48] sm:$0xf]
  %v2179 = vld [vmem:[%s5 + $0x4c] sm:$0xf]
  %v2180 = vld [vmem:[%s5 + $0x50] sm:$0xf]
  %v2202 = vunpack.c.l.b16 %v2160
  %v2203 = vunpack.c.l.b16 %v2161
  %v2204 = vunpack.c.l.b16 %v2162
  %v2205 = vunpack.c.l.b16 %v2163
  %v2206 = vunpack.c.l.b16 %v2164
  %v2207 = vunpack.c.l.b16 %v2165
  %v2208 = vunpack.c.l.b16 %v2166
  %v2209 = vunpack.c.l.b16 %v2167
  %v2210 = vunpack.c.l.b16 %v2168
  %v2211 = vunpack.c.l.b16 %v2169
  %v2212 = vunpack.c.l.b16 %v2170
  %v2213 = vunpack.c.l.b16 %v2171
  %v2214 = vunpack.c.l.b16 %v2172
  %v2215 = vunpack.c.l.b16 %v2173
  %v2216 = vunpack.c.l.b16 %v2174
  %v2217 = vunpack.c.l.b16 %v2175
  %v2218 = vunpack.c.l.b16 %v2176
  %v2219 = vunpack.c.l.b16 %v2177
  %v2220 = vunpack.c.l.b16 %v2178
  %v2221 = vunpack.c.l.b16 %v2179
  %v2222 = vunpack.c.l.b16 %v2180
  %v2223 = vpack.c.b16 %v2203, %v2202
  %v2224 = vpack.c.b16 %v2205, %v2204
  %v2225 = vpack.c.b16 %v2207, %v2206
  %v2226 = vpack.c.b16 %v2209, %v2208
  %v2227 = vpack.c.b16 %v2211, %v2210
  %v2228 = vpack.c.b16 %v2213, %v2212
  %v2229 = vpack.c.b16 %v2215, %v2214
  %v2230 = vpack.c.b16 %v2217, %v2216
  %v2231 = vpack.c.b16 %v2219, %v2218
  %v2232 = vpack.c.b16 %v2221, %v2220
  %v2233 = vpack.c.b16 %v2222, %v2222
  %v2245 = vsel %vm610, %v2153, 0
  %v2248 = vsel %vm610, %v2155, 0
  %v2251 = vsel %vm610, %v2157, 0
  %v2254 = vsel %vm610, %v2159, 0
  %v2257 = vsel %vm623, %v2233, 0
  %2259 = vmatpush.bf16.msra.mxu0 %v2230
  %2260 = vmatpush.bf16.msra.mxu0 %v2229
  %2261 = vmatpush.bf16.msra.mxu0 %v2228
  %2262 = vmatpush.bf16.msra.mxu0 %v2227
  %2263 = vmatpush.bf16.msra.mxu0 %v2226
  %2264 = vmatpush.bf16.msra.mxu0 %v2225
  %2265 = vmatpush.bf16.msra.mxu0 %v2224
  %2266 = vmatpush.bf16.msra.mxu0 %v2223
  %2267 = vmatmul.bf16.gmra.mxu0 %v2152
  %v2268 = vpop.f32.mrf.mxu0
  %v2269 = vadd.f32 0.0, %v2268
  %v2270 = vpop.f32.mrf.mxu0
  %v2271 = vadd.f32 0.0, %v2270
  %2272 = vmatmul.bf16.gmra.mxu0 %v2154
  %v2273 = vpop.f32.mrf.mxu0
  %v2274 = vadd.f32 0.0, %v2273
  %v2275 = vpop.f32.mrf.mxu0
  %v2276 = vadd.f32 0.0, %v2275
  %2277 = vmatmul.bf16.gmra.mxu0 %v2156
  %v2278 = vpop.f32.mrf.mxu0
  %v2279 = vadd.f32 0.0, %v2278
  %v2280 = vpop.f32.mrf.mxu0
  %v2281 = vadd.f32 0.0, %v2280
  %2282 = vmatmul.bf16.gmra.mxu0 %v2158
  %v2283 = vpop.f32.mrf.mxu0
  %v2284 = vadd.f32 0.0, %v2283
  %v2285 = vpop.f32.mrf.mxu0
  %v2286 = vadd.f32 0.0, %v2285
  %2287 = vdwg.mxu0
  %2288 = vmatpush.bf16.msra.mxu0 0
  %2289 = vmatpush.bf16.msra.mxu0 0
  %2290 = vmatpush.bf16.msra.mxu0 0
  %2291 = vmatpush.bf16.msra.mxu0 0
  %2292 = vmatpush.bf16.msra.mxu0 0
  %2293 = vmatpush.bf16.msra.mxu0 %v2257
  %2294 = vmatpush.bf16.msra.mxu0 %v2232
  %2295 = vmatpush.bf16.msra.mxu0 %v2231
  %2296 = vmatmul.bf16.gmra.mxu0 %v2245
  %v2297 = vpop.f32.mrf.mxu0
  %v2298 = vadd.f32 %v2269, %v2297
  %v2299 = vpop.f32.mrf.mxu0
  %v2300 = vadd.f32 %v2271, %v2299
  %2301 = vmatmul.bf16.gmra.mxu0 %v2248
  %v2302 = vpop.f32.mrf.mxu0
  %v2303 = vadd.f32 %v2274, %v2302
  %v2304 = vpop.f32.mrf.mxu0
  %v2305 = vadd.f32 %v2276, %v2304
  %2306 = vmatmul.bf16.gmra.mxu0 %v2251
  %v2307 = vpop.f32.mrf.mxu0
  %v2308 = vadd.f32 %v2279, %v2307
  %v2309 = vpop.f32.mrf.mxu0
  %v2310 = vadd.f32 %v2281, %v2309
  %2311 = vmatmul.bf16.gmra.mxu0 %v2254
  %v2312 = vpop.f32.mrf.mxu0
  %v2313 = vadd.f32 %v2284, %v2312
  %v2314 = vpop.f32.mrf.mxu0
  %v2315 = vadd.f32 %v2286, %v2314
  %2316 = vdwg.mxu0
  %v2317 = vld [vmem:[%s6] sm:$0xf]
  %v2318 = vld [vmem:[%s6 + $0x4] sm:$0xf]
  %v2319 = vld [vmem:[%s6 + $0x8] sm:$0xf]
  %v2320 = vld [vmem:[%s6 + $0xc] sm:$0xf]
  %v2321 = vld [vmem:[%s6 + $0x10] sm:$0xf]
  %v2322 = vld [vmem:[%s6 + $0x14] sm:$0xf]
  %v2323 = vld [vmem:[%s6 + $0x18] sm:$0xf]
  %v2324 = vld [vmem:[%s6 + $0x1c] sm:$0xf]
  %v2325 = vld [vmem:[%s6 + $0x20] sm:$0xf]
  %v2326 = vld [vmem:[%s6 + $0x24] sm:$0xf]
  %v2327 = vld [vmem:[%s6 + $0x28] sm:$0xf]
  %v2328 = vld [vmem:[%s6 + $0x2c] sm:$0xf]
  %v2329 = vld [vmem:[%s6 + $0x30] sm:$0xf]
  %v2330 = vld [vmem:[%s6 + $0x34] sm:$0xf]
  %v2331 = vld [vmem:[%s6 + $0x38] sm:$0xf]
  %v2332 = vld [vmem:[%s6 + $0x3c] sm:$0xf]
  %v2333 = vld [vmem:[%s6 + $0x40] sm:$0xf]
  %v2334 = vld [vmem:[%s6 + $0x44] sm:$0xf]
  %v2335 = vld [vmem:[%s6 + $0x48] sm:$0xf]
  %v2336 = vld [vmem:[%s6 + $0x4c] sm:$0xf]
  %v2337 = vld [vmem:[%s6 + $0x50] sm:$0xf]
  %v2359 = vunpack.c.l.b16 %v2317
  %v2360 = vunpack.c.l.b16 %v2318
  %v2361 = vunpack.c.l.b16 %v2319
  %v2362 = vunpack.c.l.b16 %v2320
  %v2363 = vunpack.c.l.b16 %v2321
  %v2364 = vunpack.c.l.b16 %v2322
  %v2365 = vunpack.c.l.b16 %v2323
  %v2366 = vunpack.c.l.b16 %v2324
  %v2367 = vunpack.c.l.b16 %v2325
  %v2368 = vunpack.c.l.b16 %v2326
  %v2369 = vunpack.c.l.b16 %v2327
  %v2370 = vunpack.c.l.b16 %v2328
  %v2371 = vunpack.c.l.b16 %v2329
  %v2372 = vunpack.c.l.b16 %v2330
  %v2373 = vunpack.c.l.b16 %v2331
  %v2374 = vunpack.c.l.b16 %v2332
  %v2375 = vunpack.c.l.b16 %v2333
  %v2376 = vunpack.c.l.b16 %v2334
  %v2377 = vunpack.c.l.b16 %v2335
  %v2378 = vunpack.c.l.b16 %v2336
  %v2379 = vunpack.c.l.b16 %v2337
  %v2380 = vpack.c.b16 %v2360, %v2359
  %v2381 = vpack.c.b16 %v2362, %v2361
  %v2382 = vpack.c.b16 %v2364, %v2363
  %v2383 = vpack.c.b16 %v2366, %v2365
  %v2384 = vpack.c.b16 %v2368, %v2367
  %v2385 = vpack.c.b16 %v2370, %v2369
  %v2386 = vpack.c.b16 %v2372, %v2371
  %v2387 = vpack.c.b16 %v2374, %v2373
  %v2388 = vpack.c.b16 %v2376, %v2375
  %v2389 = vpack.c.b16 %v2378, %v2377
  %v2390 = vpack.c.b16 %v2379, %v2379
  %v2402 = vsel %vm623, %v2390, 0
  %2404 = vmatpush.bf16.msra.mxu0 %v2387
  %2405 = vmatpush.bf16.msra.mxu0 %v2386
  %2406 = vmatpush.bf16.msra.mxu0 %v2385
  %2407 = vmatpush.bf16.msra.mxu0 %v2384
  %2408 = vmatpush.bf16.msra.mxu0 %v2383
  %2409 = vmatpush.bf16.msra.mxu0 %v2382
  %2410 = vmatpush.bf16.msra.mxu0 %v2381
  %2411 = vmatpush.bf16.msra.mxu0 %v2380
  %2412 = vmatmul.bf16.gmra.mxu0 %v2152
  %v2413 = vpop.f32.mrf.mxu0
  %v2414 = vadd.f32 0.0, %v2413
  %v2415 = vpop.f32.mrf.mxu0
  %v2416 = vadd.f32 0.0, %v2415
  %2417 = vmatmul.bf16.gmra.mxu0 %v2154
  %v2418 = vpop.f32.mrf.mxu0
  %v2419 = vadd.f32 0.0, %v2418
  %v2420 = vpop.f32.mrf.mxu0
  %v2421 = vadd.f32 0.0, %v2420
  %2422 = vmatmul.bf16.gmra.mxu0 %v2156
  %v2423 = vpop.f32.mrf.mxu0
  %v2424 = vadd.f32 0.0, %v2423
  %v2425 = vpop.f32.mrf.mxu0
  %v2426 = vadd.f32 0.0, %v2425
  %2427 = vmatmul.bf16.gmra.mxu0 %v2158
  %v2428 = vpop.f32.mrf.mxu0
  %v2429 = vadd.f32 0.0, %v2428
  %v2430 = vpop.f32.mrf.mxu0
  %v2431 = vadd.f32 0.0, %v2430
  %2432 = vdwg.mxu0
  %2433 = vmatpush.bf16.msra.mxu0 0
  %2434 = vmatpush.bf16.msra.mxu0 0
  %2435 = vmatpush.bf16.msra.mxu0 0
  %2436 = vmatpush.bf16.msra.mxu0 0
  %2437 = vmatpush.bf16.msra.mxu0 0
  %2438 = vmatpush.bf16.msra.mxu0 %v2402
  %2439 = vmatpush.bf16.msra.mxu0 %v2389
  %2440 = vmatpush.bf16.msra.mxu0 %v2388
  %2441 = vmatmul.bf16.gmra.mxu0 %v2245
  %v2442 = vpop.f32.mrf.mxu0
  %v2443 = vadd.f32 %v2414, %v2442
  %v2444 = vpop.f32.mrf.mxu0
  %v2445 = vadd.f32 %v2416, %v2444
  %2446 = vmatmul.bf16.gmra.mxu0 %v2248
  %v2447 = vpop.f32.mrf.mxu0
  %v2448 = vadd.f32 %v2419, %v2447
  %v2449 = vpop.f32.mrf.mxu0
  %v2450 = vadd.f32 %v2421, %v2449
  %2451 = vmatmul.bf16.gmra.mxu0 %v2251
  %v2452 = vpop.f32.mrf.mxu0
  %v2453 = vadd.f32 %v2424, %v2452
  %v2454 = vpop.f32.mrf.mxu0
  %v2455 = vadd.f32 %v2426, %v2454
  %2456 = vmatmul.bf16.gmra.mxu0 %v2254
  %v2457 = vpop.f32.mrf.mxu0
  %v2458 = vadd.f32 %v2429, %v2457
  %v2459 = vpop.f32.mrf.mxu0
  %v2460 = vadd.f32 %v2431, %v2459
  %2461 = vdwg.mxu0
  %v2462 = vmax.f32 %v2298, %v2443
  %v2463 = vmax.f32 %v2300, %v2445
  %v2464 = vmax.f32 %v2303, %v2448
  %v2465 = vmax.f32 %v2305, %v2450
  %v2466 = vmax.f32 %v2308, %v2453
  %v2467 = vmax.f32 %v2310, %v2455
  %v2468 = vmax.f32 %v2313, %v2458
  %v2469 = vmax.f32 %v2315, %v2460
  %v2470 = vpack.c.bf16 %v2462, %v2462
  %v2471 = vpack.c.bf16 %v2463, %v2463
  %v2472 = vpack.c.bf16 %v2464, %v2464
  %v2473 = vpack.c.bf16 %v2465, %v2465
  %v2474 = vpack.c.bf16 %v2466, %v2466
  %v2475 = vpack.c.bf16 %v2467, %v2467
  %v2476 = vpack.c.bf16 %v2468, %v2468
  %v2477 = vpack.c.bf16 %v2469, %v2469
  %2478 = vst.msk [vmem:[#allocation2 + $0x40] sm:$0xf] %vm33, %v2470
  %2479 = vst.msk [vmem:[#allocation2 + $0x44] sm:$0xf] %vm33, %v2471
  %2480 = vst.msk [vmem:[#allocation2 + $0x48] sm:$0xf] %vm33, %v2472
  %2481 = vst.msk [vmem:[#allocation2 + $0x4c] sm:$0xf] %vm33, %v2473
  %2482 = vst.msk [vmem:[#allocation2 + $0x50] sm:$0xf] %vm33, %v2474
  %2483 = vst.msk [vmem:[#allocation2 + $0x54] sm:$0xf] %vm33, %v2475
  %2484 = vst.msk [vmem:[#allocation2 + $0x58] sm:$0xf] %vm33, %v2476
  %2485 = vst.msk [vmem:[#allocation2 + $0x5c] sm:$0xf] %vm33, %v2477
  %v2486 = vld [vmem:[%s0 + $0x180] sm:$0xff]
  %v2487 = vld [vmem:[%s0 + $0x188] sm:$0xff]
  %v2488 = vld [vmem:[%s0 + $0x190] sm:$0xff]
  %v2489 = vld [vmem:[%s0 + $0x198] sm:$0xff]
  %v2490 = vld [vmem:[%s0 + $0x1a0] sm:$0xff]
  %v2491 = vld [vmem:[%s0 + $0x1a8] sm:$0xff]
  %v2492 = vld [vmem:[%s0 + $0x1b0] sm:$0xff]
  %v2493 = vld [vmem:[%s0 + $0x1b8] sm:$0xff]
  %v2494 = vld [vmem:[%s0 + $0x1c0] sm:$0xff]
  %v2495 = vld [vmem:[%s0 + $0x1c8] sm:$0xff]
  %v2496 = vld [vmem:[%s0 + $0x1d0] sm:$0xff]
  %v2497 = vld [vmem:[%s0 + $0x1d8] sm:$0xff]
  %v2498 = vld [vmem:[%s0 + $0x1e0] sm:$0xff]
  %v2499 = vld [vmem:[%s0 + $0x1e8] sm:$0xff]
  %v2500 = vld [vmem:[%s0 + $0x1f0] sm:$0xff]
  %v2501 = vld [vmem:[%s0 + $0x1f8] sm:$0xff]
  %v2502 = vld [vmem:[%s1] sm:$0xff]
  %v2503 = vld [vmem:[%s1 + $0x8] sm:$0xff]
  %v2504 = vld [vmem:[%s1 + $0x10] sm:$0xff]
  %v2505 = vld [vmem:[%s1 + $0x18] sm:$0xff]
  %v2506 = vld [vmem:[%s1 + $0x20] sm:$0xff]
  %v2507 = vld [vmem:[%s1 + $0x28] sm:$0xff]
  %v2508 = vld [vmem:[%s1 + $0x30] sm:$0xff]
  %v2509 = vld [vmem:[%s1 + $0x38] sm:$0xff]
  %v2510 = vld [vmem:[%s1 + $0x40] sm:$0xff]
  %v2511 = vld [vmem:[%s1 + $0x48] sm:$0xff]
  %v2512 = vld [vmem:[%s1 + $0x50] sm:$0xff]
  %v2513 = vld [vmem:[%s1 + $0x58] sm:$0xff]
  %v2514 = vld [vmem:[%s1 + $0x60] sm:$0xff]
  %v2515 = vld [vmem:[%s1 + $0x68] sm:$0xff]
  %v2516 = vld [vmem:[%s1 + $0x70] sm:$0xff]
  %v2517 = vld [vmem:[%s1 + $0x78] sm:$0xff]
  %v2518 = vld [vmem:[%s1 + $0x80] sm:$0xff]
  %v2519 = vld [vmem:[%s1 + $0x88] sm:$0xff]
  %v2520 = vld [vmem:[%s1 + $0x90] sm:$0xff]
  %v2521 = vld [vmem:[%s1 + $0x98] sm:$0xff]
  %v2538 = vunpack.c.l.b16 %v2486
  %v2539 = vunpack.c.h.b16 %v2486
  %v2540 = vunpack.c.l.b16 %v2487
  %v2541 = vunpack.c.h.b16 %v2487
  %v2542 = vunpack.c.l.b16 %v2488
  %v2543 = vunpack.c.h.b16 %v2488
  %v2544 = vunpack.c.l.b16 %v2489
  %v2545 = vunpack.c.h.b16 %v2489
  %v2546 = vunpack.c.l.b16 %v2490
  %v2547 = vunpack.c.h.b16 %v2490
  %v2548 = vunpack.c.l.b16 %v2491
  %v2549 = vunpack.c.h.b16 %v2491
  %v2550 = vunpack.c.l.b16 %v2492
  %v2551 = vunpack.c.h.b16 %v2492
  %v2552 = vunpack.c.l.b16 %v2493
  %v2553 = vunpack.c.h.b16 %v2493
  %v2554 = vunpack.c.l.b16 %v2494
  %v2555 = vunpack.c.h.b16 %v2494
  %v2556 = vunpack.c.l.b16 %v2495
  %v2557 = vunpack.c.h.b16 %v2495
  %v2558 = vunpack.c.l.b16 %v2496
  %v2559 = vunpack.c.h.b16 %v2496
  %v2560 = vunpack.c.l.b16 %v2497
  %v2561 = vunpack.c.h.b16 %v2497
  %v2562 = vunpack.c.l.b16 %v2498
  %v2563 = vunpack.c.h.b16 %v2498
  %v2564 = vunpack.c.l.b16 %v2499
  %v2565 = vunpack.c.h.b16 %v2499
  %v2566 = vunpack.c.l.b16 %v2500
  %v2567 = vunpack.c.h.b16 %v2500
  %v2568 = vunpack.c.l.b16 %v2501
  %v2569 = vunpack.c.h.b16 %v2501
  %v2570 = vpack.c.b16 %v2540, %v2538
  %v2571 = vpack.c.b16 %v2541, %v2539
  %v2572 = vpack.c.b16 %v2544, %v2542
  %v2573 = vpack.c.b16 %v2545, %v2543
  %v2574 = vpack.c.b16 %v2548, %v2546
  %v2575 = vpack.c.b16 %v2549, %v2547
  %v2576 = vpack.c.b16 %v2552, %v2550
  %v2577 = vpack.c.b16 %v2553, %v2551
  %v2578 = vpack.c.b16 %v2556, %v2554
  %v2579 = vpack.c.b16 %v2557, %v2555
  %v2580 = vpack.c.b16 %v2560, %v2558
  %v2581 = vpack.c.b16 %v2561, %v2559
  %v2582 = vpack.c.b16 %v2564, %v2562
  %v2583 = vpack.c.b16 %v2565, %v2563
  %v2584 = vpack.c.b16 %v2568, %v2566
  %v2585 = vpack.c.b16 %v2569, %v2567
  %v2614 = vunpack.c.l.b16 %v2502
  %v2615 = vunpack.c.h.b16 %v2502
  %v2616 = vunpack.c.l.b16 %v2503
  %v2617 = vunpack.c.h.b16 %v2503
  %v2618 = vunpack.c.l.b16 %v2504
  %v2619 = vunpack.c.h.b16 %v2504
  %v2620 = vunpack.c.l.b16 %v2505
  %v2621 = vunpack.c.h.b16 %v2505
  %v2622 = vunpack.c.l.b16 %v2506
  %v2623 = vunpack.c.h.b16 %v2506
  %v2624 = vunpack.c.l.b16 %v2507
  %v2625 = vunpack.c.h.b16 %v2507
  %v2626 = vunpack.c.l.b16 %v2508
  %v2627 = vunpack.c.h.b16 %v2508
  %v2628 = vunpack.c.l.b16 %v2509
  %v2629 = vunpack.c.h.b16 %v2509
  %v2630 = vunpack.c.l.b16 %v2510
  %v2631 = vunpack.c.h.b16 %v2510
  %v2632 = vunpack.c.l.b16 %v2511
  %v2633 = vunpack.c.h.b16 %v2511
  %v2634 = vunpack.c.l.b16 %v2512
  %v2635 = vunpack.c.h.b16 %v2512
  %v2636 = vunpack.c.l.b16 %v2513
  %v2637 = vunpack.c.h.b16 %v2513
  %v2638 = vunpack.c.l.b16 %v2514
  %v2639 = vunpack.c.h.b16 %v2514
  %v2640 = vunpack.c.l.b16 %v2515
  %v2641 = vunpack.c.h.b16 %v2515
  %v2642 = vunpack.c.l.b16 %v2516
  %v2643 = vunpack.c.h.b16 %v2516
  %v2644 = vunpack.c.l.b16 %v2517
  %v2645 = vunpack.c.h.b16 %v2517
  %v2646 = vunpack.c.l.b16 %v2518
  %v2647 = vunpack.c.h.b16 %v2518
  %v2648 = vunpack.c.l.b16 %v2519
  %v2649 = vunpack.c.h.b16 %v2519
  %v2650 = vunpack.c.l.b16 %v2520
  %v2651 = vunpack.c.h.b16 %v2520
  %v2652 = vunpack.c.l.b16 %v2521
  %v2653 = vunpack.c.h.b16 %v2521
  %v2654 = vpack.c.b16 %v2616, %v2614
  %v2655 = vpack.c.b16 %v2617, %v2615
  %v2656 = vpack.c.b16 %v2620, %v2618
  %v2657 = vpack.c.b16 %v2621, %v2619
  %v2658 = vpack.c.b16 %v2624, %v2622
  %v2659 = vpack.c.b16 %v2625, %v2623
  %v2660 = vpack.c.b16 %v2628, %v2626
  %v2661 = vpack.c.b16 %v2629, %v2627
  %v2662 = vpack.c.b16 %v2632, %v2630
  %v2663 = vpack.c.b16 %v2633, %v2631
  %v2664 = vpack.c.b16 %v2636, %v2634
  %v2665 = vpack.c.b16 %v2637, %v2635
  %v2666 = vpack.c.b16 %v2640, %v2638
  %v2667 = vpack.c.b16 %v2641, %v2639
  %v2668 = vpack.c.b16 %v2644, %v2642
  %v2669 = vpack.c.b16 %v2645, %v2643
  %v2670 = vpack.c.b16 %v2648, %v2646
  %v2671 = vpack.c.b16 %v2649, %v2647
  %v2672 = vpack.c.b16 %v2652, %v2650
  %v2673 = vpack.c.b16 %v2653, %v2651
  %v2695 = vsel %vm243, %v2571, 0
  %v2698 = vsel %vm243, %v2573, 0
  %v2701 = vsel %vm243, %v2575, 0
  %v2704 = vsel %vm243, %v2577, 0
  %v2707 = vsel %vm243, %v2579, 0
  %v2710 = vsel %vm243, %v2581, 0
  %v2713 = vsel %vm243, %v2583, 0
  %v2716 = vsel %vm243, %v2585, 0
  %2718 = vmatpush.bf16.msra.mxu0 %v2668
  %2719 = vmatpush.bf16.msra.mxu0 %v2666
  %2720 = vmatpush.bf16.msra.mxu0 %v2664
  %2721 = vmatpush.bf16.msra.mxu0 %v2662
  %2722 = vmatpush.bf16.msra.mxu0 %v2660
  %2723 = vmatpush.bf16.msra.mxu0 %v2658
  %2724 = vmatpush.bf16.msra.mxu0 %v2656
  %2725 = vmatpush.bf16.msra.mxu0 %v2654
  %2726 = vmatmul.bf16.gmra.mxu0 %v2570
  %v2727 = vpop.f32.mrf.mxu0
  %v2728 = vadd.f32 0.0, %v2727
  %v2729 = vpop.f32.mrf.mxu0
  %v2730 = vadd.f32 0.0, %v2729
  %2731 = vmatmul.bf16.gmra.mxu0 %v2572
  %v2732 = vpop.f32.mrf.mxu0
  %v2733 = vadd.f32 0.0, %v2732
  %v2734 = vpop.f32.mrf.mxu0
  %v2735 = vadd.f32 0.0, %v2734
  %2736 = vmatmul.bf16.gmra.mxu0 %v2574
  %v2737 = vpop.f32.mrf.mxu0
  %v2738 = vadd.f32 0.0, %v2737
  %v2739 = vpop.f32.mrf.mxu0
  %v2740 = vadd.f32 0.0, %v2739
  %2741 = vmatmul.bf16.gmra.mxu0 %v2576
  %v2742 = vpop.f32.mrf.mxu0
  %v2743 = vadd.f32 0.0, %v2742
  %v2744 = vpop.f32.mrf.mxu0
  %v2745 = vadd.f32 0.0, %v2744
  %2746 = vmatmul.bf16.gmra.mxu0 %v2578
  %v2747 = vpop.f32.mrf.mxu0
  %v2748 = vadd.f32 0.0, %v2747
  %v2749 = vpop.f32.mrf.mxu0
  %v2750 = vadd.f32 0.0, %v2749
  %2751 = vmatmul.bf16.gmra.mxu0 %v2580
  %v2752 = vpop.f32.mrf.mxu0
  %v2753 = vadd.f32 0.0, %v2752
  %v2754 = vpop.f32.mrf.mxu0
  %v2755 = vadd.f32 0.0, %v2754
  %2756 = vmatmul.bf16.gmra.mxu0 %v2582
  %v2757 = vpop.f32.mrf.mxu0
  %v2758 = vadd.f32 0.0, %v2757
  %v2759 = vpop.f32.mrf.mxu0
  %v2760 = vadd.f32 0.0, %v2759
  %2761 = vmatmul.bf16.gmra.mxu0 %v2584
  %v2762 = vpop.f32.mrf.mxu0
  %v2763 = vadd.f32 0.0, %v2762
  %v2764 = vpop.f32.mrf.mxu0
  %v2765 = vadd.f32 0.0, %v2764
  %2766 = vdwg.mxu0
  %2767 = vmatpush.bf16.msra.mxu0 0
  %2768 = vmatpush.bf16.msra.mxu0 0
  %2769 = vmatpush.bf16.msra.mxu0 0
  %2770 = vmatpush.bf16.msra.mxu0 0
  %2771 = vmatpush.bf16.msra.mxu0 0
  %2772 = vmatpush.bf16.msra.mxu0 0
  %2773 = vmatpush.bf16.msra.mxu0 %v2672
  %2774 = vmatpush.bf16.msra.mxu0 %v2670
  %2775 = vmatmul.bf16.gmra.mxu0 %v2695
  %v2776 = vpop.f32.mrf.mxu0
  %v2777 = vadd.f32 %v2728, %v2776
  %v2778 = vpop.f32.mrf.mxu0
  %v2779 = vadd.f32 %v2730, %v2778
  %2780 = vmatmul.bf16.gmra.mxu0 %v2698
  %v2781 = vpop.f32.mrf.mxu0
  %v2782 = vadd.f32 %v2733, %v2781
  %v2783 = vpop.f32.mrf.mxu0
  %v2784 = vadd.f32 %v2735, %v2783
  %2785 = vmatmul.bf16.gmra.mxu0 %v2701
  %v2786 = vpop.f32.mrf.mxu0
  %v2787 = vadd.f32 %v2738, %v2786
  %v2788 = vpop.f32.mrf.mxu0
  %v2789 = vadd.f32 %v2740, %v2788
  %2790 = vmatmul.bf16.gmra.mxu0 %v2704
  %v2791 = vpop.f32.mrf.mxu0
  %v2792 = vadd.f32 %v2743, %v2791
  %v2793 = vpop.f32.mrf.mxu0
  %v2794 = vadd.f32 %v2745, %v2793
  %2795 = vmatmul.bf16.gmra.mxu0 %v2707
  %v2796 = vpop.f32.mrf.mxu0
  %v2797 = vadd.f32 %v2748, %v2796
  %v2798 = vpop.f32.mrf.mxu0
  %v2799 = vadd.f32 %v2750, %v2798
  %2800 = vmatmul.bf16.gmra.mxu0 %v2710
  %v2801 = vpop.f32.mrf.mxu0
  %v2802 = vadd.f32 %v2753, %v2801
  %v2803 = vpop.f32.mrf.mxu0
  %v2804 = vadd.f32 %v2755, %v2803
  %2805 = vmatmul.bf16.gmra.mxu0 %v2713
  %v2806 = vpop.f32.mrf.mxu0
  %v2807 = vadd.f32 %v2758, %v2806
  %v2808 = vpop.f32.mrf.mxu0
  %v2809 = vadd.f32 %v2760, %v2808
  %2810 = vmatmul.bf16.gmra.mxu0 %v2716
  %v2811 = vpop.f32.mrf.mxu0
  %v2812 = vadd.f32 %v2763, %v2811
  %v2813 = vpop.f32.mrf.mxu0
  %v2814 = vadd.f32 %v2765, %v2813
  %2815 = vdwg.mxu0
  %2816 = vmatpush.bf16.msra.mxu0 %v2669
  %2817 = vmatpush.bf16.msra.mxu0 %v2667
  %2818 = vmatpush.bf16.msra.mxu0 %v2665
  %2819 = vmatpush.bf16.msra.mxu0 %v2663
  %2820 = vmatpush.bf16.msra.mxu0 %v2661
  %2821 = vmatpush.bf16.msra.mxu0 %v2659
  %2822 = vmatpush.bf16.msra.mxu0 %v2657
  %2823 = vmatpush.bf16.msra.mxu0 %v2655
  %2824 = vmatmul.bf16.gmra.mxu0 %v2570
  %v2825 = vpop.f32.mrf.mxu0
  %v2826 = vadd.f32 0.0, %v2825
  %v2827 = vpop.f32.mrf.mxu0
  %v2828 = vadd.f32 0.0, %v2827
  %2829 = vmatmul.bf16.gmra.mxu0 %v2572
  %v2830 = vpop.f32.mrf.mxu0
  %v2831 = vadd.f32 0.0, %v2830
  %v2832 = vpop.f32.mrf.mxu0
  %v2833 = vadd.f32 0.0, %v2832
  %2834 = vmatmul.bf16.gmra.mxu0 %v2574
  %v2835 = vpop.f32.mrf.mxu0
  %v2836 = vadd.f32 0.0, %v2835
  %v2837 = vpop.f32.mrf.mxu0
  %v2838 = vadd.f32 0.0, %v2837
  %2839 = vmatmul.bf16.gmra.mxu0 %v2576
  %v2840 = vpop.f32.mrf.mxu0
  %v2841 = vadd.f32 0.0, %v2840
  %v2842 = vpop.f32.mrf.mxu0
  %v2843 = vadd.f32 0.0, %v2842
  %2844 = vmatmul.bf16.gmra.mxu0 %v2578
  %v2845 = vpop.f32.mrf.mxu0
  %v2846 = vadd.f32 0.0, %v2845
  %v2847 = vpop.f32.mrf.mxu0
  %v2848 = vadd.f32 0.0, %v2847
  %2849 = vmatmul.bf16.gmra.mxu0 %v2580
  %v2850 = vpop.f32.mrf.mxu0
  %v2851 = vadd.f32 0.0, %v2850
  %v2852 = vpop.f32.mrf.mxu0
  %v2853 = vadd.f32 0.0, %v2852
  %2854 = vmatmul.bf16.gmra.mxu0 %v2582
  %v2855 = vpop.f32.mrf.mxu0
  %v2856 = vadd.f32 0.0, %v2855
  %v2857 = vpop.f32.mrf.mxu0
  %v2858 = vadd.f32 0.0, %v2857
  %2859 = vmatmul.bf16.gmra.mxu0 %v2584
  %v2860 = vpop.f32.mrf.mxu0
  %v2861 = vadd.f32 0.0, %v2860
  %v2862 = vpop.f32.mrf.mxu0
  %v2863 = vadd.f32 0.0, %v2862
  %2864 = vdwg.mxu0
  %2865 = vmatpush.bf16.msra.mxu0 0
  %2866 = vmatpush.bf16.msra.mxu0 0
  %2867 = vmatpush.bf16.msra.mxu0 0
  %2868 = vmatpush.bf16.msra.mxu0 0
  %2869 = vmatpush.bf16.msra.mxu0 0
  %2870 = vmatpush.bf16.msra.mxu0 0
  %2871 = vmatpush.bf16.msra.mxu0 %v2673
  %2872 = vmatpush.bf16.msra.mxu0 %v2671
  %2873 = vmatmul.bf16.gmra.mxu0 %v2695
  %v2874 = vpop.f32.mrf.mxu0
  %v2875 = vadd.f32 %v2826, %v2874
  %v2876 = vpop.f32.mrf.mxu0
  %v2877 = vadd.f32 %v2828, %v2876
  %2878 = vmatmul.bf16.gmra.mxu0 %v2698
  %v2879 = vpop.f32.mrf.mxu0
  %v2880 = vadd.f32 %v2831, %v2879
  %v2881 = vpop.f32.mrf.mxu0
  %v2882 = vadd.f32 %v2833, %v2881
  %2883 = vmatmul.bf16.gmra.mxu0 %v2701
  %v2884 = vpop.f32.mrf.mxu0
  %v2885 = vadd.f32 %v2836, %v2884
  %v2886 = vpop.f32.mrf.mxu0
  %v2887 = vadd.f32 %v2838, %v2886
  %2888 = vmatmul.bf16.gmra.mxu0 %v2704
  %v2889 = vpop.f32.mrf.mxu0
  %v2890 = vadd.f32 %v2841, %v2889
  %v2891 = vpop.f32.mrf.mxu0
  %v2892 = vadd.f32 %v2843, %v2891
  %2893 = vmatmul.bf16.gmra.mxu0 %v2707
  %v2894 = vpop.f32.mrf.mxu0
  %v2895 = vadd.f32 %v2846, %v2894
  %v2896 = vpop.f32.mrf.mxu0
  %v2897 = vadd.f32 %v2848, %v2896
  %2898 = vmatmul.bf16.gmra.mxu0 %v2710
  %v2899 = vpop.f32.mrf.mxu0
  %v2900 = vadd.f32 %v2851, %v2899
  %v2901 = vpop.f32.mrf.mxu0
  %v2902 = vadd.f32 %v2853, %v2901
  %2903 = vmatmul.bf16.gmra.mxu0 %v2713
  %v2904 = vpop.f32.mrf.mxu0
  %v2905 = vadd.f32 %v2856, %v2904
  %v2906 = vpop.f32.mrf.mxu0
  %v2907 = vadd.f32 %v2858, %v2906
  %2908 = vmatmul.bf16.gmra.mxu0 %v2716
  %v2909 = vpop.f32.mrf.mxu0
  %v2910 = vadd.f32 %v2861, %v2909
  %v2911 = vpop.f32.mrf.mxu0
  %v2912 = vadd.f32 %v2863, %v2911
  %2913 = vdwg.mxu0
  %v2914 = vmax.f32 %v2777, %v2797
  %v2915 = vmax.f32 %v2875, %v2895
  %v2916 = vmax.f32 %v2779, %v2799
  %v2917 = vmax.f32 %v2877, %v2897
  %v2918 = vmax.f32 %v2782, %v2802
  %v2919 = vmax.f32 %v2880, %v2900
  %v2920 = vmax.f32 %v2784, %v2804
  %v2921 = vmax.f32 %v2882, %v2902
  %v2922 = vmax.f32 %v2787, %v2807
  %v2923 = vmax.f32 %v2885, %v2905
  %v2924 = vmax.f32 %v2789, %v2809
  %v2925 = vmax.f32 %v2887, %v2907
  %v2926 = vmax.f32 %v2792, %v2812
  %v2927 = vmax.f32 %v2890, %v2910
  %v2928 = vmax.f32 %v2794, %v2814
  %v2929 = vmax.f32 %v2892, %v2912
  %v2930 = vld [vmem:[%s2] sm:$0x3]
  %v2932 = vperm.slane %v2930, 0
  %v2933 = vperm.slane %v2930, 1
  %v2936 = vadd.f32 %v2914, %v2932
  %v2937 = vadd.f32 %v2915, %v2933
  %v2938 = vadd.f32 %v2916, %v2932
  %v2939 = vadd.f32 %v2917, %v2933
  %v2940 = vadd.f32 %v2918, %v2932
  %v2941 = vadd.f32 %v2919, %v2933
  %v2942 = vadd.f32 %v2920, %v2932
  %v2943 = vadd.f32 %v2921, %v2933
  %v2944 = vadd.f32 %v2922, %v2932
  %v2945 = vadd.f32 %v2923, %v2933
  %v2946 = vadd.f32 %v2924, %v2932
  %v2947 = vadd.f32 %v2925, %v2933
  %v2948 = vadd.f32 %v2926, %v2932
  %v2949 = vadd.f32 %v2927, %v2933
  %v2950 = vadd.f32 %v2928, %v2932
  %v2951 = vadd.f32 %v2929, %v2933
  %v2952 = vmax.f32 %v2936, 0.0
  %v2953 = vmax.f32 %v2937, 0.0
  %v2954 = vmax.f32 %v2938, 0.0
  %v2955 = vmax.f32 %v2939, 0.0
  %v2956 = vmax.f32 %v2940, 0.0
  %v2957 = vmax.f32 %v2941, 0.0
  %v2958 = vmax.f32 %v2942, 0.0
  %v2959 = vmax.f32 %v2943, 0.0
  %v2960 = vmax.f32 %v2944, 0.0
  %v2961 = vmax.f32 %v2945, 0.0
  %v2962 = vmax.f32 %v2946, 0.0
  %v2963 = vmax.f32 %v2947, 0.0
  %v2964 = vmax.f32 %v2948, 0.0
  %v2965 = vmax.f32 %v2949, 0.0
  %v2966 = vmax.f32 %v2950, 0.0
  %v2967 = vmax.f32 %v2951, 0.0
  %v2968 = vpack.c.bf16 %v2954, %v2952
  %v2969 = vpack.c.bf16 %v2955, %v2953
  %v2970 = vpack.c.bf16 %v2958, %v2956
  %v2971 = vpack.c.bf16 %v2959, %v2957
  %v2972 = vpack.c.bf16 %v2962, %v2960
  %v2973 = vpack.c.bf16 %v2963, %v2961
  %v2974 = vpack.c.bf16 %v2966, %v2964
  %v2975 = vpack.c.bf16 %v2967, %v2965
  %v2976 = vld [vmem:[%s5] sm:$0xf]
  %v2977 = vld [vmem:[%s5 + $0x4] sm:$0xf]
  %v2978 = vld [vmem:[%s5 + $0x8] sm:$0xf]
  %v2979 = vld [vmem:[%s5 + $0xc] sm:$0xf]
  %v2980 = vld [vmem:[%s5 + $0x10] sm:$0xf]
  %v2981 = vld [vmem:[%s5 + $0x14] sm:$0xf]
  %v2982 = vld [vmem:[%s5 + $0x18] sm:$0xf]
  %v2983 = vld [vmem:[%s5 + $0x1c] sm:$0xf]
  %v2984 = vld [vmem:[%s5 + $0x20] sm:$0xf]
  %v2985 = vld [vmem:[%s5 + $0x24] sm:$0xf]
  %v2986 = vld [vmem:[%s5 + $0x28] sm:$0xf]
  %v2987 = vld [vmem:[%s5 + $0x2c] sm:$0xf]
  %v2988 = vld [vmem:[%s5 + $0x30] sm:$0xf]
  %v2989 = vld [vmem:[%s5 + $0x34] sm:$0xf]
  %v2990 = vld [vmem:[%s5 + $0x38] sm:$0xf]
  %v2991 = vld [vmem:[%s5 + $0x3c] sm:$0xf]
  %v2992 = vld [vmem:[%s5 + $0x40] sm:$0xf]
  %v2993 = vld [vmem:[%s5 + $0x44] sm:$0xf]
  %v2994 = vld [vmem:[%s5 + $0x48] sm:$0xf]
  %v2995 = vld [vmem:[%s5 + $0x4c] sm:$0xf]
  %v2996 = vld [vmem:[%s5 + $0x50] sm:$0xf]
  %v3018 = vunpack.c.l.b16 %v2976
  %v3019 = vunpack.c.l.b16 %v2977
  %v3020 = vunpack.c.l.b16 %v2978
  %v3021 = vunpack.c.l.b16 %v2979
  %v3022 = vunpack.c.l.b16 %v2980
  %v3023 = vunpack.c.l.b16 %v2981
  %v3024 = vunpack.c.l.b16 %v2982
  %v3025 = vunpack.c.l.b16 %v2983
  %v3026 = vunpack.c.l.b16 %v2984
  %v3027 = vunpack.c.l.b16 %v2985
  %v3028 = vunpack.c.l.b16 %v2986
  %v3029 = vunpack.c.l.b16 %v2987
  %v3030 = vunpack.c.l.b16 %v2988
  %v3031 = vunpack.c.l.b16 %v2989
  %v3032 = vunpack.c.l.b16 %v2990
  %v3033 = vunpack.c.l.b16 %v2991
  %v3034 = vunpack.c.l.b16 %v2992
  %v3035 = vunpack.c.l.b16 %v2993
  %v3036 = vunpack.c.l.b16 %v2994
  %v3037 = vunpack.c.l.b16 %v2995
  %v3038 = vunpack.c.l.b16 %v2996
  %v3039 = vpack.c.b16 %v3019, %v3018
  %v3040 = vpack.c.b16 %v3021, %v3020
  %v3041 = vpack.c.b16 %v3023, %v3022
  %v3042 = vpack.c.b16 %v3025, %v3024
  %v3043 = vpack.c.b16 %v3027, %v3026
  %v3044 = vpack.c.b16 %v3029, %v3028
  %v3045 = vpack.c.b16 %v3031, %v3030
  %v3046 = vpack.c.b16 %v3033, %v3032
  %v3047 = vpack.c.b16 %v3035, %v3034
  %v3048 = vpack.c.b16 %v3037, %v3036
  %v3049 = vpack.c.b16 %v3038, %v3038
  %v3061 = vsel %vm610, %v2969, 0
  %v3064 = vsel %vm610, %v2971, 0
  %v3067 = vsel %vm610, %v2973, 0
  %v3070 = vsel %vm610, %v2975, 0
  %v3073 = vsel %vm623, %v3049, 0
  %3075 = vmatpush.bf16.msra.mxu0 %v3046
  %3076 = vmatpush.bf16.msra.mxu0 %v3045
  %3077 = vmatpush.bf16.msra.mxu0 %v3044
  %3078 = vmatpush.bf16.msra.mxu0 %v3043
  %3079 = vmatpush.bf16.msra.mxu0 %v3042
  %3080 = vmatpush.bf16.msra.mxu0 %v3041
  %3081 = vmatpush.bf16.msra.mxu0 %v3040
  %3082 = vmatpush.bf16.msra.mxu0 %v3039
  %3083 = vmatmul.bf16.gmra.mxu0 %v2968
  %v3084 = vpop.f32.mrf.mxu0
  %v3085 = vadd.f32 0.0, %v3084
  %v3086 = vpop.f32.mrf.mxu0
  %v3087 = vadd.f32 0.0, %v3086
  %3088 = vmatmul.bf16.gmra.mxu0 %v2970
  %v3089 = vpop.f32.mrf.mxu0
  %v3090 = vadd.f32 0.0, %v3089
  %v3091 = vpop.f32.mrf.mxu0
  %v3092 = vadd.f32 0.0, %v3091
  %3093 = vmatmul.bf16.gmra.mxu0 %v2972
  %v3094 = vpop.f32.mrf.mxu0
  %v3095 = vadd.f32 0.0, %v3094
  %v3096 = vpop.f32.mrf.mxu0
  %v3097 = vadd.f32 0.0, %v3096
  %3098 = vmatmul.bf16.gmra.mxu0 %v2974
  %v3099 = vpop.f32.mrf.mxu0
  %v3100 = vadd.f32 0.0, %v3099
  %v3101 = vpop.f32.mrf.mxu0
  %v3102 = vadd.f32 0.0, %v3101
  %3103 = vdwg.mxu0
  %3104 = vmatpush.bf16.msra.mxu0 0
  %3105 = vmatpush.bf16.msra.mxu0 0
  %3106 = vmatpush.bf16.msra.mxu0 0
  %3107 = vmatpush.bf16.msra.mxu0 0
  %3108 = vmatpush.bf16.msra.mxu0 0
  %3109 = vmatpush.bf16.msra.mxu0 %v3073
  %3110 = vmatpush.bf16.msra.mxu0 %v3048
  %3111 = vmatpush.bf16.msra.mxu0 %v3047
  %3112 = vmatmul.bf16.gmra.mxu0 %v3061
  %v3113 = vpop.f32.mrf.mxu0
  %v3114 = vadd.f32 %v3085, %v3113
  %v3115 = vpop.f32.mrf.mxu0
  %v3116 = vadd.f32 %v3087, %v3115
  %3117 = vmatmul.bf16.gmra.mxu0 %v3064
  %v3118 = vpop.f32.mrf.mxu0
  %v3119 = vadd.f32 %v3090, %v3118
  %v3120 = vpop.f32.mrf.mxu0
  %v3121 = vadd.f32 %v3092, %v3120
  %3122 = vmatmul.bf16.gmra.mxu0 %v3067
  %v3123 = vpop.f32.mrf.mxu0
  %v3124 = vadd.f32 %v3095, %v3123
  %v3125 = vpop.f32.mrf.mxu0
  %v3126 = vadd.f32 %v3097, %v3125
  %3127 = vmatmul.bf16.gmra.mxu0 %v3070
  %v3128 = vpop.f32.mrf.mxu0
  %v3129 = vadd.f32 %v3100, %v3128
  %v3130 = vpop.f32.mrf.mxu0
  %v3131 = vadd.f32 %v3102, %v3130
  %3132 = vdwg.mxu0
  %v3133 = vld [vmem:[%s6] sm:$0xf]
  %v3134 = vld [vmem:[%s6 + $0x4] sm:$0xf]
  %v3135 = vld [vmem:[%s6 + $0x8] sm:$0xf]
  %v3136 = vld [vmem:[%s6 + $0xc] sm:$0xf]
  %v3137 = vld [vmem:[%s6 + $0x10] sm:$0xf]
  %v3138 = vld [vmem:[%s6 + $0x14] sm:$0xf]
  %v3139 = vld [vmem:[%s6 + $0x18] sm:$0xf]
  %v3140 = vld [vmem:[%s6 + $0x1c] sm:$0xf]
  %v3141 = vld [vmem:[%s6 + $0x20] sm:$0xf]
  %v3142 = vld [vmem:[%s6 + $0x24] sm:$0xf]
  %v3143 = vld [vmem:[%s6 + $0x28] sm:$0xf]
  %v3144 = vld [vmem:[%s6 + $0x2c] sm:$0xf]
  %v3145 = vld [vmem:[%s6 + $0x30] sm:$0xf]
  %v3146 = vld [vmem:[%s6 + $0x34] sm:$0xf]
  %v3147 = vld [vmem:[%s6 + $0x38] sm:$0xf]
  %v3148 = vld [vmem:[%s6 + $0x3c] sm:$0xf]
  %v3149 = vld [vmem:[%s6 + $0x40] sm:$0xf]
  %v3150 = vld [vmem:[%s6 + $0x44] sm:$0xf]
  %v3151 = vld [vmem:[%s6 + $0x48] sm:$0xf]
  %v3152 = vld [vmem:[%s6 + $0x4c] sm:$0xf]
  %v3153 = vld [vmem:[%s6 + $0x50] sm:$0xf]
  %v3175 = vunpack.c.l.b16 %v3133
  %v3176 = vunpack.c.l.b16 %v3134
  %v3177 = vunpack.c.l.b16 %v3135
  %v3178 = vunpack.c.l.b16 %v3136
  %v3179 = vunpack.c.l.b16 %v3137
  %v3180 = vunpack.c.l.b16 %v3138
  %v3181 = vunpack.c.l.b16 %v3139
  %v3182 = vunpack.c.l.b16 %v3140
  %v3183 = vunpack.c.l.b16 %v3141
  %v3184 = vunpack.c.l.b16 %v3142
  %v3185 = vunpack.c.l.b16 %v3143
  %v3186 = vunpack.c.l.b16 %v3144
  %v3187 = vunpack.c.l.b16 %v3145
  %v3188 = vunpack.c.l.b16 %v3146
  %v3189 = vunpack.c.l.b16 %v3147
  %v3190 = vunpack.c.l.b16 %v3148
  %v3191 = vunpack.c.l.b16 %v3149
  %v3192 = vunpack.c.l.b16 %v3150
  %v3193 = vunpack.c.l.b16 %v3151
  %v3194 = vunpack.c.l.b16 %v3152
  %v3195 = vunpack.c.l.b16 %v3153
  %v3196 = vpack.c.b16 %v3176, %v3175
  %v3197 = vpack.c.b16 %v3178, %v3177
  %v3198 = vpack.c.b16 %v3180, %v3179
  %v3199 = vpack.c.b16 %v3182, %v3181
  %v3200 = vpack.c.b16 %v3184, %v3183
  %v3201 = vpack.c.b16 %v3186, %v3185
  %v3202 = vpack.c.b16 %v3188, %v3187
  %v3203 = vpack.c.b16 %v3190, %v3189
  %v3204 = vpack.c.b16 %v3192, %v3191
  %v3205 = vpack.c.b16 %v3194, %v3193
  %v3206 = vpack.c.b16 %v3195, %v3195
  %v3218 = vsel %vm623, %v3206, 0
  %3220 = vmatpush.bf16.msra.mxu0 %v3203
  %3221 = vmatpush.bf16.msra.mxu0 %v3202
  %3222 = vmatpush.bf16.msra.mxu0 %v3201
  %3223 = vmatpush.bf16.msra.mxu0 %v3200
  %3224 = vmatpush.bf16.msra.mxu0 %v3199
  %3225 = vmatpush.bf16.msra.mxu0 %v3198
  %3226 = vmatpush.bf16.msra.mxu0 %v3197
  %3227 = vmatpush.bf16.msra.mxu0 %v3196
  %3228 = vmatmul.bf16.gmra.mxu0 %v2968
  %v3229 = vpop.f32.mrf.mxu0
  %v3230 = vadd.f32 0.0, %v3229
  %v3231 = vpop.f32.mrf.mxu0
  %v3232 = vadd.f32 0.0, %v3231
  %3233 = vmatmul.bf16.gmra.mxu0 %v2970
  %v3234 = vpop.f32.mrf.mxu0
  %v3235 = vadd.f32 0.0, %v3234
  %v3236 = vpop.f32.mrf.mxu0
  %v3237 = vadd.f32 0.0, %v3236
  %3238 = vmatmul.bf16.gmra.mxu0 %v2972
  %v3239 = vpop.f32.mrf.mxu0
  %v3240 = vadd.f32 0.0, %v3239
  %v3241 = vpop.f32.mrf.mxu0
  %v3242 = vadd.f32 0.0, %v3241
  %3243 = vmatmul.bf16.gmra.mxu0 %v2974
  %v3244 = vpop.f32.mrf.mxu0
  %v3245 = vadd.f32 0.0, %v3244
  %v3246 = vpop.f32.mrf.mxu0
  %v3247 = vadd.f32 0.0, %v3246
  %3248 = vdwg.mxu0
  %3249 = vmatpush.bf16.msra.mxu0 0
  %3250 = vmatpush.bf16.msra.mxu0 0
  %3251 = vmatpush.bf16.msra.mxu0 0
  %3252 = vmatpush.bf16.msra.mxu0 0
  %3253 = vmatpush.bf16.msra.mxu0 0
  %3254 = vmatpush.bf16.msra.mxu0 %v3218
  %3255 = vmatpush.bf16.msra.mxu0 %v3205
  %3256 = vmatpush.bf16.msra.mxu0 %v3204
  %3257 = vmatmul.bf16.gmra.mxu0 %v3061
  %v3258 = vpop.f32.mrf.mxu0
  %v3259 = vadd.f32 %v3230, %v3258
  %v3260 = vpop.f32.mrf.mxu0
  %v3261 = vadd.f32 %v3232, %v3260
  %3262 = vmatmul.bf16.gmra.mxu0 %v3064
  %v3263 = vpop.f32.mrf.mxu0
  %v3264 = vadd.f32 %v3235, %v3263
  %v3265 = vpop.f32.mrf.mxu0
  %v3266 = vadd.f32 %v3237, %v3265
  %3267 = vmatmul.bf16.gmra.mxu0 %v3067
  %v3268 = vpop.f32.mrf.mxu0
  %v3269 = vadd.f32 %v3240, %v3268
  %v3270 = vpop.f32.mrf.mxu0
  %v3271 = vadd.f32 %v3242, %v3270
  %3272 = vmatmul.bf16.gmra.mxu0 %v3070
  %v3273 = vpop.f32.mrf.mxu0
  %v3274 = vadd.f32 %v3245, %v3273
  %v3275 = vpop.f32.mrf.mxu0
  %v3276 = vadd.f32 %v3247, %v3275
  %3277 = vdwg.mxu0
  %v3278 = vmax.f32 %v3114, %v3259
  %v3279 = vmax.f32 %v3116, %v3261
  %v3280 = vmax.f32 %v3119, %v3264
  %v3281 = vmax.f32 %v3121, %v3266
  %v3282 = vmax.f32 %v3124, %v3269
  %v3283 = vmax.f32 %v3126, %v3271
  %v3284 = vmax.f32 %v3129, %v3274
  %v3285 = vmax.f32 %v3131, %v3276
  %v3286 = vpack.c.bf16 %v3278, %v3278
  %v3287 = vpack.c.bf16 %v3279, %v3279
  %v3288 = vpack.c.bf16 %v3280, %v3280
  %v3289 = vpack.c.bf16 %v3281, %v3281
  %v3290 = vpack.c.bf16 %v3282, %v3282
  %v3291 = vpack.c.bf16 %v3283, %v3283
  %v3292 = vpack.c.bf16 %v3284, %v3284
  %v3293 = vpack.c.bf16 %v3285, %v3285
  %3294 = vst.msk [vmem:[#allocation2 + $0x60] sm:$0xf] %vm33, %v3286
  %3295 = vst.msk [vmem:[#allocation2 + $0x64] sm:$0xf] %vm33, %v3287
  %3296 = vst.msk [vmem:[#allocation2 + $0x68] sm:$0xf] %vm33, %v3288
  %3297 = vst.msk [vmem:[#allocation2 + $0x6c] sm:$0xf] %vm33, %v3289
  %3298 = vst.msk [vmem:[#allocation2 + $0x70] sm:$0xf] %vm33, %v3290
  %3299 = vst.msk [vmem:[#allocation2 + $0x74] sm:$0xf] %vm33, %v3291
  %3300 = vst.msk [vmem:[#allocation2 + $0x78] sm:$0xf] %vm33, %v3292
  %3301 = vst.msk [vmem:[#allocation2 + $0x7c] sm:$0xf] %vm33, %v3293
  %v3302 = vld [vmem:[%s0 + $0x200] sm:$0xff]
  %v3303 = vld [vmem:[%s0 + $0x208] sm:$0xff]
  %v3304 = vld [vmem:[%s0 + $0x210] sm:$0xff]
  %v3305 = vld [vmem:[%s0 + $0x218] sm:$0xff]
  %v3306 = vld [vmem:[%s0 + $0x220] sm:$0xff]
  %v3307 = vld [vmem:[%s0 + $0x228] sm:$0xff]
  %v3308 = vld [vmem:[%s0 + $0x230] sm:$0xff]
  %v3309 = vld [vmem:[%s0 + $0x238] sm:$0xff]
  %v3310 = vld [vmem:[%s0 + $0x240] sm:$0xff]
  %v3311 = vld [vmem:[%s0 + $0x248] sm:$0xff]
  %v3312 = vld [vmem:[%s0 + $0x250] sm:$0xff]
  %v3313 = vld [vmem:[%s0 + $0x258] sm:$0xff]
  %v3314 = vld [vmem:[%s0 + $0x260] sm:$0xff]
  %v3315 = vld [vmem:[%s0 + $0x268] sm:$0xff]
  %v3316 = vld [vmem:[%s0 + $0x270] sm:$0xff]
  %v3317 = vld [vmem:[%s0 + $0x278] sm:$0xff]
  %v3318 = vld [vmem:[%s1] sm:$0xff]
  %v3319 = vld [vmem:[%s1 + $0x8] sm:$0xff]
  %v3320 = vld [vmem:[%s1 + $0x10] sm:$0xff]
  %v3321 = vld [vmem:[%s1 + $0x18] sm:$0xff]
  %v3322 = vld [vmem:[%s1 + $0x20] sm:$0xff]
  %v3323 = vld [vmem:[%s1 + $0x28] sm:$0xff]
  %v3324 = vld [vmem:[%s1 + $0x30] sm:$0xff]
  %v3325 = vld [vmem:[%s1 + $0x38] sm:$0xff]
  %v3326 = vld [vmem:[%s1 + $0x40] sm:$0xff]
  %v3327 = vld [vmem:[%s1 + $0x48] sm:$0xff]
  %v3328 = vld [vmem:[%s1 + $0x50] sm:$0xff]
  %v3329 = vld [vmem:[%s1 + $0x58] sm:$0xff]
  %v3330 = vld [vmem:[%s1 + $0x60] sm:$0xff]
  %v3331 = vld [vmem:[%s1 + $0x68] sm:$0xff]
  %v3332 = vld [vmem:[%s1 + $0x70] sm:$0xff]
  %v3333 = vld [vmem:[%s1 + $0x78] sm:$0xff]
  %v3334 = vld [vmem:[%s1 + $0x80] sm:$0xff]
  %v3335 = vld [vmem:[%s1 + $0x88] sm:$0xff]
  %v3336 = vld [vmem:[%s1 + $0x90] sm:$0xff]
  %v3337 = vld [vmem:[%s1 + $0x98] sm:$0xff]
  %v3354 = vunpack.c.l.b16 %v3302
  %v3355 = vunpack.c.h.b16 %v3302
  %v3356 = vunpack.c.l.b16 %v3303
  %v3357 = vunpack.c.h.b16 %v3303
  %v3358 = vunpack.c.l.b16 %v3304
  %v3359 = vunpack.c.h.b16 %v3304
  %v3360 = vunpack.c.l.b16 %v3305
  %v3361 = vunpack.c.h.b16 %v3305
  %v3362 = vunpack.c.l.b16 %v3306
  %v3363 = vunpack.c.h.b16 %v3306
  %v3364 = vunpack.c.l.b16 %v3307
  %v3365 = vunpack.c.h.b16 %v3307
  %v3366 = vunpack.c.l.b16 %v3308
  %v3367 = vunpack.c.h.b16 %v3308
  %v3368 = vunpack.c.l.b16 %v3309
  %v3369 = vunpack.c.h.b16 %v3309
  %v3370 = vunpack.c.l.b16 %v3310
  %v3371 = vunpack.c.h.b16 %v3310
  %v3372 = vunpack.c.l.b16 %v3311
  %v3373 = vunpack.c.h.b16 %v3311
  %v3374 = vunpack.c.l.b16 %v3312
  %v3375 = vunpack.c.h.b16 %v3312
  %v3376 = vunpack.c.l.b16 %v3313
  %v3377 = vunpack.c.h.b16 %v3313
  %v3378 = vunpack.c.l.b16 %v3314
  %v3379 = vunpack.c.h.b16 %v3314
  %v3380 = vunpack.c.l.b16 %v3315
  %v3381 = vunpack.c.h.b16 %v3315
  %v3382 = vunpack.c.l.b16 %v3316
  %v3383 = vunpack.c.h.b16 %v3316
  %v3384 = vunpack.c.l.b16 %v3317
  %v3385 = vunpack.c.h.b16 %v3317
  %v3386 = vpack.c.b16 %v3356, %v3354
  %v3387 = vpack.c.b16 %v3357, %v3355
  %v3388 = vpack.c.b16 %v3360, %v3358
  %v3389 = vpack.c.b16 %v3361, %v3359
  %v3390 = vpack.c.b16 %v3364, %v3362
  %v3391 = vpack.c.b16 %v3365, %v3363
  %v3392 = vpack.c.b16 %v3368, %v3366
  %v3393 = vpack.c.b16 %v3369, %v3367
  %v3394 = vpack.c.b16 %v3372, %v3370
  %v3395 = vpack.c.b16 %v3373, %v3371
  %v3396 = vpack.c.b16 %v3376, %v3374
  %v3397 = vpack.c.b16 %v3377, %v3375
  %v3398 = vpack.c.b16 %v3380, %v3378
  %v3399 = vpack.c.b16 %v3381, %v3379
  %v3400 = vpack.c.b16 %v3384, %v3382
  %v3401 = vpack.c.b16 %v3385, %v3383
  %v3430 = vunpack.c.l.b16 %v3318
  %v3431 = vunpack.c.h.b16 %v3318
  %v3432 = vunpack.c.l.b16 %v3319
  %v3433 = vunpack.c.h.b16 %v3319
  %v3434 = vunpack.c.l.b16 %v3320
  %v3435 = vunpack.c.h.b16 %v3320
  %v3436 = vunpack.c.l.b16 %v3321
  %v3437 = vunpack.c.h.b16 %v3321
  %v3438 = vunpack.c.l.b16 %v3322
  %v3439 = vunpack.c.h.b16 %v3322
  %v3440 = vunpack.c.l.b16 %v3323
  %v3441 = vunpack.c.h.b16 %v3323
  %v3442 = vunpack.c.l.b16 %v3324
  %v3443 = vunpack.c.h.b16 %v3324
  %v3444 = vunpack.c.l.b16 %v3325
  %v3445 = vunpack.c.h.b16 %v3325
  %v3446 = vunpack.c.l.b16 %v3326
  %v3447 = vunpack.c.h.b16 %v3326
  %v3448 = vunpack.c.l.b16 %v3327
  %v3449 = vunpack.c.h.b16 %v3327
  %v3450 = vunpack.c.l.b16 %v3328
  %v3451 = vunpack.c.h.b16 %v3328
  %v3452 = vunpack.c.l.b16 %v3329
  %v3453 = vunpack.c.h.b16 %v3329
  %v3454 = vunpack.c.l.b16 %v3330
  %v3455 = vunpack.c.h.b16 %v3330
  %v3456 = vunpack.c.l.b16 %v3331
  %v3457 = vunpack.c.h.b16 %v3331
  %v3458 = vunpack.c.l.b16 %v3332
  %v3459 = vunpack.c.h.b16 %v3332
  %v3460 = vunpack.c.l.b16 %v3333
  %v3461 = vunpack.c.h.b16 %v3333
  %v3462 = vunpack.c.l.b16 %v3334
  %v3463 = vunpack.c.h.b16 %v3334
  %v3464 = vunpack.c.l.b16 %v3335
  %v3465 = vunpack.c.h.b16 %v3335
  %v3466 = vunpack.c.l.b16 %v3336
  %v3467 = vunpack.c.h.b16 %v3336
  %v3468 = vunpack.c.l.b16 %v3337
  %v3469 = vunpack.c.h.b16 %v3337
  %v3470 = vpack.c.b16 %v3432, %v3430
  %v3471 = vpack.c.b16 %v3433, %v3431
  %v3472 = vpack.c.b16 %v3436, %v3434
  %v3473 = vpack.c.b16 %v3437, %v3435
  %v3474 = vpack.c.b16 %v3440, %v3438
  %v3475 = vpack.c.b16 %v3441, %v3439
  %v3476 = vpack.c.b16 %v3444, %v3442
  %v3477 = vpack.c.b16 %v3445, %v3443
  %v3478 = vpack.c.b16 %v3448, %v3446
  %v3479 = vpack.c.b16 %v3449, %v3447
  %v3480 = vpack.c.b16 %v3452, %v3450
  %v3481 = vpack.c.b16 %v3453, %v3451
  %v3482 = vpack.c.b16 %v3456, %v3454
  %v3483 = vpack.c.b16 %v3457, %v3455
  %v3484 = vpack.c.b16 %v3460, %v3458
  %v3485 = vpack.c.b16 %v3461, %v3459
  %v3486 = vpack.c.b16 %v3464, %v3462
  %v3487 = vpack.c.b16 %v3465, %v3463
  %v3488 = vpack.c.b16 %v3468, %v3466
  %v3489 = vpack.c.b16 %v3469, %v3467
  %v3511 = vsel %vm243, %v3387, 0
  %v3514 = vsel %vm243, %v3389, 0
  %v3517 = vsel %vm243, %v3391, 0
  %v3520 = vsel %vm243, %v3393, 0
  %v3523 = vsel %vm243, %v3395, 0
  %v3526 = vsel %vm243, %v3397, 0
  %v3529 = vsel %vm243, %v3399, 0
  %v3532 = vsel %vm243, %v3401, 0
  %3534 = vmatpush.bf16.msra.mxu0 %v3484
  %3535 = vmatpush.bf16.msra.mxu0 %v3482
  %3536 = vmatpush.bf16.msra.mxu0 %v3480
  %3537 = vmatpush.bf16.msra.mxu0 %v3478
  %3538 = vmatpush.bf16.msra.mxu0 %v3476
  %3539 = vmatpush.bf16.msra.mxu0 %v3474
  %3540 = vmatpush.bf16.msra.mxu0 %v3472
  %3541 = vmatpush.bf16.msra.mxu0 %v3470
  %3542 = vmatmul.bf16.gmra.mxu0 %v3386
  %v3543 = vpop.f32.mrf.mxu0
  %v3544 = vadd.f32 0.0, %v3543
  %v3545 = vpop.f32.mrf.mxu0
  %v3546 = vadd.f32 0.0, %v3545
  %3547 = vmatmul.bf16.gmra.mxu0 %v3388
  %v3548 = vpop.f32.mrf.mxu0
  %v3549 = vadd.f32 0.0, %v3548
  %v3550 = vpop.f32.mrf.mxu0
  %v3551 = vadd.f32 0.0, %v3550
  %3552 = vmatmul.bf16.gmra.mxu0 %v3390
  %v3553 = vpop.f32.mrf.mxu0
  %v3554 = vadd.f32 0.0, %v3553
  %v3555 = vpop.f32.mrf.mxu0
  %v3556 = vadd.f32 0.0, %v3555
  %3557 = vmatmul.bf16.gmra.mxu0 %v3392
  %v3558 = vpop.f32.mrf.mxu0
  %v3559 = vadd.f32 0.0, %v3558
  %v3560 = vpop.f32.mrf.mxu0
  %v3561 = vadd.f32 0.0, %v3560
  %3562 = vmatmul.bf16.gmra.mxu0 %v3394
  %v3563 = vpop.f32.mrf.mxu0
  %v3564 = vadd.f32 0.0, %v3563
  %v3565 = vpop.f32.mrf.mxu0
  %v3566 = vadd.f32 0.0, %v3565
  %3567 = vmatmul.bf16.gmra.mxu0 %v3396
  %v3568 = vpop.f32.mrf.mxu0
  %v3569 = vadd.f32 0.0, %v3568
  %v3570 = vpop.f32.mrf.mxu0
  %v3571 = vadd.f32 0.0, %v3570
  %3572 = vmatmul.bf16.gmra.mxu0 %v3398
  %v3573 = vpop.f32.mrf.mxu0
  %v3574 = vadd.f32 0.0, %v3573
  %v3575 = vpop.f32.mrf.mxu0
  %v3576 = vadd.f32 0.0, %v3575
  %3577 = vmatmul.bf16.gmra.mxu0 %v3400
  %v3578 = vpop.f32.mrf.mxu0
  %v3579 = vadd.f32 0.0, %v3578
  %v3580 = vpop.f32.mrf.mxu0
  %v3581 = vadd.f32 0.0, %v3580
  %3582 = vdwg.mxu0
  %3583 = vmatpush.bf16.msra.mxu0 0
  %3584 = vmatpush.bf16.msra.mxu0 0
  %3585 = vmatpush.bf16.msra.mxu0 0
  %3586 = vmatpush.bf16.msra.mxu0 0
  %3587 = vmatpush.bf16.msra.mxu0 0
  %3588 = vmatpush.bf16.msra.mxu0 0
  %3589 = vmatpush.bf16.msra.mxu0 %v3488
  %3590 = vmatpush.bf16.msra.mxu0 %v3486
  %3591 = vmatmul.bf16.gmra.mxu0 %v3511
  %v3592 = vpop.f32.mrf.mxu0
  %v3593 = vadd.f32 %v3544, %v3592
  %v3594 = vpop.f32.mrf.mxu0
  %v3595 = vadd.f32 %v3546, %v3594
  %3596 = vmatmul.bf16.gmra.mxu0 %v3514
  %v3597 = vpop.f32.mrf.mxu0
  %v3598 = vadd.f32 %v3549, %v3597
  %v3599 = vpop.f32.mrf.mxu0
  %v3600 = vadd.f32 %v3551, %v3599
  %3601 = vmatmul.bf16.gmra.mxu0 %v3517
  %v3602 = vpop.f32.mrf.mxu0
  %v3603 = vadd.f32 %v3554, %v3602
  %v3604 = vpop.f32.mrf.mxu0
  %v3605 = vadd.f32 %v3556, %v3604
  %3606 = vmatmul.bf16.gmra.mxu0 %v3520
  %v3607 = vpop.f32.mrf.mxu0
  %v3608 = vadd.f32 %v3559, %v3607
  %v3609 = vpop.f32.mrf.mxu0
  %v3610 = vadd.f32 %v3561, %v3609
  %3611 = vmatmul.bf16.gmra.mxu0 %v3523
  %v3612 = vpop.f32.mrf.mxu0
  %v3613 = vadd.f32 %v3564, %v3612
  %v3614 = vpop.f32.mrf.mxu0
  %v3615 = vadd.f32 %v3566, %v3614
  %3616 = vmatmul.bf16.gmra.mxu0 %v3526
  %v3617 = vpop.f32.mrf.mxu0
  %v3618 = vadd.f32 %v3569, %v3617
  %v3619 = vpop.f32.mrf.mxu0
  %v3620 = vadd.f32 %v3571, %v3619
  %3621 = vmatmul.bf16.gmra.mxu0 %v3529
  %v3622 = vpop.f32.mrf.mxu0
  %v3623 = vadd.f32 %v3574, %v3622
  %v3624 = vpop.f32.mrf.mxu0
  %v3625 = vadd.f32 %v3576, %v3624
  %3626 = vmatmul.bf16.gmra.mxu0 %v3532
  %v3627 = vpop.f32.mrf.mxu0
  %v3628 = vadd.f32 %v3579, %v3627
  %v3629 = vpop.f32.mrf.mxu0
  %v3630 = vadd.f32 %v3581, %v3629
  %3631 = vdwg.mxu0
  %3632 = vmatpush.bf16.msra.mxu0 %v3485
  %3633 = vmatpush.bf16.msra.mxu0 %v3483
  %3634 = vmatpush.bf16.msra.mxu0 %v3481
  %3635 = vmatpush.bf16.msra.mxu0 %v3479
  %3636 = vmatpush.bf16.msra.mxu0 %v3477
  %3637 = vmatpush.bf16.msra.mxu0 %v3475
  %3638 = vmatpush.bf16.msra.mxu0 %v3473
  %3639 = vmatpush.bf16.msra.mxu0 %v3471
  %3640 = vmatmul.bf16.gmra.mxu0 %v3386
  %v3641 = vpop.f32.mrf.mxu0
  %v3642 = vadd.f32 0.0, %v3641
  %v3643 = vpop.f32.mrf.mxu0
  %v3644 = vadd.f32 0.0, %v3643
  %3645 = vmatmul.bf16.gmra.mxu0 %v3388
  %v3646 = vpop.f32.mrf.mxu0
  %v3647 = vadd.f32 0.0, %v3646
  %v3648 = vpop.f32.mrf.mxu0
  %v3649 = vadd.f32 0.0, %v3648
  %3650 = vmatmul.bf16.gmra.mxu0 %v3390
  %v3651 = vpop.f32.mrf.mxu0
  %v3652 = vadd.f32 0.0, %v3651
  %v3653 = vpop.f32.mrf.mxu0
  %v3654 = vadd.f32 0.0, %v3653
  %3655 = vmatmul.bf16.gmra.mxu0 %v3392
  %v3656 = vpop.f32.mrf.mxu0
  %v3657 = vadd.f32 0.0, %v3656
  %v3658 = vpop.f32.mrf.mxu0
  %v3659 = vadd.f32 0.0, %v3658
  %3660 = vmatmul.bf16.gmra.mxu0 %v3394
  %v3661 = vpop.f32.mrf.mxu0
  %v3662 = vadd.f32 0.0, %v3661
  %v3663 = vpop.f32.mrf.mxu0
  %v3664 = vadd.f32 0.0, %v3663
  %3665 = vmatmul.bf16.gmra.mxu0 %v3396
  %v3666 = vpop.f32.mrf.mxu0
  %v3667 = vadd.f32 0.0, %v3666
  %v3668 = vpop.f32.mrf.mxu0
  %v3669 = vadd.f32 0.0, %v3668
  %3670 = vmatmul.bf16.gmra.mxu0 %v3398
  %v3671 = vpop.f32.mrf.mxu0
  %v3672 = vadd.f32 0.0, %v3671
  %v3673 = vpop.f32.mrf.mxu0
  %v3674 = vadd.f32 0.0, %v3673
  %3675 = vmatmul.bf16.gmra.mxu0 %v3400
  %v3676 = vpop.f32.mrf.mxu0
  %v3677 = vadd.f32 0.0, %v3676
  %v3678 = vpop.f32.mrf.mxu0
  %v3679 = vadd.f32 0.0, %v3678
  %3680 = vdwg.mxu0
  %3681 = vmatpush.bf16.msra.mxu0 0
  %3682 = vmatpush.bf16.msra.mxu0 0
  %3683 = vmatpush.bf16.msra.mxu0 0
  %3684 = vmatpush.bf16.msra.mxu0 0
  %3685 = vmatpush.bf16.msra.mxu0 0
  %3686 = vmatpush.bf16.msra.mxu0 0
  %3687 = vmatpush.bf16.msra.mxu0 %v3489
  %3688 = vmatpush.bf16.msra.mxu0 %v3487
  %3689 = vmatmul.bf16.gmra.mxu0 %v3511
  %v3690 = vpop.f32.mrf.mxu0
  %v3691 = vadd.f32 %v3642, %v3690
  %v3692 = vpop.f32.mrf.mxu0
  %v3693 = vadd.f32 %v3644, %v3692
  %3694 = vmatmul.bf16.gmra.mxu0 %v3514
  %v3695 = vpop.f32.mrf.mxu0
  %v3696 = vadd.f32 %v3647, %v3695
  %v3697 = vpop.f32.mrf.mxu0
  %v3698 = vadd.f32 %v3649, %v3697
  %3699 = vmatmul.bf16.gmra.mxu0 %v3517
  %v3700 = vpop.f32.mrf.mxu0
  %v3701 = vadd.f32 %v3652, %v3700
  %v3702 = vpop.f32.mrf.mxu0
  %v3703 = vadd.f32 %v3654, %v3702
  %3704 = vmatmul.bf16.gmra.mxu0 %v3520
  %v3705 = vpop.f32.mrf.mxu0
  %v3706 = vadd.f32 %v3657, %v3705
  %v3707 = vpop.f32.mrf.mxu0
  %v3708 = vadd.f32 %v3659, %v3707
  %3709 = vmatmul.bf16.gmra.mxu0 %v3523
  %v3710 = vpop.f32.mrf.mxu0
  %v3711 = vadd.f32 %v3662, %v3710
  %v3712 = vpop.f32.mrf.mxu0
  %v3713 = vadd.f32 %v3664, %v3712
  %3714 = vmatmul.bf16.gmra.mxu0 %v3526
  %v3715 = vpop.f32.mrf.mxu0
  %v3716 = vadd.f32 %v3667, %v3715
  %v3717 = vpop.f32.mrf.mxu0
  %v3718 = vadd.f32 %v3669, %v3717
  %3719 = vmatmul.bf16.gmra.mxu0 %v3529
  %v3720 = vpop.f32.mrf.mxu0
  %v3721 = vadd.f32 %v3672, %v3720
  %v3722 = vpop.f32.mrf.mxu0
  %v3723 = vadd.f32 %v3674, %v3722
  %3724 = vmatmul.bf16.gmra.mxu0 %v3532
  %v3725 = vpop.f32.mrf.mxu0
  %v3726 = vadd.f32 %v3677, %v3725
  %v3727 = vpop.f32.mrf.mxu0
  %v3728 = vadd.f32 %v3679, %v3727
  %3729 = vdwg.mxu0
  %v3730 = vmax.f32 %v3593, %v3613
  %v3731 = vmax.f32 %v3691, %v3711
  %v3732 = vmax.f32 %v3595, %v3615
  %v3733 = vmax.f32 %v3693, %v3713
  %v3734 = vmax.f32 %v3598, %v3618
  %v3735 = vmax.f32 %v3696, %v3716
  %v3736 = vmax.f32 %v3600, %v3620
  %v3737 = vmax.f32 %v3698, %v3718
  %v3738 = vmax.f32 %v3603, %v3623
  %v3739 = vmax.f32 %v3701, %v3721
  %v3740 = vmax.f32 %v3605, %v3625
  %v3741 = vmax.f32 %v3703, %v3723
  %v3742 = vmax.f32 %v3608, %v3628
  %v3743 = vmax.f32 %v3706, %v3726
  %v3744 = vmax.f32 %v3610, %v3630
  %v3745 = vmax.f32 %v3708, %v3728
  %v3746 = vld [vmem:[%s2] sm:$0x3]
  %v3748 = vperm.slane %v3746, 0
  %v3749 = vperm.slane %v3746, 1
  %v3752 = vadd.f32 %v3730, %v3748
  %v3753 = vadd.f32 %v3731, %v3749
  %v3754 = vadd.f32 %v3732, %v3748
  %v3755 = vadd.f32 %v3733, %v3749
  %v3756 = vadd.f32 %v3734, %v3748
  %v3757 = vadd.f32 %v3735, %v3749
  %v3758 = vadd.f32 %v3736, %v3748
  %v3759 = vadd.f32 %v3737, %v3749
  %v3760 = vadd.f32 %v3738, %v3748
  %v3761 = vadd.f32 %v3739, %v3749
  %v3762 = vadd.f32 %v3740, %v3748
  %v3763 = vadd.f32 %v3741, %v3749
  %v3764 = vadd.f32 %v3742, %v3748
  %v3765 = vadd.f32 %v3743, %v3749
  %v3766 = vadd.f32 %v3744, %v3748
  %v3767 = vadd.f32 %v3745, %v3749
  %v3768 = vmax.f32 %v3752, 0.0
  %v3769 = vmax.f32 %v3753, 0.0
  %v3770 = vmax.f32 %v3754, 0.0
  %v3771 = vmax.f32 %v3755, 0.0
  %v3772 = vmax.f32 %v3756, 0.0
  %v3773 = vmax.f32 %v3757, 0.0
  %v3774 = vmax.f32 %v3758, 0.0
  %v3775 = vmax.f32 %v3759, 0.0
  %v3776 = vmax.f32 %v3760, 0.0
  %v3777 = vmax.f32 %v3761, 0.0
  %v3778 = vmax.f32 %v3762, 0.0
  %v3779 = vmax.f32 %v3763, 0.0
  %v3780 = vmax.f32 %v3764, 0.0
  %v3781 = vmax.f32 %v3765, 0.0
  %v3782 = vmax.f32 %v3766, 0.0
  %v3783 = vmax.f32 %v3767, 0.0
  %v3784 = vpack.c.bf16 %v3770, %v3768
  %v3785 = vpack.c.bf16 %v3771, %v3769
  %v3786 = vpack.c.bf16 %v3774, %v3772
  %v3787 = vpack.c.bf16 %v3775, %v3773
  %v3788 = vpack.c.bf16 %v3778, %v3776
  %v3789 = vpack.c.bf16 %v3779, %v3777
  %v3790 = vpack.c.bf16 %v3782, %v3780
  %v3791 = vpack.c.bf16 %v3783, %v3781
  %v3792 = vld [vmem:[%s5] sm:$0xf]
  %v3793 = vld [vmem:[%s5 + $0x4] sm:$0xf]
  %v3794 = vld [vmem:[%s5 + $0x8] sm:$0xf]
  %v3795 = vld [vmem:[%s5 + $0xc] sm:$0xf]
  %v3796 = vld [vmem:[%s5 + $0x10] sm:$0xf]
  %v3797 = vld [vmem:[%s5 + $0x14] sm:$0xf]
  %v3798 = vld [vmem:[%s5 + $0x18] sm:$0xf]
  %v3799 = vld [vmem:[%s5 + $0x1c] sm:$0xf]
  %v3800 = vld [vmem:[%s5 + $0x20] sm:$0xf]
  %v3801 = vld [vmem:[%s5 + $0x24] sm:$0xf]
  %v3802 = vld [vmem:[%s5 + $0x28] sm:$0xf]
  %v3803 = vld [vmem:[%s5 + $0x2c] sm:$0xf]
  %v3804 = vld [vmem:[%s5 + $0x30] sm:$0xf]
  %v3805 = vld [vmem:[%s5 + $0x34] sm:$0xf]
  %v3806 = vld [vmem:[%s5 + $0x38] sm:$0xf]
  %v3807 = vld [vmem:[%s5 + $0x3c] sm:$0xf]
  %v3808 = vld [vmem:[%s5 + $0x40] sm:$0xf]
  %v3809 = vld [vmem:[%s5 + $0x44] sm:$0xf]
  %v3810 = vld [vmem:[%s5 + $0x48] sm:$0xf]
  %v3811 = vld [vmem:[%s5 + $0x4c] sm:$0xf]
  %v3812 = vld [vmem:[%s5 + $0x50] sm:$0xf]
  %v3834 = vunpack.c.l.b16 %v3792
  %v3835 = vunpack.c.l.b16 %v3793
  %v3836 = vunpack.c.l.b16 %v3794
  %v3837 = vunpack.c.l.b16 %v3795
  %v3838 = vunpack.c.l.b16 %v3796
  %v3839 = vunpack.c.l.b16 %v3797
  %v3840 = vunpack.c.l.b16 %v3798
  %v3841 = vunpack.c.l.b16 %v3799
  %v3842 = vunpack.c.l.b16 %v3800
  %v3843 = vunpack.c.l.b16 %v3801
  %v3844 = vunpack.c.l.b16 %v3802
  %v3845 = vunpack.c.l.b16 %v3803
  %v3846 = vunpack.c.l.b16 %v3804
  %v3847 = vunpack.c.l.b16 %v3805
  %v3848 = vunpack.c.l.b16 %v3806
  %v3849 = vunpack.c.l.b16 %v3807
  %v3850 = vunpack.c.l.b16 %v3808
  %v3851 = vunpack.c.l.b16 %v3809
  %v3852 = vunpack.c.l.b16 %v3810
  %v3853 = vunpack.c.l.b16 %v3811
  %v3854 = vunpack.c.l.b16 %v3812
  %v3855 = vpack.c.b16 %v3835, %v3834
  %v3856 = vpack.c.b16 %v3837, %v3836
  %v3857 = vpack.c.b16 %v3839, %v3838
  %v3858 = vpack.c.b16 %v3841, %v3840
  %v3859 = vpack.c.b16 %v3843, %v3842
  %v3860 = vpack.c.b16 %v3845, %v3844
  %v3861 = vpack.c.b16 %v3847, %v3846
  %v3862 = vpack.c.b16 %v3849, %v3848
  %v3863 = vpack.c.b16 %v3851, %v3850
  %v3864 = vpack.c.b16 %v3853, %v3852
  %v3865 = vpack.c.b16 %v3854, %v3854
  %v3877 = vsel %vm610, %v3785, 0
  %v3880 = vsel %vm610, %v3787, 0
  %v3883 = vsel %vm610, %v3789, 0
  %v3886 = vsel %vm610, %v3791, 0
  %v3889 = vsel %vm623, %v3865, 0
  %3891 = vmatpush.bf16.msra.mxu0 %v3862
  %3892 = vmatpush.bf16.msra.mxu0 %v3861
  %3893 = vmatpush.bf16.msra.mxu0 %v3860
  %3894 = vmatpush.bf16.msra.mxu0 %v3859
  %3895 = vmatpush.bf16.msra.mxu0 %v3858
  %3896 = vmatpush.bf16.msra.mxu0 %v3857
  %3897 = vmatpush.bf16.msra.mxu0 %v3856
  %3898 = vmatpush.bf16.msra.mxu0 %v3855
  %3899 = vmatmul.bf16.gmra.mxu0 %v3784
  %v3900 = vpop.f32.mrf.mxu0
  %v3901 = vadd.f32 0.0, %v3900
  %v3902 = vpop.f32.mrf.mxu0
  %v3903 = vadd.f32 0.0, %v3902
  %3904 = vmatmul.bf16.gmra.mxu0 %v3786
  %v3905 = vpop.f32.mrf.mxu0
  %v3906 = vadd.f32 0.0, %v3905
  %v3907 = vpop.f32.mrf.mxu0
  %v3908 = vadd.f32 0.0, %v3907
  %3909 = vmatmul.bf16.gmra.mxu0 %v3788
  %v3910 = vpop.f32.mrf.mxu0
  %v3911 = vadd.f32 0.0, %v3910
  %v3912 = vpop.f32.mrf.mxu0
  %v3913 = vadd.f32 0.0, %v3912
  %3914 = vmatmul.bf16.gmra.mxu0 %v3790
  %v3915 = vpop.f32.mrf.mxu0
  %v3916 = vadd.f32 0.0, %v3915
  %v3917 = vpop.f32.mrf.mxu0
  %v3918 = vadd.f32 0.0, %v3917
  %3919 = vdwg.mxu0
  %3920 = vmatpush.bf16.msra.mxu0 0
  %3921 = vmatpush.bf16.msra.mxu0 0
  %3922 = vmatpush.bf16.msra.mxu0 0
  %3923 = vmatpush.bf16.msra.mxu0 0
  %3924 = vmatpush.bf16.msra.mxu0 0
  %3925 = vmatpush.bf16.msra.mxu0 %v3889
  %3926 = vmatpush.bf16.msra.mxu0 %v3864
  %3927 = vmatpush.bf16.msra.mxu0 %v3863
  %3928 = vmatmul.bf16.gmra.mxu0 %v3877
  %v3929 = vpop.f32.mrf.mxu0
  %v3930 = vadd.f32 %v3901, %v3929
  %v3931 = vpop.f32.mrf.mxu0
  %v3932 = vadd.f32 %v3903, %v3931
  %3933 = vmatmul.bf16.gmra.mxu0 %v3880
  %v3934 = vpop.f32.mrf.mxu0
  %v3935 = vadd.f32 %v3906, %v3934
  %v3936 = vpop.f32.mrf.mxu0
  %v3937 = vadd.f32 %v3908, %v3936
  %3938 = vmatmul.bf16.gmra.mxu0 %v3883
  %v3939 = vpop.f32.mrf.mxu0
  %v3940 = vadd.f32 %v3911, %v3939
  %v3941 = vpop.f32.mrf.mxu0
  %v3942 = vadd.f32 %v3913, %v3941
  %3943 = vmatmul.bf16.gmra.mxu0 %v3886
  %v3944 = vpop.f32.mrf.mxu0
  %v3945 = vadd.f32 %v3916, %v3944
  %v3946 = vpop.f32.mrf.mxu0
  %v3947 = vadd.f32 %v3918, %v3946
  %3948 = vdwg.mxu0
  %v3949 = vld [vmem:[%s6] sm:$0xf]
  %v3950 = vld [vmem:[%s6 + $0x4] sm:$0xf]
  %v3951 = vld [vmem:[%s6 + $0x8] sm:$0xf]
  %v3952 = vld [vmem:[%s6 + $0xc] sm:$0xf]
  %v3953 = vld [vmem:[%s6 + $0x10] sm:$0xf]
  %v3954 = vld [vmem:[%s6 + $0x14] sm:$0xf]
  %v3955 = vld [vmem:[%s6 + $0x18] sm:$0xf]
  %v3956 = vld [vmem:[%s6 + $0x1c] sm:$0xf]
  %v3957 = vld [vmem:[%s6 + $0x20] sm:$0xf]
  %v3958 = vld [vmem:[%s6 + $0x24] sm:$0xf]
  %v3959 = vld [vmem:[%s6 + $0x28] sm:$0xf]
  %v3960 = vld [vmem:[%s6 + $0x2c] sm:$0xf]
  %v3961 = vld [vmem:[%s6 + $0x30] sm:$0xf]
  %v3962 = vld [vmem:[%s6 + $0x34] sm:$0xf]
  %v3963 = vld [vmem:[%s6 + $0x38] sm:$0xf]
  %v3964 = vld [vmem:[%s6 + $0x3c] sm:$0xf]
  %v3965 = vld [vmem:[%s6 + $0x40] sm:$0xf]
  %v3966 = vld [vmem:[%s6 + $0x44] sm:$0xf]
  %v3967 = vld [vmem:[%s6 + $0x48] sm:$0xf]
  %v3968 = vld [vmem:[%s6 + $0x4c] sm:$0xf]
  %v3969 = vld [vmem:[%s6 + $0x50] sm:$0xf]
  %v3991 = vunpack.c.l.b16 %v3949
  %v3992 = vunpack.c.l.b16 %v3950
  %v3993 = vunpack.c.l.b16 %v3951
  %v3994 = vunpack.c.l.b16 %v3952
  %v3995 = vunpack.c.l.b16 %v3953
  %v3996 = vunpack.c.l.b16 %v3954
  %v3997 = vunpack.c.l.b16 %v3955
  %v3998 = vunpack.c.l.b16 %v3956
  %v3999 = vunpack.c.l.b16 %v3957
  %v4000 = vunpack.c.l.b16 %v3958
  %v4001 = vunpack.c.l.b16 %v3959
  %v4002 = vunpack.c.l.b16 %v3960
  %v4003 = vunpack.c.l.b16 %v3961
  %v4004 = vunpack.c.l.b16 %v3962
  %v4005 = vunpack.c.l.b16 %v3963
  %v4006 = vunpack.c.l.b16 %v3964
  %v4007 = vunpack.c.l.b16 %v3965
  %v4008 = vunpack.c.l.b16 %v3966
  %v4009 = vunpack.c.l.b16 %v3967
  %v4010 = vunpack.c.l.b16 %v3968
  %v4011 = vunpack.c.l.b16 %v3969
  %v4012 = vpack.c.b16 %v3992, %v3991
  %v4013 = vpack.c.b16 %v3994, %v3993
  %v4014 = vpack.c.b16 %v3996, %v3995
  %v4015 = vpack.c.b16 %v3998, %v3997
  %v4016 = vpack.c.b16 %v4000, %v3999
  %v4017 = vpack.c.b16 %v4002, %v4001
  %v4018 = vpack.c.b16 %v4004, %v4003
  %v4019 = vpack.c.b16 %v4006, %v4005
  %v4020 = vpack.c.b16 %v4008, %v4007
  %v4021 = vpack.c.b16 %v4010, %v4009
  %v4022 = vpack.c.b16 %v4011, %v4011
  %v4034 = vsel %vm623, %v4022, 0
  %4036 = vmatpush.bf16.msra.mxu0 %v4019
  %4037 = vmatpush.bf16.msra.mxu0 %v4018
  %4038 = vmatpush.bf16.msra.mxu0 %v4017
  %4039 = vmatpush.bf16.msra.mxu0 %v4016
  %4040 = vmatpush.bf16.msra.mxu0 %v4015
  %4041 = vmatpush.bf16.msra.mxu0 %v4014
  %4042 = vmatpush.bf16.msra.mxu0 %v4013
  %4043 = vmatpush.bf16.msra.mxu0 %v4012
  %4044 = vmatmul.bf16.gmra.mxu0 %v3784
  %v4045 = vpop.f32.mrf.mxu0
  %v4046 = vadd.f32 0.0, %v4045
  %v4047 = vpop.f32.mrf.mxu0
  %v4048 = vadd.f32 0.0, %v4047
  %4049 = vmatmul.bf16.gmra.mxu0 %v3786
  %v4050 = vpop.f32.mrf.mxu0
  %v4051 = vadd.f32 0.0, %v4050
  %v4052 = vpop.f32.mrf.mxu0
  %v4053 = vadd.f32 0.0, %v4052
  %4054 = vmatmul.bf16.gmra.mxu0 %v3788
  %v4055 = vpop.f32.mrf.mxu0
  %v4056 = vadd.f32 0.0, %v4055
  %v4057 = vpop.f32.mrf.mxu0
  %v4058 = vadd.f32 0.0, %v4057
  %4059 = vmatmul.bf16.gmra.mxu0 %v3790
  %v4060 = vpop.f32.mrf.mxu0
  %v4061 = vadd.f32 0.0, %v4060
  %v4062 = vpop.f32.mrf.mxu0
  %v4063 = vadd.f32 0.0, %v4062
  %4064 = vdwg.mxu0
  %4065 = vmatpush.bf16.msra.mxu0 0
  %4066 = vmatpush.bf16.msra.mxu0 0
  %4067 = vmatpush.bf16.msra.mxu0 0
  %4068 = vmatpush.bf16.msra.mxu0 0
  %4069 = vmatpush.bf16.msra.mxu0 0
  %4070 = vmatpush.bf16.msra.mxu0 %v4034
  %4071 = vmatpush.bf16.msra.mxu0 %v4021
  %4072 = vmatpush.bf16.msra.mxu0 %v4020
  %4073 = vmatmul.bf16.gmra.mxu0 %v3877
  %v4074 = vpop.f32.mrf.mxu0
  %v4075 = vadd.f32 %v4046, %v4074
  %v4076 = vpop.f32.mrf.mxu0
  %v4077 = vadd.f32 %v4048, %v4076
  %4078 = vmatmul.bf16.gmra.mxu0 %v3880
  %v4079 = vpop.f32.mrf.mxu0
  %v4080 = vadd.f32 %v4051, %v4079
  %v4081 = vpop.f32.mrf.mxu0
  %v4082 = vadd.f32 %v4053, %v4081
  %4083 = vmatmul.bf16.gmra.mxu0 %v3883
  %v4084 = vpop.f32.mrf.mxu0
  %v4085 = vadd.f32 %v4056, %v4084
  %v4086 = vpop.f32.mrf.mxu0
  %v4087 = vadd.f32 %v4058, %v4086
  %4088 = vmatmul.bf16.gmra.mxu0 %v3886
  %v4089 = vpop.f32.mrf.mxu0
  %v4090 = vadd.f32 %v4061, %v4089
  %v4091 = vpop.f32.mrf.mxu0
  %v4092 = vadd.f32 %v4063, %v4091
  %4093 = vdwg.mxu0
  %v4094 = vmax.f32 %v3930, %v4075
  %v4095 = vmax.f32 %v3932, %v4077
  %v4096 = vmax.f32 %v3935, %v4080
  %v4097 = vmax.f32 %v3937, %v4082
  %v4098 = vmax.f32 %v3940, %v4085
  %v4099 = vmax.f32 %v3942, %v4087
  %v4100 = vmax.f32 %v3945, %v4090
  %v4101 = vmax.f32 %v3947, %v4092
  %v4102 = vpack.c.bf16 %v4094, %v4094
  %v4103 = vpack.c.bf16 %v4095, %v4095
  %v4104 = vpack.c.bf16 %v4096, %v4096
  %v4105 = vpack.c.bf16 %v4097, %v4097
  %v4106 = vpack.c.bf16 %v4098, %v4098
  %v4107 = vpack.c.bf16 %v4099, %v4099
  %v4108 = vpack.c.bf16 %v4100, %v4100
  %v4109 = vpack.c.bf16 %v4101, %v4101
  %4110 = vst.msk [vmem:[#allocation2 + $0x80] sm:$0xf] %vm33, %v4102
  %4111 = vst.msk [vmem:[#allocation2 + $0x84] sm:$0xf] %vm33, %v4103
  %4112 = vst.msk [vmem:[#allocation2 + $0x88] sm:$0xf] %vm33, %v4104
  %4113 = vst.msk [vmem:[#allocation2 + $0x8c] sm:$0xf] %vm33, %v4105
  %4114 = vst.msk [vmem:[#allocation2 + $0x90] sm:$0xf] %vm33, %v4106
  %4115 = vst.msk [vmem:[#allocation2 + $0x94] sm:$0xf] %vm33, %v4107
  %4116 = vst.msk [vmem:[#allocation2 + $0x98] sm:$0xf] %vm33, %v4108
  %4117 = vst.msk [vmem:[#allocation2 + $0x9c] sm:$0xf] %vm33, %v4109
  %v4118 = vld [vmem:[%s0 + $0x280] sm:$0xff]
  %v4119 = vld [vmem:[%s0 + $0x288] sm:$0xff]
  %v4120 = vld [vmem:[%s0 + $0x290] sm:$0xff]
  %v4121 = vld [vmem:[%s0 + $0x298] sm:$0xff]
  %v4122 = vld [vmem:[%s0 + $0x2a0] sm:$0xff]
  %v4123 = vld [vmem:[%s0 + $0x2a8] sm:$0xff]
  %v4124 = vld [vmem:[%s0 + $0x2b0] sm:$0xff]
  %v4125 = vld [vmem:[%s0 + $0x2b8] sm:$0xff]
  %v4126 = vld [vmem:[%s0 + $0x2c0] sm:$0xff]
  %v4127 = vld [vmem:[%s0 + $0x2c8] sm:$0xff]
  %v4128 = vld [vmem:[%s0 + $0x2d0] sm:$0xff]
  %v4129 = vld [vmem:[%s0 + $0x2d8] sm:$0xff]
  %v4130 = vld [vmem:[%s0 + $0x2e0] sm:$0xff]
  %v4131 = vld [vmem:[%s0 + $0x2e8] sm:$0xff]
  %v4132 = vld [vmem:[%s0 + $0x2f0] sm:$0xff]
  %v4133 = vld [vmem:[%s0 + $0x2f8] sm:$0xff]
  %v4134 = vld [vmem:[%s1] sm:$0xff]
  %v4135 = vld [vmem:[%s1 + $0x8] sm:$0xff]
  %v4136 = vld [vmem:[%s1 + $0x10] sm:$0xff]
  %v4137 = vld [vmem:[%s1 + $0x18] sm:$0xff]
  %v4138 = vld [vmem:[%s1 + $0x20] sm:$0xff]
  %v4139 = vld [vmem:[%s1 + $0x28] sm:$0xff]
  %v4140 = vld [vmem:[%s1 + $0x30] sm:$0xff]
  %v4141 = vld [vmem:[%s1 + $0x38] sm:$0xff]
  %v4142 = vld [vmem:[%s1 + $0x40] sm:$0xff]
  %v4143 = vld [vmem:[%s1 + $0x48] sm:$0xff]
  %v4144 = vld [vmem:[%s1 + $0x50] sm:$0xff]
  %v4145 = vld [vmem:[%s1 + $0x58] sm:$0xff]
  %v4146 = vld [vmem:[%s1 + $0x60] sm:$0xff]
  %v4147 = vld [vmem:[%s1 + $0x68] sm:$0xff]
  %v4148 = vld [vmem:[%s1 + $0x70] sm:$0xff]
  %v4149 = vld [vmem:[%s1 + $0x78] sm:$0xff]
  %v4150 = vld [vmem:[%s1 + $0x80] sm:$0xff]
  %v4151 = vld [vmem:[%s1 + $0x88] sm:$0xff]
  %v4152 = vld [vmem:[%s1 + $0x90] sm:$0xff]
  %v4153 = vld [vmem:[%s1 + $0x98] sm:$0xff]
  %v4170 = vunpack.c.l.b16 %v4118
  %v4171 = vunpack.c.h.b16 %v4118
  %v4172 = vunpack.c.l.b16 %v4119
  %v4173 = vunpack.c.h.b16 %v4119
  %v4174 = vunpack.c.l.b16 %v4120
  %v4175 = vunpack.c.h.b16 %v4120
  %v4176 = vunpack.c.l.b16 %v4121
  %v4177 = vunpack.c.h.b16 %v4121
  %v4178 = vunpack.c.l.b16 %v4122
  %v4179 = vunpack.c.h.b16 %v4122
  %v4180 = vunpack.c.l.b16 %v4123
  %v4181 = vunpack.c.h.b16 %v4123
  %v4182 = vunpack.c.l.b16 %v4124
  %v4183 = vunpack.c.h.b16 %v4124
  %v4184 = vunpack.c.l.b16 %v4125
  %v4185 = vunpack.c.h.b16 %v4125
  %v4186 = vunpack.c.l.b16 %v4126
  %v4187 = vunpack.c.h.b16 %v4126
  %v4188 = vunpack.c.l.b16 %v4127
  %v4189 = vunpack.c.h.b16 %v4127
  %v4190 = vunpack.c.l.b16 %v4128
  %v4191 = vunpack.c.h.b16 %v4128
  %v4192 = vunpack.c.l.b16 %v4129
  %v4193 = vunpack.c.h.b16 %v4129
  %v4194 = vunpack.c.l.b16 %v4130
  %v4195 = vunpack.c.h.b16 %v4130
  %v4196 = vunpack.c.l.b16 %v4131
  %v4197 = vunpack.c.h.b16 %v4131
  %v4198 = vunpack.c.l.b16 %v4132
  %v4199 = vunpack.c.h.b16 %v4132
  %v4200 = vunpack.c.l.b16 %v4133
  %v4201 = vunpack.c.h.b16 %v4133
  %v4202 = vpack.c.b16 %v4172, %v4170
  %v4203 = vpack.c.b16 %v4173, %v4171
  %v4204 = vpack.c.b16 %v4176, %v4174
  %v4205 = vpack.c.b16 %v4177, %v4175
  %v4206 = vpack.c.b16 %v4180, %v4178
  %v4207 = vpack.c.b16 %v4181, %v4179
  %v4208 = vpack.c.b16 %v4184, %v4182
  %v4209 = vpack.c.b16 %v4185, %v4183
  %v4210 = vpack.c.b16 %v4188, %v4186
  %v4211 = vpack.c.b16 %v4189, %v4187
  %v4212 = vpack.c.b16 %v4192, %v4190
  %v4213 = vpack.c.b16 %v4193, %v4191
  %v4214 = vpack.c.b16 %v4196, %v4194
  %v4215 = vpack.c.b16 %v4197, %v4195
  %v4216 = vpack.c.b16 %v4200, %v4198
  %v4217 = vpack.c.b16 %v4201, %v4199
  %v4246 = vunpack.c.l.b16 %v4134
  %v4247 = vunpack.c.h.b16 %v4134
  %v4248 = vunpack.c.l.b16 %v4135
  %v4249 = vunpack.c.h.b16 %v4135
  %v4250 = vunpack.c.l.b16 %v4136
  %v4251 = vunpack.c.h.b16 %v4136
  %v4252 = vunpack.c.l.b16 %v4137
  %v4253 = vunpack.c.h.b16 %v4137
  %v4254 = vunpack.c.l.b16 %v4138
  %v4255 = vunpack.c.h.b16 %v4138
  %v4256 = vunpack.c.l.b16 %v4139
  %v4257 = vunpack.c.h.b16 %v4139
  %v4258 = vunpack.c.l.b16 %v4140
  %v4259 = vunpack.c.h.b16 %v4140
  %v4260 = vunpack.c.l.b16 %v4141
  %v4261 = vunpack.c.h.b16 %v4141
  %v4262 = vunpack.c.l.b16 %v4142
  %v4263 = vunpack.c.h.b16 %v4142
  %v4264 = vunpack.c.l.b16 %v4143
  %v4265 = vunpack.c.h.b16 %v4143
  %v4266 = vunpack.c.l.b16 %v4144
  %v4267 = vunpack.c.h.b16 %v4144
  %v4268 = vunpack.c.l.b16 %v4145
  %v4269 = vunpack.c.h.b16 %v4145
  %v4270 = vunpack.c.l.b16 %v4146
  %v4271 = vunpack.c.h.b16 %v4146
  %v4272 = vunpack.c.l.b16 %v4147
  %v4273 = vunpack.c.h.b16 %v4147
  %v4274 = vunpack.c.l.b16 %v4148
  %v4275 = vunpack.c.h.b16 %v4148
  %v4276 = vunpack.c.l.b16 %v4149
  %v4277 = vunpack.c.h.b16 %v4149
  %v4278 = vunpack.c.l.b16 %v4150
  %v4279 = vunpack.c.h.b16 %v4150
  %v4280 = vunpack.c.l.b16 %v4151
  %v4281 = vunpack.c.h.b16 %v4151
  %v4282 = vunpack.c.l.b16 %v4152
  %v4283 = vunpack.c.h.b16 %v4152
  %v4284 = vunpack.c.l.b16 %v4153
  %v4285 = vunpack.c.h.b16 %v4153
  %v4286 = vpack.c.b16 %v4248, %v4246
  %v4287 = vpack.c.b16 %v4249, %v4247
  %v4288 = vpack.c.b16 %v4252, %v4250
  %v4289 = vpack.c.b16 %v4253, %v4251
  %v4290 = vpack.c.b16 %v4256, %v4254
  %v4291 = vpack.c.b16 %v4257, %v4255
  %v4292 = vpack.c.b16 %v4260, %v4258
  %v4293 = vpack.c.b16 %v4261, %v4259
  %v4294 = vpack.c.b16 %v4264, %v4262
  %v4295 = vpack.c.b16 %v4265, %v4263
  %v4296 = vpack.c.b16 %v4268, %v4266
  %v4297 = vpack.c.b16 %v4269, %v4267
  %v4298 = vpack.c.b16 %v4272, %v4270
  %v4299 = vpack.c.b16 %v4273, %v4271
  %v4300 = vpack.c.b16 %v4276, %v4274
  %v4301 = vpack.c.b16 %v4277, %v4275
  %v4302 = vpack.c.b16 %v4280, %v4278
  %v4303 = vpack.c.b16 %v4281, %v4279
  %v4304 = vpack.c.b16 %v4284, %v4282
  %v4305 = vpack.c.b16 %v4285, %v4283
  %v4327 = vsel %vm243, %v4203, 0
  %v4330 = vsel %vm243, %v4205, 0
  %v4333 = vsel %vm243, %v4207, 0
  %v4336 = vsel %vm243, %v4209, 0
  %v4339 = vsel %vm243, %v4211, 0
  %v4342 = vsel %vm243, %v4213, 0
  %v4345 = vsel %vm243, %v4215, 0
  %v4348 = vsel %vm243, %v4217, 0
  %4350 = vmatpush.bf16.msra.mxu0 %v4300
  %4351 = vmatpush.bf16.msra.mxu0 %v4298
  %4352 = vmatpush.bf16.msra.mxu0 %v4296
  %4353 = vmatpush.bf16.msra.mxu0 %v4294
  %4354 = vmatpush.bf16.msra.mxu0 %v4292
  %4355 = vmatpush.bf16.msra.mxu0 %v4290
  %4356 = vmatpush.bf16.msra.mxu0 %v4288
  %4357 = vmatpush.bf16.msra.mxu0 %v4286
  %4358 = vmatmul.bf16.gmra.mxu0 %v4202
  %v4359 = vpop.f32.mrf.mxu0
  %v4360 = vadd.f32 0.0, %v4359
  %v4361 = vpop.f32.mrf.mxu0
  %v4362 = vadd.f32 0.0, %v4361
  %4363 = vmatmul.bf16.gmra.mxu0 %v4204
  %v4364 = vpop.f32.mrf.mxu0
  %v4365 = vadd.f32 0.0, %v4364
  %v4366 = vpop.f32.mrf.mxu0
  %v4367 = vadd.f32 0.0, %v4366
  %4368 = vmatmul.bf16.gmra.mxu0 %v4206
  %v4369 = vpop.f32.mrf.mxu0
  %v4370 = vadd.f32 0.0, %v4369
  %v4371 = vpop.f32.mrf.mxu0
  %v4372 = vadd.f32 0.0, %v4371
  %4373 = vmatmul.bf16.gmra.mxu0 %v4208
  %v4374 = vpop.f32.mrf.mxu0
  %v4375 = vadd.f32 0.0, %v4374
  %v4376 = vpop.f32.mrf.mxu0
  %v4377 = vadd.f32 0.0, %v4376
  %4378 = vmatmul.bf16.gmra.mxu0 %v4210
  %v4379 = vpop.f32.mrf.mxu0
  %v4380 = vadd.f32 0.0, %v4379
  %v4381 = vpop.f32.mrf.mxu0
  %v4382 = vadd.f32 0.0, %v4381
  %4383 = vmatmul.bf16.gmra.mxu0 %v4212
  %v4384 = vpop.f32.mrf.mxu0
  %v4385 = vadd.f32 0.0, %v4384
  %v4386 = vpop.f32.mrf.mxu0
  %v4387 = vadd.f32 0.0, %v4386
  %4388 = vmatmul.bf16.gmra.mxu0 %v4214
  %v4389 = vpop.f32.mrf.mxu0
  %v4390 = vadd.f32 0.0, %v4389
  %v4391 = vpop.f32.mrf.mxu0
  %v4392 = vadd.f32 0.0, %v4391
  %4393 = vmatmul.bf16.gmra.mxu0 %v4216
  %v4394 = vpop.f32.mrf.mxu0
  %v4395 = vadd.f32 0.0, %v4394
  %v4396 = vpop.f32.mrf.mxu0
  %v4397 = vadd.f32 0.0, %v4396
  %4398 = vdwg.mxu0
  %4399 = vmatpush.bf16.msra.mxu0 0
  %4400 = vmatpush.bf16.msra.mxu0 0
  %4401 = vmatpush.bf16.msra.mxu0 0
  %4402 = vmatpush.bf16.msra.mxu0 0
  %4403 = vmatpush.bf16.msra.mxu0 0
  %4404 = vmatpush.bf16.msra.mxu0 0
  %4405 = vmatpush.bf16.msra.mxu0 %v4304
  %4406 = vmatpush.bf16.msra.mxu0 %v4302
  %4407 = vmatmul.bf16.gmra.mxu0 %v4327
  %v4408 = vpop.f32.mrf.mxu0
  %v4409 = vadd.f32 %v4360, %v4408
  %v4410 = vpop.f32.mrf.mxu0
  %v4411 = vadd.f32 %v4362, %v4410
  %4412 = vmatmul.bf16.gmra.mxu0 %v4330
  %v4413 = vpop.f32.mrf.mxu0
  %v4414 = vadd.f32 %v4365, %v4413
  %v4415 = vpop.f32.mrf.mxu0
  %v4416 = vadd.f32 %v4367, %v4415
  %4417 = vmatmul.bf16.gmra.mxu0 %v4333
  %v4418 = vpop.f32.mrf.mxu0
  %v4419 = vadd.f32 %v4370, %v4418
  %v4420 = vpop.f32.mrf.mxu0
  %v4421 = vadd.f32 %v4372, %v4420
  %4422 = vmatmul.bf16.gmra.mxu0 %v4336
  %v4423 = vpop.f32.mrf.mxu0
  %v4424 = vadd.f32 %v4375, %v4423
  %v4425 = vpop.f32.mrf.mxu0
  %v4426 = vadd.f32 %v4377, %v4425
  %4427 = vmatmul.bf16.gmra.mxu0 %v4339
  %v4428 = vpop.f32.mrf.mxu0
  %v4429 = vadd.f32 %v4380, %v4428
  %v4430 = vpop.f32.mrf.mxu0
  %v4431 = vadd.f32 %v4382, %v4430
  %4432 = vmatmul.bf16.gmra.mxu0 %v4342
  %v4433 = vpop.f32.mrf.mxu0
  %v4434 = vadd.f32 %v4385, %v4433
  %v4435 = vpop.f32.mrf.mxu0
  %v4436 = vadd.f32 %v4387, %v4435
  %4437 = vmatmul.bf16.gmra.mxu0 %v4345
  %v4438 = vpop.f32.mrf.mxu0
  %v4439 = vadd.f32 %v4390, %v4438
  %v4440 = vpop.f32.mrf.mxu0
  %v4441 = vadd.f32 %v4392, %v4440
  %4442 = vmatmul.bf16.gmra.mxu0 %v4348
  %v4443 = vpop.f32.mrf.mxu0
  %v4444 = vadd.f32 %v4395, %v4443
  %v4445 = vpop.f32.mrf.mxu0
  %v4446 = vadd.f32 %v4397, %v4445
  %4447 = vdwg.mxu0
  %4448 = vmatpush.bf16.msra.mxu0 %v4301
  %4449 = vmatpush.bf16.msra.mxu0 %v4299
  %4450 = vmatpush.bf16.msra.mxu0 %v4297
  %4451 = vmatpush.bf16.msra.mxu0 %v4295
  %4452 = vmatpush.bf16.msra.mxu0 %v4293
  %4453 = vmatpush.bf16.msra.mxu0 %v4291
  %4454 = vmatpush.bf16.msra.mxu0 %v4289
  %4455 = vmatpush.bf16.msra.mxu0 %v4287
  %4456 = vmatmul.bf16.gmra.mxu0 %v4202
  %v4457 = vpop.f32.mrf.mxu0
  %v4458 = vadd.f32 0.0, %v4457
  %v4459 = vpop.f32.mrf.mxu0
  %v4460 = vadd.f32 0.0, %v4459
  %4461 = vmatmul.bf16.gmra.mxu0 %v4204
  %v4462 = vpop.f32.mrf.mxu0
  %v4463 = vadd.f32 0.0, %v4462
  %v4464 = vpop.f32.mrf.mxu0
  %v4465 = vadd.f32 0.0, %v4464
  %4466 = vmatmul.bf16.gmra.mxu0 %v4206
  %v4467 = vpop.f32.mrf.mxu0
  %v4468 = vadd.f32 0.0, %v4467
  %v4469 = vpop.f32.mrf.mxu0
  %v4470 = vadd.f32 0.0, %v4469
  %4471 = vmatmul.bf16.gmra.mxu0 %v4208
  %v4472 = vpop.f32.mrf.mxu0
  %v4473 = vadd.f32 0.0, %v4472
  %v4474 = vpop.f32.mrf.mxu0
  %v4475 = vadd.f32 0.0, %v4474
  %4476 = vmatmul.bf16.gmra.mxu0 %v4210
  %v4477 = vpop.f32.mrf.mxu0
  %v4478 = vadd.f32 0.0, %v4477
  %v4479 = vpop.f32.mrf.mxu0
  %v4480 = vadd.f32 0.0, %v4479
  %4481 = vmatmul.bf16.gmra.mxu0 %v4212
  %v4482 = vpop.f32.mrf.mxu0
  %v4483 = vadd.f32 0.0, %v4482
  %v4484 = vpop.f32.mrf.mxu0
  %v4485 = vadd.f32 0.0, %v4484
  %4486 = vmatmul.bf16.gmra.mxu0 %v4214
  %v4487 = vpop.f32.mrf.mxu0
  %v4488 = vadd.f32 0.0, %v4487
  %v4489 = vpop.f32.mrf.mxu0
  %v4490 = vadd.f32 0.0, %v4489
  %4491 = vmatmul.bf16.gmra.mxu0 %v4216
  %v4492 = vpop.f32.mrf.mxu0
  %v4493 = vadd.f32 0.0, %v4492
  %v4494 = vpop.f32.mrf.mxu0
  %v4495 = vadd.f32 0.0, %v4494
  %4496 = vdwg.mxu0
  %4497 = vmatpush.bf16.msra.mxu0 0
  %4498 = vmatpush.bf16.msra.mxu0 0
  %4499 = vmatpush.bf16.msra.mxu0 0
  %4500 = vmatpush.bf16.msra.mxu0 0
  %4501 = vmatpush.bf16.msra.mxu0 0
  %4502 = vmatpush.bf16.msra.mxu0 0
  %4503 = vmatpush.bf16.msra.mxu0 %v4305
  %4504 = vmatpush.bf16.msra.mxu0 %v4303
  %4505 = vmatmul.bf16.gmra.mxu0 %v4327
  %v4506 = vpop.f32.mrf.mxu0
  %v4507 = vadd.f32 %v4458, %v4506
  %v4508 = vpop.f32.mrf.mxu0
  %v4509 = vadd.f32 %v4460, %v4508
  %4510 = vmatmul.bf16.gmra.mxu0 %v4330
  %v4511 = vpop.f32.mrf.mxu0
  %v4512 = vadd.f32 %v4463, %v4511
  %v4513 = vpop.f32.mrf.mxu0
  %v4514 = vadd.f32 %v4465, %v4513
  %4515 = vmatmul.bf16.gmra.mxu0 %v4333
  %v4516 = vpop.f32.mrf.mxu0
  %v4517 = vadd.f32 %v4468, %v4516
  %v4518 = vpop.f32.mrf.mxu0
  %v4519 = vadd.f32 %v4470, %v4518
  %4520 = vmatmul.bf16.gmra.mxu0 %v4336
  %v4521 = vpop.f32.mrf.mxu0
  %v4522 = vadd.f32 %v4473, %v4521
  %v4523 = vpop.f32.mrf.mxu0
  %v4524 = vadd.f32 %v4475, %v4523
  %4525 = vmatmul.bf16.gmra.mxu0 %v4339
  %v4526 = vpop.f32.mrf.mxu0
  %v4527 = vadd.f32 %v4478, %v4526
  %v4528 = vpop.f32.mrf.mxu0
  %v4529 = vadd.f32 %v4480, %v4528
  %4530 = vmatmul.bf16.gmra.mxu0 %v4342
  %v4531 = vpop.f32.mrf.mxu0
  %v4532 = vadd.f32 %v4483, %v4531
  %v4533 = vpop.f32.mrf.mxu0
  %v4534 = vadd.f32 %v4485, %v4533
  %4535 = vmatmul.bf16.gmra.mxu0 %v4345
  %v4536 = vpop.f32.mrf.mxu0
  %v4537 = vadd.f32 %v4488, %v4536
  %v4538 = vpop.f32.mrf.mxu0
  %v4539 = vadd.f32 %v4490, %v4538
  %4540 = vmatmul.bf16.gmra.mxu0 %v4348
  %v4541 = vpop.f32.mrf.mxu0
  %v4542 = vadd.f32 %v4493, %v4541
  %v4543 = vpop.f32.mrf.mxu0
  %v4544 = vadd.f32 %v4495, %v4543
  %4545 = vdwg.mxu0
  %v4546 = vmax.f32 %v4409, %v4429
  %v4547 = vmax.f32 %v4507, %v4527
  %v4548 = vmax.f32 %v4411, %v4431
  %v4549 = vmax.f32 %v4509, %v4529
  %v4550 = vmax.f32 %v4414, %v4434
  %v4551 = vmax.f32 %v4512, %v4532
  %v4552 = vmax.f32 %v4416, %v4436
  %v4553 = vmax.f32 %v4514, %v4534
  %v4554 = vmax.f32 %v4419, %v4439
  %v4555 = vmax.f32 %v4517, %v4537
  %v4556 = vmax.f32 %v4421, %v4441
  %v4557 = vmax.f32 %v4519, %v4539
  %v4558 = vmax.f32 %v4424, %v4444
  %v4559 = vmax.f32 %v4522, %v4542
  %v4560 = vmax.f32 %v4426, %v4446
  %v4561 = vmax.f32 %v4524, %v4544
  %v4562 = vld [vmem:[%s2] sm:$0x3]
  %v4564 = vperm.slane %v4562, 0
  %v4565 = vperm.slane %v4562, 1
  %v4568 = vadd.f32 %v4546, %v4564
  %v4569 = vadd.f32 %v4547, %v4565
  %v4570 = vadd.f32 %v4548, %v4564
  %v4571 = vadd.f32 %v4549, %v4565
  %v4572 = vadd.f32 %v4550, %v4564
  %v4573 = vadd.f32 %v4551, %v4565
  %v4574 = vadd.f32 %v4552, %v4564
  %v4575 = vadd.f32 %v4553, %v4565
  %v4576 = vadd.f32 %v4554, %v4564
  %v4577 = vadd.f32 %v4555, %v4565
  %v4578 = vadd.f32 %v4556, %v4564
  %v4579 = vadd.f32 %v4557, %v4565
  %v4580 = vadd.f32 %v4558, %v4564
  %v4581 = vadd.f32 %v4559, %v4565
  %v4582 = vadd.f32 %v4560, %v4564
  %v4583 = vadd.f32 %v4561, %v4565
  %v4584 = vmax.f32 %v4568, 0.0
  %v4585 = vmax.f32 %v4569, 0.0
  %v4586 = vmax.f32 %v4570, 0.0
  %v4587 = vmax.f32 %v4571, 0.0
  %v4588 = vmax.f32 %v4572, 0.0
  %v4589 = vmax.f32 %v4573, 0.0
  %v4590 = vmax.f32 %v4574, 0.0
  %v4591 = vmax.f32 %v4575, 0.0
  %v4592 = vmax.f32 %v4576, 0.0
  %v4593 = vmax.f32 %v4577, 0.0
  %v4594 = vmax.f32 %v4578, 0.0
  %v4595 = vmax.f32 %v4579, 0.0
  %v4596 = vmax.f32 %v4580, 0.0
  %v4597 = vmax.f32 %v4581, 0.0
  %v4598 = vmax.f32 %v4582, 0.0
  %v4599 = vmax.f32 %v4583, 0.0
  %v4600 = vpack.c.bf16 %v4586, %v4584
  %v4601 = vpack.c.bf16 %v4587, %v4585
  %v4602 = vpack.c.bf16 %v4590, %v4588
  %v4603 = vpack.c.bf16 %v4591, %v4589
  %v4604 = vpack.c.bf16 %v4594, %v4592
  %v4605 = vpack.c.bf16 %v4595, %v4593
  %v4606 = vpack.c.bf16 %v4598, %v4596
  %v4607 = vpack.c.bf16 %v4599, %v4597
  %v4608 = vld [vmem:[%s5] sm:$0xf]
  %v4609 = vld [vmem:[%s5 + $0x4] sm:$0xf]
  %v4610 = vld [vmem:[%s5 + $0x8] sm:$0xf]
  %v4611 = vld [vmem:[%s5 + $0xc] sm:$0xf]
  %v4612 = vld [vmem:[%s5 + $0x10] sm:$0xf]
  %v4613 = vld [vmem:[%s5 + $0x14] sm:$0xf]
  %v4614 = vld [vmem:[%s5 + $0x18] sm:$0xf]
  %v4615 = vld [vmem:[%s5 + $0x1c] sm:$0xf]
  %v4616 = vld [vmem:[%s5 + $0x20] sm:$0xf]
  %v4617 = vld [vmem:[%s5 + $0x24] sm:$0xf]
  %v4618 = vld [vmem:[%s5 + $0x28] sm:$0xf]
  %v4619 = vld [vmem:[%s5 + $0x2c] sm:$0xf]
  %v4620 = vld [vmem:[%s5 + $0x30] sm:$0xf]
  %v4621 = vld [vmem:[%s5 + $0x34] sm:$0xf]
  %v4622 = vld [vmem:[%s5 + $0x38] sm:$0xf]
  %v4623 = vld [vmem:[%s5 + $0x3c] sm:$0xf]
  %v4624 = vld [vmem:[%s5 + $0x40] sm:$0xf]
  %v4625 = vld [vmem:[%s5 + $0x44] sm:$0xf]
  %v4626 = vld [vmem:[%s5 + $0x48] sm:$0xf]
  %v4627 = vld [vmem:[%s5 + $0x4c] sm:$0xf]
  %v4628 = vld [vmem:[%s5 + $0x50] sm:$0xf]
  %v4650 = vunpack.c.l.b16 %v4608
  %v4651 = vunpack.c.l.b16 %v4609
  %v4652 = vunpack.c.l.b16 %v4610
  %v4653 = vunpack.c.l.b16 %v4611
  %v4654 = vunpack.c.l.b16 %v4612
  %v4655 = vunpack.c.l.b16 %v4613
  %v4656 = vunpack.c.l.b16 %v4614
  %v4657 = vunpack.c.l.b16 %v4615
  %v4658 = vunpack.c.l.b16 %v4616
  %v4659 = vunpack.c.l.b16 %v4617
  %v4660 = vunpack.c.l.b16 %v4618
  %v4661 = vunpack.c.l.b16 %v4619
  %v4662 = vunpack.c.l.b16 %v4620
  %v4663 = vunpack.c.l.b16 %v4621
  %v4664 = vunpack.c.l.b16 %v4622
  %v4665 = vunpack.c.l.b16 %v4623
  %v4666 = vunpack.c.l.b16 %v4624
  %v4667 = vunpack.c.l.b16 %v4625
  %v4668 = vunpack.c.l.b16 %v4626
  %v4669 = vunpack.c.l.b16 %v4627
  %v4670 = vunpack.c.l.b16 %v4628
  %v4671 = vpack.c.b16 %v4651, %v4650
  %v4672 = vpack.c.b16 %v4653, %v4652
  %v4673 = vpack.c.b16 %v4655, %v4654
  %v4674 = vpack.c.b16 %v4657, %v4656
  %v4675 = vpack.c.b16 %v4659, %v4658
  %v4676 = vpack.c.b16 %v4661, %v4660
  %v4677 = vpack.c.b16 %v4663, %v4662
  %v4678 = vpack.c.b16 %v4665, %v4664
  %v4679 = vpack.c.b16 %v4667, %v4666
  %v4680 = vpack.c.b16 %v4669, %v4668
  %v4681 = vpack.c.b16 %v4670, %v4670
  %v4693 = vsel %vm610, %v4601, 0
  %v4696 = vsel %vm610, %v4603, 0
  %v4699 = vsel %vm610, %v4605, 0
  %v4702 = vsel %vm610, %v4607, 0
  %v4705 = vsel %vm623, %v4681, 0
  %4707 = vmatpush.bf16.msra.mxu0 %v4678
  %4708 = vmatpush.bf16.msra.mxu0 %v4677
  %4709 = vmatpush.bf16.msra.mxu0 %v4676
  %4710 = vmatpush.bf16.msra.mxu0 %v4675
  %4711 = vmatpush.bf16.msra.mxu0 %v4674
  %4712 = vmatpush.bf16.msra.mxu0 %v4673
  %4713 = vmatpush.bf16.msra.mxu0 %v4672
  %4714 = vmatpush.bf16.msra.mxu0 %v4671
  %4715 = vmatmul.bf16.gmra.mxu0 %v4600
  %v4716 = vpop.f32.mrf.mxu0
  %v4717 = vadd.f32 0.0, %v4716
  %v4718 = vpop.f32.mrf.mxu0
  %v4719 = vadd.f32 0.0, %v4718
  %4720 = vmatmul.bf16.gmra.mxu0 %v4602
  %v4721 = vpop.f32.mrf.mxu0
  %v4722 = vadd.f32 0.0, %v4721
  %v4723 = vpop.f32.mrf.mxu0
  %v4724 = vadd.f32 0.0, %v4723
  %4725 = vmatmul.bf16.gmra.mxu0 %v4604
  %v4726 = vpop.f32.mrf.mxu0
  %v4727 = vadd.f32 0.0, %v4726
  %v4728 = vpop.f32.mrf.mxu0
  %v4729 = vadd.f32 0.0, %v4728
  %4730 = vmatmul.bf16.gmra.mxu0 %v4606
  %v4731 = vpop.f32.mrf.mxu0
  %v4732 = vadd.f32 0.0, %v4731
  %v4733 = vpop.f32.mrf.mxu0
  %v4734 = vadd.f32 0.0, %v4733
  %4735 = vdwg.mxu0
  %4736 = vmatpush.bf16.msra.mxu0 0
  %4737 = vmatpush.bf16.msra.mxu0 0
  %4738 = vmatpush.bf16.msra.mxu0 0
  %4739 = vmatpush.bf16.msra.mxu0 0
  %4740 = vmatpush.bf16.msra.mxu0 0
  %4741 = vmatpush.bf16.msra.mxu0 %v4705
  %4742 = vmatpush.bf16.msra.mxu0 %v4680
  %4743 = vmatpush.bf16.msra.mxu0 %v4679
  %4744 = vmatmul.bf16.gmra.mxu0 %v4693
  %v4745 = vpop.f32.mrf.mxu0
  %v4746 = vadd.f32 %v4717, %v4745
  %v4747 = vpop.f32.mrf.mxu0
  %v4748 = vadd.f32 %v4719, %v4747
  %4749 = vmatmul.bf16.gmra.mxu0 %v4696
  %v4750 = vpop.f32.mrf.mxu0
  %v4751 = vadd.f32 %v4722, %v4750
  %v4752 = vpop.f32.mrf.mxu0
  %v4753 = vadd.f32 %v4724, %v4752
  %4754 = vmatmul.bf16.gmra.mxu0 %v4699
  %v4755 = vpop.f32.mrf.mxu0
  %v4756 = vadd.f32 %v4727, %v4755
  %v4757 = vpop.f32.mrf.mxu0
  %v4758 = vadd.f32 %v4729, %v4757
  %4759 = vmatmul.bf16.gmra.mxu0 %v4702
  %v4760 = vpop.f32.mrf.mxu0
  %v4761 = vadd.f32 %v4732, %v4760
  %v4762 = vpop.f32.mrf.mxu0
  %v4763 = vadd.f32 %v4734, %v4762
  %4764 = vdwg.mxu0
  %v4765 = vld [vmem:[%s6] sm:$0xf]
  %v4766 = vld [vmem:[%s6 + $0x4] sm:$0xf]
  %v4767 = vld [vmem:[%s6 + $0x8] sm:$0xf]
  %v4768 = vld [vmem:[%s6 + $0xc] sm:$0xf]
  %v4769 = vld [vmem:[%s6 + $0x10] sm:$0xf]
  %v4770 = vld [vmem:[%s6 + $0x14] sm:$0xf]
  %v4771 = vld [vmem:[%s6 + $0x18] sm:$0xf]
  %v4772 = vld [vmem:[%s6 + $0x1c] sm:$0xf]
  %v4773 = vld [vmem:[%s6 + $0x20] sm:$0xf]
  %v4774 = vld [vmem:[%s6 + $0x24] sm:$0xf]
  %v4775 = vld [vmem:[%s6 + $0x28] sm:$0xf]
  %v4776 = vld [vmem:[%s6 + $0x2c] sm:$0xf]
  %v4777 = vld [vmem:[%s6 + $0x30] sm:$0xf]
  %v4778 = vld [vmem:[%s6 + $0x34] sm:$0xf]
  %v4779 = vld [vmem:[%s6 + $0x38] sm:$0xf]
  %v4780 = vld [vmem:[%s6 + $0x3c] sm:$0xf]
  %v4781 = vld [vmem:[%s6 + $0x40] sm:$0xf]
  %v4782 = vld [vmem:[%s6 + $0x44] sm:$0xf]
  %v4783 = vld [vmem:[%s6 + $0x48] sm:$0xf]
  %v4784 = vld [vmem:[%s6 + $0x4c] sm:$0xf]
  %v4785 = vld [vmem:[%s6 + $0x50] sm:$0xf]
  %v4807 = vunpack.c.l.b16 %v4765
  %v4808 = vunpack.c.l.b16 %v4766
  %v4809 = vunpack.c.l.b16 %v4767
  %v4810 = vunpack.c.l.b16 %v4768
  %v4811 = vunpack.c.l.b16 %v4769
  %v4812 = vunpack.c.l.b16 %v4770
  %v4813 = vunpack.c.l.b16 %v4771
  %v4814 = vunpack.c.l.b16 %v4772
  %v4815 = vunpack.c.l.b16 %v4773
  %v4816 = vunpack.c.l.b16 %v4774
  %v4817 = vunpack.c.l.b16 %v4775
  %v4818 = vunpack.c.l.b16 %v4776
  %v4819 = vunpack.c.l.b16 %v4777
  %v4820 = vunpack.c.l.b16 %v4778
  %v4821 = vunpack.c.l.b16 %v4779
  %v4822 = vunpack.c.l.b16 %v4780
  %v4823 = vunpack.c.l.b16 %v4781
  %v4824 = vunpack.c.l.b16 %v4782
  %v4825 = vunpack.c.l.b16 %v4783
  %v4826 = vunpack.c.l.b16 %v4784
  %v4827 = vunpack.c.l.b16 %v4785
  %v4828 = vpack.c.b16 %v4808, %v4807
  %v4829 = vpack.c.b16 %v4810, %v4809
  %v4830 = vpack.c.b16 %v4812, %v4811
  %v4831 = vpack.c.b16 %v4814, %v4813
  %v4832 = vpack.c.b16 %v4816, %v4815
  %v4833 = vpack.c.b16 %v4818, %v4817
  %v4834 = vpack.c.b16 %v4820, %v4819
  %v4835 = vpack.c.b16 %v4822, %v4821
  %v4836 = vpack.c.b16 %v4824, %v4823
  %v4837 = vpack.c.b16 %v4826, %v4825
  %v4838 = vpack.c.b16 %v4827, %v4827
  %v4850 = vsel %vm623, %v4838, 0
  %4852 = vmatpush.bf16.msra.mxu0 %v4835
  %4853 = vmatpush.bf16.msra.mxu0 %v4834
  %4854 = vmatpush.bf16.msra.mxu0 %v4833
  %4855 = vmatpush.bf16.msra.mxu0 %v4832
  %4856 = vmatpush.bf16.msra.mxu0 %v4831
  %4857 = vmatpush.bf16.msra.mxu0 %v4830
  %4858 = vmatpush.bf16.msra.mxu0 %v4829
  %4859 = vmatpush.bf16.msra.mxu0 %v4828
  %4860 = vmatmul.bf16.gmra.mxu0 %v4600
  %v4861 = vpop.f32.mrf.mxu0
  %v4862 = vadd.f32 0.0, %v4861
  %v4863 = vpop.f32.mrf.mxu0
  %v4864 = vadd.f32 0.0, %v4863
  %4865 = vmatmul.bf16.gmra.mxu0 %v4602
  %v4866 = vpop.f32.mrf.mxu0
  %v4867 = vadd.f32 0.0, %v4866
  %v4868 = vpop.f32.mrf.mxu0
  %v4869 = vadd.f32 0.0, %v4868
  %4870 = vmatmul.bf16.gmra.mxu0 %v4604
  %v4871 = vpop.f32.mrf.mxu0
  %v4872 = vadd.f32 0.0, %v4871
  %v4873 = vpop.f32.mrf.mxu0
  %v4874 = vadd.f32 0.0, %v4873
  %4875 = vmatmul.bf16.gmra.mxu0 %v4606
  %v4876 = vpop.f32.mrf.mxu0
  %v4877 = vadd.f32 0.0, %v4876
  %v4878 = vpop.f32.mrf.mxu0
  %v4879 = vadd.f32 0.0, %v4878
  %4880 = vdwg.mxu0
  %4881 = vmatpush.bf16.msra.mxu0 0
  %4882 = vmatpush.bf16.msra.mxu0 0
  %4883 = vmatpush.bf16.msra.mxu0 0
  %4884 = vmatpush.bf16.msra.mxu0 0
  %4885 = vmatpush.bf16.msra.mxu0 0
  %4886 = vmatpush.bf16.msra.mxu0 %v4850
  %4887 = vmatpush.bf16.msra.mxu0 %v4837
  %4888 = vmatpush.bf16.msra.mxu0 %v4836
  %4889 = vmatmul.bf16.gmra.mxu0 %v4693
  %v4890 = vpop.f32.mrf.mxu0
  %v4891 = vadd.f32 %v4862, %v4890
  %v4892 = vpop.f32.mrf.mxu0
  %v4893 = vadd.f32 %v4864, %v4892
  %4894 = vmatmul.bf16.gmra.mxu0 %v4696
  %v4895 = vpop.f32.mrf.mxu0
  %v4896 = vadd.f32 %v4867, %v4895
  %v4897 = vpop.f32.mrf.mxu0
  %v4898 = vadd.f32 %v4869, %v4897
  %4899 = vmatmul.bf16.gmra.mxu0 %v4699
  %v4900 = vpop.f32.mrf.mxu0
  %v4901 = vadd.f32 %v4872, %v4900
  %v4902 = vpop.f32.mrf.mxu0
  %v4903 = vadd.f32 %v4874, %v4902
  %4904 = vmatmul.bf16.gmra.mxu0 %v4702
  %v4905 = vpop.f32.mrf.mxu0
  %v4906 = vadd.f32 %v4877, %v4905
  %v4907 = vpop.f32.mrf.mxu0
  %v4908 = vadd.f32 %v4879, %v4907
  %4909 = vdwg.mxu0
  %v4910 = vmax.f32 %v4746, %v4891
  %v4911 = vmax.f32 %v4748, %v4893
  %v4912 = vmax.f32 %v4751, %v4896
  %v4913 = vmax.f32 %v4753, %v4898
  %v4914 = vmax.f32 %v4756, %v4901
  %v4915 = vmax.f32 %v4758, %v4903
  %v4916 = vmax.f32 %v4761, %v4906
  %v4917 = vmax.f32 %v4763, %v4908
  %v4918 = vpack.c.bf16 %v4910, %v4910
  %v4919 = vpack.c.bf16 %v4911, %v4911
  %v4920 = vpack.c.bf16 %v4912, %v4912
  %v4921 = vpack.c.bf16 %v4913, %v4913
  %v4922 = vpack.c.bf16 %v4914, %v4914
  %v4923 = vpack.c.bf16 %v4915, %v4915
  %v4924 = vpack.c.bf16 %v4916, %v4916
  %v4925 = vpack.c.bf16 %v4917, %v4917
  %4926 = vst.msk [vmem:[#allocation2 + $0xa0] sm:$0xf] %vm33, %v4918
  %4927 = vst.msk [vmem:[#allocation2 + $0xa4] sm:$0xf] %vm33, %v4919
  %4928 = vst.msk [vmem:[#allocation2 + $0xa8] sm:$0xf] %vm33, %v4920
  %4929 = vst.msk [vmem:[#allocation2 + $0xac] sm:$0xf] %vm33, %v4921
  %4930 = vst.msk [vmem:[#allocation2 + $0xb0] sm:$0xf] %vm33, %v4922
  %4931 = vst.msk [vmem:[#allocation2 + $0xb4] sm:$0xf] %vm33, %v4923
  %4932 = vst.msk [vmem:[#allocation2 + $0xb8] sm:$0xf] %vm33, %v4924
  %4933 = vst.msk [vmem:[#allocation2 + $0xbc] sm:$0xf] %vm33, %v4925
  %v4934 = vld [vmem:[%s0 + $0x300] sm:$0xff]
  %v4935 = vld [vmem:[%s0 + $0x308] sm:$0xff]
  %v4936 = vld [vmem:[%s0 + $0x310] sm:$0xff]
  %v4937 = vld [vmem:[%s0 + $0x318] sm:$0xff]
  %v4938 = vld [vmem:[%s0 + $0x320] sm:$0xff]
  %v4939 = vld [vmem:[%s0 + $0x328] sm:$0xff]
  %v4940 = vld [vmem:[%s0 + $0x330] sm:$0xff]
  %v4941 = vld [vmem:[%s0 + $0x338] sm:$0xff]
  %v4942 = vld [vmem:[%s0 + $0x340] sm:$0xff]
  %v4943 = vld [vmem:[%s0 + $0x348] sm:$0xff]
  %v4944 = vld [vmem:[%s0 + $0x350] sm:$0xff]
  %v4945 = vld [vmem:[%s0 + $0x358] sm:$0xff]
  %v4946 = vld [vmem:[%s0 + $0x360] sm:$0xff]
  %v4947 = vld [vmem:[%s0 + $0x368] sm:$0xff]
  %v4948 = vld [vmem:[%s0 + $0x370] sm:$0xff]
  %v4949 = vld [vmem:[%s0 + $0x378] sm:$0xff]
  %v4950 = vld [vmem:[%s1] sm:$0xff]
  %v4951 = vld [vmem:[%s1 + $0x8] sm:$0xff]
  %v4952 = vld [vmem:[%s1 + $0x10] sm:$0xff]
  %v4953 = vld [vmem:[%s1 + $0x18] sm:$0xff]
  %v4954 = vld [vmem:[%s1 + $0x20] sm:$0xff]
  %v4955 = vld [vmem:[%s1 + $0x28] sm:$0xff]
  %v4956 = vld [vmem:[%s1 + $0x30] sm:$0xff]
  %v4957 = vld [vmem:[%s1 + $0x38] sm:$0xff]
  %v4958 = vld [vmem:[%s1 + $0x40] sm:$0xff]
  %v4959 = vld [vmem:[%s1 + $0x48] sm:$0xff]
  %v4960 = vld [vmem:[%s1 + $0x50] sm:$0xff]
  %v4961 = vld [vmem:[%s1 + $0x58] sm:$0xff]
  %v4962 = vld [vmem:[%s1 + $0x60] sm:$0xff]
  %v4963 = vld [vmem:[%s1 + $0x68] sm:$0xff]
  %v4964 = vld [vmem:[%s1 + $0x70] sm:$0xff]
  %v4965 = vld [vmem:[%s1 + $0x78] sm:$0xff]
  %v4966 = vld [vmem:[%s1 + $0x80] sm:$0xff]
  %v4967 = vld [vmem:[%s1 + $0x88] sm:$0xff]
  %v4968 = vld [vmem:[%s1 + $0x90] sm:$0xff]
  %v4969 = vld [vmem:[%s1 + $0x98] sm:$0xff]
  %v4986 = vunpack.c.l.b16 %v4934
  %v4987 = vunpack.c.h.b16 %v4934
  %v4988 = vunpack.c.l.b16 %v4935
  %v4989 = vunpack.c.h.b16 %v4935
  %v4990 = vunpack.c.l.b16 %v4936
  %v4991 = vunpack.c.h.b16 %v4936
  %v4992 = vunpack.c.l.b16 %v4937
  %v4993 = vunpack.c.h.b16 %v4937
  %v4994 = vunpack.c.l.b16 %v4938
  %v4995 = vunpack.c.h.b16 %v4938
  %v4996 = vunpack.c.l.b16 %v4939
  %v4997 = vunpack.c.h.b16 %v4939
  %v4998 = vunpack.c.l.b16 %v4940
  %v4999 = vunpack.c.h.b16 %v4940
  %v5000 = vunpack.c.l.b16 %v4941
  %v5001 = vunpack.c.h.b16 %v4941
  %v5002 = vunpack.c.l.b16 %v4942
  %v5003 = vunpack.c.h.b16 %v4942
  %v5004 = vunpack.c.l.b16 %v4943
  %v5005 = vunpack.c.h.b16 %v4943
  %v5006 = vunpack.c.l.b16 %v4944
  %v5007 = vunpack.c.h.b16 %v4944
  %v5008 = vunpack.c.l.b16 %v4945
  %v5009 = vunpack.c.h.b16 %v4945
  %v5010 = vunpack.c.l.b16 %v4946
  %v5011 = vunpack.c.h.b16 %v4946
  %v5012 = vunpack.c.l.b16 %v4947
  %v5013 = vunpack.c.h.b16 %v4947
  %v5014 = vunpack.c.l.b16 %v4948
  %v5015 = vunpack.c.h.b16 %v4948
  %v5016 = vunpack.c.l.b16 %v4949
  %v5017 = vunpack.c.h.b16 %v4949
  %v5018 = vpack.c.b16 %v4988, %v4986
  %v5019 = vpack.c.b16 %v4989, %v4987
  %v5020 = vpack.c.b16 %v4992, %v4990
  %v5021 = vpack.c.b16 %v4993, %v4991
  %v5022 = vpack.c.b16 %v4996, %v4994
  %v5023 = vpack.c.b16 %v4997, %v4995
  %v5024 = vpack.c.b16 %v5000, %v4998
  %v5025 = vpack.c.b16 %v5001, %v4999
  %v5026 = vpack.c.b16 %v5004, %v5002
  %v5027 = vpack.c.b16 %v5005, %v5003
  %v5028 = vpack.c.b16 %v5008, %v5006
  %v5029 = vpack.c.b16 %v5009, %v5007
  %v5030 = vpack.c.b16 %v5012, %v5010
  %v5031 = vpack.c.b16 %v5013, %v5011
  %v5032 = vpack.c.b16 %v5016, %v5014
  %v5033 = vpack.c.b16 %v5017, %v5015
  %v5062 = vunpack.c.l.b16 %v4950
  %v5063 = vunpack.c.h.b16 %v4950
  %v5064 = vunpack.c.l.b16 %v4951
  %v5065 = vunpack.c.h.b16 %v4951
  %v5066 = vunpack.c.l.b16 %v4952
  %v5067 = vunpack.c.h.b16 %v4952
  %v5068 = vunpack.c.l.b16 %v4953
  %v5069 = vunpack.c.h.b16 %v4953
  %v5070 = vunpack.c.l.b16 %v4954
  %v5071 = vunpack.c.h.b16 %v4954
  %v5072 = vunpack.c.l.b16 %v4955
  %v5073 = vunpack.c.h.b16 %v4955
  %v5074 = vunpack.c.l.b16 %v4956
  %v5075 = vunpack.c.h.b16 %v4956
  %v5076 = vunpack.c.l.b16 %v4957
  %v5077 = vunpack.c.h.b16 %v4957
  %v5078 = vunpack.c.l.b16 %v4958
  %v5079 = vunpack.c.h.b16 %v4958
  %v5080 = vunpack.c.l.b16 %v4959
  %v5081 = vunpack.c.h.b16 %v4959
  %v5082 = vunpack.c.l.b16 %v4960
  %v5083 = vunpack.c.h.b16 %v4960
  %v5084 = vunpack.c.l.b16 %v4961
  %v5085 = vunpack.c.h.b16 %v4961
  %v5086 = vunpack.c.l.b16 %v4962
  %v5087 = vunpack.c.h.b16 %v4962
  %v5088 = vunpack.c.l.b16 %v4963
  %v5089 = vunpack.c.h.b16 %v4963
  %v5090 = vunpack.c.l.b16 %v4964
  %v5091 = vunpack.c.h.b16 %v4964
  %v5092 = vunpack.c.l.b16 %v4965
  %v5093 = vunpack.c.h.b16 %v4965
  %v5094 = vunpack.c.l.b16 %v4966
  %v5095 = vunpack.c.h.b16 %v4966
  %v5096 = vunpack.c.l.b16 %v4967
  %v5097 = vunpack.c.h.b16 %v4967
  %v5098 = vunpack.c.l.b16 %v4968
  %v5099 = vunpack.c.h.b16 %v4968
  %v5100 = vunpack.c.l.b16 %v4969
  %v5101 = vunpack.c.h.b16 %v4969
  %v5102 = vpack.c.b16 %v5064, %v5062
  %v5103 = vpack.c.b16 %v5065, %v5063
  %v5104 = vpack.c.b16 %v5068, %v5066
  %v5105 = vpack.c.b16 %v5069, %v5067
  %v5106 = vpack.c.b16 %v5072, %v5070
  %v5107 = vpack.c.b16 %v5073, %v5071
  %v5108 = vpack.c.b16 %v5076, %v5074
  %v5109 = vpack.c.b16 %v5077, %v5075
  %v5110 = vpack.c.b16 %v5080, %v5078
  %v5111 = vpack.c.b16 %v5081, %v5079
  %v5112 = vpack.c.b16 %v5084, %v5082
  %v5113 = vpack.c.b16 %v5085, %v5083
  %v5114 = vpack.c.b16 %v5088, %v5086
  %v5115 = vpack.c.b16 %v5089, %v5087
  %v5116 = vpack.c.b16 %v5092, %v5090
  %v5117 = vpack.c.b16 %v5093, %v5091
  %v5118 = vpack.c.b16 %v5096, %v5094
  %v5119 = vpack.c.b16 %v5097, %v5095
  %v5120 = vpack.c.b16 %v5100, %v5098
  %v5121 = vpack.c.b16 %v5101, %v5099
  %v5143 = vsel %vm243, %v5019, 0
  %v5146 = vsel %vm243, %v5021, 0
  %v5149 = vsel %vm243, %v5023, 0
  %v5152 = vsel %vm243, %v5025, 0
  %v5155 = vsel %vm243, %v5027, 0
  %v5158 = vsel %vm243, %v5029, 0
  %v5161 = vsel %vm243, %v5031, 0
  %v5164 = vsel %vm243, %v5033, 0
  %5166 = vmatpush.bf16.msra.mxu0 %v5116
  %5167 = vmatpush.bf16.msra.mxu0 %v5114
  %5168 = vmatpush.bf16.msra.mxu0 %v5112
  %5169 = vmatpush.bf16.msra.mxu0 %v5110
  %5170 = vmatpush.bf16.msra.mxu0 %v5108
  %5171 = vmatpush.bf16.msra.mxu0 %v5106
  %5172 = vmatpush.bf16.msra.mxu0 %v5104
  %5173 = vmatpush.bf16.msra.mxu0 %v5102
  %5174 = vmatmul.bf16.gmra.mxu0 %v5018
  %v5175 = vpop.f32.mrf.mxu0
  %v5176 = vadd.f32 0.0, %v5175
  %v5177 = vpop.f32.mrf.mxu0
  %v5178 = vadd.f32 0.0, %v5177
  %5179 = vmatmul.bf16.gmra.mxu0 %v5020
  %v5180 = vpop.f32.mrf.mxu0
  %v5181 = vadd.f32 0.0, %v5180
  %v5182 = vpop.f32.mrf.mxu0
  %v5183 = vadd.f32 0.0, %v5182
  %5184 = vmatmul.bf16.gmra.mxu0 %v5022
  %v5185 = vpop.f32.mrf.mxu0
  %v5186 = vadd.f32 0.0, %v5185
  %v5187 = vpop.f32.mrf.mxu0
  %v5188 = vadd.f32 0.0, %v5187
  %5189 = vmatmul.bf16.gmra.mxu0 %v5024
  %v5190 = vpop.f32.mrf.mxu0
  %v5191 = vadd.f32 0.0, %v5190
  %v5192 = vpop.f32.mrf.mxu0
  %v5193 = vadd.f32 0.0, %v5192
  %5194 = vmatmul.bf16.gmra.mxu0 %v5026
  %v5195 = vpop.f32.mrf.mxu0
  %v5196 = vadd.f32 0.0, %v5195
  %v5197 = vpop.f32.mrf.mxu0
  %v5198 = vadd.f32 0.0, %v5197
  %5199 = vmatmul.bf16.gmra.mxu0 %v5028
  %v5200 = vpop.f32.mrf.mxu0
  %v5201 = vadd.f32 0.0, %v5200
  %v5202 = vpop.f32.mrf.mxu0
  %v5203 = vadd.f32 0.0, %v5202
  %5204 = vmatmul.bf16.gmra.mxu0 %v5030
  %v5205 = vpop.f32.mrf.mxu0
  %v5206 = vadd.f32 0.0, %v5205
  %v5207 = vpop.f32.mrf.mxu0
  %v5208 = vadd.f32 0.0, %v5207
  %5209 = vmatmul.bf16.gmra.mxu0 %v5032
  %v5210 = vpop.f32.mrf.mxu0
  %v5211 = vadd.f32 0.0, %v5210
  %v5212 = vpop.f32.mrf.mxu0
  %v5213 = vadd.f32 0.0, %v5212
  %5214 = vdwg.mxu0
  %5215 = vmatpush.bf16.msra.mxu0 0
  %5216 = vmatpush.bf16.msra.mxu0 0
  %5217 = vmatpush.bf16.msra.mxu0 0
  %5218 = vmatpush.bf16.msra.mxu0 0
  %5219 = vmatpush.bf16.msra.mxu0 0
  %5220 = vmatpush.bf16.msra.mxu0 0
  %5221 = vmatpush.bf16.msra.mxu0 %v5120
  %5222 = vmatpush.bf16.msra.mxu0 %v5118
  %5223 = vmatmul.bf16.gmra.mxu0 %v5143
  %v5224 = vpop.f32.mrf.mxu0
  %v5225 = vadd.f32 %v5176, %v5224
  %v5226 = vpop.f32.mrf.mxu0
  %v5227 = vadd.f32 %v5178, %v5226
  %5228 = vmatmul.bf16.gmra.mxu0 %v5146
  %v5229 = vpop.f32.mrf.mxu0
  %v5230 = vadd.f32 %v5181, %v5229
  %v5231 = vpop.f32.mrf.mxu0
  %v5232 = vadd.f32 %v5183, %v5231
  %5233 = vmatmul.bf16.gmra.mxu0 %v5149
  %v5234 = vpop.f32.mrf.mxu0
  %v5235 = vadd.f32 %v5186, %v5234
  %v5236 = vpop.f32.mrf.mxu0
  %v5237 = vadd.f32 %v5188, %v5236
  %5238 = vmatmul.bf16.gmra.mxu0 %v5152
  %v5239 = vpop.f32.mrf.mxu0
  %v5240 = vadd.f32 %v5191, %v5239
  %v5241 = vpop.f32.mrf.mxu0
  %v5242 = vadd.f32 %v5193, %v5241
  %5243 = vmatmul.bf16.gmra.mxu0 %v5155
  %v5244 = vpop.f32.mrf.mxu0
  %v5245 = vadd.f32 %v5196, %v5244
  %v5246 = vpop.f32.mrf.mxu0
  %v5247 = vadd.f32 %v5198, %v5246
  %5248 = vmatmul.bf16.gmra.mxu0 %v5158
  %v5249 = vpop.f32.mrf.mxu0
  %v5250 = vadd.f32 %v5201, %v5249
  %v5251 = vpop.f32.mrf.mxu0
  %v5252 = vadd.f32 %v5203, %v5251
  %5253 = vmatmul.bf16.gmra.mxu0 %v5161
  %v5254 = vpop.f32.mrf.mxu0
  %v5255 = vadd.f32 %v5206, %v5254
  %v5256 = vpop.f32.mrf.mxu0
  %v5257 = vadd.f32 %v5208, %v5256
  %5258 = vmatmul.bf16.gmra.mxu0 %v5164
  %v5259 = vpop.f32.mrf.mxu0
  %v5260 = vadd.f32 %v5211, %v5259
  %v5261 = vpop.f32.mrf.mxu0
  %v5262 = vadd.f32 %v5213, %v5261
  %5263 = vdwg.mxu0
  %5264 = vmatpush.bf16.msra.mxu0 %v5117
  %5265 = vmatpush.bf16.msra.mxu0 %v5115
  %5266 = vmatpush.bf16.msra.mxu0 %v5113
  %5267 = vmatpush.bf16.msra.mxu0 %v5111
  %5268 = vmatpush.bf16.msra.mxu0 %v5109
  %5269 = vmatpush.bf16.msra.mxu0 %v5107
  %5270 = vmatpush.bf16.msra.mxu0 %v5105
  %5271 = vmatpush.bf16.msra.mxu0 %v5103
  %5272 = vmatmul.bf16.gmra.mxu0 %v5018
  %v5273 = vpop.f32.mrf.mxu0
  %v5274 = vadd.f32 0.0, %v5273
  %v5275 = vpop.f32.mrf.mxu0
  %v5276 = vadd.f32 0.0, %v5275
  %5277 = vmatmul.bf16.gmra.mxu0 %v5020
  %v5278 = vpop.f32.mrf.mxu0
  %v5279 = vadd.f32 0.0, %v5278
  %v5280 = vpop.f32.mrf.mxu0
  %v5281 = vadd.f32 0.0, %v5280
  %5282 = vmatmul.bf16.gmra.mxu0 %v5022
  %v5283 = vpop.f32.mrf.mxu0
  %v5284 = vadd.f32 0.0, %v5283
  %v5285 = vpop.f32.mrf.mxu0
  %v5286 = vadd.f32 0.0, %v5285
  %5287 = vmatmul.bf16.gmra.mxu0 %v5024
  %v5288 = vpop.f32.mrf.mxu0
  %v5289 = vadd.f32 0.0, %v5288
  %v5290 = vpop.f32.mrf.mxu0
  %v5291 = vadd.f32 0.0, %v5290
  %5292 = vmatmul.bf16.gmra.mxu0 %v5026
  %v5293 = vpop.f32.mrf.mxu0
  %v5294 = vadd.f32 0.0, %v5293
  %v5295 = vpop.f32.mrf.mxu0
  %v5296 = vadd.f32 0.0, %v5295
  %5297 = vmatmul.bf16.gmra.mxu0 %v5028
  %v5298 = vpop.f32.mrf.mxu0
  %v5299 = vadd.f32 0.0, %v5298
  %v5300 = vpop.f32.mrf.mxu0
  %v5301 = vadd.f32 0.0, %v5300
  %5302 = vmatmul.bf16.gmra.mxu0 %v5030
  %v5303 = vpop.f32.mrf.mxu0
  %v5304 = vadd.f32 0.0, %v5303
  %v5305 = vpop.f32.mrf.mxu0
  %v5306 = vadd.f32 0.0, %v5305
  %5307 = vmatmul.bf16.gmra.mxu0 %v5032
  %v5308 = vpop.f32.mrf.mxu0
  %v5309 = vadd.f32 0.0, %v5308
  %v5310 = vpop.f32.mrf.mxu0
  %v5311 = vadd.f32 0.0, %v5310
  %5312 = vdwg.mxu0
  %5313 = vmatpush.bf16.msra.mxu0 0
  %5314 = vmatpush.bf16.msra.mxu0 0
  %5315 = vmatpush.bf16.msra.mxu0 0
  %5316 = vmatpush.bf16.msra.mxu0 0
  %5317 = vmatpush.bf16.msra.mxu0 0
  %5318 = vmatpush.bf16.msra.mxu0 0
  %5319 = vmatpush.bf16.msra.mxu0 %v5121
  %5320 = vmatpush.bf16.msra.mxu0 %v5119
  %5321 = vmatmul.bf16.gmra.mxu0 %v5143
  %v5322 = vpop.f32.mrf.mxu0
  %v5323 = vadd.f32 %v5274, %v5322
  %v5324 = vpop.f32.mrf.mxu0
  %v5325 = vadd.f32 %v5276, %v5324
  %5326 = vmatmul.bf16.gmra.mxu0 %v5146
  %v5327 = vpop.f32.mrf.mxu0
  %v5328 = vadd.f32 %v5279, %v5327
  %v5329 = vpop.f32.mrf.mxu0
  %v5330 = vadd.f32 %v5281, %v5329
  %5331 = vmatmul.bf16.gmra.mxu0 %v5149
  %v5332 = vpop.f32.mrf.mxu0
  %v5333 = vadd.f32 %v5284, %v5332
  %v5334 = vpop.f32.mrf.mxu0
  %v5335 = vadd.f32 %v5286, %v5334
  %5336 = vmatmul.bf16.gmra.mxu0 %v5152
  %v5337 = vpop.f32.mrf.mxu0
  %v5338 = vadd.f32 %v5289, %v5337
  %v5339 = vpop.f32.mrf.mxu0
  %v5340 = vadd.f32 %v5291, %v5339
  %5341 = vmatmul.bf16.gmra.mxu0 %v5155
  %v5342 = vpop.f32.mrf.mxu0
  %v5343 = vadd.f32 %v5294, %v5342
  %v5344 = vpop.f32.mrf.mxu0
  %v5345 = vadd.f32 %v5296, %v5344
  %5346 = vmatmul.bf16.gmra.mxu0 %v5158
  %v5347 = vpop.f32.mrf.mxu0
  %v5348 = vadd.f32 %v5299, %v5347
  %v5349 = vpop.f32.mrf.mxu0
  %v5350 = vadd.f32 %v5301, %v5349
  %5351 = vmatmul.bf16.gmra.mxu0 %v5161
  %v5352 = vpop.f32.mrf.mxu0
  %v5353 = vadd.f32 %v5304, %v5352
  %v5354 = vpop.f32.mrf.mxu0
  %v5355 = vadd.f32 %v5306, %v5354
  %5356 = vmatmul.bf16.gmra.mxu0 %v5164
  %v5357 = vpop.f32.mrf.mxu0
  %v5358 = vadd.f32 %v5309, %v5357
  %v5359 = vpop.f32.mrf.mxu0
  %v5360 = vadd.f32 %v5311, %v5359
  %5361 = vdwg.mxu0
  %v5362 = vmax.f32 %v5225, %v5245
  %v5363 = vmax.f32 %v5323, %v5343
  %v5364 = vmax.f32 %v5227, %v5247
  %v5365 = vmax.f32 %v5325, %v5345
  %v5366 = vmax.f32 %v5230, %v5250
  %v5367 = vmax.f32 %v5328, %v5348
  %v5368 = vmax.f32 %v5232, %v5252
  %v5369 = vmax.f32 %v5330, %v5350
  %v5370 = vmax.f32 %v5235, %v5255
  %v5371 = vmax.f32 %v5333, %v5353
  %v5372 = vmax.f32 %v5237, %v5257
  %v5373 = vmax.f32 %v5335, %v5355
  %v5374 = vmax.f32 %v5240, %v5260
  %v5375 = vmax.f32 %v5338, %v5358
  %v5376 = vmax.f32 %v5242, %v5262
  %v5377 = vmax.f32 %v5340, %v5360
  %v5378 = vld [vmem:[%s2] sm:$0x3]
  %v5380 = vperm.slane %v5378, 0
  %v5381 = vperm.slane %v5378, 1
  %v5384 = vadd.f32 %v5362, %v5380
  %v5385 = vadd.f32 %v5363, %v5381
  %v5386 = vadd.f32 %v5364, %v5380
  %v5387 = vadd.f32 %v5365, %v5381
  %v5388 = vadd.f32 %v5366, %v5380
  %v5389 = vadd.f32 %v5367, %v5381
  %v5390 = vadd.f32 %v5368, %v5380
  %v5391 = vadd.f32 %v5369, %v5381
  %v5392 = vadd.f32 %v5370, %v5380
  %v5393 = vadd.f32 %v5371, %v5381
  %v5394 = vadd.f32 %v5372, %v5380
  %v5395 = vadd.f32 %v5373, %v5381
  %v5396 = vadd.f32 %v5374, %v5380
  %v5397 = vadd.f32 %v5375, %v5381
  %v5398 = vadd.f32 %v5376, %v5380
  %v5399 = vadd.f32 %v5377, %v5381
  %v5400 = vmax.f32 %v5384, 0.0
  %v5401 = vmax.f32 %v5385, 0.0
  %v5402 = vmax.f32 %v5386, 0.0
  %v5403 = vmax.f32 %v5387, 0.0
  %v5404 = vmax.f32 %v5388, 0.0
  %v5405 = vmax.f32 %v5389, 0.0
  %v5406 = vmax.f32 %v5390, 0.0
  %v5407 = vmax.f32 %v5391, 0.0
  %v5408 = vmax.f32 %v5392, 0.0
  %v5409 = vmax.f32 %v5393, 0.0
  %v5410 = vmax.f32 %v5394, 0.0
  %v5411 = vmax.f32 %v5395, 0.0
  %v5412 = vmax.f32 %v5396, 0.0
  %v5413 = vmax.f32 %v5397, 0.0
  %v5414 = vmax.f32 %v5398, 0.0
  %v5415 = vmax.f32 %v5399, 0.0
  %v5416 = vpack.c.bf16 %v5402, %v5400
  %v5417 = vpack.c.bf16 %v5403, %v5401
  %v5418 = vpack.c.bf16 %v5406, %v5404
  %v5419 = vpack.c.bf16 %v5407, %v5405
  %v5420 = vpack.c.bf16 %v5410, %v5408
  %v5421 = vpack.c.bf16 %v5411, %v5409
  %v5422 = vpack.c.bf16 %v5414, %v5412
  %v5423 = vpack.c.bf16 %v5415, %v5413
  %v5424 = vld [vmem:[%s5] sm:$0xf]
  %v5425 = vld [vmem:[%s5 + $0x4] sm:$0xf]
  %v5426 = vld [vmem:[%s5 + $0x8] sm:$0xf]
  %v5427 = vld [vmem:[%s5 + $0xc] sm:$0xf]
  %v5428 = vld [vmem:[%s5 + $0x10] sm:$0xf]
  %v5429 = vld [vmem:[%s5 + $0x14] sm:$0xf]
  %v5430 = vld [vmem:[%s5 + $0x18] sm:$0xf]
  %v5431 = vld [vmem:[%s5 + $0x1c] sm:$0xf]
  %v5432 = vld [vmem:[%s5 + $0x20] sm:$0xf]
  %v5433 = vld [vmem:[%s5 + $0x24] sm:$0xf]
  %v5434 = vld [vmem:[%s5 + $0x28] sm:$0xf]
  %v5435 = vld [vmem:[%s5 + $0x2c] sm:$0xf]
  %v5436 = vld [vmem:[%s5 + $0x30] sm:$0xf]
  %v5437 = vld [vmem:[%s5 + $0x34] sm:$0xf]
  %v5438 = vld [vmem:[%s5 + $0x38] sm:$0xf]
  %v5439 = vld [vmem:[%s5 + $0x3c] sm:$0xf]
  %v5440 = vld [vmem:[%s5 + $0x40] sm:$0xf]
  %v5441 = vld [vmem:[%s5 + $0x44] sm:$0xf]
  %v5442 = vld [vmem:[%s5 + $0x48] sm:$0xf]
  %v5443 = vld [vmem:[%s5 + $0x4c] sm:$0xf]
  %v5444 = vld [vmem:[%s5 + $0x50] sm:$0xf]
  %v5466 = vunpack.c.l.b16 %v5424
  %v5467 = vunpack.c.l.b16 %v5425
  %v5468 = vunpack.c.l.b16 %v5426
  %v5469 = vunpack.c.l.b16 %v5427
  %v5470 = vunpack.c.l.b16 %v5428
  %v5471 = vunpack.c.l.b16 %v5429
  %v5472 = vunpack.c.l.b16 %v5430
  %v5473 = vunpack.c.l.b16 %v5431
  %v5474 = vunpack.c.l.b16 %v5432
  %v5475 = vunpack.c.l.b16 %v5433
  %v5476 = vunpack.c.l.b16 %v5434
  %v5477 = vunpack.c.l.b16 %v5435
  %v5478 = vunpack.c.l.b16 %v5436
  %v5479 = vunpack.c.l.b16 %v5437
  %v5480 = vunpack.c.l.b16 %v5438
  %v5481 = vunpack.c.l.b16 %v5439
  %v5482 = vunpack.c.l.b16 %v5440
  %v5483 = vunpack.c.l.b16 %v5441
  %v5484 = vunpack.c.l.b16 %v5442
  %v5485 = vunpack.c.l.b16 %v5443
  %v5486 = vunpack.c.l.b16 %v5444
  %v5487 = vpack.c.b16 %v5467, %v5466
  %v5488 = vpack.c.b16 %v5469, %v5468
  %v5489 = vpack.c.b16 %v5471, %v5470
  %v5490 = vpack.c.b16 %v5473, %v5472
  %v5491 = vpack.c.b16 %v5475, %v5474
  %v5492 = vpack.c.b16 %v5477, %v5476
  %v5493 = vpack.c.b16 %v5479, %v5478
  %v5494 = vpack.c.b16 %v5481, %v5480
  %v5495 = vpack.c.b16 %v5483, %v5482
  %v5496 = vpack.c.b16 %v5485, %v5484
  %v5497 = vpack.c.b16 %v5486, %v5486
  %v5509 = vsel %vm610, %v5417, 0
  %v5512 = vsel %vm610, %v5419, 0
  %v5515 = vsel %vm610, %v5421, 0
  %v5518 = vsel %vm610, %v5423, 0
  %v5521 = vsel %vm623, %v5497, 0
  %5523 = vmatpush.bf16.msra.mxu0 %v5494
  %5524 = vmatpush.bf16.msra.mxu0 %v5493
  %5525 = vmatpush.bf16.msra.mxu0 %v5492
  %5526 = vmatpush.bf16.msra.mxu0 %v5491
  %5527 = vmatpush.bf16.msra.mxu0 %v5490
  %5528 = vmatpush.bf16.msra.mxu0 %v5489
  %5529 = vmatpush.bf16.msra.mxu0 %v5488
  %5530 = vmatpush.bf16.msra.mxu0 %v5487
  %5531 = vmatmul.bf16.gmra.mxu0 %v5416
  %v5532 = vpop.f32.mrf.mxu0
  %v5533 = vadd.f32 0.0, %v5532
  %v5534 = vpop.f32.mrf.mxu0
  %v5535 = vadd.f32 0.0, %v5534
  %5536 = vmatmul.bf16.gmra.mxu0 %v5418
  %v5537 = vpop.f32.mrf.mxu0
  %v5538 = vadd.f32 0.0, %v5537
  %v5539 = vpop.f32.mrf.mxu0
  %v5540 = vadd.f32 0.0, %v5539
  %5541 = vmatmul.bf16.gmra.mxu0 %v5420
  %v5542 = vpop.f32.mrf.mxu0
  %v5543 = vadd.f32 0.0, %v5542
  %v5544 = vpop.f32.mrf.mxu0
  %v5545 = vadd.f32 0.0, %v5544
  %5546 = vmatmul.bf16.gmra.mxu0 %v5422
  %v5547 = vpop.f32.mrf.mxu0
  %v5548 = vadd.f32 0.0, %v5547
  %v5549 = vpop.f32.mrf.mxu0
  %v5550 = vadd.f32 0.0, %v5549
  %5551 = vdwg.mxu0
  %5552 = vmatpush.bf16.msra.mxu0 0
  %5553 = vmatpush.bf16.msra.mxu0 0
  %5554 = vmatpush.bf16.msra.mxu0 0
  %5555 = vmatpush.bf16.msra.mxu0 0
  %5556 = vmatpush.bf16.msra.mxu0 0
  %5557 = vmatpush.bf16.msra.mxu0 %v5521
  %5558 = vmatpush.bf16.msra.mxu0 %v5496
  %5559 = vmatpush.bf16.msra.mxu0 %v5495
  %5560 = vmatmul.bf16.gmra.mxu0 %v5509
  %v5561 = vpop.f32.mrf.mxu0
  %v5562 = vadd.f32 %v5533, %v5561
  %v5563 = vpop.f32.mrf.mxu0
  %v5564 = vadd.f32 %v5535, %v5563
  %5565 = vmatmul.bf16.gmra.mxu0 %v5512
  %v5566 = vpop.f32.mrf.mxu0
  %v5567 = vadd.f32 %v5538, %v5566
  %v5568 = vpop.f32.mrf.mxu0
  %v5569 = vadd.f32 %v5540, %v5568
  %5570 = vmatmul.bf16.gmra.mxu0 %v5515
  %v5571 = vpop.f32.mrf.mxu0
  %v5572 = vadd.f32 %v5543, %v5571
  %v5573 = vpop.f32.mrf.mxu0
  %v5574 = vadd.f32 %v5545, %v5573
  %5575 = vmatmul.bf16.gmra.mxu0 %v5518
  %v5576 = vpop.f32.mrf.mxu0
  %v5577 = vadd.f32 %v5548, %v5576
  %v5578 = vpop.f32.mrf.mxu0
  %v5579 = vadd.f32 %v5550, %v5578
  %5580 = vdwg.mxu0
  %v5581 = vld [vmem:[%s6] sm:$0xf]
  %v5582 = vld [vmem:[%s6 + $0x4] sm:$0xf]
  %v5583 = vld [vmem:[%s6 + $0x8] sm:$0xf]
  %v5584 = vld [vmem:[%s6 + $0xc] sm:$0xf]
  %v5585 = vld [vmem:[%s6 + $0x10] sm:$0xf]
  %v5586 = vld [vmem:[%s6 + $0x14] sm:$0xf]
  %v5587 = vld [vmem:[%s6 + $0x18] sm:$0xf]
  %v5588 = vld [vmem:[%s6 + $0x1c] sm:$0xf]
  %v5589 = vld [vmem:[%s6 + $0x20] sm:$0xf]
  %v5590 = vld [vmem:[%s6 + $0x24] sm:$0xf]
  %v5591 = vld [vmem:[%s6 + $0x28] sm:$0xf]
  %v5592 = vld [vmem:[%s6 + $0x2c] sm:$0xf]
  %v5593 = vld [vmem:[%s6 + $0x30] sm:$0xf]
  %v5594 = vld [vmem:[%s6 + $0x34] sm:$0xf]
  %v5595 = vld [vmem:[%s6 + $0x38] sm:$0xf]
  %v5596 = vld [vmem:[%s6 + $0x3c] sm:$0xf]
  %v5597 = vld [vmem:[%s6 + $0x40] sm:$0xf]
  %v5598 = vld [vmem:[%s6 + $0x44] sm:$0xf]
  %v5599 = vld [vmem:[%s6 + $0x48] sm:$0xf]
  %v5600 = vld [vmem:[%s6 + $0x4c] sm:$0xf]
  %v5601 = vld [vmem:[%s6 + $0x50] sm:$0xf]
  %v5623 = vunpack.c.l.b16 %v5581
  %v5624 = vunpack.c.l.b16 %v5582
  %v5625 = vunpack.c.l.b16 %v5583
  %v5626 = vunpack.c.l.b16 %v5584
  %v5627 = vunpack.c.l.b16 %v5585
  %v5628 = vunpack.c.l.b16 %v5586
  %v5629 = vunpack.c.l.b16 %v5587
  %v5630 = vunpack.c.l.b16 %v5588
  %v5631 = vunpack.c.l.b16 %v5589
  %v5632 = vunpack.c.l.b16 %v5590
  %v5633 = vunpack.c.l.b16 %v5591
  %v5634 = vunpack.c.l.b16 %v5592
  %v5635 = vunpack.c.l.b16 %v5593
  %v5636 = vunpack.c.l.b16 %v5594
  %v5637 = vunpack.c.l.b16 %v5595
  %v5638 = vunpack.c.l.b16 %v5596
  %v5639 = vunpack.c.l.b16 %v5597
  %v5640 = vunpack.c.l.b16 %v5598
  %v5641 = vunpack.c.l.b16 %v5599
  %v5642 = vunpack.c.l.b16 %v5600
  %v5643 = vunpack.c.l.b16 %v5601
  %v5644 = vpack.c.b16 %v5624, %v5623
  %v5645 = vpack.c.b16 %v5626, %v5625
  %v5646 = vpack.c.b16 %v5628, %v5627
  %v5647 = vpack.c.b16 %v5630, %v5629
  %v5648 = vpack.c.b16 %v5632, %v5631
  %v5649 = vpack.c.b16 %v5634, %v5633
  %v5650 = vpack.c.b16 %v5636, %v5635
  %v5651 = vpack.c.b16 %v5638, %v5637
  %v5652 = vpack.c.b16 %v5640, %v5639
  %v5653 = vpack.c.b16 %v5642, %v5641
  %v5654 = vpack.c.b16 %v5643, %v5643
  %v5666 = vsel %vm623, %v5654, 0
  %5668 = vmatpush.bf16.msra.mxu0 %v5651
  %5669 = vmatpush.bf16.msra.mxu0 %v5650
  %5670 = vmatpush.bf16.msra.mxu0 %v5649
  %5671 = vmatpush.bf16.msra.mxu0 %v5648
  %5672 = vmatpush.bf16.msra.mxu0 %v5647
  %5673 = vmatpush.bf16.msra.mxu0 %v5646
  %5674 = vmatpush.bf16.msra.mxu0 %v5645
  %5675 = vmatpush.bf16.msra.mxu0 %v5644
  %5676 = vmatmul.bf16.gmra.mxu0 %v5416
  %v5677 = vpop.f32.mrf.mxu0
  %v5678 = vadd.f32 0.0, %v5677
  %v5679 = vpop.f32.mrf.mxu0
  %v5680 = vadd.f32 0.0, %v5679
  %5681 = vmatmul.bf16.gmra.mxu0 %v5418
  %v5682 = vpop.f32.mrf.mxu0
  %v5683 = vadd.f32 0.0, %v5682
  %v5684 = vpop.f32.mrf.mxu0
  %v5685 = vadd.f32 0.0, %v5684
  %5686 = vmatmul.bf16.gmra.mxu0 %v5420
  %v5687 = vpop.f32.mrf.mxu0
  %v5688 = vadd.f32 0.0, %v5687
  %v5689 = vpop.f32.mrf.mxu0
  %v5690 = vadd.f32 0.0, %v5689
  %5691 = vmatmul.bf16.gmra.mxu0 %v5422
  %v5692 = vpop.f32.mrf.mxu0
  %v5693 = vadd.f32 0.0, %v5692
  %v5694 = vpop.f32.mrf.mxu0
  %v5695 = vadd.f32 0.0, %v5694
  %5696 = vdwg.mxu0
  %5697 = vmatpush.bf16.msra.mxu0 0
  %5698 = vmatpush.bf16.msra.mxu0 0
  %5699 = vmatpush.bf16.msra.mxu0 0
  %5700 = vmatpush.bf16.msra.mxu0 0
  %5701 = vmatpush.bf16.msra.mxu0 0
  %5702 = vmatpush.bf16.msra.mxu0 %v5666
  %5703 = vmatpush.bf16.msra.mxu0 %v5653
  %5704 = vmatpush.bf16.msra.mxu0 %v5652
  %5705 = vmatmul.bf16.gmra.mxu0 %v5509
  %v5706 = vpop.f32.mrf.mxu0
  %v5707 = vadd.f32 %v5678, %v5706
  %v5708 = vpop.f32.mrf.mxu0
  %v5709 = vadd.f32 %v5680, %v5708
  %5710 = vmatmul.bf16.gmra.mxu0 %v5512
  %v5711 = vpop.f32.mrf.mxu0
  %v5712 = vadd.f32 %v5683, %v5711
  %v5713 = vpop.f32.mrf.mxu0
  %v5714 = vadd.f32 %v5685, %v5713
  %5715 = vmatmul.bf16.gmra.mxu0 %v5515
  %v5716 = vpop.f32.mrf.mxu0
  %v5717 = vadd.f32 %v5688, %v5716
  %v5718 = vpop.f32.mrf.mxu0
  %v5719 = vadd.f32 %v5690, %v5718
  %5720 = vmatmul.bf16.gmra.mxu0 %v5518
  %v5721 = vpop.f32.mrf.mxu0
  %v5722 = vadd.f32 %v5693, %v5721
  %v5723 = vpop.f32.mrf.mxu0
  %v5724 = vadd.f32 %v5695, %v5723
  %5725 = vdwg.mxu0
  %v5726 = vmax.f32 %v5562, %v5707
  %v5727 = vmax.f32 %v5564, %v5709
  %v5728 = vmax.f32 %v5567, %v5712
  %v5729 = vmax.f32 %v5569, %v5714
  %v5730 = vmax.f32 %v5572, %v5717
  %v5731 = vmax.f32 %v5574, %v5719
  %v5732 = vmax.f32 %v5577, %v5722
  %v5733 = vmax.f32 %v5579, %v5724
  %v5734 = vpack.c.bf16 %v5726, %v5726
  %v5735 = vpack.c.bf16 %v5727, %v5727
  %v5736 = vpack.c.bf16 %v5728, %v5728
  %v5737 = vpack.c.bf16 %v5729, %v5729
  %v5738 = vpack.c.bf16 %v5730, %v5730
  %v5739 = vpack.c.bf16 %v5731, %v5731
  %v5740 = vpack.c.bf16 %v5732, %v5732
  %v5741 = vpack.c.bf16 %v5733, %v5733
  %5742 = vst.msk [vmem:[#allocation2 + $0xc0] sm:$0xf] %vm33, %v5734
  %5743 = vst.msk [vmem:[#allocation2 + $0xc4] sm:$0xf] %vm33, %v5735
  %5744 = vst.msk [vmem:[#allocation2 + $0xc8] sm:$0xf] %vm33, %v5736
  %5745 = vst.msk [vmem:[#allocation2 + $0xcc] sm:$0xf] %vm33, %v5737
  %5746 = vst.msk [vmem:[#allocation2 + $0xd0] sm:$0xf] %vm33, %v5738
  %5747 = vst.msk [vmem:[#allocation2 + $0xd4] sm:$0xf] %vm33, %v5739
  %5748 = vst.msk [vmem:[#allocation2 + $0xd8] sm:$0xf] %vm33, %v5740
  %5749 = vst.msk [vmem:[#allocation2 + $0xdc] sm:$0xf] %vm33, %v5741
  %v5750 = vld [vmem:[%s0 + $0x380] sm:$0xff]
  %v5751 = vld [vmem:[%s0 + $0x388] sm:$0xff]
  %v5752 = vld [vmem:[%s0 + $0x390] sm:$0xff]
  %v5753 = vld [vmem:[%s0 + $0x398] sm:$0xff]
  %v5754 = vld [vmem:[%s0 + $0x3a0] sm:$0xff]
  %v5755 = vld [vmem:[%s0 + $0x3a8] sm:$0xff]
  %v5756 = vld [vmem:[%s0 + $0x3b0] sm:$0xff]
  %v5757 = vld [vmem:[%s0 + $0x3b8] sm:$0xff]
  %v5758 = vld [vmem:[%s0 + $0x3c0] sm:$0xff]
  %v5759 = vld [vmem:[%s0 + $0x3c8] sm:$0xff]
  %v5760 = vld [vmem:[%s0 + $0x3d0] sm:$0xff]
  %v5761 = vld [vmem:[%s0 + $0x3d8] sm:$0xff]
  %v5762 = vld [vmem:[%s0 + $0x3e0] sm:$0xff]
  %v5763 = vld [vmem:[%s0 + $0x3e8] sm:$0xff]
  %v5764 = vld [vmem:[%s0 + $0x3f0] sm:$0xff]
  %v5765 = vld [vmem:[%s0 + $0x3f8] sm:$0xff]
  %v5766 = vld [vmem:[%s1] sm:$0xff]
  %v5767 = vld [vmem:[%s1 + $0x8] sm:$0xff]
  %v5768 = vld [vmem:[%s1 + $0x10] sm:$0xff]
  %v5769 = vld [vmem:[%s1 + $0x18] sm:$0xff]
  %v5770 = vld [vmem:[%s1 + $0x20] sm:$0xff]
  %v5771 = vld [vmem:[%s1 + $0x28] sm:$0xff]
  %v5772 = vld [vmem:[%s1 + $0x30] sm:$0xff]
  %v5773 = vld [vmem:[%s1 + $0x38] sm:$0xff]
  %v5774 = vld [vmem:[%s1 + $0x40] sm:$0xff]
  %v5775 = vld [vmem:[%s1 + $0x48] sm:$0xff]
  %v5776 = vld [vmem:[%s1 + $0x50] sm:$0xff]
  %v5777 = vld [vmem:[%s1 + $0x58] sm:$0xff]
  %v5778 = vld [vmem:[%s1 + $0x60] sm:$0xff]
  %v5779 = vld [vmem:[%s1 + $0x68] sm:$0xff]
  %v5780 = vld [vmem:[%s1 + $0x70] sm:$0xff]
  %v5781 = vld [vmem:[%s1 + $0x78] sm:$0xff]
  %v5782 = vld [vmem:[%s1 + $0x80] sm:$0xff]
  %v5783 = vld [vmem:[%s1 + $0x88] sm:$0xff]
  %v5784 = vld [vmem:[%s1 + $0x90] sm:$0xff]
  %v5785 = vld [vmem:[%s1 + $0x98] sm:$0xff]
  %v5802 = vunpack.c.l.b16 %v5750
  %v5803 = vunpack.c.h.b16 %v5750
  %v5804 = vunpack.c.l.b16 %v5751
  %v5805 = vunpack.c.h.b16 %v5751
  %v5806 = vunpack.c.l.b16 %v5752
  %v5807 = vunpack.c.h.b16 %v5752
  %v5808 = vunpack.c.l.b16 %v5753
  %v5809 = vunpack.c.h.b16 %v5753
  %v5810 = vunpack.c.l.b16 %v5754
  %v5811 = vunpack.c.h.b16 %v5754
  %v5812 = vunpack.c.l.b16 %v5755
  %v5813 = vunpack.c.h.b16 %v5755
  %v5814 = vunpack.c.l.b16 %v5756
  %v5815 = vunpack.c.h.b16 %v5756
  %v5816 = vunpack.c.l.b16 %v5757
  %v5817 = vunpack.c.h.b16 %v5757
  %v5818 = vunpack.c.l.b16 %v5758
  %v5819 = vunpack.c.h.b16 %v5758
  %v5820 = vunpack.c.l.b16 %v5759
  %v5821 = vunpack.c.h.b16 %v5759
  %v5822 = vunpack.c.l.b16 %v5760
  %v5823 = vunpack.c.h.b16 %v5760
  %v5824 = vunpack.c.l.b16 %v5761
  %v5825 = vunpack.c.h.b16 %v5761
  %v5826 = vunpack.c.l.b16 %v5762
  %v5827 = vunpack.c.h.b16 %v5762
  %v5828 = vunpack.c.l.b16 %v5763
  %v5829 = vunpack.c.h.b16 %v5763
  %v5830 = vunpack.c.l.b16 %v5764
  %v5831 = vunpack.c.h.b16 %v5764
  %v5832 = vunpack.c.l.b16 %v5765
  %v5833 = vunpack.c.h.b16 %v5765
  %v5834 = vpack.c.b16 %v5804, %v5802
  %v5835 = vpack.c.b16 %v5805, %v5803
  %v5836 = vpack.c.b16 %v5808, %v5806
  %v5837 = vpack.c.b16 %v5809, %v5807
  %v5838 = vpack.c.b16 %v5812, %v5810
  %v5839 = vpack.c.b16 %v5813, %v5811
  %v5840 = vpack.c.b16 %v5816, %v5814
  %v5841 = vpack.c.b16 %v5817, %v5815
  %v5842 = vpack.c.b16 %v5820, %v5818
  %v5843 = vpack.c.b16 %v5821, %v5819
  %v5844 = vpack.c.b16 %v5824, %v5822
  %v5845 = vpack.c.b16 %v5825, %v5823
  %v5846 = vpack.c.b16 %v5828, %v5826
  %v5847 = vpack.c.b16 %v5829, %v5827
  %v5848 = vpack.c.b16 %v5832, %v5830
  %v5849 = vpack.c.b16 %v5833, %v5831
  %v5878 = vunpack.c.l.b16 %v5766
  %v5879 = vunpack.c.h.b16 %v5766
  %v5880 = vunpack.c.l.b16 %v5767
  %v5881 = vunpack.c.h.b16 %v5767
  %v5882 = vunpack.c.l.b16 %v5768
  %v5883 = vunpack.c.h.b16 %v5768
  %v5884 = vunpack.c.l.b16 %v5769
  %v5885 = vunpack.c.h.b16 %v5769
  %v5886 = vunpack.c.l.b16 %v5770
  %v5887 = vunpack.c.h.b16 %v5770
  %v5888 = vunpack.c.l.b16 %v5771
  %v5889 = vunpack.c.h.b16 %v5771
  %v5890 = vunpack.c.l.b16 %v5772
  %v5891 = vunpack.c.h.b16 %v5772
  %v5892 = vunpack.c.l.b16 %v5773
  %v5893 = vunpack.c.h.b16 %v5773
  %v5894 = vunpack.c.l.b16 %v5774
  %v5895 = vunpack.c.h.b16 %v5774
  %v5896 = vunpack.c.l.b16 %v5775
  %v5897 = vunpack.c.h.b16 %v5775
  %v5898 = vunpack.c.l.b16 %v5776
  %v5899 = vunpack.c.h.b16 %v5776
  %v5900 = vunpack.c.l.b16 %v5777
  %v5901 = vunpack.c.h.b16 %v5777
  %v5902 = vunpack.c.l.b16 %v5778
  %v5903 = vunpack.c.h.b16 %v5778
  %v5904 = vunpack.c.l.b16 %v5779
  %v5905 = vunpack.c.h.b16 %v5779
  %v5906 = vunpack.c.l.b16 %v5780
  %v5907 = vunpack.c.h.b16 %v5780
  %v5908 = vunpack.c.l.b16 %v5781
  %v5909 = vunpack.c.h.b16 %v5781
  %v5910 = vunpack.c.l.b16 %v5782
  %v5911 = vunpack.c.h.b16 %v5782
  %v5912 = vunpack.c.l.b16 %v5783
  %v5913 = vunpack.c.h.b16 %v5783
  %v5914 = vunpack.c.l.b16 %v5784
  %v5915 = vunpack.c.h.b16 %v5784
  %v5916 = vunpack.c.l.b16 %v5785
  %v5917 = vunpack.c.h.b16 %v5785
  %v5918 = vpack.c.b16 %v5880, %v5878
  %v5919 = vpack.c.b16 %v5881, %v5879
  %v5920 = vpack.c.b16 %v5884, %v5882
  %v5921 = vpack.c.b16 %v5885, %v5883
  %v5922 = vpack.c.b16 %v5888, %v5886
  %v5923 = vpack.c.b16 %v5889, %v5887
  %v5924 = vpack.c.b16 %v5892, %v5890
  %v5925 = vpack.c.b16 %v5893, %v5891
  %v5926 = vpack.c.b16 %v5896, %v5894
  %v5927 = vpack.c.b16 %v5897, %v5895
  %v5928 = vpack.c.b16 %v5900, %v5898
  %v5929 = vpack.c.b16 %v5901, %v5899
  %v5930 = vpack.c.b16 %v5904, %v5902
  %v5931 = vpack.c.b16 %v5905, %v5903
  %v5932 = vpack.c.b16 %v5908, %v5906
  %v5933 = vpack.c.b16 %v5909, %v5907
  %v5934 = vpack.c.b16 %v5912, %v5910
  %v5935 = vpack.c.b16 %v5913, %v5911
  %v5936 = vpack.c.b16 %v5916, %v5914
  %v5937 = vpack.c.b16 %v5917, %v5915
  %v5959 = vsel %vm243, %v5835, 0
  %v5962 = vsel %vm243, %v5837, 0
  %v5965 = vsel %vm243, %v5839, 0
  %v5968 = vsel %vm243, %v5841, 0
  %v5971 = vsel %vm243, %v5843, 0
  %v5974 = vsel %vm243, %v5845, 0
  %v5977 = vsel %vm243, %v5847, 0
  %v5980 = vsel %vm243, %v5849, 0
  %5982 = vmatpush.bf16.msra.mxu0 %v5932
  %5983 = vmatpush.bf16.msra.mxu0 %v5930
  %5984 = vmatpush.bf16.msra.mxu0 %v5928
  %5985 = vmatpush.bf16.msra.mxu0 %v5926
  %5986 = vmatpush.bf16.msra.mxu0 %v5924
  %5987 = vmatpush.bf16.msra.mxu0 %v5922
  %5988 = vmatpush.bf16.msra.mxu0 %v5920
  %5989 = vmatpush.bf16.msra.mxu0 %v5918
  %5990 = vmatmul.bf16.gmra.mxu0 %v5834
  %v5991 = vpop.f32.mrf.mxu0
  %v5992 = vadd.f32 0.0, %v5991
  %v5993 = vpop.f32.mrf.mxu0
  %v5994 = vadd.f32 0.0, %v5993
  %5995 = vmatmul.bf16.gmra.mxu0 %v5836
  %v5996 = vpop.f32.mrf.mxu0
  %v5997 = vadd.f32 0.0, %v5996
  %v5998 = vpop.f32.mrf.mxu0
  %v5999 = vadd.f32 0.0, %v5998
  %6000 = vmatmul.bf16.gmra.mxu0 %v5838
  %v6001 = vpop.f32.mrf.mxu0
  %v6002 = vadd.f32 0.0, %v6001
  %v6003 = vpop.f32.mrf.mxu0
  %v6004 = vadd.f32 0.0, %v6003
  %6005 = vmatmul.bf16.gmra.mxu0 %v5840
  %v6006 = vpop.f32.mrf.mxu0
  %v6007 = vadd.f32 0.0, %v6006
  %v6008 = vpop.f32.mrf.mxu0
  %v6009 = vadd.f32 0.0, %v6008
  %6010 = vmatmul.bf16.gmra.mxu0 %v5842
  %v6011 = vpop.f32.mrf.mxu0
  %v6012 = vadd.f32 0.0, %v6011
  %v6013 = vpop.f32.mrf.mxu0
  %v6014 = vadd.f32 0.0, %v6013
  %6015 = vmatmul.bf16.gmra.mxu0 %v5844
  %v6016 = vpop.f32.mrf.mxu0
  %v6017 = vadd.f32 0.0, %v6016
  %v6018 = vpop.f32.mrf.mxu0
  %v6019 = vadd.f32 0.0, %v6018
  %6020 = vmatmul.bf16.gmra.mxu0 %v5846
  %v6021 = vpop.f32.mrf.mxu0
  %v6022 = vadd.f32 0.0, %v6021
  %v6023 = vpop.f32.mrf.mxu0
  %v6024 = vadd.f32 0.0, %v6023
  %6025 = vmatmul.bf16.gmra.mxu0 %v5848
  %v6026 = vpop.f32.mrf.mxu0
  %v6027 = vadd.f32 0.0, %v6026
  %v6028 = vpop.f32.mrf.mxu0
  %v6029 = vadd.f32 0.0, %v6028
  %6030 = vdwg.mxu0
  %6031 = vmatpush.bf16.msra.mxu0 0
  %6032 = vmatpush.bf16.msra.mxu0 0
  %6033 = vmatpush.bf16.msra.mxu0 0
  %6034 = vmatpush.bf16.msra.mxu0 0
  %6035 = vmatpush.bf16.msra.mxu0 0
  %6036 = vmatpush.bf16.msra.mxu0 0
  %6037 = vmatpush.bf16.msra.mxu0 %v5936
  %6038 = vmatpush.bf16.msra.mxu0 %v5934
  %6039 = vmatmul.bf16.gmra.mxu0 %v5959
  %v6040 = vpop.f32.mrf.mxu0
  %v6041 = vadd.f32 %v5992, %v6040
  %v6042 = vpop.f32.mrf.mxu0
  %v6043 = vadd.f32 %v5994, %v6042
  %6044 = vmatmul.bf16.gmra.mxu0 %v5962
  %v6045 = vpop.f32.mrf.mxu0
  %v6046 = vadd.f32 %v5997, %v6045
  %v6047 = vpop.f32.mrf.mxu0
  %v6048 = vadd.f32 %v5999, %v6047
  %6049 = vmatmul.bf16.gmra.mxu0 %v5965
  %v6050 = vpop.f32.mrf.mxu0
  %v6051 = vadd.f32 %v6002, %v6050
  %v6052 = vpop.f32.mrf.mxu0
  %v6053 = vadd.f32 %v6004, %v6052
  %6054 = vmatmul.bf16.gmra.mxu0 %v5968
  %v6055 = vpop.f32.mrf.mxu0
  %v6056 = vadd.f32 %v6007, %v6055
  %v6057 = vpop.f32.mrf.mxu0
  %v6058 = vadd.f32 %v6009, %v6057
  %6059 = vmatmul.bf16.gmra.mxu0 %v5971
  %v6060 = vpop.f32.mrf.mxu0
  %v6061 = vadd.f32 %v6012, %v6060
  %v6062 = vpop.f32.mrf.mxu0
  %v6063 = vadd.f32 %v6014, %v6062
  %6064 = vmatmul.bf16.gmra.mxu0 %v5974
  %v6065 = vpop.f32.mrf.mxu0
  %v6066 = vadd.f32 %v6017, %v6065
  %v6067 = vpop.f32.mrf.mxu0
  %v6068 = vadd.f32 %v6019, %v6067
  %6069 = vmatmul.bf16.gmra.mxu0 %v5977
  %v6070 = vpop.f32.mrf.mxu0
  %v6071 = vadd.f32 %v6022, %v6070
  %v6072 = vpop.f32.mrf.mxu0
  %v6073 = vadd.f32 %v6024, %v6072
  %6074 = vmatmul.bf16.gmra.mxu0 %v5980
  %v6075 = vpop.f32.mrf.mxu0
  %v6076 = vadd.f32 %v6027, %v6075
  %v6077 = vpop.f32.mrf.mxu0
  %v6078 = vadd.f32 %v6029, %v6077
  %6079 = vdwg.mxu0
  %6080 = vmatpush.bf16.msra.mxu0 %v5933
  %6081 = vmatpush.bf16.msra.mxu0 %v5931
  %6082 = vmatpush.bf16.msra.mxu0 %v5929
  %6083 = vmatpush.bf16.msra.mxu0 %v5927
  %6084 = vmatpush.bf16.msra.mxu0 %v5925
  %6085 = vmatpush.bf16.msra.mxu0 %v5923
  %6086 = vmatpush.bf16.msra.mxu0 %v5921
  %6087 = vmatpush.bf16.msra.mxu0 %v5919
  %6088 = vmatmul.bf16.gmra.mxu0 %v5834
  %v6089 = vpop.f32.mrf.mxu0
  %v6090 = vadd.f32 0.0, %v6089
  %v6091 = vpop.f32.mrf.mxu0
  %v6092 = vadd.f32 0.0, %v6091
  %6093 = vmatmul.bf16.gmra.mxu0 %v5836
  %v6094 = vpop.f32.mrf.mxu0
  %v6095 = vadd.f32 0.0, %v6094
  %v6096 = vpop.f32.mrf.mxu0
  %v6097 = vadd.f32 0.0, %v6096
  %6098 = vmatmul.bf16.gmra.mxu0 %v5838
  %v6099 = vpop.f32.mrf.mxu0
  %v6100 = vadd.f32 0.0, %v6099
  %v6101 = vpop.f32.mrf.mxu0
  %v6102 = vadd.f32 0.0, %v6101
  %6103 = vmatmul.bf16.gmra.mxu0 %v5840
  %v6104 = vpop.f32.mrf.mxu0
  %v6105 = vadd.f32 0.0, %v6104
  %v6106 = vpop.f32.mrf.mxu0
  %v6107 = vadd.f32 0.0, %v6106
  %6108 = vmatmul.bf16.gmra.mxu0 %v5842
  %v6109 = vpop.f32.mrf.mxu0
  %v6110 = vadd.f32 0.0, %v6109
  %v6111 = vpop.f32.mrf.mxu0
  %v6112 = vadd.f32 0.0, %v6111
  %6113 = vmatmul.bf16.gmra.mxu0 %v5844
  %v6114 = vpop.f32.mrf.mxu0
  %v6115 = vadd.f32 0.0, %v6114
  %v6116 = vpop.f32.mrf.mxu0
  %v6117 = vadd.f32 0.0, %v6116
  %6118 = vmatmul.bf16.gmra.mxu0 %v5846
  %v6119 = vpop.f32.mrf.mxu0
  %v6120 = vadd.f32 0.0, %v6119
  %v6121 = vpop.f32.mrf.mxu0
  %v6122 = vadd.f32 0.0, %v6121
  %6123 = vmatmul.bf16.gmra.mxu0 %v5848
  %v6124 = vpop.f32.mrf.mxu0
  %v6125 = vadd.f32 0.0, %v6124
  %v6126 = vpop.f32.mrf.mxu0
  %v6127 = vadd.f32 0.0, %v6126
  %6128 = vdwg.mxu0
  %6129 = vmatpush.bf16.msra.mxu0 0
  %6130 = vmatpush.bf16.msra.mxu0 0
  %6131 = vmatpush.bf16.msra.mxu0 0
  %6132 = vmatpush.bf16.msra.mxu0 0
  %6133 = vmatpush.bf16.msra.mxu0 0
  %6134 = vmatpush.bf16.msra.mxu0 0
  %6135 = vmatpush.bf16.msra.mxu0 %v5937
  %6136 = vmatpush.bf16.msra.mxu0 %v5935
  %6137 = vmatmul.bf16.gmra.mxu0 %v5959
  %v6138 = vpop.f32.mrf.mxu0
  %v6139 = vadd.f32 %v6090, %v6138
  %v6140 = vpop.f32.mrf.mxu0
  %v6141 = vadd.f32 %v6092, %v6140
  %6142 = vmatmul.bf16.gmra.mxu0 %v5962
  %v6143 = vpop.f32.mrf.mxu0
  %v6144 = vadd.f32 %v6095, %v6143
  %v6145 = vpop.f32.mrf.mxu0
  %v6146 = vadd.f32 %v6097, %v6145
  %6147 = vmatmul.bf16.gmra.mxu0 %v5965
  %v6148 = vpop.f32.mrf.mxu0
  %v6149 = vadd.f32 %v6100, %v6148
  %v6150 = vpop.f32.mrf.mxu0
  %v6151 = vadd.f32 %v6102, %v6150
  %6152 = vmatmul.bf16.gmra.mxu0 %v5968
  %v6153 = vpop.f32.mrf.mxu0
  %v6154 = vadd.f32 %v6105, %v6153
  %v6155 = vpop.f32.mrf.mxu0
  %v6156 = vadd.f32 %v6107, %v6155
  %6157 = vmatmul.bf16.gmra.mxu0 %v5971
  %v6158 = vpop.f32.mrf.mxu0
  %v6159 = vadd.f32 %v6110, %v6158
  %v6160 = vpop.f32.mrf.mxu0
  %v6161 = vadd.f32 %v6112, %v6160
  %6162 = vmatmul.bf16.gmra.mxu0 %v5974
  %v6163 = vpop.f32.mrf.mxu0
  %v6164 = vadd.f32 %v6115, %v6163
  %v6165 = vpop.f32.mrf.mxu0
  %v6166 = vadd.f32 %v6117, %v6165
  %6167 = vmatmul.bf16.gmra.mxu0 %v5977
  %v6168 = vpop.f32.mrf.mxu0
  %v6169 = vadd.f32 %v6120, %v6168
  %v6170 = vpop.f32.mrf.mxu0
  %v6171 = vadd.f32 %v6122, %v6170
  %6172 = vmatmul.bf16.gmra.mxu0 %v5980
  %v6173 = vpop.f32.mrf.mxu0
  %v6174 = vadd.f32 %v6125, %v6173
  %v6175 = vpop.f32.mrf.mxu0
  %v6176 = vadd.f32 %v6127, %v6175
  %6177 = vdwg.mxu0
  %v6178 = vmax.f32 %v6041, %v6061
  %v6179 = vmax.f32 %v6139, %v6159
  %v6180 = vmax.f32 %v6043, %v6063
  %v6181 = vmax.f32 %v6141, %v6161
  %v6182 = vmax.f32 %v6046, %v6066
  %v6183 = vmax.f32 %v6144, %v6164
  %v6184 = vmax.f32 %v6048, %v6068
  %v6185 = vmax.f32 %v6146, %v6166
  %v6186 = vmax.f32 %v6051, %v6071
  %v6187 = vmax.f32 %v6149, %v6169
  %v6188 = vmax.f32 %v6053, %v6073
  %v6189 = vmax.f32 %v6151, %v6171
  %v6190 = vmax.f32 %v6056, %v6076
  %v6191 = vmax.f32 %v6154, %v6174
  %v6192 = vmax.f32 %v6058, %v6078
  %v6193 = vmax.f32 %v6156, %v6176
  %v6194 = vld [vmem:[%s2] sm:$0x3]
  %v6196 = vperm.slane %v6194, 0
  %v6197 = vperm.slane %v6194, 1
  %v6200 = vadd.f32 %v6178, %v6196
  %v6201 = vadd.f32 %v6179, %v6197
  %v6202 = vadd.f32 %v6180, %v6196
  %v6203 = vadd.f32 %v6181, %v6197
  %v6204 = vadd.f32 %v6182, %v6196
  %v6205 = vadd.f32 %v6183, %v6197
  %v6206 = vadd.f32 %v6184, %v6196
  %v6207 = vadd.f32 %v6185, %v6197
  %v6208 = vadd.f32 %v6186, %v6196
  %v6209 = vadd.f32 %v6187, %v6197
  %v6210 = vadd.f32 %v6188, %v6196
  %v6211 = vadd.f32 %v6189, %v6197
  %v6212 = vadd.f32 %v6190, %v6196
  %v6213 = vadd.f32 %v6191, %v6197
  %v6214 = vadd.f32 %v6192, %v6196
  %v6215 = vadd.f32 %v6193, %v6197
  %v6216 = vmax.f32 %v6200, 0.0
  %v6217 = vmax.f32 %v6201, 0.0
  %v6218 = vmax.f32 %v6202, 0.0
  %v6219 = vmax.f32 %v6203, 0.0
  %v6220 = vmax.f32 %v6204, 0.0
  %v6221 = vmax.f32 %v6205, 0.0
  %v6222 = vmax.f32 %v6206, 0.0
  %v6223 = vmax.f32 %v6207, 0.0
  %v6224 = vmax.f32 %v6208, 0.0
  %v6225 = vmax.f32 %v6209, 0.0
  %v6226 = vmax.f32 %v6210, 0.0
  %v6227 = vmax.f32 %v6211, 0.0
  %v6228 = vmax.f32 %v6212, 0.0
  %v6229 = vmax.f32 %v6213, 0.0
  %v6230 = vmax.f32 %v6214, 0.0
  %v6231 = vmax.f32 %v6215, 0.0
  %v6232 = vpack.c.bf16 %v6218, %v6216
  %v6233 = vpack.c.bf16 %v6219, %v6217
  %v6234 = vpack.c.bf16 %v6222, %v6220
  %v6235 = vpack.c.bf16 %v6223, %v6221
  %v6236 = vpack.c.bf16 %v6226, %v6224
  %v6237 = vpack.c.bf16 %v6227, %v6225
  %v6238 = vpack.c.bf16 %v6230, %v6228
  %v6239 = vpack.c.bf16 %v6231, %v6229
  %v6240 = vld [vmem:[%s5] sm:$0xf]
  %v6241 = vld [vmem:[%s5 + $0x4] sm:$0xf]
  %v6242 = vld [vmem:[%s5 + $0x8] sm:$0xf]
  %v6243 = vld [vmem:[%s5 + $0xc] sm:$0xf]
  %v6244 = vld [vmem:[%s5 + $0x10] sm:$0xf]
  %v6245 = vld [vmem:[%s5 + $0x14] sm:$0xf]
  %v6246 = vld [vmem:[%s5 + $0x18] sm:$0xf]
  %v6247 = vld [vmem:[%s5 + $0x1c] sm:$0xf]
  %v6248 = vld [vmem:[%s5 + $0x20] sm:$0xf]
  %v6249 = vld [vmem:[%s5 + $0x24] sm:$0xf]
  %v6250 = vld [vmem:[%s5 + $0x28] sm:$0xf]
  %v6251 = vld [vmem:[%s5 + $0x2c] sm:$0xf]
  %v6252 = vld [vmem:[%s5 + $0x30] sm:$0xf]
  %v6253 = vld [vmem:[%s5 + $0x34] sm:$0xf]
  %v6254 = vld [vmem:[%s5 + $0x38] sm:$0xf]
  %v6255 = vld [vmem:[%s5 + $0x3c] sm:$0xf]
  %v6256 = vld [vmem:[%s5 + $0x40] sm:$0xf]
  %v6257 = vld [vmem:[%s5 + $0x44] sm:$0xf]
  %v6258 = vld [vmem:[%s5 + $0x48] sm:$0xf]
  %v6259 = vld [vmem:[%s5 + $0x4c] sm:$0xf]
  %v6260 = vld [vmem:[%s5 + $0x50] sm:$0xf]
  %v6282 = vunpack.c.l.b16 %v6240
  %v6283 = vunpack.c.l.b16 %v6241
  %v6284 = vunpack.c.l.b16 %v6242
  %v6285 = vunpack.c.l.b16 %v6243
  %v6286 = vunpack.c.l.b16 %v6244
  %v6287 = vunpack.c.l.b16 %v6245
  %v6288 = vunpack.c.l.b16 %v6246
  %v6289 = vunpack.c.l.b16 %v6247
  %v6290 = vunpack.c.l.b16 %v6248
  %v6291 = vunpack.c.l.b16 %v6249
  %v6292 = vunpack.c.l.b16 %v6250
  %v6293 = vunpack.c.l.b16 %v6251
  %v6294 = vunpack.c.l.b16 %v6252
  %v6295 = vunpack.c.l.b16 %v6253
  %v6296 = vunpack.c.l.b16 %v6254
  %v6297 = vunpack.c.l.b16 %v6255
  %v6298 = vunpack.c.l.b16 %v6256
  %v6299 = vunpack.c.l.b16 %v6257
  %v6300 = vunpack.c.l.b16 %v6258
  %v6301 = vunpack.c.l.b16 %v6259
  %v6302 = vunpack.c.l.b16 %v6260
  %v6303 = vpack.c.b16 %v6283, %v6282
  %v6304 = vpack.c.b16 %v6285, %v6284
  %v6305 = vpack.c.b16 %v6287, %v6286
  %v6306 = vpack.c.b16 %v6289, %v6288
  %v6307 = vpack.c.b16 %v6291, %v6290
  %v6308 = vpack.c.b16 %v6293, %v6292
  %v6309 = vpack.c.b16 %v6295, %v6294
  %v6310 = vpack.c.b16 %v6297, %v6296
  %v6311 = vpack.c.b16 %v6299, %v6298
  %v6312 = vpack.c.b16 %v6301, %v6300
  %v6313 = vpack.c.b16 %v6302, %v6302
  %v6325 = vsel %vm610, %v6233, 0
  %v6328 = vsel %vm610, %v6235, 0
  %v6331 = vsel %vm610, %v6237, 0
  %v6334 = vsel %vm610, %v6239, 0
  %v6337 = vsel %vm623, %v6313, 0
  %6339 = vmatpush.bf16.msra.mxu0 %v6310
  %6340 = vmatpush.bf16.msra.mxu0 %v6309
  %6341 = vmatpush.bf16.msra.mxu0 %v6308
  %6342 = vmatpush.bf16.msra.mxu0 %v6307
  %6343 = vmatpush.bf16.msra.mxu0 %v6306
  %6344 = vmatpush.bf16.msra.mxu0 %v6305
  %6345 = vmatpush.bf16.msra.mxu0 %v6304
  %6346 = vmatpush.bf16.msra.mxu0 %v6303
  %6347 = vmatmul.bf16.gmra.mxu0 %v6232
  %v6348 = vpop.f32.mrf.mxu0
  %v6349 = vadd.f32 0.0, %v6348
  %v6350 = vpop.f32.mrf.mxu0
  %v6351 = vadd.f32 0.0, %v6350
  %6352 = vmatmul.bf16.gmra.mxu0 %v6234
  %v6353 = vpop.f32.mrf.mxu0
  %v6354 = vadd.f32 0.0, %v6353
  %v6355 = vpop.f32.mrf.mxu0
  %v6356 = vadd.f32 0.0, %v6355
  %6357 = vmatmul.bf16.gmra.mxu0 %v6236
  %v6358 = vpop.f32.mrf.mxu0
  %v6359 = vadd.f32 0.0, %v6358
  %v6360 = vpop.f32.mrf.mxu0
  %v6361 = vadd.f32 0.0, %v6360
  %6362 = vmatmul.bf16.gmra.mxu0 %v6238
  %v6363 = vpop.f32.mrf.mxu0
  %v6364 = vadd.f32 0.0, %v6363
  %v6365 = vpop.f32.mrf.mxu0
  %v6366 = vadd.f32 0.0, %v6365
  %6367 = vdwg.mxu0
  %6368 = vmatpush.bf16.msra.mxu0 0
  %6369 = vmatpush.bf16.msra.mxu0 0
  %6370 = vmatpush.bf16.msra.mxu0 0
  %6371 = vmatpush.bf16.msra.mxu0 0
  %6372 = vmatpush.bf16.msra.mxu0 0
  %6373 = vmatpush.bf16.msra.mxu0 %v6337
  %6374 = vmatpush.bf16.msra.mxu0 %v6312
  %6375 = vmatpush.bf16.msra.mxu0 %v6311
  %6376 = vmatmul.bf16.gmra.mxu0 %v6325
  %v6377 = vpop.f32.mrf.mxu0
  %v6378 = vadd.f32 %v6349, %v6377
  %v6379 = vpop.f32.mrf.mxu0
  %v6380 = vadd.f32 %v6351, %v6379
  %6381 = vmatmul.bf16.gmra.mxu0 %v6328
  %v6382 = vpop.f32.mrf.mxu0
  %v6383 = vadd.f32 %v6354, %v6382
  %v6384 = vpop.f32.mrf.mxu0
  %v6385 = vadd.f32 %v6356, %v6384
  %6386 = vmatmul.bf16.gmra.mxu0 %v6331
  %v6387 = vpop.f32.mrf.mxu0
  %v6388 = vadd.f32 %v6359, %v6387
  %v6389 = vpop.f32.mrf.mxu0
  %v6390 = vadd.f32 %v6361, %v6389
  %6391 = vmatmul.bf16.gmra.mxu0 %v6334
  %v6392 = vpop.f32.mrf.mxu0
  %v6393 = vadd.f32 %v6364, %v6392
  %v6394 = vpop.f32.mrf.mxu0
  %v6395 = vadd.f32 %v6366, %v6394
  %6396 = vdwg.mxu0
  %v6397 = vld [vmem:[%s6] sm:$0xf]
  %v6398 = vld [vmem:[%s6 + $0x4] sm:$0xf]
  %v6399 = vld [vmem:[%s6 + $0x8] sm:$0xf]
  %v6400 = vld [vmem:[%s6 + $0xc] sm:$0xf]
  %v6401 = vld [vmem:[%s6 + $0x10] sm:$0xf]
  %v6402 = vld [vmem:[%s6 + $0x14] sm:$0xf]
  %v6403 = vld [vmem:[%s6 + $0x18] sm:$0xf]
  %v6404 = vld [vmem:[%s6 + $0x1c] sm:$0xf]
  %v6405 = vld [vmem:[%s6 + $0x20] sm:$0xf]
  %v6406 = vld [vmem:[%s6 + $0x24] sm:$0xf]
  %v6407 = vld [vmem:[%s6 + $0x28] sm:$0xf]
  %v6408 = vld [vmem:[%s6 + $0x2c] sm:$0xf]
  %v6409 = vld [vmem:[%s6 + $0x30] sm:$0xf]
  %v6410 = vld [vmem:[%s6 + $0x34] sm:$0xf]
  %v6411 = vld [vmem:[%s6 + $0x38] sm:$0xf]
  %v6412 = vld [vmem:[%s6 + $0x3c] sm:$0xf]
  %v6413 = vld [vmem:[%s6 + $0x40] sm:$0xf]
  %v6414 = vld [vmem:[%s6 + $0x44] sm:$0xf]
  %v6415 = vld [vmem:[%s6 + $0x48] sm:$0xf]
  %v6416 = vld [vmem:[%s6 + $0x4c] sm:$0xf]
  %v6417 = vld [vmem:[%s6 + $0x50] sm:$0xf]
  %v6439 = vunpack.c.l.b16 %v6397
  %v6440 = vunpack.c.l.b16 %v6398
  %v6441 = vunpack.c.l.b16 %v6399
  %v6442 = vunpack.c.l.b16 %v6400
  %v6443 = vunpack.c.l.b16 %v6401
  %v6444 = vunpack.c.l.b16 %v6402
  %v6445 = vunpack.c.l.b16 %v6403
  %v6446 = vunpack.c.l.b16 %v6404
  %v6447 = vunpack.c.l.b16 %v6405
  %v6448 = vunpack.c.l.b16 %v6406
  %v6449 = vunpack.c.l.b16 %v6407
  %v6450 = vunpack.c.l.b16 %v6408
  %v6451 = vunpack.c.l.b16 %v6409
  %v6452 = vunpack.c.l.b16 %v6410
  %v6453 = vunpack.c.l.b16 %v6411
  %v6454 = vunpack.c.l.b16 %v6412
  %v6455 = vunpack.c.l.b16 %v6413
  %v6456 = vunpack.c.l.b16 %v6414
  %v6457 = vunpack.c.l.b16 %v6415
  %v6458 = vunpack.c.l.b16 %v6416
  %v6459 = vunpack.c.l.b16 %v6417
  %v6460 = vpack.c.b16 %v6440, %v6439
  %v6461 = vpack.c.b16 %v6442, %v6441
  %v6462 = vpack.c.b16 %v6444, %v6443
  %v6463 = vpack.c.b16 %v6446, %v6445
  %v6464 = vpack.c.b16 %v6448, %v6447
  %v6465 = vpack.c.b16 %v6450, %v6449
  %v6466 = vpack.c.b16 %v6452, %v6451
  %v6467 = vpack.c.b16 %v6454, %v6453
  %v6468 = vpack.c.b16 %v6456, %v6455
  %v6469 = vpack.c.b16 %v6458, %v6457
  %v6470 = vpack.c.b16 %v6459, %v6459
  %v6482 = vsel %vm623, %v6470, 0
  %6484 = vmatpush.bf16.msra.mxu0 %v6467
  %6485 = vmatpush.bf16.msra.mxu0 %v6466
  %6486 = vmatpush.bf16.msra.mxu0 %v6465
  %6487 = vmatpush.bf16.msra.mxu0 %v6464
  %6488 = vmatpush.bf16.msra.mxu0 %v6463
  %6489 = vmatpush.bf16.msra.mxu0 %v6462
  %6490 = vmatpush.bf16.msra.mxu0 %v6461
  %6491 = vmatpush.bf16.msra.mxu0 %v6460
  %6492 = vmatmul.bf16.gmra.mxu0 %v6232
  %v6493 = vpop.f32.mrf.mxu0
  %v6494 = vadd.f32 0.0, %v6493
  %v6495 = vpop.f32.mrf.mxu0
  %v6496 = vadd.f32 0.0, %v6495
  %6497 = vmatmul.bf16.gmra.mxu0 %v6234
  %v6498 = vpop.f32.mrf.mxu0
  %v6499 = vadd.f32 0.0, %v6498
  %v6500 = vpop.f32.mrf.mxu0
  %v6501 = vadd.f32 0.0, %v6500
  %6502 = vmatmul.bf16.gmra.mxu0 %v6236
  %v6503 = vpop.f32.mrf.mxu0
  %v6504 = vadd.f32 0.0, %v6503
  %v6505 = vpop.f32.mrf.mxu0
  %v6506 = vadd.f32 0.0, %v6505
  %6507 = vmatmul.bf16.gmra.mxu0 %v6238
  %v6508 = vpop.f32.mrf.mxu0
  %v6509 = vadd.f32 0.0, %v6508
  %v6510 = vpop.f32.mrf.mxu0
  %v6511 = vadd.f32 0.0, %v6510
  %6512 = vdwg.mxu0
  %6513 = vmatpush.bf16.msra.mxu0 0
  %6514 = vmatpush.bf16.msra.mxu0 0
  %6515 = vmatpush.bf16.msra.mxu0 0
  %6516 = vmatpush.bf16.msra.mxu0 0
  %6517 = vmatpush.bf16.msra.mxu0 0
  %6518 = vmatpush.bf16.msra.mxu0 %v6482
  %6519 = vmatpush.bf16.msra.mxu0 %v6469
  %6520 = vmatpush.bf16.msra.mxu0 %v6468
  %6521 = vmatmul.bf16.gmra.mxu0 %v6325
  %v6522 = vpop.f32.mrf.mxu0
  %v6523 = vadd.f32 %v6494, %v6522
  %v6524 = vpop.f32.mrf.mxu0
  %v6525 = vadd.f32 %v6496, %v6524
  %6526 = vmatmul.bf16.gmra.mxu0 %v6328
  %v6527 = vpop.f32.mrf.mxu0
  %v6528 = vadd.f32 %v6499, %v6527
  %v6529 = vpop.f32.mrf.mxu0
  %v6530 = vadd.f32 %v6501, %v6529
  %6531 = vmatmul.bf16.gmra.mxu0 %v6331
  %v6532 = vpop.f32.mrf.mxu0
  %v6533 = vadd.f32 %v6504, %v6532
  %v6534 = vpop.f32.mrf.mxu0
  %v6535 = vadd.f32 %v6506, %v6534
  %6536 = vmatmul.bf16.gmra.mxu0 %v6334
  %v6537 = vpop.f32.mrf.mxu0
  %v6538 = vadd.f32 %v6509, %v6537
  %v6539 = vpop.f32.mrf.mxu0
  %v6540 = vadd.f32 %v6511, %v6539
  %6541 = vdwg.mxu0
  %v6542 = vmax.f32 %v6378, %v6523
  %v6543 = vmax.f32 %v6380, %v6525
  %v6544 = vmax.f32 %v6383, %v6528
  %v6545 = vmax.f32 %v6385, %v6530
  %v6546 = vmax.f32 %v6388, %v6533
  %v6547 = vmax.f32 %v6390, %v6535
  %v6548 = vmax.f32 %v6393, %v6538
  %v6549 = vmax.f32 %v6395, %v6540
  %v6550 = vpack.c.bf16 %v6542, %v6542
  %v6551 = vpack.c.bf16 %v6543, %v6543
  %v6552 = vpack.c.bf16 %v6544, %v6544
  %v6553 = vpack.c.bf16 %v6545, %v6545
  %v6554 = vpack.c.bf16 %v6546, %v6546
  %v6555 = vpack.c.bf16 %v6547, %v6547
  %v6556 = vpack.c.bf16 %v6548, %v6548
  %v6557 = vpack.c.bf16 %v6549, %v6549
  %6558 = vst.msk [vmem:[#allocation2 + $0xe0] sm:$0xf] %vm33, %v6550
  %6559 = vst.msk [vmem:[#allocation2 + $0xe4] sm:$0xf] %vm33, %v6551
  %6560 = vst.msk [vmem:[#allocation2 + $0xe8] sm:$0xf] %vm33, %v6552
  %6561 = vst.msk [vmem:[#allocation2 + $0xec] sm:$0xf] %vm33, %v6553
  %6562 = vst.msk [vmem:[#allocation2 + $0xf0] sm:$0xf] %vm33, %v6554
  %6563 = vst.msk [vmem:[#allocation2 + $0xf4] sm:$0xf] %vm33, %v6555
  %6564 = vst.msk [vmem:[#allocation2 + $0xf8] sm:$0xf] %vm33, %v6556
  %6565 = vst.msk [vmem:[#allocation2 + $0xfc] sm:$0xf] %vm33, %v6557
  %v6566 = vld [vmem:[#allocation2] sm:$0xf]
  %v6567 = vld [vmem:[#allocation2 + $0x4] sm:$0xf]
  %v6568 = vld [vmem:[#allocation2 + $0x8] sm:$0xf]
  %v6569 = vld [vmem:[#allocation2 + $0xc] sm:$0xf]
  %v6570 = vld [vmem:[#allocation2 + $0x10] sm:$0xf]
  %v6571 = vld [vmem:[#allocation2 + $0x14] sm:$0xf]
  %v6572 = vld [vmem:[#allocation2 + $0x18] sm:$0xf]
  %v6573 = vld [vmem:[#allocation2 + $0x1c] sm:$0xf]
  %v6574 = vld [vmem:[#allocation2 + $0x20] sm:$0xf]
  %v6575 = vld [vmem:[#allocation2 + $0x24] sm:$0xf]
  %v6576 = vld [vmem:[#allocation2 + $0x28] sm:$0xf]
  %v6577 = vld [vmem:[#allocation2 + $0x2c] sm:$0xf]
  %v6578 = vld [vmem:[#allocation2 + $0x30] sm:$0xf]
  %v6579 = vld [vmem:[#allocation2 + $0x34] sm:$0xf]
  %v6580 = vld [vmem:[#allocation2 + $0x38] sm:$0xf]
  %v6581 = vld [vmem:[#allocation2 + $0x3c] sm:$0xf]
  %v6582 = vld [vmem:[#allocation2 + $0x40] sm:$0x1]
  %v6583 = vld [vmem:[#allocation2] sm:$0xe]
  %v6584 = vld [vmem:[#allocation2 + $0x40] sm:$0x3]
  %v6585 = vld [vmem:[#allocation2] sm:$0xc]
  %v6602 = vunpack.c.l.b16 %v6566
  %v6603 = vunpack.c.l.b16 %v6567
  %v6604 = vunpack.c.l.b16 %v6568
  %v6605 = vunpack.c.l.b16 %v6569
  %v6606 = vunpack.c.l.b16 %v6570
  %v6607 = vunpack.c.l.b16 %v6571
  %v6608 = vunpack.c.l.b16 %v6572
  %v6609 = vunpack.c.l.b16 %v6573
  %v6610 = vunpack.c.l.b16 %v6574
  %v6611 = vunpack.c.l.b16 %v6575
  %v6612 = vunpack.c.l.b16 %v6576
  %v6613 = vunpack.c.l.b16 %v6577
  %v6614 = vunpack.c.l.b16 %v6578
  %v6615 = vunpack.c.l.b16 %v6579
  %v6616 = vunpack.c.l.b16 %v6580
  %v6617 = vunpack.c.l.b16 %v6581
  %v6618 = vpack.c.b16 %v6603, %v6602
  %v6619 = vpack.c.b16 %v6605, %v6604
  %v6620 = vpack.c.b16 %v6607, %v6606
  %v6621 = vpack.c.b16 %v6609, %v6608
  %v6622 = vpack.c.b16 %v6611, %v6610
  %v6623 = vpack.c.b16 %v6613, %v6612
  %v6624 = vpack.c.b16 %v6615, %v6614
  %v6625 = vpack.c.b16 %v6617, %v6616
  %v6627 = vunpack.c.l.b16 %v6582
  %v6628 = vpack.c.b16 %v6627, %v6627
  %vm6629 = vsmask.f32 7424
  %v6631 = vshrl.u32 %v6618, 16
  %v6633 = vshll.u32 %v6618, 16
  %v6635 = vrot.slane %v6633, 1
  %v6636 = vor.u32 %v6631, %v6635
  %v6638 = vshll.u32 %v6619, 16
  %v6640 = vrot.slane %v6638, 1
  %v6641 = vsel %vm6629, %v6636, %v6640
  %v6642 = vshrl.u32 %v6619, 16
  %v6644 = vor.u32 %v6642, %v6640
  %v6646 = vshll.u32 %v6620, 16
  %v6648 = vrot.slane %v6646, 1
  %v6649 = vsel %vm6629, %v6644, %v6648
  %v6650 = vshrl.u32 %v6620, 16
  %v6652 = vor.u32 %v6650, %v6648
  %v6654 = vshll.u32 %v6621, 16
  %v6656 = vrot.slane %v6654, 1
  %v6657 = vsel %vm6629, %v6652, %v6656
  %v6658 = vshrl.u32 %v6621, 16
  %v6660 = vor.u32 %v6658, %v6656
  %v6662 = vshll.u32 %v6622, 16
  %v6664 = vrot.slane %v6662, 1
  %v6665 = vsel %vm6629, %v6660, %v6664
  %v6666 = vshrl.u32 %v6622, 16
  %v6668 = vor.u32 %v6666, %v6664
  %v6670 = vshll.u32 %v6623, 16
  %v6672 = vrot.slane %v6670, 1
  %v6673 = vsel %vm6629, %v6668, %v6672
  %v6674 = vshrl.u32 %v6623, 16
  %v6676 = vor.u32 %v6674, %v6672
  %v6678 = vshll.u32 %v6624, 16
  %v6680 = vrot.slane %v6678, 1
  %v6681 = vsel %vm6629, %v6676, %v6680
  %v6682 = vshrl.u32 %v6624, 16
  %v6684 = vor.u32 %v6682, %v6680
  %v6686 = vshll.u32 %v6625, 16
  %v6688 = vrot.slane %v6686, 1
  %v6689 = vsel %vm6629, %v6684, %v6688
  %v6690 = vshrl.u32 %v6625, 16
  %v6692 = vor.u32 %v6690, %v6688
  %v6694 = vshll.u32 %v6628, 16
  %v6696 = vrot.slane %v6694, 1
  %v6697 = vsel %vm6629, %v6692, %v6696
  %6698 = vrot.lane.b32.xlu0 %v6641, 84
  %v6699 = vpop.permute.xlu0 %6698
  %6700 = vrot.lane.b32.xlu0 %v6649, 84
  %v6701 = vpop.permute.xlu0 %6700
  %6702 = vrot.lane.b32.xlu0 %v6657, 84
  %v6703 = vpop.permute.xlu0 %6702
  %6704 = vrot.lane.b32.xlu0 %v6665, 84
  %v6705 = vpop.permute.xlu0 %6704
  %6706 = vrot.lane.b32.xlu0 %v6673, 84
  %v6707 = vpop.permute.xlu0 %6706
  %6708 = vrot.lane.b32.xlu0 %v6681, 84
  %v6709 = vpop.permute.xlu0 %6708
  %6710 = vrot.lane.b32.xlu0 %v6689, 84
  %v6711 = vpop.permute.xlu0 %6710
  %6712 = vrot.lane.b32.xlu0 %v6697, 84
  %v6713 = vpop.permute.xlu0 %6712
  %v6715 = vunpack.c.l.b16 %v6583
  %v6716 = vpack.c.b16 %v6603, %v6715
  %vm6717 = vcmask 1046528
  %v6718 = vrot.slane %v6716, 1
  %v6719 = vrot.slane %v6619, 1
  %v6720 = vsel %vm6717, %v6718, %v6719
  %v6721 = vrot.slane %v6620, 1
  %v6722 = vsel %vm6717, %v6719, %v6721
  %v6723 = vrot.slane %v6621, 1
  %v6724 = vsel %vm6717, %v6721, %v6723
  %v6725 = vrot.slane %v6622, 1
  %v6726 = vsel %vm6717, %v6723, %v6725
  %v6727 = vrot.slane %v6623, 1
  %v6728 = vsel %vm6717, %v6725, %v6727
  %v6729 = vrot.slane %v6624, 1
  %v6730 = vsel %vm6717, %v6727, %v6729
  %v6731 = vrot.slane %v6625, 1
  %v6732 = vsel %vm6717, %v6729, %v6731
  %v6733 = vrot.slane %v6628, 1
  %v6734 = vsel %vm6717, %v6731, %v6733
  %6735 = vrot.lane.b32.xlu0 %v6720, 40
  %v6736 = vpop.permute.xlu0 %6735
  %6737 = vrot.lane.b32.xlu0 %v6722, 40
  %v6738 = vpop.permute.xlu0 %6737
  %6739 = vrot.lane.b32.xlu0 %v6724, 40
  %v6740 = vpop.permute.xlu0 %6739
  %6741 = vrot.lane.b32.xlu0 %v6726, 40
  %v6742 = vpop.permute.xlu0 %6741
  %6743 = vrot.lane.b32.xlu0 %v6728, 40
  %v6744 = vpop.permute.xlu0 %6743
  %6745 = vrot.lane.b32.xlu0 %v6730, 40
  %v6746 = vpop.permute.xlu0 %6745
  %6747 = vrot.lane.b32.xlu0 %v6732, 40
  %v6748 = vpop.permute.xlu0 %6747
  %6749 = vrot.lane.b32.xlu0 %v6734, 40
  %v6750 = vpop.permute.xlu0 %6749
  %v6752 = vunpack.c.l.b16 %v6584
  %v6753 = vpack.c.b16 %v6752, %v6752
  %vm6754 = vsmask.f32 6400
  %v6756 = vshrl.u32 %v6716, 16
  %v6758 = vrot.slane %v6756, 1
  %v6759 = vshll.u32 %v6716, 16
  %v6761 = vrot.slane %v6759, 2
  %v6762 = vor.u32 %v6758, %v6761
  %v6763 = vrot.slane %v6642, 1
  %v6764 = vrot.slane %v6638, 2
  %v6765 = vor.u32 %v6763, %v6764
  %v6766 = vsel %vm6754, %v6762, %v6765
  %v6767 = vrot.slane %v6650, 1
  %v6768 = vrot.slane %v6646, 2
  %v6769 = vor.u32 %v6767, %v6768
  %v6770 = vsel %vm6754, %v6765, %v6769
  %v6771 = vrot.slane %v6658, 1
  %v6772 = vrot.slane %v6654, 2
  %v6773 = vor.u32 %v6771, %v6772
  %v6774 = vsel %vm6754, %v6769, %v6773
  %v6775 = vrot.slane %v6666, 1
  %v6776 = vrot.slane %v6662, 2
  %v6777 = vor.u32 %v6775, %v6776
  %v6778 = vsel %vm6754, %v6773, %v6777
  %v6779 = vrot.slane %v6674, 1
  %v6780 = vrot.slane %v6670, 2
  %v6781 = vor.u32 %v6779, %v6780
  %v6782 = vsel %vm6754, %v6777, %v6781
  %v6783 = vrot.slane %v6682, 1
  %v6784 = vrot.slane %v6678, 2
  %v6785 = vor.u32 %v6783, %v6784
  %v6786 = vsel %vm6754, %v6781, %v6785
  %v6787 = vrot.slane %v6690, 1
  %v6788 = vrot.slane %v6686, 2
  %v6789 = vor.u32 %v6787, %v6788
  %v6790 = vsel %vm6754, %v6785, %v6789
  %v6792 = vshrl.u32 %v6753, 16
  %v6794 = vrot.slane %v6792, 1
  %v6795 = vshll.u32 %v6753, 16
  %v6797 = vrot.slane %v6795, 2
  %v6798 = vor.u32 %v6794, %v6797
  %v6799 = vsel %vm6754, %v6789, %v6798
  %6800 = vrot.lane.b32.xlu0 %v6766, 124
  %v6801 = vpop.permute.xlu0 %6800
  %6802 = vrot.lane.b32.xlu0 %v6770, 124
  %v6803 = vpop.permute.xlu0 %6802
  %6804 = vrot.lane.b32.xlu0 %v6774, 124
  %v6805 = vpop.permute.xlu0 %6804
  %6806 = vrot.lane.b32.xlu0 %v6778, 124
  %v6807 = vpop.permute.xlu0 %6806
  %6808 = vrot.lane.b32.xlu0 %v6782, 124
  %v6809 = vpop.permute.xlu0 %6808
  %6810 = vrot.lane.b32.xlu0 %v6786, 124
  %v6811 = vpop.permute.xlu0 %6810
  %6812 = vrot.lane.b32.xlu0 %v6790, 124
  %v6813 = vpop.permute.xlu0 %6812
  %6814 = vrot.lane.b32.xlu0 %v6799, 124
  %v6815 = vpop.permute.xlu0 %6814
  %v6817 = vunpack.c.l.b16 %v6585
  %v6818 = vpack.c.b16 %v6603, %v6817
  %vm6819 = vcmask 1045504
  %v6820 = vrot.slane %v6818, 2
  %v6821 = vrot.slane %v6619, 2
  %v6822 = vsel %vm6819, %v6820, %v6821
  %v6823 = vrot.slane %v6620, 2
  %v6824 = vsel %vm6819, %v6821, %v6823
  %v6825 = vrot.slane %v6621, 2
  %v6826 = vsel %vm6819, %v6823, %v6825
  %v6827 = vrot.slane %v6622, 2
  %v6828 = vsel %vm6819, %v6825, %v6827
  %v6829 = vrot.slane %v6623, 2
  %v6830 = vsel %vm6819, %v6827, %v6829
  %v6831 = vrot.slane %v6624, 2
  %v6832 = vsel %vm6819, %v6829, %v6831
  %v6833 = vrot.slane %v6625, 2
  %v6834 = vsel %vm6819, %v6831, %v6833
  %v6835 = vrot.slane %v6753, 2
  %v6836 = vsel %vm6819, %v6833, %v6835
  %6837 = vrot.lane.b32.xlu0 %v6822, 80
  %v6838 = vpop.permute.xlu0 %6837
  %6839 = vrot.lane.b32.xlu0 %v6824, 80
  %v6840 = vpop.permute.xlu0 %6839
  %6841 = vrot.lane.b32.xlu0 %v6826, 80
  %v6842 = vpop.permute.xlu0 %6841
  %6843 = vrot.lane.b32.xlu0 %v6828, 80
  %v6844 = vpop.permute.xlu0 %6843
  %6845 = vrot.lane.b32.xlu0 %v6830, 80
  %v6846 = vpop.permute.xlu0 %6845
  %6847 = vrot.lane.b32.xlu0 %v6832, 80
  %v6848 = vpop.permute.xlu0 %6847
  %6849 = vrot.lane.b32.xlu0 %v6834, 80
  %v6850 = vpop.permute.xlu0 %6849
  %6851 = vrot.lane.b32.xlu0 %v6836, 80
  %v6852 = vpop.permute.xlu0 %6851
  %vm6853 = vcmask 687104
  %v6855 = vsel %vm6853, %v6618, %v6699
  %v6858 = vsel %vm6853, %v6619, %v6701
  %v6861 = vsel %vm6853, %v6620, %v6703
  %v6864 = vsel %vm6853, %v6621, %v6705
  %v6867 = vsel %vm6853, %v6622, %v6707
  %v6870 = vsel %vm6853, %v6623, %v6709
  %v6873 = vsel %vm6853, %v6624, %v6711
  %v6876 = vsel %vm6853, %v6625, %v6713
  %v6879 = vsel %vm610, %v6699, %v6736
  %v6881 = vsel %vm610, %v6701, %v6738
  %v6883 = vsel %vm610, %v6703, %v6740
  %v6885 = vsel %vm610, %v6705, %v6742
  %v6887 = vsel %vm610, %v6707, %v6744
  %v6889 = vsel %vm610, %v6709, %v6746
  %v6891 = vsel %vm610, %v6711, %v6748
  %v6893 = vsel %vm610, %v6713, %v6750
  %vm6894 = vcmask 1014784
  %v6896 = vsel %vm6894, %v6879, %v6801
  %v6899 = vsel %vm6894, %v6881, %v6803
  %v6902 = vsel %vm6894, %v6883, %v6805
  %v6905 = vsel %vm6894, %v6885, %v6807
  %v6908 = vsel %vm6894, %v6887, %v6809
  %v6911 = vsel %vm6894, %v6889, %v6811
  %v6914 = vsel %vm6894, %v6891, %v6813
  %v6917 = vsel %vm6894, %v6893, %v6815
  %vm6919 = vcmask 654336
  %v6921 = vsel %vm6919, %v6801, %v6838
  %v6924 = vsel %vm6919, %v6803, %v6840
  %v6927 = vsel %vm6919, %v6805, %v6842
  %v6930 = vsel %vm6919, %v6807, %v6844
  %v6933 = vsel %vm6919, %v6809, %v6846
  %v6936 = vsel %vm6919, %v6811, %v6848
  %v6939 = vsel %vm6919, %v6813, %v6850
  %v6942 = vsel %vm6919, %v6815, %v6852
  %v6944 = vld [vmem:[%s3] sm:$0xff]
  %v6945 = vld [vmem:[%s3 + $0x8] sm:$0xff]
  %v6946 = vld [vmem:[%s3 + $0x10] sm:$0xff]
  %v6947 = vld [vmem:[%s3 + $0x18] sm:$0xff]
  %v6948 = vld [vmem:[%s3 + $0x20] sm:$0xff]
  %v6949 = vld [vmem:[%s3 + $0x28] sm:$0xff]
  %v6950 = vld [vmem:[%s3 + $0x30] sm:$0xff]
  %v6951 = vld [vmem:[%s3 + $0x38] sm:$0xff]
  %v6952 = vld [vmem:[%s3 + $0x40] sm:$0xff]
  %v6953 = vld [vmem:[%s3 + $0x48] sm:$0xff]
  %v6954 = vld [vmem:[%s3 + $0x50] sm:$0xff]
  %v6955 = vld [vmem:[%s3 + $0x58] sm:$0xff]
  %v6956 = vld [vmem:[%s3 + $0x60] sm:$0xff]
  %v6957 = vld [vmem:[%s3 + $0x68] sm:$0xff]
  %v6958 = vld [vmem:[%s3 + $0x70] sm:$0xff]
  %v6959 = vld [vmem:[%s3 + $0x78] sm:$0xff]
  %v6960 = vld [vmem:[%s3 + $0x80] sm:$0xff]
  %v6961 = vld [vmem:[%s3 + $0x88] sm:$0xff]
  %v6962 = vld [vmem:[%s3 + $0x90] sm:$0xff]
  %v6963 = vld [vmem:[%s3 + $0x98] sm:$0xff]
  %v6964 = vld [vmem:[%s3 + $0xa0] sm:$0xff]
  %v6965 = vld [vmem:[%s3 + $0xa8] sm:$0xff]
  %v6966 = vld [vmem:[%s3 + $0xb0] sm:$0xff]
  %v6967 = vld [vmem:[%s3 + $0xb8] sm:$0xff]
  %v6968 = vld [vmem:[%s3 + $0xc0] sm:$0xff]
  %v6969 = vld [vmem:[%s3 + $0xc8] sm:$0xff]
  %v6970 = vld [vmem:[%s3 + $0xd0] sm:$0xff]
  %v6971 = vld [vmem:[%s3 + $0xd8] sm:$0xff]
  %v6972 = vld [vmem:[%s3 + $0xe0] sm:$0xff]
  %v6973 = vld [vmem:[%s3 + $0xe8] sm:$0xff]
  %v6974 = vld [vmem:[%s3 + $0xf0] sm:$0xff]
  %v6975 = vld [vmem:[%s3 + $0xf8] sm:$0xff]
  %v6976 = vld [vmem:[%s3 + $0x100] sm:$0xff]
  %v6977 = vld [vmem:[%s3 + $0x108] sm:$0xff]
  %v6978 = vld [vmem:[%s3 + $0x110] sm:$0xff]
  %v6979 = vld [vmem:[%s3 + $0x118] sm:$0xff]
  %v6980 = vld [vmem:[%s3 + $0x120] sm:$0xff]
  %v6981 = vld [vmem:[%s3 + $0x128] sm:$0xff]
  %v6982 = vld [vmem:[%s3 + $0x130] sm:$0xff]
  %v6983 = vld [vmem:[%s3 + $0x138] sm:$0xff]
  %v6984 = vld [vmem:[%s3 + $0x140] sm:$0xff]
  %v6985 = vld [vmem:[%s3 + $0x148] sm:$0xff]
  %v6986 = vld [vmem:[%s3 + $0x150] sm:$0xff]
  %v6987 = vld [vmem:[%s3 + $0x158] sm:$0xff]
  %v6988 = vld [vmem:[%s3 + $0x160] sm:$0xff]
  %v6989 = vld [vmem:[%s3 + $0x168] sm:$0xff]
  %v6990 = vld [vmem:[%s3 + $0x170] sm:$0xff]
  %v6991 = vld [vmem:[%s3 + $0x178] sm:$0xff]
  %v6992 = vld [vmem:[%s3 + $0x180] sm:$0xff]
  %v6993 = vld [vmem:[%s3 + $0x188] sm:$0xff]
  %v6994 = vld [vmem:[%s3 + $0x190] sm:$0xff]
  %v6995 = vld [vmem:[%s3 + $0x198] sm:$0xff]
  %v6996 = vld [vmem:[%s3 + $0x1a0] sm:$0x33]
  %v6997 = vld [vmem:[%s4] sm:$0x3]
  %v6999 = vperm.slane %v6997, 0
  %v7000 = vperm.slane %v6997, 1
  %v7056 = vunpack.c.l.b16 %v6944
  %v7057 = vunpack.c.h.b16 %v6944
  %v7058 = vunpack.c.l.b16 %v6945
  %v7059 = vunpack.c.h.b16 %v6945
  %v7060 = vunpack.c.l.b16 %v6946
  %v7061 = vunpack.c.h.b16 %v6946
  %v7062 = vunpack.c.l.b16 %v6947
  %v7063 = vunpack.c.h.b16 %v6947
  %v7064 = vunpack.c.l.b16 %v6948
  %v7065 = vunpack.c.h.b16 %v6948
  %v7066 = vunpack.c.l.b16 %v6949
  %v7067 = vunpack.c.h.b16 %v6949
  %v7068 = vunpack.c.l.b16 %v6950
  %v7069 = vunpack.c.h.b16 %v6950
  %v7070 = vunpack.c.l.b16 %v6951
  %v7071 = vunpack.c.h.b16 %v6951
  %v7072 = vunpack.c.l.b16 %v6952
  %v7073 = vunpack.c.h.b16 %v6952
  %v7074 = vunpack.c.l.b16 %v6953
  %v7075 = vunpack.c.h.b16 %v6953
  %v7076 = vunpack.c.l.b16 %v6954
  %v7077 = vunpack.c.h.b16 %v6954
  %v7078 = vunpack.c.l.b16 %v6955
  %v7079 = vunpack.c.h.b16 %v6955
  %v7080 = vunpack.c.l.b16 %v6956
  %v7081 = vunpack.c.h.b16 %v6956
  %v7082 = vunpack.c.l.b16 %v6957
  %v7083 = vunpack.c.h.b16 %v6957
  %v7084 = vunpack.c.l.b16 %v6958
  %v7085 = vunpack.c.h.b16 %v6958
  %v7086 = vunpack.c.l.b16 %v6959
  %v7087 = vunpack.c.h.b16 %v6959
  %v7088 = vunpack.c.l.b16 %v6960
  %v7089 = vunpack.c.h.b16 %v6960
  %v7090 = vunpack.c.l.b16 %v6961
  %v7091 = vunpack.c.h.b16 %v6961
  %v7092 = vunpack.c.l.b16 %v6962
  %v7093 = vunpack.c.h.b16 %v6962
  %v7094 = vunpack.c.l.b16 %v6963
  %v7095 = vunpack.c.h.b16 %v6963
  %v7096 = vunpack.c.l.b16 %v6964
  %v7097 = vunpack.c.h.b16 %v6964
  %v7098 = vunpack.c.l.b16 %v6965
  %v7099 = vunpack.c.h.b16 %v6965
  %v7100 = vunpack.c.l.b16 %v6966
  %v7101 = vunpack.c.h.b16 %v6966
  %v7102 = vunpack.c.l.b16 %v6967
  %v7103 = vunpack.c.h.b16 %v6967
  %v7104 = vunpack.c.l.b16 %v6968
  %v7105 = vunpack.c.h.b16 %v6968
  %v7106 = vunpack.c.l.b16 %v6969
  %v7107 = vunpack.c.h.b16 %v6969
  %v7108 = vunpack.c.l.b16 %v6970
  %v7109 = vunpack.c.h.b16 %v6970
  %v7110 = vunpack.c.l.b16 %v6971
  %v7111 = vunpack.c.h.b16 %v6971
  %v7112 = vunpack.c.l.b16 %v6972
  %v7113 = vunpack.c.h.b16 %v6972
  %v7114 = vunpack.c.l.b16 %v6973
  %v7115 = vunpack.c.h.b16 %v6973
  %v7116 = vunpack.c.l.b16 %v6974
  %v7117 = vunpack.c.h.b16 %v6974
  %v7118 = vunpack.c.l.b16 %v6975
  %v7119 = vunpack.c.h.b16 %v6975
  %v7120 = vunpack.c.l.b16 %v6976
  %v7121 = vunpack.c.h.b16 %v6976
  %v7122 = vunpack.c.l.b16 %v6977
  %v7123 = vunpack.c.h.b16 %v6977
  %v7124 = vunpack.c.l.b16 %v6978
  %v7125 = vunpack.c.h.b16 %v6978
  %v7126 = vunpack.c.l.b16 %v6979
  %v7127 = vunpack.c.h.b16 %v6979
  %v7128 = vunpack.c.l.b16 %v6980
  %v7129 = vunpack.c.h.b16 %v6980
  %v7130 = vunpack.c.l.b16 %v6981
  %v7131 = vunpack.c.h.b16 %v6981
  %v7132 = vunpack.c.l.b16 %v6982
  %v7133 = vunpack.c.h.b16 %v6982
  %v7134 = vunpack.c.l.b16 %v6983
  %v7135 = vunpack.c.h.b16 %v6983
  %v7136 = vunpack.c.l.b16 %v6984
  %v7137 = vunpack.c.h.b16 %v6984
  %v7138 = vunpack.c.l.b16 %v6985
  %v7139 = vunpack.c.h.b16 %v6985
  %v7140 = vunpack.c.l.b16 %v6986
  %v7141 = vunpack.c.h.b16 %v6986
  %v7142 = vunpack.c.l.b16 %v6987
  %v7143 = vunpack.c.h.b16 %v6987
  %v7144 = vunpack.c.l.b16 %v6988
  %v7145 = vunpack.c.h.b16 %v6988
  %v7146 = vunpack.c.l.b16 %v6989
  %v7147 = vunpack.c.h.b16 %v6989
  %v7148 = vunpack.c.l.b16 %v6990
  %v7149 = vunpack.c.h.b16 %v6990
  %v7150 = vunpack.c.l.b16 %v6991
  %v7151 = vunpack.c.h.b16 %v6991
  %v7152 = vunpack.c.l.b16 %v6992
  %v7153 = vunpack.c.h.b16 %v6992
  %v7154 = vunpack.c.l.b16 %v6993
  %v7155 = vunpack.c.h.b16 %v6993
  %v7156 = vunpack.c.l.b16 %v6994
  %v7157 = vunpack.c.h.b16 %v6994
  %v7158 = vunpack.c.l.b16 %v6995
  %v7159 = vunpack.c.h.b16 %v6995
  %v7160 = vunpack.c.l.b16 %v6996
  %v7161 = vunpack.c.h.b16 %v6996
  %v7162 = vpack.c.b16 %v7058, %v7056
  %v7163 = vpack.c.b16 %v7059, %v7057
  %v7164 = vpack.c.b16 %v7062, %v7060
  %v7165 = vpack.c.b16 %v7063, %v7061
  %v7166 = vpack.c.b16 %v7066, %v7064
  %v7167 = vpack.c.b16 %v7067, %v7065
  %v7168 = vpack.c.b16 %v7070, %v7068
  %v7169 = vpack.c.b16 %v7071, %v7069
  %v7170 = vpack.c.b16 %v7074, %v7072
  %v7171 = vpack.c.b16 %v7075, %v7073
  %v7172 = vpack.c.b16 %v7078, %v7076
  %v7173 = vpack.c.b16 %v7079, %v7077
  %v7174 = vpack.c.b16 %v7082, %v7080
  %v7175 = vpack.c.b16 %v7083, %v7081
  %v7176 = vpack.c.b16 %v7086, %v7084
  %v7177 = vpack.c.b16 %v7087, %v7085
  %v7178 = vpack.c.b16 %v7090, %v7088
  %v7179 = vpack.c.b16 %v7091, %v7089
  %v7180 = vpack.c.b16 %v7094, %v7092
  %v7181 = vpack.c.b16 %v7095, %v7093
  %v7182 = vpack.c.b16 %v7098, %v7096
  %v7183 = vpack.c.b16 %v7099, %v7097
  %v7184 = vpack.c.b16 %v7102, %v7100
  %v7185 = vpack.c.b16 %v7103, %v7101
  %v7186 = vpack.c.b16 %v7106, %v7104
  %v7187 = vpack.c.b16 %v7107, %v7105
  %v7188 = vpack.c.b16 %v7110, %v7108
  %v7189 = vpack.c.b16 %v7111, %v7109
  %v7190 = vpack.c.b16 %v7114, %v7112
  %v7191 = vpack.c.b16 %v7115, %v7113
  %v7192 = vpack.c.b16 %v7118, %v7116
  %v7193 = vpack.c.b16 %v7119, %v7117
  %v7194 = vpack.c.b16 %v7122, %v7120
  %v7195 = vpack.c.b16 %v7123, %v7121
  %v7196 = vpack.c.b16 %v7126, %v7124
  %v7197 = vpack.c.b16 %v7127, %v7125
  %v7198 = vpack.c.b16 %v7130, %v7128
  %v7199 = vpack.c.b16 %v7131, %v7129
  %v7200 = vpack.c.b16 %v7134, %v7132
  %v7201 = vpack.c.b16 %v7135, %v7133
  %v7202 = vpack.c.b16 %v7138, %v7136
  %v7203 = vpack.c.b16 %v7139, %v7137
  %v7204 = vpack.c.b16 %v7142, %v7140
  %v7205 = vpack.c.b16 %v7143, %v7141
  %v7206 = vpack.c.b16 %v7146, %v7144
  %v7207 = vpack.c.b16 %v7147, %v7145
  %v7208 = vpack.c.b16 %v7150, %v7148
  %v7209 = vpack.c.b16 %v7151, %v7149
  %v7210 = vpack.c.b16 %v7154, %v7152
  %v7211 = vpack.c.b16 %v7155, %v7153
  %v7212 = vpack.c.b16 %v7158, %v7156
  %v7213 = vpack.c.b16 %v7159, %v7157
  %v7214 = vpack.c.b16 %v7160, %v7160
  %v7215 = vpack.c.b16 %v7161, %v7161
  %vm7268 = vcmask 293888
  %v7269 = vsel %vm7268, %v6838, 0
  %v7271 = vsel %vm7268, %v6840, 0
  %v7273 = vsel %vm7268, %v6842, 0
  %v7275 = vsel %vm7268, %v6844, 0
  %v7277 = vsel %vm7268, %v6846, 0
  %v7279 = vsel %vm7268, %v6848, 0
  %v7281 = vsel %vm7268, %v6850, 0
  %v7283 = vsel %vm7268, %v6852, 0
  %vm7285 = vcmask 1041408
  %v7287 = vsel %vm7285, %v7214, 0
  %v7290 = vsel %vm7285, %v7215, 0
  %7292 = vmatpush.bf16.msra.mxu0 %v7176
  %7293 = vmatpush.bf16.msra.mxu0 %v7174
  %7294 = vmatpush.bf16.msra.mxu0 %v7172
  %7295 = vmatpush.bf16.msra.mxu0 %v7170
  %7296 = vmatpush.bf16.msra.mxu0 %v7168
  %7297 = vmatpush.bf16.msra.mxu0 %v7166
  %7298 = vmatpush.bf16.msra.mxu0 %v7164
  %7299 = vmatpush.bf16.msra.mxu0 %v7162
  %7300 = vmatmul.bf16.gmra.mxu0 %v6855
  %v7301 = vpop.f32.mrf.mxu0
  %v7302 = vadd.f32 %v6999, %v7301
  %v7303 = vpop.f32.mrf.mxu0
  %v7304 = vadd.f32 %v6999, %v7303
  %7305 = vmatmul.bf16.gmra.mxu0 %v6858
  %v7306 = vpop.f32.mrf.mxu0
  %v7307 = vadd.f32 %v6999, %v7306
  %v7308 = vpop.f32.mrf.mxu0
  %v7309 = vadd.f32 %v6999, %v7308
  %7310 = vmatmul.bf16.gmra.mxu0 %v6861
  %v7311 = vpop.f32.mrf.mxu0
  %v7312 = vadd.f32 %v6999, %v7311
  %v7313 = vpop.f32.mrf.mxu0
  %v7314 = vadd.f32 %v6999, %v7313
  %7315 = vmatmul.bf16.gmra.mxu0 %v6864
  %v7316 = vpop.f32.mrf.mxu0
  %v7317 = vadd.f32 %v6999, %v7316
  %v7318 = vpop.f32.mrf.mxu0
  %v7319 = vadd.f32 %v6999, %v7318
  %7320 = vmatmul.bf16.gmra.mxu0 %v6867
  %v7321 = vpop.f32.mrf.mxu0
  %v7322 = vadd.f32 %v6999, %v7321
  %v7323 = vpop.f32.mrf.mxu0
  %v7324 = vadd.f32 %v6999, %v7323
  %7325 = vmatmul.bf16.gmra.mxu0 %v6870
  %v7326 = vpop.f32.mrf.mxu0
  %v7327 = vadd.f32 %v6999, %v7326
  %v7328 = vpop.f32.mrf.mxu0
  %v7329 = vadd.f32 %v6999, %v7328
  %7330 = vmatmul.bf16.gmra.mxu0 %v6873
  %v7331 = vpop.f32.mrf.mxu0
  %v7332 = vadd.f32 %v6999, %v7331
  %v7333 = vpop.f32.mrf.mxu0
  %v7334 = vadd.f32 %v6999, %v7333
  %7335 = vmatmul.bf16.gmra.mxu0 %v6876
  %v7336 = vpop.f32.mrf.mxu0
  %v7337 = vadd.f32 %v6999, %v7336
  %v7338 = vpop.f32.mrf.mxu0
  %v7339 = vadd.f32 %v6999, %v7338
  %7340 = vdwg.mxu0
  %7341 = vmatpush.bf16.msra.mxu0 %v7192
  %7342 = vmatpush.bf16.msra.mxu0 %v7190
  %7343 = vmatpush.bf16.msra.mxu0 %v7188
  %7344 = vmatpush.bf16.msra.mxu0 %v7186
  %7345 = vmatpush.bf16.msra.mxu0 %v7184
  %7346 = vmatpush.bf16.msra.mxu0 %v7182
  %7347 = vmatpush.bf16.msra.mxu0 %v7180
  %7348 = vmatpush.bf16.msra.mxu0 %v7178
  %7349 = vmatmul.bf16.gmra.mxu0 %v6896
  %v7350 = vpop.f32.mrf.mxu0
  %v7351 = vadd.f32 %v7302, %v7350
  %v7352 = vpop.f32.mrf.mxu0
  %v7353 = vadd.f32 %v7304, %v7352
  %7354 = vmatmul.bf16.gmra.mxu0 %v6899
  %v7355 = vpop.f32.mrf.mxu0
  %v7356 = vadd.f32 %v7307, %v7355
  %v7357 = vpop.f32.mrf.mxu0
  %v7358 = vadd.f32 %v7309, %v7357
  %7359 = vmatmul.bf16.gmra.mxu0 %v6902
  %v7360 = vpop.f32.mrf.mxu0
  %v7361 = vadd.f32 %v7312, %v7360
  %v7362 = vpop.f32.mrf.mxu0
  %v7363 = vadd.f32 %v7314, %v7362
  %7364 = vmatmul.bf16.gmra.mxu0 %v6905
  %v7365 = vpop.f32.mrf.mxu0
  %v7366 = vadd.f32 %v7317, %v7365
  %v7367 = vpop.f32.mrf.mxu0
  %v7368 = vadd.f32 %v7319, %v7367
  %7369 = vmatmul.bf16.gmra.mxu0 %v6908
  %v7370 = vpop.f32.mrf.mxu0
  %v7371 = vadd.f32 %v7322, %v7370
  %v7372 = vpop.f32.mrf.mxu0
  %v7373 = vadd.f32 %v7324, %v7372
  %7374 = vmatmul.bf16.gmra.mxu0 %v6911
  %v7375 = vpop.f32.mrf.mxu0
  %v7376 = vadd.f32 %v7327, %v7375
  %v7377 = vpop.f32.mrf.mxu0
  %v7378 = vadd.f32 %v7329, %v7377
  %7379 = vmatmul.bf16.gmra.mxu0 %v6914
  %v7380 = vpop.f32.mrf.mxu0
  %v7381 = vadd.f32 %v7332, %v7380
  %v7382 = vpop.f32.mrf.mxu0
  %v7383 = vadd.f32 %v7334, %v7382
  %7384 = vmatmul.bf16.gmra.mxu0 %v6917
  %v7385 = vpop.f32.mrf.mxu0
  %v7386 = vadd.f32 %v7337, %v7385
  %v7387 = vpop.f32.mrf.mxu0
  %v7388 = vadd.f32 %v7339, %v7387
  %7389 = vdwg.mxu0
  %7390 = vmatpush.bf16.msra.mxu0 %v7208
  %7391 = vmatpush.bf16.msra.mxu0 %v7206
  %7392 = vmatpush.bf16.msra.mxu0 %v7204
  %7393 = vmatpush.bf16.msra.mxu0 %v7202
  %7394 = vmatpush.bf16.msra.mxu0 %v7200
  %7395 = vmatpush.bf16.msra.mxu0 %v7198
  %7396 = vmatpush.bf16.msra.mxu0 %v7196
  %7397 = vmatpush.bf16.msra.mxu0 %v7194
  %7398 = vmatmul.bf16.gmra.mxu0 %v6921
  %v7399 = vpop.f32.mrf.mxu0
  %v7400 = vadd.f32 %v7351, %v7399
  %v7401 = vpop.f32.mrf.mxu0
  %v7402 = vadd.f32 %v7353, %v7401
  %7403 = vmatmul.bf16.gmra.mxu0 %v6924
  %v7404 = vpop.f32.mrf.mxu0
  %v7405 = vadd.f32 %v7356, %v7404
  %v7406 = vpop.f32.mrf.mxu0
  %v7407 = vadd.f32 %v7358, %v7406
  %7408 = vmatmul.bf16.gmra.mxu0 %v6927
  %v7409 = vpop.f32.mrf.mxu0
  %v7410 = vadd.f32 %v7361, %v7409
  %v7411 = vpop.f32.mrf.mxu0
  %v7412 = vadd.f32 %v7363, %v7411
  %7413 = vmatmul.bf16.gmra.mxu0 %v6930
  %v7414 = vpop.f32.mrf.mxu0
  %v7415 = vadd.f32 %v7366, %v7414
  %v7416 = vpop.f32.mrf.mxu0
  %v7417 = vadd.f32 %v7368, %v7416
  %7418 = vmatmul.bf16.gmra.mxu0 %v6933
  %v7419 = vpop.f32.mrf.mxu0
  %v7420 = vadd.f32 %v7371, %v7419
  %v7421 = vpop.f32.mrf.mxu0
  %v7422 = vadd.f32 %v7373, %v7421
  %7423 = vmatmul.bf16.gmra.mxu0 %v6936
  %v7424 = vpop.f32.mrf.mxu0
  %v7425 = vadd.f32 %v7376, %v7424
  %v7426 = vpop.f32.mrf.mxu0
  %v7427 = vadd.f32 %v7378, %v7426
  %7428 = vmatmul.bf16.gmra.mxu0 %v6939
  %v7429 = vpop.f32.mrf.mxu0
  %v7430 = vadd.f32 %v7381, %v7429
  %v7431 = vpop.f32.mrf.mxu0
  %v7432 = vadd.f32 %v7383, %v7431
  %7433 = vmatmul.bf16.gmra.mxu0 %v6942
  %v7434 = vpop.f32.mrf.mxu0
  %v7435 = vadd.f32 %v7386, %v7434
  %v7436 = vpop.f32.mrf.mxu0
  %v7437 = vadd.f32 %v7388, %v7436
  %7438 = vdwg.mxu0
  %7439 = vmatpush.bf16.msra.mxu0 0
  %7440 = vmatpush.bf16.msra.mxu0 0
  %7441 = vmatpush.bf16.msra.mxu0 0
  %7442 = vmatpush.bf16.msra.mxu0 0
  %7443 = vmatpush.bf16.msra.mxu0 0
  %7444 = vmatpush.bf16.msra.mxu0 %v7287
  %7445 = vmatpush.bf16.msra.mxu0 %v7212
  %7446 = vmatpush.bf16.msra.mxu0 %v7210
  %7447 = vmatmul.bf16.gmra.mxu0 %v7269
  %v7448 = vpop.f32.mrf.mxu0
  %v7449 = vadd.f32 %v7400, %v7448
  %v7450 = vpop.f32.mrf.mxu0
  %v7451 = vadd.f32 %v7402, %v7450
  %7452 = vmatmul.bf16.gmra.mxu0 %v7271
  %v7453 = vpop.f32.mrf.mxu0
  %v7454 = vadd.f32 %v7405, %v7453
  %v7455 = vpop.f32.mrf.mxu0
  %v7456 = vadd.f32 %v7407, %v7455
  %7457 = vmatmul.bf16.gmra.mxu0 %v7273
  %v7458 = vpop.f32.mrf.mxu0
  %v7459 = vadd.f32 %v7410, %v7458
  %v7460 = vpop.f32.mrf.mxu0
  %v7461 = vadd.f32 %v7412, %v7460
  %7462 = vmatmul.bf16.gmra.mxu0 %v7275
  %v7463 = vpop.f32.mrf.mxu0
  %v7464 = vadd.f32 %v7415, %v7463
  %v7465 = vpop.f32.mrf.mxu0
  %v7466 = vadd.f32 %v7417, %v7465
  %7467 = vmatmul.bf16.gmra.mxu0 %v7277
  %v7468 = vpop.f32.mrf.mxu0
  %v7469 = vadd.f32 %v7420, %v7468
  %v7470 = vpop.f32.mrf.mxu0
  %v7471 = vadd.f32 %v7422, %v7470
  %7472 = vmatmul.bf16.gmra.mxu0 %v7279
  %v7473 = vpop.f32.mrf.mxu0
  %v7474 = vadd.f32 %v7425, %v7473
  %v7475 = vpop.f32.mrf.mxu0
  %v7476 = vadd.f32 %v7427, %v7475
  %7477 = vmatmul.bf16.gmra.mxu0 %v7281
  %v7478 = vpop.f32.mrf.mxu0
  %v7479 = vadd.f32 %v7430, %v7478
  %v7480 = vpop.f32.mrf.mxu0
  %v7481 = vadd.f32 %v7432, %v7480
  %7482 = vmatmul.bf16.gmra.mxu0 %v7283
  %v7483 = vpop.f32.mrf.mxu0
  %v7484 = vadd.f32 %v7435, %v7483
  %v7485 = vpop.f32.mrf.mxu0
  %v7486 = vadd.f32 %v7437, %v7485
  %7487 = vdwg.mxu0
  %7488 = vmatpush.bf16.msra.mxu0 %v7177
  %7489 = vmatpush.bf16.msra.mxu0 %v7175
  %7490 = vmatpush.bf16.msra.mxu0 %v7173
  %7491 = vmatpush.bf16.msra.mxu0 %v7171
  %7492 = vmatpush.bf16.msra.mxu0 %v7169
  %7493 = vmatpush.bf16.msra.mxu0 %v7167
  %7494 = vmatpush.bf16.msra.mxu0 %v7165
  %7495 = vmatpush.bf16.msra.mxu0 %v7163
  %7496 = vmatmul.bf16.gmra.mxu0 %v6855
  %v7497 = vpop.f32.mrf.mxu0
  %v7498 = vadd.f32 %v7000, %v7497
  %v7499 = vpop.f32.mrf.mxu0
  %v7500 = vadd.f32 %v7000, %v7499
  %7501 = vmatmul.bf16.gmra.mxu0 %v6858
  %v7502 = vpop.f32.mrf.mxu0
  %v7503 = vadd.f32 %v7000, %v7502
  %v7504 = vpop.f32.mrf.mxu0
  %v7505 = vadd.f32 %v7000, %v7504
  %7506 = vmatmul.bf16.gmra.mxu0 %v6861
  %v7507 = vpop.f32.mrf.mxu0
  %v7508 = vadd.f32 %v7000, %v7507
  %v7509 = vpop.f32.mrf.mxu0
  %v7510 = vadd.f32 %v7000, %v7509
  %7511 = vmatmul.bf16.gmra.mxu0 %v6864
  %v7512 = vpop.f32.mrf.mxu0
  %v7513 = vadd.f32 %v7000, %v7512
  %v7514 = vpop.f32.mrf.mxu0
  %v7515 = vadd.f32 %v7000, %v7514
  %7516 = vmatmul.bf16.gmra.mxu0 %v6867
  %v7517 = vpop.f32.mrf.mxu0
  %v7518 = vadd.f32 %v7000, %v7517
  %v7519 = vpop.f32.mrf.mxu0
  %v7520 = vadd.f32 %v7000, %v7519
  %7521 = vmatmul.bf16.gmra.mxu0 %v6870
  %v7522 = vpop.f32.mrf.mxu0
  %v7523 = vadd.f32 %v7000, %v7522
  %v7524 = vpop.f32.mrf.mxu0
  %v7525 = vadd.f32 %v7000, %v7524
  %7526 = vmatmul.bf16.gmra.mxu0 %v6873
  %v7527 = vpop.f32.mrf.mxu0
  %v7528 = vadd.f32 %v7000, %v7527
  %v7529 = vpop.f32.mrf.mxu0
  %v7530 = vadd.f32 %v7000, %v7529
  %7531 = vmatmul.bf16.gmra.mxu0 %v6876
  %v7532 = vpop.f32.mrf.mxu0
  %v7533 = vadd.f32 %v7000, %v7532
  %v7534 = vpop.f32.mrf.mxu0
  %v7535 = vadd.f32 %v7000, %v7534
  %7536 = vdwg.mxu0
  %7537 = vmatpush.bf16.msra.mxu0 %v7193
  %7538 = vmatpush.bf16.msra.mxu0 %v7191
  %7539 = vmatpush.bf16.msra.mxu0 %v7189
  %7540 = vmatpush.bf16.msra.mxu0 %v7187
  %7541 = vmatpush.bf16.msra.mxu0 %v7185
  %7542 = vmatpush.bf16.msra.mxu0 %v7183
  %7543 = vmatpush.bf16.msra.mxu0 %v7181
  %7544 = vmatpush.bf16.msra.mxu0 %v7179
  %7545 = vmatmul.bf16.gmra.mxu0 %v6896
  %v7546 = vpop.f32.mrf.mxu0
  %v7547 = vadd.f32 %v7498, %v7546
  %v7548 = vpop.f32.mrf.mxu0
  %v7549 = vadd.f32 %v7500, %v7548
  %7550 = vmatmul.bf16.gmra.mxu0 %v6899
  %v7551 = vpop.f32.mrf.mxu0
  %v7552 = vadd.f32 %v7503, %v7551
  %v7553 = vpop.f32.mrf.mxu0
  %v7554 = vadd.f32 %v7505, %v7553
  %7555 = vmatmul.bf16.gmra.mxu0 %v6902
  %v7556 = vpop.f32.mrf.mxu0
  %v7557 = vadd.f32 %v7508, %v7556
  %v7558 = vpop.f32.mrf.mxu0
  %v7559 = vadd.f32 %v7510, %v7558
  %7560 = vmatmul.bf16.gmra.mxu0 %v6905
  %v7561 = vpop.f32.mrf.mxu0
  %v7562 = vadd.f32 %v7513, %v7561
  %v7563 = vpop.f32.mrf.mxu0
  %v7564 = vadd.f32 %v7515, %v7563
  %7565 = vmatmul.bf16.gmra.mxu0 %v6908
  %v7566 = vpop.f32.mrf.mxu0
  %v7567 = vadd.f32 %v7518, %v7566
  %v7568 = vpop.f32.mrf.mxu0
  %v7569 = vadd.f32 %v7520, %v7568
  %7570 = vmatmul.bf16.gmra.mxu0 %v6911
  %v7571 = vpop.f32.mrf.mxu0
  %v7572 = vadd.f32 %v7523, %v7571
  %v7573 = vpop.f32.mrf.mxu0
  %v7574 = vadd.f32 %v7525, %v7573
  %7575 = vmatmul.bf16.gmra.mxu0 %v6914
  %v7576 = vpop.f32.mrf.mxu0
  %v7577 = vadd.f32 %v7528, %v7576
  %v7578 = vpop.f32.mrf.mxu0
  %v7579 = vadd.f32 %v7530, %v7578
  %7580 = vmatmul.bf16.gmra.mxu0 %v6917
  %v7581 = vpop.f32.mrf.mxu0
  %v7582 = vadd.f32 %v7533, %v7581
  %v7583 = vpop.f32.mrf.mxu0
  %v7584 = vadd.f32 %v7535, %v7583
  %7585 = vdwg.mxu0
  %7586 = vmatpush.bf16.msra.mxu0 %v7209
  %7587 = vmatpush.bf16.msra.mxu0 %v7207
  %7588 = vmatpush.bf16.msra.mxu0 %v7205
  %7589 = vmatpush.bf16.msra.mxu0 %v7203
  %7590 = vmatpush.bf16.msra.mxu0 %v7201
  %7591 = vmatpush.bf16.msra.mxu0 %v7199
  %7592 = vmatpush.bf16.msra.mxu0 %v7197
  %7593 = vmatpush.bf16.msra.mxu0 %v7195
  %7594 = vmatmul.bf16.gmra.mxu0 %v6921
  %v7595 = vpop.f32.mrf.mxu0
  %v7596 = vadd.f32 %v7547, %v7595
  %v7597 = vpop.f32.mrf.mxu0
  %v7598 = vadd.f32 %v7549, %v7597
  %7599 = vmatmul.bf16.gmra.mxu0 %v6924
  %v7600 = vpop.f32.mrf.mxu0
  %v7601 = vadd.f32 %v7552, %v7600
  %v7602 = vpop.f32.mrf.mxu0
  %v7603 = vadd.f32 %v7554, %v7602
  %7604 = vmatmul.bf16.gmra.mxu0 %v6927
  %v7605 = vpop.f32.mrf.mxu0
  %v7606 = vadd.f32 %v7557, %v7605
  %v7607 = vpop.f32.mrf.mxu0
  %v7608 = vadd.f32 %v7559, %v7607
  %7609 = vmatmul.bf16.gmra.mxu0 %v6930
  %v7610 = vpop.f32.mrf.mxu0
  %v7611 = vadd.f32 %v7562, %v7610
  %v7612 = vpop.f32.mrf.mxu0
  %v7613 = vadd.f32 %v7564, %v7612
  %7614 = vmatmul.bf16.gmra.mxu0 %v6933
  %v7615 = vpop.f32.mrf.mxu0
  %v7616 = vadd.f32 %v7567, %v7615
  %v7617 = vpop.f32.mrf.mxu0
  %v7618 = vadd.f32 %v7569, %v7617
  %7619 = vmatmul.bf16.gmra.mxu0 %v6936
  %v7620 = vpop.f32.mrf.mxu0
  %v7621 = vadd.f32 %v7572, %v7620
  %v7622 = vpop.f32.mrf.mxu0
  %v7623 = vadd.f32 %v7574, %v7622
  %7624 = vmatmul.bf16.gmra.mxu0 %v6939
  %v7625 = vpop.f32.mrf.mxu0
  %v7626 = vadd.f32 %v7577, %v7625
  %v7627 = vpop.f32.mrf.mxu0
  %v7628 = vadd.f32 %v7579, %v7627
  %7629 = vmatmul.bf16.gmra.mxu0 %v6942
  %v7630 = vpop.f32.mrf.mxu0
  %v7631 = vadd.f32 %v7582, %v7630
  %v7632 = vpop.f32.mrf.mxu0
  %v7633 = vadd.f32 %v7584, %v7632
  %7634 = vdwg.mxu0
  %7635 = vmatpush.bf16.msra.mxu0 0
  %7636 = vmatpush.bf16.msra.mxu0 0
  %7637 = vmatpush.bf16.msra.mxu0 0
  %7638 = vmatpush.bf16.msra.mxu0 0
  %7639 = vmatpush.bf16.msra.mxu0 0
  %7640 = vmatpush.bf16.msra.mxu0 %v7290
  %7641 = vmatpush.bf16.msra.mxu0 %v7213
  %7642 = vmatpush.bf16.msra.mxu0 %v7211
  %7643 = vmatmul.bf16.gmra.mxu0 %v7269
  %v7644 = vpop.f32.mrf.mxu0
  %v7645 = vadd.f32 %v7596, %v7644
  %v7646 = vpop.f32.mrf.mxu0
  %v7647 = vadd.f32 %v7598, %v7646
  %7648 = vmatmul.bf16.gmra.mxu0 %v7271
  %v7649 = vpop.f32.mrf.mxu0
  %v7650 = vadd.f32 %v7601, %v7649
  %v7651 = vpop.f32.mrf.mxu0
  %v7652 = vadd.f32 %v7603, %v7651
  %7653 = vmatmul.bf16.gmra.mxu0 %v7273
  %v7654 = vpop.f32.mrf.mxu0
  %v7655 = vadd.f32 %v7606, %v7654
  %v7656 = vpop.f32.mrf.mxu0
  %v7657 = vadd.f32 %v7608, %v7656
  %7658 = vmatmul.bf16.gmra.mxu0 %v7275
  %v7659 = vpop.f32.mrf.mxu0
  %v7660 = vadd.f32 %v7611, %v7659
  %v7661 = vpop.f32.mrf.mxu0
  %v7662 = vadd.f32 %v7613, %v7661
  %7663 = vmatmul.bf16.gmra.mxu0 %v7277
  %v7664 = vpop.f32.mrf.mxu0
  %v7665 = vadd.f32 %v7616, %v7664
  %v7666 = vpop.f32.mrf.mxu0
  %v7667 = vadd.f32 %v7618, %v7666
  %7668 = vmatmul.bf16.gmra.mxu0 %v7279
  %v7669 = vpop.f32.mrf.mxu0
  %v7670 = vadd.f32 %v7621, %v7669
  %v7671 = vpop.f32.mrf.mxu0
  %v7672 = vadd.f32 %v7623, %v7671
  %7673 = vmatmul.bf16.gmra.mxu0 %v7281
  %v7674 = vpop.f32.mrf.mxu0
  %v7675 = vadd.f32 %v7626, %v7674
  %v7676 = vpop.f32.mrf.mxu0
  %v7677 = vadd.f32 %v7628, %v7676
  %7678 = vmatmul.bf16.gmra.mxu0 %v7283
  %v7679 = vpop.f32.mrf.mxu0
  %v7680 = vadd.f32 %v7631, %v7679
  %v7681 = vpop.f32.mrf.mxu0
  %v7682 = vadd.f32 %v7633, %v7681
  %7683 = vdwg.mxu0
  %v7684 = vld [vmem:[%s7] sm:$0xff]
  %v7685 = vld [vmem:[%s7 + $0x8] sm:$0xff]
  %v7686 = vld [vmem:[%s7 + $0x10] sm:$0xff]
  %v7687 = vld [vmem:[%s7 + $0x18] sm:$0xff]
  %v7688 = vld [vmem:[%s7 + $0x20] sm:$0xff]
  %v7689 = vld [vmem:[%s7 + $0x28] sm:$0xff]
  %v7690 = vld [vmem:[%s7 + $0x30] sm:$0xff]
  %v7691 = vld [vmem:[%s7 + $0x38] sm:$0xff]
  %v7692 = vld [vmem:[%s7 + $0x40] sm:$0xff]
  %v7693 = vld [vmem:[%s7 + $0x48] sm:$0xff]
  %v7694 = vld [vmem:[%s7 + $0x50] sm:$0xff]
  %v7695 = vld [vmem:[%s7 + $0x58] sm:$0xff]
  %v7696 = vld [vmem:[%s7 + $0x60] sm:$0xff]
  %v7697 = vld [vmem:[%s7 + $0x68] sm:$0xff]
  %v7698 = vld [vmem:[%s7 + $0x70] sm:$0xff]
  %v7699 = vld [vmem:[%s7 + $0x78] sm:$0xff]
  %v7700 = vld [vmem:[%s7 + $0x80] sm:$0xff]
  %v7701 = vld [vmem:[%s7 + $0x88] sm:$0xff]
  %v7702 = vld [vmem:[%s7 + $0x90] sm:$0xff]
  %v7703 = vld [vmem:[%s7 + $0x98] sm:$0xff]
  %v7705 = vsel %vm243, %v7645, 0
  %v7708 = vsel %vm243, %v7647, 0
  %v7711 = vsel %vm243, %v7650, 0
  %v7714 = vsel %vm243, %v7652, 0
  %v7717 = vsel %vm243, %v7655, 0
  %v7720 = vsel %vm243, %v7657, 0
  %v7723 = vsel %vm243, %v7660, 0
  %v7726 = vsel %vm243, %v7662, 0
  %v7729 = vsel %vm243, %v7665, 0
  %v7732 = vsel %vm243, %v7667, 0
  %v7735 = vsel %vm243, %v7670, 0
  %v7738 = vsel %vm243, %v7672, 0
  %v7741 = vsel %vm243, %v7675, 0
  %v7744 = vsel %vm243, %v7677, 0
  %v7747 = vsel %vm243, %v7680, 0
  %v7750 = vsel %vm243, %v7682, 0
  %7752 = vmatpush.msra.mxu0 %v7699
  %7753 = vmatpush.msra.mxu0 %v7698
  %7754 = vmatpush.msra.mxu0 %v7697
  %7755 = vmatpush.msra.mxu0 %v7696
  %7756 = vmatpush.msra.mxu0 %v7695
  %7757 = vmatpush.msra.mxu0 %v7694
  %7758 = vmatpush.msra.mxu0 %v7693
  %7759 = vmatpush.msra.mxu0 %v7692
  %7760 = vmatpush.msra.mxu0 %v7691
  %7761 = vmatpush.msra.mxu0 %v7690
  %7762 = vmatpush.msra.mxu0 %v7689
  %7763 = vmatpush.msra.mxu0 %v7688
  %7764 = vmatpush.msra.mxu0 %v7687
  %7765 = vmatpush.msra.mxu0 %v7686
  %7766 = vmatpush.msra.mxu0 %v7685
  %7767 = vmatpush.msra.mxu0 %v7684
  %7768 = vmatmul.f32.gmra.mxu0 %v7449
  %v7769 = vpop.f32.mrf.mxu0
  %v7770 = vadd.f32 0.0, %v7769
  %7771 = vmatmul.f32.gmra.mxu0 %v7451
  %v7772 = vpop.f32.mrf.mxu0
  %v7773 = vadd.f32 0.0, %v7772
  %7774 = vmatmul.f32.gmra.mxu0 %v7454
  %v7775 = vpop.f32.mrf.mxu0
  %v7776 = vadd.f32 0.0, %v7775
  %7777 = vmatmul.f32.gmra.mxu0 %v7456
  %v7778 = vpop.f32.mrf.mxu0
  %v7779 = vadd.f32 0.0, %v7778
  %7780 = vmatmul.f32.gmra.mxu0 %v7459
  %v7781 = vpop.f32.mrf.mxu0
  %v7782 = vadd.f32 0.0, %v7781
  %7783 = vmatmul.f32.gmra.mxu0 %v7461
  %v7784 = vpop.f32.mrf.mxu0
  %v7785 = vadd.f32 0.0, %v7784
  %7786 = vmatmul.f32.gmra.mxu0 %v7464
  %v7787 = vpop.f32.mrf.mxu0
  %v7788 = vadd.f32 0.0, %v7787
  %7789 = vmatmul.f32.gmra.mxu0 %v7466
  %v7790 = vpop.f32.mrf.mxu0
  %v7791 = vadd.f32 0.0, %v7790
  %7792 = vmatmul.f32.gmra.mxu0 %v7469
  %v7793 = vpop.f32.mrf.mxu0
  %v7794 = vadd.f32 0.0, %v7793
  %7795 = vmatmul.f32.gmra.mxu0 %v7471
  %v7796 = vpop.f32.mrf.mxu0
  %v7797 = vadd.f32 0.0, %v7796
  %7798 = vmatmul.f32.gmra.mxu0 %v7474
  %v7799 = vpop.f32.mrf.mxu0
  %v7800 = vadd.f32 0.0, %v7799
  %7801 = vmatmul.f32.gmra.mxu0 %v7476
  %v7802 = vpop.f32.mrf.mxu0
  %v7803 = vadd.f32 0.0, %v7802
  %7804 = vmatmul.f32.gmra.mxu0 %v7479
  %v7805 = vpop.f32.mrf.mxu0
  %v7806 = vadd.f32 0.0, %v7805
  %7807 = vmatmul.f32.gmra.mxu0 %v7481
  %v7808 = vpop.f32.mrf.mxu0
  %v7809 = vadd.f32 0.0, %v7808
  %7810 = vmatmul.f32.gmra.mxu0 %v7484
  %v7811 = vpop.f32.mrf.mxu0
  %v7812 = vadd.f32 0.0, %v7811
  %7813 = vmatmul.f32.gmra.mxu0 %v7486
  %v7814 = vpop.f32.mrf.mxu0
  %v7815 = vadd.f32 0.0, %v7814
  %7816 = vdwg.mxu0
  %7817 = vmatpush.msra.mxu0 0.0
  %7818 = vmatpush.msra.mxu0 0.0
  %7819 = vmatpush.msra.mxu0 0.0
  %7820 = vmatpush.msra.mxu0 0.0
  %7821 = vmatpush.msra.mxu0 0.0
  %7822 = vmatpush.msra.mxu0 0.0
  %7823 = vmatpush.msra.mxu0 0.0
  %7824 = vmatpush.msra.mxu0 0.0
  %7825 = vmatpush.msra.mxu0 0.0
  %7826 = vmatpush.msra.mxu0 0.0
  %7827 = vmatpush.msra.mxu0 0.0
  %7828 = vmatpush.msra.mxu0 0.0
  %7829 = vmatpush.msra.mxu0 %v7703
  %7830 = vmatpush.msra.mxu0 %v7702
  %7831 = vmatpush.msra.mxu0 %v7701
  %7832 = vmatpush.msra.mxu0 %v7700
  %7833 = vmatmul.f32.gmra.mxu0 %v7705
  %v7834 = vpop.f32.mrf.mxu0
  %v7835 = vadd.f32 %v7770, %v7834
  %7836 = vmatmul.f32.gmra.mxu0 %v7708
  %v7837 = vpop.f32.mrf.mxu0
  %v7838 = vadd.f32 %v7773, %v7837
  %7839 = vmatmul.f32.gmra.mxu0 %v7711
  %v7840 = vpop.f32.mrf.mxu0
  %v7841 = vadd.f32 %v7776, %v7840
  %7842 = vmatmul.f32.gmra.mxu0 %v7714
  %v7843 = vpop.f32.mrf.mxu0
  %v7844 = vadd.f32 %v7779, %v7843
  %7845 = vmatmul.f32.gmra.mxu0 %v7717
  %v7846 = vpop.f32.mrf.mxu0
  %v7847 = vadd.f32 %v7782, %v7846
  %7848 = vmatmul.f32.gmra.mxu0 %v7720
  %v7849 = vpop.f32.mrf.mxu0
  %v7850 = vadd.f32 %v7785, %v7849
  %7851 = vmatmul.f32.gmra.mxu0 %v7723
  %v7852 = vpop.f32.mrf.mxu0
  %v7853 = vadd.f32 %v7788, %v7852
  %7854 = vmatmul.f32.gmra.mxu0 %v7726
  %v7855 = vpop.f32.mrf.mxu0
  %v7856 = vadd.f32 %v7791, %v7855
  %7857 = vmatmul.f32.gmra.mxu0 %v7729
  %v7858 = vpop.f32.mrf.mxu0
  %v7859 = vadd.f32 %v7794, %v7858
  %7860 = vmatmul.f32.gmra.mxu0 %v7732
  %v7861 = vpop.f32.mrf.mxu0
  %v7862 = vadd.f32 %v7797, %v7861
  %7863 = vmatmul.f32.gmra.mxu0 %v7735
  %v7864 = vpop.f32.mrf.mxu0
  %v7865 = vadd.f32 %v7800, %v7864
  %7866 = vmatmul.f32.gmra.mxu0 %v7738
  %v7867 = vpop.f32.mrf.mxu0
  %v7868 = vadd.f32 %v7803, %v7867
  %7869 = vmatmul.f32.gmra.mxu0 %v7741
  %v7870 = vpop.f32.mrf.mxu0
  %v7871 = vadd.f32 %v7806, %v7870
  %7872 = vmatmul.f32.gmra.mxu0 %v7744
  %v7873 = vpop.f32.mrf.mxu0
  %v7874 = vadd.f32 %v7809, %v7873
  %7875 = vmatmul.f32.gmra.mxu0 %v7747
  %v7876 = vpop.f32.mrf.mxu0
  %v7877 = vadd.f32 %v7812, %v7876
  %7878 = vmatmul.f32.gmra.mxu0 %v7750
  %v7879 = vpop.f32.mrf.mxu0
  %v7880 = vadd.f32 %v7815, %v7879
  %7881 = vdwg.mxu0
  %v7882 = vld [vmem:[%s8] sm:$0xff]
  %v7883 = vld [vmem:[%s8 + $0x8] sm:$0xff]
  %v7884 = vld [vmem:[%s8 + $0x10] sm:$0xff]
  %v7885 = vld [vmem:[%s8 + $0x18] sm:$0xff]
  %v7886 = vld [vmem:[%s8 + $0x20] sm:$0xff]
  %v7887 = vld [vmem:[%s8 + $0x28] sm:$0xff]
  %v7888 = vld [vmem:[%s8 + $0x30] sm:$0xff]
  %v7889 = vld [vmem:[%s8 + $0x38] sm:$0xff]
  %v7890 = vld [vmem:[%s8 + $0x40] sm:$0xff]
  %v7891 = vld [vmem:[%s8 + $0x48] sm:$0xff]
  %v7892 = vld [vmem:[%s8 + $0x50] sm:$0xff]
  %v7893 = vld [vmem:[%s8 + $0x58] sm:$0xff]
  %v7894 = vld [vmem:[%s8 + $0x60] sm:$0xff]
  %v7895 = vld [vmem:[%s8 + $0x68] sm:$0xff]
  %v7896 = vld [vmem:[%s8 + $0x70] sm:$0xff]
  %v7897 = vld [vmem:[%s8 + $0x78] sm:$0xff]
  %v7898 = vld [vmem:[%s8 + $0x80] sm:$0xff]
  %v7899 = vld [vmem:[%s8 + $0x88] sm:$0xff]
  %v7900 = vld [vmem:[%s8 + $0x90] sm:$0xff]
  %v7901 = vld [vmem:[%s8 + $0x98] sm:$0xff]
  %7902 = vmatpush.msra.mxu0 %v7897
  %7903 = vmatpush.msra.mxu0 %v7896
  %7904 = vmatpush.msra.mxu0 %v7895
  %7905 = vmatpush.msra.mxu0 %v7894
  %7906 = vmatpush.msra.mxu0 %v7893
  %7907 = vmatpush.msra.mxu0 %v7892
  %7908 = vmatpush.msra.mxu0 %v7891
  %7909 = vmatpush.msra.mxu0 %v7890
  %7910 = vmatpush.msra.mxu0 %v7889
  %7911 = vmatpush.msra.mxu0 %v7888
  %7912 = vmatpush.msra.mxu0 %v7887
  %7913 = vmatpush.msra.mxu0 %v7886
  %7914 = vmatpush.msra.mxu0 %v7885
  %7915 = vmatpush.msra.mxu0 %v7884
  %7916 = vmatpush.msra.mxu0 %v7883
  %7917 = vmatpush.msra.mxu0 %v7882
  %7918 = vmatmul.f32.gmra.mxu0 %v7449
  %v7919 = vpop.f32.mrf.mxu0
  %v7920 = vadd.f32 0.0, %v7919
  %7921 = vmatmul.f32.gmra.mxu0 %v7451
  %v7922 = vpop.f32.mrf.mxu0
  %v7923 = vadd.f32 0.0, %v7922
  %7924 = vmatmul.f32.gmra.mxu0 %v7454
  %v7925 = vpop.f32.mrf.mxu0
  %v7926 = vadd.f32 0.0, %v7925
  %7927 = vmatmul.f32.gmra.mxu0 %v7456
  %v7928 = vpop.f32.mrf.mxu0
  %v7929 = vadd.f32 0.0, %v7928
  %7930 = vmatmul.f32.gmra.mxu0 %v7459
  %v7931 = vpop.f32.mrf.mxu0
  %v7932 = vadd.f32 0.0, %v7931
  %7933 = vmatmul.f32.gmra.mxu0 %v7461
  %v7934 = vpop.f32.mrf.mxu0
  %v7935 = vadd.f32 0.0, %v7934
  %7936 = vmatmul.f32.gmra.mxu0 %v7464
  %v7937 = vpop.f32.mrf.mxu0
  %v7938 = vadd.f32 0.0, %v7937
  %7939 = vmatmul.f32.gmra.mxu0 %v7466
  %v7940 = vpop.f32.mrf.mxu0
  %v7941 = vadd.f32 0.0, %v7940
  %7942 = vmatmul.f32.gmra.mxu0 %v7469
  %v7943 = vpop.f32.mrf.mxu0
  %v7944 = vadd.f32 0.0, %v7943
  %7945 = vmatmul.f32.gmra.mxu0 %v7471
  %v7946 = vpop.f32.mrf.mxu0
  %v7947 = vadd.f32 0.0, %v7946
  %7948 = vmatmul.f32.gmra.mxu0 %v7474
  %v7949 = vpop.f32.mrf.mxu0
  %v7950 = vadd.f32 0.0, %v7949
  %7951 = vmatmul.f32.gmra.mxu0 %v7476
  %v7952 = vpop.f32.mrf.mxu0
  %v7953 = vadd.f32 0.0, %v7952
  %7954 = vmatmul.f32.gmra.mxu0 %v7479
  %v7955 = vpop.f32.mrf.mxu0
  %v7956 = vadd.f32 0.0, %v7955
  %7957 = vmatmul.f32.gmra.mxu0 %v7481
  %v7958 = vpop.f32.mrf.mxu0
  %v7959 = vadd.f32 0.0, %v7958
  %7960 = vmatmul.f32.gmra.mxu0 %v7484
  %v7961 = vpop.f32.mrf.mxu0
  %v7962 = vadd.f32 0.0, %v7961
  %7963 = vmatmul.f32.gmra.mxu0 %v7486
  %v7964 = vpop.f32.mrf.mxu0
  %v7965 = vadd.f32 0.0, %v7964
  %7966 = vdwg.mxu0
  %7967 = vmatpush.msra.mxu0 0.0
  %7968 = vmatpush.msra.mxu0 0.0
  %7969 = vmatpush.msra.mxu0 0.0
  %7970 = vmatpush.msra.mxu0 0.0
  %7971 = vmatpush.msra.mxu0 0.0
  %7972 = vmatpush.msra.mxu0 0.0
  %7973 = vmatpush.msra.mxu0 0.0
  %7974 = vmatpush.msra.mxu0 0.0
  %7975 = vmatpush.msra.mxu0 0.0
  %7976 = vmatpush.msra.mxu0 0.0
  %7977 = vmatpush.msra.mxu0 0.0
  %7978 = vmatpush.msra.mxu0 0.0
  %7979 = vmatpush.msra.mxu0 %v7901
  %7980 = vmatpush.msra.mxu0 %v7900
  %7981 = vmatpush.msra.mxu0 %v7899
  %7982 = vmatpush.msra.mxu0 %v7898
  %7983 = vmatmul.f32.gmra.mxu0 %v7705
  %v7984 = vpop.f32.mrf.mxu0
  %v7985 = vadd.f32 %v7920, %v7984
  %7986 = vmatmul.f32.gmra.mxu0 %v7708
  %v7987 = vpop.f32.mrf.mxu0
  %v7988 = vadd.f32 %v7923, %v7987
  %7989 = vmatmul.f32.gmra.mxu0 %v7711
  %v7990 = vpop.f32.mrf.mxu0
  %v7991 = vadd.f32 %v7926, %v7990
  %7992 = vmatmul.f32.gmra.mxu0 %v7714
  %v7993 = vpop.f32.mrf.mxu0
  %v7994 = vadd.f32 %v7929, %v7993
  %7995 = vmatmul.f32.gmra.mxu0 %v7717
  %v7996 = vpop.f32.mrf.mxu0
  %v7997 = vadd.f32 %v7932, %v7996
  %7998 = vmatmul.f32.gmra.mxu0 %v7720
  %v7999 = vpop.f32.mrf.mxu0
  %v8000 = vadd.f32 %v7935, %v7999
  %8001 = vmatmul.f32.gmra.mxu0 %v7723
  %v8002 = vpop.f32.mrf.mxu0
  %v8003 = vadd.f32 %v7938, %v8002
  %8004 = vmatmul.f32.gmra.mxu0 %v7726
  %v8005 = vpop.f32.mrf.mxu0
  %v8006 = vadd.f32 %v7941, %v8005
  %8007 = vmatmul.f32.gmra.mxu0 %v7729
  %v8008 = vpop.f32.mrf.mxu0
  %v8009 = vadd.f32 %v7944, %v8008
  %8010 = vmatmul.f32.gmra.mxu0 %v7732
  %v8011 = vpop.f32.mrf.mxu0
  %v8012 = vadd.f32 %v7947, %v8011
  %8013 = vmatmul.f32.gmra.mxu0 %v7735
  %v8014 = vpop.f32.mrf.mxu0
  %v8015 = vadd.f32 %v7950, %v8014
  %8016 = vmatmul.f32.gmra.mxu0 %v7738
  %v8017 = vpop.f32.mrf.mxu0
  %v8018 = vadd.f32 %v7953, %v8017
  %8019 = vmatmul.f32.gmra.mxu0 %v7741
  %v8020 = vpop.f32.mrf.mxu0
  %v8021 = vadd.f32 %v7956, %v8020
  %8022 = vmatmul.f32.gmra.mxu0 %v7744
  %v8023 = vpop.f32.mrf.mxu0
  %v8024 = vadd.f32 %v7959, %v8023
  %8025 = vmatmul.f32.gmra.mxu0 %v7747
  %v8026 = vpop.f32.mrf.mxu0
  %v8027 = vadd.f32 %v7962, %v8026
  %8028 = vmatmul.f32.gmra.mxu0 %v7750
  %v8029 = vpop.f32.mrf.mxu0
  %v8030 = vadd.f32 %v7965, %v8029
  %8031 = vdwg.mxu0
  %v8032 = vmax.f32 %v7835, %v7985
  %v8033 = vmax.f32 %v7838, %v7988
  %v8034 = vmax.f32 %v7841, %v7991
  %v8035 = vmax.f32 %v7844, %v7994
  %v8036 = vmax.f32 %v7847, %v7997
  %v8037 = vmax.f32 %v7850, %v8000
  %v8038 = vmax.f32 %v7853, %v8003
  %v8039 = vmax.f32 %v7856, %v8006
  %v8040 = vmax.f32 %v7859, %v8009
  %v8041 = vmax.f32 %v7862, %v8012
  %v8042 = vmax.f32 %v7865, %v8015
  %v8043 = vmax.f32 %v7868, %v8018
  %v8044 = vmax.f32 %v7871, %v8021
  %v8045 = vmax.f32 %v7874, %v8024
  %v8046 = vmax.f32 %v7877, %v8027
  %v8047 = vmax.f32 %v7880, %v8030
  %8048 = vst.msk [vmem:[%s9] sm:$0xff] %vm6919, %v8032
  %8049 = vst.msk [vmem:[%s9 + $0x8] sm:$0xff] %vm6919, %v8033
  %8050 = vst.msk [vmem:[%s9 + $0x10] sm:$0xff] %vm6919, %v8034
  %8051 = vst.msk [vmem:[%s9 + $0x18] sm:$0xff] %vm6919, %v8035
  %8052 = vst.msk [vmem:[%s9 + $0x20] sm:$0xff] %vm6919, %v8036
  %8053 = vst.msk [vmem:[%s9 + $0x28] sm:$0xff] %vm6919, %v8037
  %8054 = vst.msk [vmem:[%s9 + $0x30] sm:$0xff] %vm6919, %v8038
  %8055 = vst.msk [vmem:[%s9 + $0x38] sm:$0xff] %vm6919, %v8039
  %8056 = vst.msk [vmem:[%s9 + $0x40] sm:$0xff] %vm6919, %v8040
  %8057 = vst.msk [vmem:[%s9 + $0x48] sm:$0xff] %vm6919, %v8041
  %8058 = vst.msk [vmem:[%s9 + $0x50] sm:$0xff] %vm6919, %v8042
  %8059 = vst.msk [vmem:[%s9 + $0x58] sm:$0xff] %vm6919, %v8043
  %8060 = vst.msk [vmem:[%s9 + $0x60] sm:$0xff] %vm6919, %v8044
  %8061 = vst.msk [vmem:[%s9 + $0x68] sm:$0xff] %vm6919, %v8045
  %8062 = vst.msk [vmem:[%s9 + $0x70] sm:$0xff] %vm6919, %v8046
  %8063 = vst.msk [vmem:[%s9 + $0x78] sm:$0xff] %vm6919, %v8047
  %v8064 = vld [vmem:[#allocation2 + $0x40] sm:$0xf]
  %v8065 = vld [vmem:[#allocation2 + $0x44] sm:$0xf]
  %v8066 = vld [vmem:[#allocation2 + $0x48] sm:$0xf]
  %v8067 = vld [vmem:[#allocation2 + $0x4c] sm:$0xf]
  %v8068 = vld [vmem:[#allocation2 + $0x50] sm:$0xf]
  %v8069 = vld [vmem:[#allocation2 + $0x54] sm:$0xf]
  %v8070 = vld [vmem:[#allocation2 + $0x58] sm:$0xf]
  %v8071 = vld [vmem:[#allocation2 + $0x5c] sm:$0xf]
  %v8072 = vld [vmem:[#allocation2 + $0x60] sm:$0xf]
  %v8073 = vld [vmem:[#allocation2 + $0x64] sm:$0xf]
  %v8074 = vld [vmem:[#allocation2 + $0x68] sm:$0xf]
  %v8075 = vld [vmem:[#allocation2 + $0x6c] sm:$0xf]
  %v8076 = vld [vmem:[#allocation2 + $0x70] sm:$0xf]
  %v8077 = vld [vmem:[#allocation2 + $0x74] sm:$0xf]
  %v8078 = vld [vmem:[#allocation2 + $0x78] sm:$0xf]
  %v8079 = vld [vmem:[#allocation2 + $0x7c] sm:$0xf]
  %v8080 = vld [vmem:[#allocation2 + $0x80] sm:$0x1]
  %v8081 = vld [vmem:[#allocation2 + $0x40] sm:$0xe]
  %v8082 = vld [vmem:[#allocation2 + $0x80] sm:$0x3]
  %v8083 = vld [vmem:[#allocation2 + $0x40] sm:$0xc]
  %v8100 = vunpack.c.l.b16 %v8064
  %v8101 = vunpack.c.l.b16 %v8065
  %v8102 = vunpack.c.l.b16 %v8066
  %v8103 = vunpack.c.l.b16 %v8067
  %v8104 = vunpack.c.l.b16 %v8068
  %v8105 = vunpack.c.l.b16 %v8069
  %v8106 = vunpack.c.l.b16 %v8070
  %v8107 = vunpack.c.l.b16 %v8071
  %v8108 = vunpack.c.l.b16 %v8072
  %v8109 = vunpack.c.l.b16 %v8073
  %v8110 = vunpack.c.l.b16 %v8074
  %v8111 = vunpack.c.l.b16 %v8075
  %v8112 = vunpack.c.l.b16 %v8076
  %v8113 = vunpack.c.l.b16 %v8077
  %v8114 = vunpack.c.l.b16 %v8078
  %v8115 = vunpack.c.l.b16 %v8079
  %v8116 = vpack.c.b16 %v8101, %v8100
  %v8117 = vpack.c.b16 %v8103, %v8102
  %v8118 = vpack.c.b16 %v8105, %v8104
  %v8119 = vpack.c.b16 %v8107, %v8106
  %v8120 = vpack.c.b16 %v8109, %v8108
  %v8121 = vpack.c.b16 %v8111, %v8110
  %v8122 = vpack.c.b16 %v8113, %v8112
  %v8123 = vpack.c.b16 %v8115, %v8114
  %v8125 = vunpack.c.l.b16 %v8080
  %v8126 = vpack.c.b16 %v8125, %v8125
  %v8128 = vshrl.u32 %v8116, 16
  %v8130 = vshll.u32 %v8116, 16
  %v8132 = vrot.slane %v8130, 1
  %v8133 = vor.u32 %v8128, %v8132
  %v8135 = vshll.u32 %v8117, 16
  %v8137 = vrot.slane %v8135, 1
  %v8138 = vsel %vm6629, %v8133, %v8137
  %v8139 = vshrl.u32 %v8117, 16
  %v8141 = vor.u32 %v8139, %v8137
  %v8143 = vshll.u32 %v8118, 16
  %v8145 = vrot.slane %v8143, 1
  %v8146 = vsel %vm6629, %v8141, %v8145
  %v8147 = vshrl.u32 %v8118, 16
  %v8149 = vor.u32 %v8147, %v8145
  %v8151 = vshll.u32 %v8119, 16
  %v8153 = vrot.slane %v8151, 1
  %v8154 = vsel %vm6629, %v8149, %v8153
  %v8155 = vshrl.u32 %v8119, 16
  %v8157 = vor.u32 %v8155, %v8153
  %v8159 = vshll.u32 %v8120, 16
  %v8161 = vrot.slane %v8159, 1
  %v8162 = vsel %vm6629, %v8157, %v8161
  %v8163 = vshrl.u32 %v8120, 16
  %v8165 = vor.u32 %v8163, %v8161
  %v8167 = vshll.u32 %v8121, 16
  %v8169 = vrot.slane %v8167, 1
  %v8170 = vsel %vm6629, %v8165, %v8169
  %v8171 = vshrl.u32 %v8121, 16
  %v8173 = vor.u32 %v8171, %v8169
  %v8175 = vshll.u32 %v8122, 16
  %v8177 = vrot.slane %v8175, 1
  %v8178 = vsel %vm6629, %v8173, %v8177
  %v8179 = vshrl.u32 %v8122, 16
  %v8181 = vor.u32 %v8179, %v8177
  %v8183 = vshll.u32 %v8123, 16
  %v8185 = vrot.slane %v8183, 1
  %v8186 = vsel %vm6629, %v8181, %v8185
  %v8187 = vshrl.u32 %v8123, 16
  %v8189 = vor.u32 %v8187, %v8185
  %v8191 = vshll.u32 %v8126, 16
  %v8193 = vrot.slane %v8191, 1
  %v8194 = vsel %vm6629, %v8189, %v8193
  %8195 = vrot.lane.b32.xlu0 %v8138, 84
  %v8196 = vpop.permute.xlu0 %8195
  %8197 = vrot.lane.b32.xlu0 %v8146, 84
  %v8198 = vpop.permute.xlu0 %8197
  %8199 = vrot.lane.b32.xlu0 %v8154, 84
  %v8200 = vpop.permute.xlu0 %8199
  %8201 = vrot.lane.b32.xlu0 %v8162, 84
  %v8202 = vpop.permute.xlu0 %8201
  %8203 = vrot.lane.b32.xlu0 %v8170, 84
  %v8204 = vpop.permute.xlu0 %8203
  %8205 = vrot.lane.b32.xlu0 %v8178, 84
  %v8206 = vpop.permute.xlu0 %8205
  %8207 = vrot.lane.b32.xlu0 %v8186, 84
  %v8208 = vpop.permute.xlu0 %8207
  %8209 = vrot.lane.b32.xlu0 %v8194, 84
  %v8210 = vpop.permute.xlu0 %8209
  %v8212 = vunpack.c.l.b16 %v8081
  %v8213 = vpack.c.b16 %v8101, %v8212
  %v8214 = vrot.slane %v8213, 1
  %v8215 = vrot.slane %v8117, 1
  %v8216 = vsel %vm6717, %v8214, %v8215
  %v8217 = vrot.slane %v8118, 1
  %v8218 = vsel %vm6717, %v8215, %v8217
  %v8219 = vrot.slane %v8119, 1
  %v8220 = vsel %vm6717, %v8217, %v8219
  %v8221 = vrot.slane %v8120, 1
  %v8222 = vsel %vm6717, %v8219, %v8221
  %v8223 = vrot.slane %v8121, 1
  %v8224 = vsel %vm6717, %v8221, %v8223
  %v8225 = vrot.slane %v8122, 1
  %v8226 = vsel %vm6717, %v8223, %v8225
  %v8227 = vrot.slane %v8123, 1
  %v8228 = vsel %vm6717, %v8225, %v8227
  %v8229 = vrot.slane %v8126, 1
  %v8230 = vsel %vm6717, %v8227, %v8229
  %8231 = vrot.lane.b32.xlu0 %v8216, 40
  %v8232 = vpop.permute.xlu0 %8231
  %8233 = vrot.lane.b32.xlu0 %v8218, 40
  %v8234 = vpop.permute.xlu0 %8233
  %8235 = vrot.lane.b32.xlu0 %v8220, 40
  %v8236 = vpop.permute.xlu0 %8235
  %8237 = vrot.lane.b32.xlu0 %v8222, 40
  %v8238 = vpop.permute.xlu0 %8237
  %8239 = vrot.lane.b32.xlu0 %v8224, 40
  %v8240 = vpop.permute.xlu0 %8239
  %8241 = vrot.lane.b32.xlu0 %v8226, 40
  %v8242 = vpop.permute.xlu0 %8241
  %8243 = vrot.lane.b32.xlu0 %v8228, 40
  %v8244 = vpop.permute.xlu0 %8243
  %8245 = vrot.lane.b32.xlu0 %v8230, 40
  %v8246 = vpop.permute.xlu0 %8245
  %v8248 = vunpack.c.l.b16 %v8082
  %v8249 = vpack.c.b16 %v8248, %v8248
  %v8251 = vshrl.u32 %v8213, 16
  %v8253 = vrot.slane %v8251, 1
  %v8254 = vshll.u32 %v8213, 16
  %v8256 = vrot.slane %v8254, 2
  %v8257 = vor.u32 %v8253, %v8256
  %v8258 = vrot.slane %v8139, 1
  %v8259 = vrot.slane %v8135, 2
  %v8260 = vor.u32 %v8258, %v8259
  %v8261 = vsel %vm6754, %v8257, %v8260
  %v8262 = vrot.slane %v8147, 1
  %v8263 = vrot.slane %v8143, 2
  %v8264 = vor.u32 %v8262, %v8263
  %v8265 = vsel %vm6754, %v8260, %v8264
  %v8266 = vrot.slane %v8155, 1
  %v8267 = vrot.slane %v8151, 2
  %v8268 = vor.u32 %v8266, %v8267
  %v8269 = vsel %vm6754, %v8264, %v8268
  %v8270 = vrot.slane %v8163, 1
  %v8271 = vrot.slane %v8159, 2
  %v8272 = vor.u32 %v8270, %v8271
  %v8273 = vsel %vm6754, %v8268, %v8272
  %v8274 = vrot.slane %v8171, 1
  %v8275 = vrot.slane %v8167, 2
  %v8276 = vor.u32 %v8274, %v8275
  %v8277 = vsel %vm6754, %v8272, %v8276
  %v8278 = vrot.slane %v8179, 1
  %v8279 = vrot.slane %v8175, 2
  %v8280 = vor.u32 %v8278, %v8279
  %v8281 = vsel %vm6754, %v8276, %v8280
  %v8282 = vrot.slane %v8187, 1
  %v8283 = vrot.slane %v8183, 2
  %v8284 = vor.u32 %v8282, %v8283
  %v8285 = vsel %vm6754, %v8280, %v8284
  %v8287 = vshrl.u32 %v8249, 16
  %v8289 = vrot.slane %v8287, 1
  %v8290 = vshll.u32 %v8249, 16
  %v8292 = vrot.slane %v8290, 2
  %v8293 = vor.u32 %v8289, %v8292
  %v8294 = vsel %vm6754, %v8284, %v8293
  %8295 = vrot.lane.b32.xlu0 %v8261, 124
  %v8296 = vpop.permute.xlu0 %8295
  %8297 = vrot.lane.b32.xlu0 %v8265, 124
  %v8298 = vpop.permute.xlu0 %8297
  %8299 = vrot.lane.b32.xlu0 %v8269, 124
  %v8300 = vpop.permute.xlu0 %8299
  %8301 = vrot.lane.b32.xlu0 %v8273, 124
  %v8302 = vpop.permute.xlu0 %8301
  %8303 = vrot.lane.b32.xlu0 %v8277, 124
  %v8304 = vpop.permute.xlu0 %8303
  %8305 = vrot.lane.b32.xlu0 %v8281, 124
  %v8306 = vpop.permute.xlu0 %8305
  %8307 = vrot.lane.b32.xlu0 %v8285, 124
  %v8308 = vpop.permute.xlu0 %8307
  %8309 = vrot.lane.b32.xlu0 %v8294, 124
  %v8310 = vpop.permute.xlu0 %8309
  %v8312 = vunpack.c.l.b16 %v8083
  %v8313 = vpack.c.b16 %v8101, %v8312
  %v8314 = vrot.slane %v8313, 2
  %v8315 = vrot.slane %v8117, 2
  %v8316 = vsel %vm6819, %v8314, %v8315
  %v8317 = vrot.slane %v8118, 2
  %v8318 = vsel %vm6819, %v8315, %v8317
  %v8319 = vrot.slane %v8119, 2
  %v8320 = vsel %vm6819, %v8317, %v8319
  %v8321 = vrot.slane %v8120, 2
  %v8322 = vsel %vm6819, %v8319, %v8321
  %v8323 = vrot.slane %v8121, 2
  %v8324 = vsel %vm6819, %v8321, %v8323
  %v8325 = vrot.slane %v8122, 2
  %v8326 = vsel %vm6819, %v8323, %v8325
  %v8327 = vrot.slane %v8123, 2
  %v8328 = vsel %vm6819, %v8325, %v8327
  %v8329 = vrot.slane %v8249, 2
  %v8330 = vsel %vm6819, %v8327, %v8329
  %8331 = vrot.lane.b32.xlu0 %v8316, 80
  %v8332 = vpop.permute.xlu0 %8331
  %8333 = vrot.lane.b32.xlu0 %v8318, 80
  %v8334 = vpop.permute.xlu0 %8333
  %8335 = vrot.lane.b32.xlu0 %v8320, 80
  %v8336 = vpop.permute.xlu0 %8335
  %8337 = vrot.lane.b32.xlu0 %v8322, 80
  %v8338 = vpop.permute.xlu0 %8337
  %8339 = vrot.lane.b32.xlu0 %v8324, 80
  %v8340 = vpop.permute.xlu0 %8339
  %8341 = vrot.lane.b32.xlu0 %v8326, 80
  %v8342 = vpop.permute.xlu0 %8341
  %8343 = vrot.lane.b32.xlu0 %v8328, 80
  %v8344 = vpop.permute.xlu0 %8343
  %8345 = vrot.lane.b32.xlu0 %v8330, 80
  %v8346 = vpop.permute.xlu0 %8345
  %v8348 = vsel %vm6853, %v8116, %v8196
  %v8351 = vsel %vm6853, %v8117, %v8198
  %v8354 = vsel %vm6853, %v8118, %v8200
  %v8357 = vsel %vm6853, %v8119, %v8202
  %v8360 = vsel %vm6853, %v8120, %v8204
  %v8363 = vsel %vm6853, %v8121, %v8206
  %v8366 = vsel %vm6853, %v8122, %v8208
  %v8369 = vsel %vm6853, %v8123, %v8210
  %v8372 = vsel %vm610, %v8196, %v8232
  %v8374 = vsel %vm610, %v8198, %v8234
  %v8376 = vsel %vm610, %v8200, %v8236
  %v8378 = vsel %vm610, %v8202, %v8238
  %v8380 = vsel %vm610, %v8204, %v8240
  %v8382 = vsel %vm610, %v8206, %v8242
  %v8384 = vsel %vm610, %v8208, %v8244
  %v8386 = vsel %vm610, %v8210, %v8246
  %v8388 = vsel %vm6894, %v8372, %v8296
  %v8391 = vsel %vm6894, %v8374, %v8298
  %v8394 = vsel %vm6894, %v8376, %v8300
  %v8397 = vsel %vm6894, %v8378, %v8302
  %v8400 = vsel %vm6894, %v8380, %v8304
  %v8403 = vsel %vm6894, %v8382, %v8306
  %v8406 = vsel %vm6894, %v8384, %v8308
  %v8409 = vsel %vm6894, %v8386, %v8310
  %v8412 = vsel %vm6919, %v8296, %v8332
  %v8415 = vsel %vm6919, %v8298, %v8334
  %v8418 = vsel %vm6919, %v8300, %v8336
  %v8421 = vsel %vm6919, %v8302, %v8338
  %v8424 = vsel %vm6919, %v8304, %v8340
  %v8427 = vsel %vm6919, %v8306, %v8342
  %v8430 = vsel %vm6919, %v8308, %v8344
  %v8433 = vsel %vm6919, %v8310, %v8346
  %v8435 = vld [vmem:[%s3] sm:$0xff]
  %v8436 = vld [vmem:[%s3 + $0x8] sm:$0xff]
  %v8437 = vld [vmem:[%s3 + $0x10] sm:$0xff]
  %v8438 = vld [vmem:[%s3 + $0x18] sm:$0xff]
  %v8439 = vld [vmem:[%s3 + $0x20] sm:$0xff]
  %v8440 = vld [vmem:[%s3 + $0x28] sm:$0xff]
  %v8441 = vld [vmem:[%s3 + $0x30] sm:$0xff]
  %v8442 = vld [vmem:[%s3 + $0x38] sm:$0xff]
  %v8443 = vld [vmem:[%s3 + $0x40] sm:$0xff]
  %v8444 = vld [vmem:[%s3 + $0x48] sm:$0xff]
  %v8445 = vld [vmem:[%s3 + $0x50] sm:$0xff]
  %v8446 = vld [vmem:[%s3 + $0x58] sm:$0xff]
  %v8447 = vld [vmem:[%s3 + $0x60] sm:$0xff]
  %v8448 = vld [vmem:[%s3 + $0x68] sm:$0xff]
  %v8449 = vld [vmem:[%s3 + $0x70] sm:$0xff]
  %v8450 = vld [vmem:[%s3 + $0x78] sm:$0xff]
  %v8451 = vld [vmem:[%s3 + $0x80] sm:$0xff]
  %v8452 = vld [vmem:[%s3 + $0x88] sm:$0xff]
  %v8453 = vld [vmem:[%s3 + $0x90] sm:$0xff]
  %v8454 = vld [vmem:[%s3 + $0x98] sm:$0xff]
  %v8455 = vld [vmem:[%s3 + $0xa0] sm:$0xff]
  %v8456 = vld [vmem:[%s3 + $0xa8] sm:$0xff]
  %v8457 = vld [vmem:[%s3 + $0xb0] sm:$0xff]
  %v8458 = vld [vmem:[%s3 + $0xb8] sm:$0xff]
  %v8459 = vld [vmem:[%s3 + $0xc0] sm:$0xff]
  %v8460 = vld [vmem:[%s3 + $0xc8] sm:$0xff]
  %v8461 = vld [vmem:[%s3 + $0xd0] sm:$0xff]
  %v8462 = vld [vmem:[%s3 + $0xd8] sm:$0xff]
  %v8463 = vld [vmem:[%s3 + $0xe0] sm:$0xff]
  %v8464 = vld [vmem:[%s3 + $0xe8] sm:$0xff]
  %v8465 = vld [vmem:[%s3 + $0xf0] sm:$0xff]
  %v8466 = vld [vmem:[%s3 + $0xf8] sm:$0xff]
  %v8467 = vld [vmem:[%s3 + $0x100] sm:$0xff]
  %v8468 = vld [vmem:[%s3 + $0x108] sm:$0xff]
  %v8469 = vld [vmem:[%s3 + $0x110] sm:$0xff]
  %v8470 = vld [vmem:[%s3 + $0x118] sm:$0xff]
  %v8471 = vld [vmem:[%s3 + $0x120] sm:$0xff]
  %v8472 = vld [vmem:[%s3 + $0x128] sm:$0xff]
  %v8473 = vld [vmem:[%s3 + $0x130] sm:$0xff]
  %v8474 = vld [vmem:[%s3 + $0x138] sm:$0xff]
  %v8475 = vld [vmem:[%s3 + $0x140] sm:$0xff]
  %v8476 = vld [vmem:[%s3 + $0x148] sm:$0xff]
  %v8477 = vld [vmem:[%s3 + $0x150] sm:$0xff]
  %v8478 = vld [vmem:[%s3 + $0x158] sm:$0xff]
  %v8479 = vld [vmem:[%s3 + $0x160] sm:$0xff]
  %v8480 = vld [vmem:[%s3 + $0x168] sm:$0xff]
  %v8481 = vld [vmem:[%s3 + $0x170] sm:$0xff]
  %v8482 = vld [vmem:[%s3 + $0x178] sm:$0xff]
  %v8483 = vld [vmem:[%s3 + $0x180] sm:$0xff]
  %v8484 = vld [vmem:[%s3 + $0x188] sm:$0xff]
  %v8485 = vld [vmem:[%s3 + $0x190] sm:$0xff]
  %v8486 = vld [vmem:[%s3 + $0x198] sm:$0xff]
  %v8487 = vld [vmem:[%s3 + $0x1a0] sm:$0x33]
  %v8488 = vld [vmem:[%s4] sm:$0x3]
  %v8490 = vperm.slane %v8488, 0
  %v8491 = vperm.slane %v8488, 1
  %v8547 = vunpack.c.l.b16 %v8435
  %v8548 = vunpack.c.h.b16 %v8435
  %v8549 = vunpack.c.l.b16 %v8436
  %v8550 = vunpack.c.h.b16 %v8436
  %v8551 = vunpack.c.l.b16 %v8437
  %v8552 = vunpack.c.h.b16 %v8437
  %v8553 = vunpack.c.l.b16 %v8438
  %v8554 = vunpack.c.h.b16 %v8438
  %v8555 = vunpack.c.l.b16 %v8439
  %v8556 = vunpack.c.h.b16 %v8439
  %v8557 = vunpack.c.l.b16 %v8440
  %v8558 = vunpack.c.h.b16 %v8440
  %v8559 = vunpack.c.l.b16 %v8441
  %v8560 = vunpack.c.h.b16 %v8441
  %v8561 = vunpack.c.l.b16 %v8442
  %v8562 = vunpack.c.h.b16 %v8442
  %v8563 = vunpack.c.l.b16 %v8443
  %v8564 = vunpack.c.h.b16 %v8443
  %v8565 = vunpack.c.l.b16 %v8444
  %v8566 = vunpack.c.h.b16 %v8444
  %v8567 = vunpack.c.l.b16 %v8445
  %v8568 = vunpack.c.h.b16 %v8445
  %v8569 = vunpack.c.l.b16 %v8446
  %v8570 = vunpack.c.h.b16 %v8446
  %v8571 = vunpack.c.l.b16 %v8447
  %v8572 = vunpack.c.h.b16 %v8447
  %v8573 = vunpack.c.l.b16 %v8448
  %v8574 = vunpack.c.h.b16 %v8448
  %v8575 = vunpack.c.l.b16 %v8449
  %v8576 = vunpack.c.h.b16 %v8449
  %v8577 = vunpack.c.l.b16 %v8450
  %v8578 = vunpack.c.h.b16 %v8450
  %v8579 = vunpack.c.l.b16 %v8451
  %v8580 = vunpack.c.h.b16 %v8451
  %v8581 = vunpack.c.l.b16 %v8452
  %v8582 = vunpack.c.h.b16 %v8452
  %v8583 = vunpack.c.l.b16 %v8453
  %v8584 = vunpack.c.h.b16 %v8453
  %v8585 = vunpack.c.l.b16 %v8454
  %v8586 = vunpack.c.h.b16 %v8454
  %v8587 = vunpack.c.l.b16 %v8455
  %v8588 = vunpack.c.h.b16 %v8455
  %v8589 = vunpack.c.l.b16 %v8456
  %v8590 = vunpack.c.h.b16 %v8456
  %v8591 = vunpack.c.l.b16 %v8457
  %v8592 = vunpack.c.h.b16 %v8457
  %v8593 = vunpack.c.l.b16 %v8458
  %v8594 = vunpack.c.h.b16 %v8458
  %v8595 = vunpack.c.l.b16 %v8459
  %v8596 = vunpack.c.h.b16 %v8459
  %v8597 = vunpack.c.l.b16 %v8460
  %v8598 = vunpack.c.h.b16 %v8460
  %v8599 = vunpack.c.l.b16 %v8461
  %v8600 = vunpack.c.h.b16 %v8461
  %v8601 = vunpack.c.l.b16 %v8462
  %v8602 = vunpack.c.h.b16 %v8462
  %v8603 = vunpack.c.l.b16 %v8463
  %v8604 = vunpack.c.h.b16 %v8463
  %v8605 = vunpack.c.l.b16 %v8464
  %v8606 = vunpack.c.h.b16 %v8464
  %v8607 = vunpack.c.l.b16 %v8465
  %v8608 = vunpack.c.h.b16 %v8465
  %v8609 = vunpack.c.l.b16 %v8466
  %v8610 = vunpack.c.h.b16 %v8466
  %v8611 = vunpack.c.l.b16 %v8467
  %v8612 = vunpack.c.h.b16 %v8467
  %v8613 = vunpack.c.l.b16 %v8468
  %v8614 = vunpack.c.h.b16 %v8468
  %v8615 = vunpack.c.l.b16 %v8469
  %v8616 = vunpack.c.h.b16 %v8469
  %v8617 = vunpack.c.l.b16 %v8470
  %v8618 = vunpack.c.h.b16 %v8470
  %v8619 = vunpack.c.l.b16 %v8471
  %v8620 = vunpack.c.h.b16 %v8471
  %v8621 = vunpack.c.l.b16 %v8472
  %v8622 = vunpack.c.h.b16 %v8472
  %v8623 = vunpack.c.l.b16 %v8473
  %v8624 = vunpack.c.h.b16 %v8473
  %v8625 = vunpack.c.l.b16 %v8474
  %v8626 = vunpack.c.h.b16 %v8474
  %v8627 = vunpack.c.l.b16 %v8475
  %v8628 = vunpack.c.h.b16 %v8475
  %v8629 = vunpack.c.l.b16 %v8476
  %v8630 = vunpack.c.h.b16 %v8476
  %v8631 = vunpack.c.l.b16 %v8477
  %v8632 = vunpack.c.h.b16 %v8477
  %v8633 = vunpack.c.l.b16 %v8478
  %v8634 = vunpack.c.h.b16 %v8478
  %v8635 = vunpack.c.l.b16 %v8479
  %v8636 = vunpack.c.h.b16 %v8479
  %v8637 = vunpack.c.l.b16 %v8480
  %v8638 = vunpack.c.h.b16 %v8480
  %v8639 = vunpack.c.l.b16 %v8481
  %v8640 = vunpack.c.h.b16 %v8481
  %v8641 = vunpack.c.l.b16 %v8482
  %v8642 = vunpack.c.h.b16 %v8482
  %v8643 = vunpack.c.l.b16 %v8483
  %v8644 = vunpack.c.h.b16 %v8483
  %v8645 = vunpack.c.l.b16 %v8484
  %v8646 = vunpack.c.h.b16 %v8484
  %v8647 = vunpack.c.l.b16 %v8485
  %v8648 = vunpack.c.h.b16 %v8485
  %v8649 = vunpack.c.l.b16 %v8486
  %v8650 = vunpack.c.h.b16 %v8486
  %v8651 = vunpack.c.l.b16 %v8487
  %v8652 = vunpack.c.h.b16 %v8487
  %v8653 = vpack.c.b16 %v8549, %v8547
  %v8654 = vpack.c.b16 %v8550, %v8548
  %v8655 = vpack.c.b16 %v8553, %v8551
  %v8656 = vpack.c.b16 %v8554, %v8552
  %v8657 = vpack.c.b16 %v8557, %v8555
  %v8658 = vpack.c.b16 %v8558, %v8556
  %v8659 = vpack.c.b16 %v8561, %v8559
  %v8660 = vpack.c.b16 %v8562, %v8560
  %v8661 = vpack.c.b16 %v8565, %v8563
  %v8662 = vpack.c.b16 %v8566, %v8564
  %v8663 = vpack.c.b16 %v8569, %v8567
  %v8664 = vpack.c.b16 %v8570, %v8568
  %v8665 = vpack.c.b16 %v8573, %v8571
  %v8666 = vpack.c.b16 %v8574, %v8572
  %v8667 = vpack.c.b16 %v8577, %v8575
  %v8668 = vpack.c.b16 %v8578, %v8576
  %v8669 = vpack.c.b16 %v8581, %v8579
  %v8670 = vpack.c.b16 %v8582, %v8580
  %v8671 = vpack.c.b16 %v8585, %v8583
  %v8672 = vpack.c.b16 %v8586, %v8584
  %v8673 = vpack.c.b16 %v8589, %v8587
  %v8674 = vpack.c.b16 %v8590, %v8588
  %v8675 = vpack.c.b16 %v8593, %v8591
  %v8676 = vpack.c.b16 %v8594, %v8592
  %v8677 = vpack.c.b16 %v8597, %v8595
  %v8678 = vpack.c.b16 %v8598, %v8596
  %v8679 = vpack.c.b16 %v8601, %v8599
  %v8680 = vpack.c.b16 %v8602, %v8600
  %v8681 = vpack.c.b16 %v8605, %v8603
  %v8682 = vpack.c.b16 %v8606, %v8604
  %v8683 = vpack.c.b16 %v8609, %v8607
  %v8684 = vpack.c.b16 %v8610, %v8608
  %v8685 = vpack.c.b16 %v8613, %v8611
  %v8686 = vpack.c.b16 %v8614, %v8612
  %v8687 = vpack.c.b16 %v8617, %v8615
  %v8688 = vpack.c.b16 %v8618, %v8616
  %v8689 = vpack.c.b16 %v8621, %v8619
  %v8690 = vpack.c.b16 %v8622, %v8620
  %v8691 = vpack.c.b16 %v8625, %v8623
  %v8692 = vpack.c.b16 %v8626, %v8624
  %v8693 = vpack.c.b16 %v8629, %v8627
  %v8694 = vpack.c.b16 %v8630, %v8628
  %v8695 = vpack.c.b16 %v8633, %v8631
  %v8696 = vpack.c.b16 %v8634, %v8632
  %v8697 = vpack.c.b16 %v8637, %v8635
  %v8698 = vpack.c.b16 %v8638, %v8636
  %v8699 = vpack.c.b16 %v8641, %v8639
  %v8700 = vpack.c.b16 %v8642, %v8640
  %v8701 = vpack.c.b16 %v8645, %v8643
  %v8702 = vpack.c.b16 %v8646, %v8644
  %v8703 = vpack.c.b16 %v8649, %v8647
  %v8704 = vpack.c.b16 %v8650, %v8648
  %v8705 = vpack.c.b16 %v8651, %v8651
  %v8706 = vpack.c.b16 %v8652, %v8652
  %v8759 = vsel %vm7268, %v8332, 0
  %v8761 = vsel %vm7268, %v8334, 0
  %v8763 = vsel %vm7268, %v8336, 0
  %v8765 = vsel %vm7268, %v8338, 0
  %v8767 = vsel %vm7268, %v8340, 0
  %v8769 = vsel %vm7268, %v8342, 0
  %v8771 = vsel %vm7268, %v8344, 0
  %v8773 = vsel %vm7268, %v8346, 0
  %v8776 = vsel %vm7285, %v8705, 0
  %v8779 = vsel %vm7285, %v8706, 0
  %8781 = vmatpush.bf16.msra.mxu0 %v8667
  %8782 = vmatpush.bf16.msra.mxu0 %v8665
  %8783 = vmatpush.bf16.msra.mxu0 %v8663
  %8784 = vmatpush.bf16.msra.mxu0 %v8661
  %8785 = vmatpush.bf16.msra.mxu0 %v8659
  %8786 = vmatpush.bf16.msra.mxu0 %v8657
  %8787 = vmatpush.bf16.msra.mxu0 %v8655
  %8788 = vmatpush.bf16.msra.mxu0 %v8653
  %8789 = vmatmul.bf16.gmra.mxu0 %v8348
  %v8790 = vpop.f32.mrf.mxu0
  %v8791 = vadd.f32 %v8490, %v8790
  %v8792 = vpop.f32.mrf.mxu0
  %v8793 = vadd.f32 %v8490, %v8792
  %8794 = vmatmul.bf16.gmra.mxu0 %v8351
  %v8795 = vpop.f32.mrf.mxu0
  %v8796 = vadd.f32 %v8490, %v8795
  %v8797 = vpop.f32.mrf.mxu0
  %v8798 = vadd.f32 %v8490, %v8797
  %8799 = vmatmul.bf16.gmra.mxu0 %v8354
  %v8800 = vpop.f32.mrf.mxu0
  %v8801 = vadd.f32 %v8490, %v8800
  %v8802 = vpop.f32.mrf.mxu0
  %v8803 = vadd.f32 %v8490, %v8802
  %8804 = vmatmul.bf16.gmra.mxu0 %v8357
  %v8805 = vpop.f32.mrf.mxu0
  %v8806 = vadd.f32 %v8490, %v8805
  %v8807 = vpop.f32.mrf.mxu0
  %v8808 = vadd.f32 %v8490, %v8807
  %8809 = vmatmul.bf16.gmra.mxu0 %v8360
  %v8810 = vpop.f32.mrf.mxu0
  %v8811 = vadd.f32 %v8490, %v8810
  %v8812 = vpop.f32.mrf.mxu0
  %v8813 = vadd.f32 %v8490, %v8812
  %8814 = vmatmul.bf16.gmra.mxu0 %v8363
  %v8815 = vpop.f32.mrf.mxu0
  %v8816 = vadd.f32 %v8490, %v8815
  %v8817 = vpop.f32.mrf.mxu0
  %v8818 = vadd.f32 %v8490, %v8817
  %8819 = vmatmul.bf16.gmra.mxu0 %v8366
  %v8820 = vpop.f32.mrf.mxu0
  %v8821 = vadd.f32 %v8490, %v8820
  %v8822 = vpop.f32.mrf.mxu0
  %v8823 = vadd.f32 %v8490, %v8822
  %8824 = vmatmul.bf16.gmra.mxu0 %v8369
  %v8825 = vpop.f32.mrf.mxu0
  %v8826 = vadd.f32 %v8490, %v8825
  %v8827 = vpop.f32.mrf.mxu0
  %v8828 = vadd.f32 %v8490, %v8827
  %8829 = vdwg.mxu0
  %8830 = vmatpush.bf16.msra.mxu0 %v8683
  %8831 = vmatpush.bf16.msra.mxu0 %v8681
  %8832 = vmatpush.bf16.msra.mxu0 %v8679
  %8833 = vmatpush.bf16.msra.mxu0 %v8677
  %8834 = vmatpush.bf16.msra.mxu0 %v8675
  %8835 = vmatpush.bf16.msra.mxu0 %v8673
  %8836 = vmatpush.bf16.msra.mxu0 %v8671
  %8837 = vmatpush.bf16.msra.mxu0 %v8669
  %8838 = vmatmul.bf16.gmra.mxu0 %v8388
  %v8839 = vpop.f32.mrf.mxu0
  %v8840 = vadd.f32 %v8791, %v8839
  %v8841 = vpop.f32.mrf.mxu0
  %v8842 = vadd.f32 %v8793, %v8841
  %8843 = vmatmul.bf16.gmra.mxu0 %v8391
  %v8844 = vpop.f32.mrf.mxu0
  %v8845 = vadd.f32 %v8796, %v8844
  %v8846 = vpop.f32.mrf.mxu0
  %v8847 = vadd.f32 %v8798, %v8846
  %8848 = vmatmul.bf16.gmra.mxu0 %v8394
  %v8849 = vpop.f32.mrf.mxu0
  %v8850 = vadd.f32 %v8801, %v8849
  %v8851 = vpop.f32.mrf.mxu0
  %v8852 = vadd.f32 %v8803, %v8851
  %8853 = vmatmul.bf16.gmra.mxu0 %v8397
  %v8854 = vpop.f32.mrf.mxu0
  %v8855 = vadd.f32 %v8806, %v8854
  %v8856 = vpop.f32.mrf.mxu0
  %v8857 = vadd.f32 %v8808, %v8856
  %8858 = vmatmul.bf16.gmra.mxu0 %v8400
  %v8859 = vpop.f32.mrf.mxu0
  %v8860 = vadd.f32 %v8811, %v8859
  %v8861 = vpop.f32.mrf.mxu0
  %v8862 = vadd.f32 %v8813, %v8861
  %8863 = vmatmul.bf16.gmra.mxu0 %v8403
  %v8864 = vpop.f32.mrf.mxu0
  %v8865 = vadd.f32 %v8816, %v8864
  %v8866 = vpop.f32.mrf.mxu0
  %v8867 = vadd.f32 %v8818, %v8866
  %8868 = vmatmul.bf16.gmra.mxu0 %v8406
  %v8869 = vpop.f32.mrf.mxu0
  %v8870 = vadd.f32 %v8821, %v8869
  %v8871 = vpop.f32.mrf.mxu0
  %v8872 = vadd.f32 %v8823, %v8871
  %8873 = vmatmul.bf16.gmra.mxu0 %v8409
  %v8874 = vpop.f32.mrf.mxu0
  %v8875 = vadd.f32 %v8826, %v8874
  %v8876 = vpop.f32.mrf.mxu0
  %v8877 = vadd.f32 %v8828, %v8876
  %8878 = vdwg.mxu0
  %8879 = vmatpush.bf16.msra.mxu0 %v8699
  %8880 = vmatpush.bf16.msra.mxu0 %v8697
  %8881 = vmatpush.bf16.msra.mxu0 %v8695
  %8882 = vmatpush.bf16.msra.mxu0 %v8693
  %8883 = vmatpush.bf16.msra.mxu0 %v8691
  %8884 = vmatpush.bf16.msra.mxu0 %v8689
  %8885 = vmatpush.bf16.msra.mxu0 %v8687
  %8886 = vmatpush.bf16.msra.mxu0 %v8685
  %8887 = vmatmul.bf16.gmra.mxu0 %v8412
  %v8888 = vpop.f32.mrf.mxu0
  %v8889 = vadd.f32 %v8840, %v8888
  %v8890 = vpop.f32.mrf.mxu0
  %v8891 = vadd.f32 %v8842, %v8890
  %8892 = vmatmul.bf16.gmra.mxu0 %v8415
  %v8893 = vpop.f32.mrf.mxu0
  %v8894 = vadd.f32 %v8845, %v8893
  %v8895 = vpop.f32.mrf.mxu0
  %v8896 = vadd.f32 %v8847, %v8895
  %8897 = vmatmul.bf16.gmra.mxu0 %v8418
  %v8898 = vpop.f32.mrf.mxu0
  %v8899 = vadd.f32 %v8850, %v8898
  %v8900 = vpop.f32.mrf.mxu0
  %v8901 = vadd.f32 %v8852, %v8900
  %8902 = vmatmul.bf16.gmra.mxu0 %v8421
  %v8903 = vpop.f32.mrf.mxu0
  %v8904 = vadd.f32 %v8855, %v8903
  %v8905 = vpop.f32.mrf.mxu0
  %v8906 = vadd.f32 %v8857, %v8905
  %8907 = vmatmul.bf16.gmra.mxu0 %v8424
  %v8908 = vpop.f32.mrf.mxu0
  %v8909 = vadd.f32 %v8860, %v8908
  %v8910 = vpop.f32.mrf.mxu0
  %v8911 = vadd.f32 %v8862, %v8910
  %8912 = vmatmul.bf16.gmra.mxu0 %v8427
  %v8913 = vpop.f32.mrf.mxu0
  %v8914 = vadd.f32 %v8865, %v8913
  %v8915 = vpop.f32.mrf.mxu0
  %v8916 = vadd.f32 %v8867, %v8915
  %8917 = vmatmul.bf16.gmra.mxu0 %v8430
  %v8918 = vpop.f32.mrf.mxu0
  %v8919 = vadd.f32 %v8870, %v8918
  %v8920 = vpop.f32.mrf.mxu0
  %v8921 = vadd.f32 %v8872, %v8920
  %8922 = vmatmul.bf16.gmra.mxu0 %v8433
  %v8923 = vpop.f32.mrf.mxu0
  %v8924 = vadd.f32 %v8875, %v8923
  %v8925 = vpop.f32.mrf.mxu0
  %v8926 = vadd.f32 %v8877, %v8925
  %8927 = vdwg.mxu0
  %8928 = vmatpush.bf16.msra.mxu0 0
  %8929 = vmatpush.bf16.msra.mxu0 0
  %8930 = vmatpush.bf16.msra.mxu0 0
  %8931 = vmatpush.bf16.msra.mxu0 0
  %8932 = vmatpush.bf16.msra.mxu0 0
  %8933 = vmatpush.bf16.msra.mxu0 %v8776
  %8934 = vmatpush.bf16.msra.mxu0 %v8703
  %8935 = vmatpush.bf16.msra.mxu0 %v8701
  %8936 = vmatmul.bf16.gmra.mxu0 %v8759
  %v8937 = vpop.f32.mrf.mxu0
  %v8938 = vadd.f32 %v8889, %v8937
  %v8939 = vpop.f32.mrf.mxu0
  %v8940 = vadd.f32 %v8891, %v8939
  %8941 = vmatmul.bf16.gmra.mxu0 %v8761
  %v8942 = vpop.f32.mrf.mxu0
  %v8943 = vadd.f32 %v8894, %v8942
  %v8944 = vpop.f32.mrf.mxu0
  %v8945 = vadd.f32 %v8896, %v8944
  %8946 = vmatmul.bf16.gmra.mxu0 %v8763
  %v8947 = vpop.f32.mrf.mxu0
  %v8948 = vadd.f32 %v8899, %v8947
  %v8949 = vpop.f32.mrf.mxu0
  %v8950 = vadd.f32 %v8901, %v8949
  %8951 = vmatmul.bf16.gmra.mxu0 %v8765
  %v8952 = vpop.f32.mrf.mxu0
  %v8953 = vadd.f32 %v8904, %v8952
  %v8954 = vpop.f32.mrf.mxu0
  %v8955 = vadd.f32 %v8906, %v8954
  %8956 = vmatmul.bf16.gmra.mxu0 %v8767
  %v8957 = vpop.f32.mrf.mxu0
  %v8958 = vadd.f32 %v8909, %v8957
  %v8959 = vpop.f32.mrf.mxu0
  %v8960 = vadd.f32 %v8911, %v8959
  %8961 = vmatmul.bf16.gmra.mxu0 %v8769
  %v8962 = vpop.f32.mrf.mxu0
  %v8963 = vadd.f32 %v8914, %v8962
  %v8964 = vpop.f32.mrf.mxu0
  %v8965 = vadd.f32 %v8916, %v8964
  %8966 = vmatmul.bf16.gmra.mxu0 %v8771
  %v8967 = vpop.f32.mrf.mxu0
  %v8968 = vadd.f32 %v8919, %v8967
  %v8969 = vpop.f32.mrf.mxu0
  %v8970 = vadd.f32 %v8921, %v8969
  %8971 = vmatmul.bf16.gmra.mxu0 %v8773
  %v8972 = vpop.f32.mrf.mxu0
  %v8973 = vadd.f32 %v8924, %v8972
  %v8974 = vpop.f32.mrf.mxu0
  %v8975 = vadd.f32 %v8926, %v8974
  %8976 = vdwg.mxu0
  %8977 = vmatpush.bf16.msra.mxu0 %v8668
  %8978 = vmatpush.bf16.msra.mxu0 %v8666
  %8979 = vmatpush.bf16.msra.mxu0 %v8664
  %8980 = vmatpush.bf16.msra.mxu0 %v8662
  %8981 = vmatpush.bf16.msra.mxu0 %v8660
  %8982 = vmatpush.bf16.msra.mxu0 %v8658
  %8983 = vmatpush.bf16.msra.mxu0 %v8656
  %8984 = vmatpush.bf16.msra.mxu0 %v8654
  %8985 = vmatmul.bf16.gmra.mxu0 %v8348
  %v8986 = vpop.f32.mrf.mxu0
  %v8987 = vadd.f32 %v8491, %v8986
  %v8988 = vpop.f32.mrf.mxu0
  %v8989 = vadd.f32 %v8491, %v8988
  %8990 = vmatmul.bf16.gmra.mxu0 %v8351
  %v8991 = vpop.f32.mrf.mxu0
  %v8992 = vadd.f32 %v8491, %v8991
  %v8993 = vpop.f32.mrf.mxu0
  %v8994 = vadd.f32 %v8491, %v8993
  %8995 = vmatmul.bf16.gmra.mxu0 %v8354
  %v8996 = vpop.f32.mrf.mxu0
  %v8997 = vadd.f32 %v8491, %v8996
  %v8998 = vpop.f32.mrf.mxu0
  %v8999 = vadd.f32 %v8491, %v8998
  %9000 = vmatmul.bf16.gmra.mxu0 %v8357
  %v9001 = vpop.f32.mrf.mxu0
  %v9002 = vadd.f32 %v8491, %v9001
  %v9003 = vpop.f32.mrf.mxu0
  %v9004 = vadd.f32 %v8491, %v9003
  %9005 = vmatmul.bf16.gmra.mxu0 %v8360
  %v9006 = vpop.f32.mrf.mxu0
  %v9007 = vadd.f32 %v8491, %v9006
  %v9008 = vpop.f32.mrf.mxu0
  %v9009 = vadd.f32 %v8491, %v9008
  %9010 = vmatmul.bf16.gmra.mxu0 %v8363
  %v9011 = vpop.f32.mrf.mxu0
  %v9012 = vadd.f32 %v8491, %v9011
  %v9013 = vpop.f32.mrf.mxu0
  %v9014 = vadd.f32 %v8491, %v9013
  %9015 = vmatmul.bf16.gmra.mxu0 %v8366
  %v9016 = vpop.f32.mrf.mxu0
  %v9017 = vadd.f32 %v8491, %v9016
  %v9018 = vpop.f32.mrf.mxu0
  %v9019 = vadd.f32 %v8491, %v9018
  %9020 = vmatmul.bf16.gmra.mxu0 %v8369
  %v9021 = vpop.f32.mrf.mxu0
  %v9022 = vadd.f32 %v8491, %v9021
  %v9023 = vpop.f32.mrf.mxu0
  %v9024 = vadd.f32 %v8491, %v9023
  %9025 = vdwg.mxu0
  %9026 = vmatpush.bf16.msra.mxu0 %v8684
  %9027 = vmatpush.bf16.msra.mxu0 %v8682
  %9028 = vmatpush.bf16.msra.mxu0 %v8680
  %9029 = vmatpush.bf16.msra.mxu0 %v8678
  %9030 = vmatpush.bf16.msra.mxu0 %v8676
  %9031 = vmatpush.bf16.msra.mxu0 %v8674
  %9032 = vmatpush.bf16.msra.mxu0 %v8672
  %9033 = vmatpush.bf16.msra.mxu0 %v8670
  %9034 = vmatmul.bf16.gmra.mxu0 %v8388
  %v9035 = vpop.f32.mrf.mxu0
  %v9036 = vadd.f32 %v8987, %v9035
  %v9037 = vpop.f32.mrf.mxu0
  %v9038 = vadd.f32 %v8989, %v9037
  %9039 = vmatmul.bf16.gmra.mxu0 %v8391
  %v9040 = vpop.f32.mrf.mxu0
  %v9041 = vadd.f32 %v8992, %v9040
  %v9042 = vpop.f32.mrf.mxu0
  %v9043 = vadd.f32 %v8994, %v9042
  %9044 = vmatmul.bf16.gmra.mxu0 %v8394
  %v9045 = vpop.f32.mrf.mxu0
  %v9046 = vadd.f32 %v8997, %v9045
  %v9047 = vpop.f32.mrf.mxu0
  %v9048 = vadd.f32 %v8999, %v9047
  %9049 = vmatmul.bf16.gmra.mxu0 %v8397
  %v9050 = vpop.f32.mrf.mxu0
  %v9051 = vadd.f32 %v9002, %v9050
  %v9052 = vpop.f32.mrf.mxu0
  %v9053 = vadd.f32 %v9004, %v9052
  %9054 = vmatmul.bf16.gmra.mxu0 %v8400
  %v9055 = vpop.f32.mrf.mxu0
  %v9056 = vadd.f32 %v9007, %v9055
  %v9057 = vpop.f32.mrf.mxu0
  %v9058 = vadd.f32 %v9009, %v9057
  %9059 = vmatmul.bf16.gmra.mxu0 %v8403
  %v9060 = vpop.f32.mrf.mxu0
  %v9061 = vadd.f32 %v9012, %v9060
  %v9062 = vpop.f32.mrf.mxu0
  %v9063 = vadd.f32 %v9014, %v9062
  %9064 = vmatmul.bf16.gmra.mxu0 %v8406
  %v9065 = vpop.f32.mrf.mxu0
  %v9066 = vadd.f32 %v9017, %v9065
  %v9067 = vpop.f32.mrf.mxu0
  %v9068 = vadd.f32 %v9019, %v9067
  %9069 = vmatmul.bf16.gmra.mxu0 %v8409
  %v9070 = vpop.f32.mrf.mxu0
  %v9071 = vadd.f32 %v9022, %v9070
  %v9072 = vpop.f32.mrf.mxu0
  %v9073 = vadd.f32 %v9024, %v9072
  %9074 = vdwg.mxu0
  %9075 = vmatpush.bf16.msra.mxu0 %v8700
  %9076 = vmatpush.bf16.msra.mxu0 %v8698
  %9077 = vmatpush.bf16.msra.mxu0 %v8696
  %9078 = vmatpush.bf16.msra.mxu0 %v8694
  %9079 = vmatpush.bf16.msra.mxu0 %v8692
  %9080 = vmatpush.bf16.msra.mxu0 %v8690
  %9081 = vmatpush.bf16.msra.mxu0 %v8688
  %9082 = vmatpush.bf16.msra.mxu0 %v8686
  %9083 = vmatmul.bf16.gmra.mxu0 %v8412
  %v9084 = vpop.f32.mrf.mxu0
  %v9085 = vadd.f32 %v9036, %v9084
  %v9086 = vpop.f32.mrf.mxu0
  %v9087 = vadd.f32 %v9038, %v9086
  %9088 = vmatmul.bf16.gmra.mxu0 %v8415
  %v9089 = vpop.f32.mrf.mxu0
  %v9090 = vadd.f32 %v9041, %v9089
  %v9091 = vpop.f32.mrf.mxu0
  %v9092 = vadd.f32 %v9043, %v9091
  %9093 = vmatmul.bf16.gmra.mxu0 %v8418
  %v9094 = vpop.f32.mrf.mxu0
  %v9095 = vadd.f32 %v9046, %v9094
  %v9096 = vpop.f32.mrf.mxu0
  %v9097 = vadd.f32 %v9048, %v9096
  %9098 = vmatmul.bf16.gmra.mxu0 %v8421
  %v9099 = vpop.f32.mrf.mxu0
  %v9100 = vadd.f32 %v9051, %v9099
  %v9101 = vpop.f32.mrf.mxu0
  %v9102 = vadd.f32 %v9053, %v9101
  %9103 = vmatmul.bf16.gmra.mxu0 %v8424
  %v9104 = vpop.f32.mrf.mxu0
  %v9105 = vadd.f32 %v9056, %v9104
  %v9106 = vpop.f32.mrf.mxu0
  %v9107 = vadd.f32 %v9058, %v9106
  %9108 = vmatmul.bf16.gmra.mxu0 %v8427
  %v9109 = vpop.f32.mrf.mxu0
  %v9110 = vadd.f32 %v9061, %v9109
  %v9111 = vpop.f32.mrf.mxu0
  %v9112 = vadd.f32 %v9063, %v9111
  %9113 = vmatmul.bf16.gmra.mxu0 %v8430
  %v9114 = vpop.f32.mrf.mxu0
  %v9115 = vadd.f32 %v9066, %v9114
  %v9116 = vpop.f32.mrf.mxu0
  %v9117 = vadd.f32 %v9068, %v9116
  %9118 = vmatmul.bf16.gmra.mxu0 %v8433
  %v9119 = vpop.f32.mrf.mxu0
  %v9120 = vadd.f32 %v9071, %v9119
  %v9121 = vpop.f32.mrf.mxu0
  %v9122 = vadd.f32 %v9073, %v9121
  %9123 = vdwg.mxu0
  %9124 = vmatpush.bf16.msra.mxu0 0
  %9125 = vmatpush.bf16.msra.mxu0 0
  %9126 = vmatpush.bf16.msra.mxu0 0
  %9127 = vmatpush.bf16.msra.mxu0 0
  %9128 = vmatpush.bf16.msra.mxu0 0
  %9129 = vmatpush.bf16.msra.mxu0 %v8779
  %9130 = vmatpush.bf16.msra.mxu0 %v8704
  %9131 = vmatpush.bf16.msra.mxu0 %v8702
  %9132 = vmatmul.bf16.gmra.mxu0 %v8759
  %v9133 = vpop.f32.mrf.mxu0
  %v9134 = vadd.f32 %v9085, %v9133
  %v9135 = vpop.f32.mrf.mxu0
  %v9136 = vadd.f32 %v9087, %v9135
  %9137 = vmatmul.bf16.gmra.mxu0 %v8761
  %v9138 = vpop.f32.mrf.mxu0
  %v9139 = vadd.f32 %v9090, %v9138
  %v9140 = vpop.f32.mrf.mxu0
  %v9141 = vadd.f32 %v9092, %v9140
  %9142 = vmatmul.bf16.gmra.mxu0 %v8763
  %v9143 = vpop.f32.mrf.mxu0
  %v9144 = vadd.f32 %v9095, %v9143
  %v9145 = vpop.f32.mrf.mxu0
  %v9146 = vadd.f32 %v9097, %v9145
  %9147 = vmatmul.bf16.gmra.mxu0 %v8765
  %v9148 = vpop.f32.mrf.mxu0
  %v9149 = vadd.f32 %v9100, %v9148
  %v9150 = vpop.f32.mrf.mxu0
  %v9151 = vadd.f32 %v9102, %v9150
  %9152 = vmatmul.bf16.gmra.mxu0 %v8767
  %v9153 = vpop.f32.mrf.mxu0
  %v9154 = vadd.f32 %v9105, %v9153
  %v9155 = vpop.f32.mrf.mxu0
  %v9156 = vadd.f32 %v9107, %v9155
  %9157 = vmatmul.bf16.gmra.mxu0 %v8769
  %v9158 = vpop.f32.mrf.mxu0
  %v9159 = vadd.f32 %v9110, %v9158
  %v9160 = vpop.f32.mrf.mxu0
  %v9161 = vadd.f32 %v9112, %v9160
  %9162 = vmatmul.bf16.gmra.mxu0 %v8771
  %v9163 = vpop.f32.mrf.mxu0
  %v9164 = vadd.f32 %v9115, %v9163
  %v9165 = vpop.f32.mrf.mxu0
  %v9166 = vadd.f32 %v9117, %v9165
  %9167 = vmatmul.bf16.gmra.mxu0 %v8773
  %v9168 = vpop.f32.mrf.mxu0
  %v9169 = vadd.f32 %v9120, %v9168
  %v9170 = vpop.f32.mrf.mxu0
  %v9171 = vadd.f32 %v9122, %v9170
  %9172 = vdwg.mxu0
  %v9173 = vld [vmem:[%s7] sm:$0xff]
  %v9174 = vld [vmem:[%s7 + $0x8] sm:$0xff]
  %v9175 = vld [vmem:[%s7 + $0x10] sm:$0xff]
  %v9176 = vld [vmem:[%s7 + $0x18] sm:$0xff]
  %v9177 = vld [vmem:[%s7 + $0x20] sm:$0xff]
  %v9178 = vld [vmem:[%s7 + $0x28] sm:$0xff]
  %v9179 = vld [vmem:[%s7 + $0x30] sm:$0xff]
  %v9180 = vld [vmem:[%s7 + $0x38] sm:$0xff]
  %v9181 = vld [vmem:[%s7 + $0x40] sm:$0xff]
  %v9182 = vld [vmem:[%s7 + $0x48] sm:$0xff]
  %v9183 = vld [vmem:[%s7 + $0x50] sm:$0xff]
  %v9184 = vld [vmem:[%s7 + $0x58] sm:$0xff]
  %v9185 = vld [vmem:[%s7 + $0x60] sm:$0xff]
  %v9186 = vld [vmem:[%s7 + $0x68] sm:$0xff]
  %v9187 = vld [vmem:[%s7 + $0x70] sm:$0xff]
  %v9188 = vld [vmem:[%s7 + $0x78] sm:$0xff]
  %v9189 = vld [vmem:[%s7 + $0x80] sm:$0xff]
  %v9190 = vld [vmem:[%s7 + $0x88] sm:$0xff]
  %v9191 = vld [vmem:[%s7 + $0x90] sm:$0xff]
  %v9192 = vld [vmem:[%s7 + $0x98] sm:$0xff]
  %v9194 = vsel %vm243, %v9134, 0
  %v9197 = vsel %vm243, %v9136, 0
  %v9200 = vsel %vm243, %v9139, 0
  %v9203 = vsel %vm243, %v9141, 0
  %v9206 = vsel %vm243, %v9144, 0
  %v9209 = vsel %vm243, %v9146, 0
  %v9212 = vsel %vm243, %v9149, 0
  %v9215 = vsel %vm243, %v9151, 0
  %v9218 = vsel %vm243, %v9154, 0
  %v9221 = vsel %vm243, %v9156, 0
  %v9224 = vsel %vm243, %v9159, 0
  %v9227 = vsel %vm243, %v9161, 0
  %v9230 = vsel %vm243, %v9164, 0
  %v9233 = vsel %vm243, %v9166, 0
  %v9236 = vsel %vm243, %v9169, 0
  %v9239 = vsel %vm243, %v9171, 0
  %9241 = vmatpush.msra.mxu0 %v9188
  %9242 = vmatpush.msra.mxu0 %v9187
  %9243 = vmatpush.msra.mxu0 %v9186
  %9244 = vmatpush.msra.mxu0 %v9185
  %9245 = vmatpush.msra.mxu0 %v9184
  %9246 = vmatpush.msra.mxu0 %v9183
  %9247 = vmatpush.msra.mxu0 %v9182
  %9248 = vmatpush.msra.mxu0 %v9181
  %9249 = vmatpush.msra.mxu0 %v9180
  %9250 = vmatpush.msra.mxu0 %v9179
  %9251 = vmatpush.msra.mxu0 %v9178
  %9252 = vmatpush.msra.mxu0 %v9177
  %9253 = vmatpush.msra.mxu0 %v9176
  %9254 = vmatpush.msra.mxu0 %v9175
  %9255 = vmatpush.msra.mxu0 %v9174
  %9256 = vmatpush.msra.mxu0 %v9173
  %9257 = vmatmul.f32.gmra.mxu0 %v8938
  %v9258 = vpop.f32.mrf.mxu0
  %v9259 = vadd.f32 0.0, %v9258
  %9260 = vmatmul.f32.gmra.mxu0 %v8940
  %v9261 = vpop.f32.mrf.mxu0
  %v9262 = vadd.f32 0.0, %v9261
  %9263 = vmatmul.f32.gmra.mxu0 %v8943
  %v9264 = vpop.f32.mrf.mxu0
  %v9265 = vadd.f32 0.0, %v9264
  %9266 = vmatmul.f32.gmra.mxu0 %v8945
  %v9267 = vpop.f32.mrf.mxu0
  %v9268 = vadd.f32 0.0, %v9267
  %9269 = vmatmul.f32.gmra.mxu0 %v8948
  %v9270 = vpop.f32.mrf.mxu0
  %v9271 = vadd.f32 0.0, %v9270
  %9272 = vmatmul.f32.gmra.mxu0 %v8950
  %v9273 = vpop.f32.mrf.mxu0
  %v9274 = vadd.f32 0.0, %v9273
  %9275 = vmatmul.f32.gmra.mxu0 %v8953
  %v9276 = vpop.f32.mrf.mxu0
  %v9277 = vadd.f32 0.0, %v9276
  %9278 = vmatmul.f32.gmra.mxu0 %v8955
  %v9279 = vpop.f32.mrf.mxu0
  %v9280 = vadd.f32 0.0, %v9279
  %9281 = vmatmul.f32.gmra.mxu0 %v8958
  %v9282 = vpop.f32.mrf.mxu0
  %v9283 = vadd.f32 0.0, %v9282
  %9284 = vmatmul.f32.gmra.mxu0 %v8960
  %v9285 = vpop.f32.mrf.mxu0
  %v9286 = vadd.f32 0.0, %v9285
  %9287 = vmatmul.f32.gmra.mxu0 %v8963
  %v9288 = vpop.f32.mrf.mxu0
  %v9289 = vadd.f32 0.0, %v9288
  %9290 = vmatmul.f32.gmra.mxu0 %v8965
  %v9291 = vpop.f32.mrf.mxu0
  %v9292 = vadd.f32 0.0, %v9291
  %9293 = vmatmul.f32.gmra.mxu0 %v8968
  %v9294 = vpop.f32.mrf.mxu0
  %v9295 = vadd.f32 0.0, %v9294
  %9296 = vmatmul.f32.gmra.mxu0 %v8970
  %v9297 = vpop.f32.mrf.mxu0
  %v9298 = vadd.f32 0.0, %v9297
  %9299 = vmatmul.f32.gmra.mxu0 %v8973
  %v9300 = vpop.f32.mrf.mxu0
  %v9301 = vadd.f32 0.0, %v9300
  %9302 = vmatmul.f32.gmra.mxu0 %v8975
  %v9303 = vpop.f32.mrf.mxu0
  %v9304 = vadd.f32 0.0, %v9303
  %9305 = vdwg.mxu0
  %9306 = vmatpush.msra.mxu0 0.0
  %9307 = vmatpush.msra.mxu0 0.0
  %9308 = vmatpush.msra.mxu0 0.0
  %9309 = vmatpush.msra.mxu0 0.0
  %9310 = vmatpush.msra.mxu0 0.0
  %9311 = vmatpush.msra.mxu0 0.0
  %9312 = vmatpush.msra.mxu0 0.0
  %9313 = vmatpush.msra.mxu0 0.0
  %9314 = vmatpush.msra.mxu0 0.0
  %9315 = vmatpush.msra.mxu0 0.0
  %9316 = vmatpush.msra.mxu0 0.0
  %9317 = vmatpush.msra.mxu0 0.0
  %9318 = vmatpush.msra.mxu0 %v9192
  %9319 = vmatpush.msra.mxu0 %v9191
  %9320 = vmatpush.msra.mxu0 %v9190
  %9321 = vmatpush.msra.mxu0 %v9189
  %9322 = vmatmul.f32.gmra.mxu0 %v9194
  %v9323 = vpop.f32.mrf.mxu0
  %v9324 = vadd.f32 %v9259, %v9323
  %9325 = vmatmul.f32.gmra.mxu0 %v9197
  %v9326 = vpop.f32.mrf.mxu0
  %v9327 = vadd.f32 %v9262, %v9326
  %9328 = vmatmul.f32.gmra.mxu0 %v9200
  %v9329 = vpop.f32.mrf.mxu0
  %v9330 = vadd.f32 %v9265, %v9329
  %9331 = vmatmul.f32.gmra.mxu0 %v9203
  %v9332 = vpop.f32.mrf.mxu0
  %v9333 = vadd.f32 %v9268, %v9332
  %9334 = vmatmul.f32.gmra.mxu0 %v9206
  %v9335 = vpop.f32.mrf.mxu0
  %v9336 = vadd.f32 %v9271, %v9335
  %9337 = vmatmul.f32.gmra.mxu0 %v9209
  %v9338 = vpop.f32.mrf.mxu0
  %v9339 = vadd.f32 %v9274, %v9338
  %9340 = vmatmul.f32.gmra.mxu0 %v9212
  %v9341 = vpop.f32.mrf.mxu0
  %v9342 = vadd.f32 %v9277, %v9341
  %9343 = vmatmul.f32.gmra.mxu0 %v9215
  %v9344 = vpop.f32.mrf.mxu0
  %v9345 = vadd.f32 %v9280, %v9344
  %9346 = vmatmul.f32.gmra.mxu0 %v9218
  %v9347 = vpop.f32.mrf.mxu0
  %v9348 = vadd.f32 %v9283, %v9347
  %9349 = vmatmul.f32.gmra.mxu0 %v9221
  %v9350 = vpop.f32.mrf.mxu0
  %v9351 = vadd.f32 %v9286, %v9350
  %9352 = vmatmul.f32.gmra.mxu0 %v9224
  %v9353 = vpop.f32.mrf.mxu0
  %v9354 = vadd.f32 %v9289, %v9353
  %9355 = vmatmul.f32.gmra.mxu0 %v9227
  %v9356 = vpop.f32.mrf.mxu0
  %v9357 = vadd.f32 %v9292, %v9356
  %9358 = vmatmul.f32.gmra.mxu0 %v9230
  %v9359 = vpop.f32.mrf.mxu0
  %v9360 = vadd.f32 %v9295, %v9359
  %9361 = vmatmul.f32.gmra.mxu0 %v9233
  %v9362 = vpop.f32.mrf.mxu0
  %v9363 = vadd.f32 %v9298, %v9362
  %9364 = vmatmul.f32.gmra.mxu0 %v9236
  %v9365 = vpop.f32.mrf.mxu0
  %v9366 = vadd.f32 %v9301, %v9365
  %9367 = vmatmul.f32.gmra.mxu0 %v9239
  %v9368 = vpop.f32.mrf.mxu0
  %v9369 = vadd.f32 %v9304, %v9368
  %9370 = vdwg.mxu0
  %v9371 = vld [vmem:[%s8] sm:$0xff]
  %v9372 = vld [vmem:[%s8 + $0x8] sm:$0xff]
  %v9373 = vld [vmem:[%s8 + $0x10] sm:$0xff]
  %v9374 = vld [vmem:[%s8 + $0x18] sm:$0xff]
  %v9375 = vld [vmem:[%s8 + $0x20] sm:$0xff]
  %v9376 = vld [vmem:[%s8 + $0x28] sm:$0xff]
  %v9377 = vld [vmem:[%s8 + $0x30] sm:$0xff]
  %v9378 = vld [vmem:[%s8 + $0x38] sm:$0xff]
  %v9379 = vld [vmem:[%s8 + $0x40] sm:$0xff]
  %v9380 = vld [vmem:[%s8 + $0x48] sm:$0xff]
  %v9381 = vld [vmem:[%s8 + $0x50] sm:$0xff]
  %v9382 = vld [vmem:[%s8 + $0x58] sm:$0xff]
  %v9383 = vld [vmem:[%s8 + $0x60] sm:$0xff]
  %v9384 = vld [vmem:[%s8 + $0x68] sm:$0xff]
  %v9385 = vld [vmem:[%s8 + $0x70] sm:$0xff]
  %v9386 = vld [vmem:[%s8 + $0x78] sm:$0xff]
  %v9387 = vld [vmem:[%s8 + $0x80] sm:$0xff]
  %v9388 = vld [vmem:[%s8 + $0x88] sm:$0xff]
  %v9389 = vld [vmem:[%s8 + $0x90] sm:$0xff]
  %v9390 = vld [vmem:[%s8 + $0x98] sm:$0xff]
  %9391 = vmatpush.msra.mxu0 %v9386
  %9392 = vmatpush.msra.mxu0 %v9385
  %9393 = vmatpush.msra.mxu0 %v9384
  %9394 = vmatpush.msra.mxu0 %v9383
  %9395 = vmatpush.msra.mxu0 %v9382
  %9396 = vmatpush.msra.mxu0 %v9381
  %9397 = vmatpush.msra.mxu0 %v9380
  %9398 = vmatpush.msra.mxu0 %v9379
  %9399 = vmatpush.msra.mxu0 %v9378
  %9400 = vmatpush.msra.mxu0 %v9377
  %9401 = vmatpush.msra.mxu0 %v9376
  %9402 = vmatpush.msra.mxu0 %v9375
  %9403 = vmatpush.msra.mxu0 %v9374
  %9404 = vmatpush.msra.mxu0 %v9373
  %9405 = vmatpush.msra.mxu0 %v9372
  %9406 = vmatpush.msra.mxu0 %v9371
  %9407 = vmatmul.f32.gmra.mxu0 %v8938
  %v9408 = vpop.f32.mrf.mxu0
  %v9409 = vadd.f32 0.0, %v9408
  %9410 = vmatmul.f32.gmra.mxu0 %v8940
  %v9411 = vpop.f32.mrf.mxu0
  %v9412 = vadd.f32 0.0, %v9411
  %9413 = vmatmul.f32.gmra.mxu0 %v8943
  %v9414 = vpop.f32.mrf.mxu0
  %v9415 = vadd.f32 0.0, %v9414
  %9416 = vmatmul.f32.gmra.mxu0 %v8945
  %v9417 = vpop.f32.mrf.mxu0
  %v9418 = vadd.f32 0.0, %v9417
  %9419 = vmatmul.f32.gmra.mxu0 %v8948
  %v9420 = vpop.f32.mrf.mxu0
  %v9421 = vadd.f32 0.0, %v9420
  %9422 = vmatmul.f32.gmra.mxu0 %v8950
  %v9423 = vpop.f32.mrf.mxu0
  %v9424 = vadd.f32 0.0, %v9423
  %9425 = vmatmul.f32.gmra.mxu0 %v8953
  %v9426 = vpop.f32.mrf.mxu0
  %v9427 = vadd.f32 0.0, %v9426
  %9428 = vmatmul.f32.gmra.mxu0 %v8955
  %v9429 = vpop.f32.mrf.mxu0
  %v9430 = vadd.f32 0.0, %v9429
  %9431 = vmatmul.f32.gmra.mxu0 %v8958
  %v9432 = vpop.f32.mrf.mxu0
  %v9433 = vadd.f32 0.0, %v9432
  %9434 = vmatmul.f32.gmra.mxu0 %v8960
  %v9435 = vpop.f32.mrf.mxu0
  %v9436 = vadd.f32 0.0, %v9435
  %9437 = vmatmul.f32.gmra.mxu0 %v8963
  %v9438 = vpop.f32.mrf.mxu0
  %v9439 = vadd.f32 0.0, %v9438
  %9440 = vmatmul.f32.gmra.mxu0 %v8965
  %v9441 = vpop.f32.mrf.mxu0
  %v9442 = vadd.f32 0.0, %v9441
  %9443 = vmatmul.f32.gmra.mxu0 %v8968
  %v9444 = vpop.f32.mrf.mxu0
  %v9445 = vadd.f32 0.0, %v9444
  %9446 = vmatmul.f32.gmra.mxu0 %v8970
  %v9447 = vpop.f32.mrf.mxu0
  %v9448 = vadd.f32 0.0, %v9447
  %9449 = vmatmul.f32.gmra.mxu0 %v8973
  %v9450 = vpop.f32.mrf.mxu0
  %v9451 = vadd.f32 0.0, %v9450
  %9452 = vmatmul.f32.gmra.mxu0 %v8975
  %v9453 = vpop.f32.mrf.mxu0
  %v9454 = vadd.f32 0.0, %v9453
  %9455 = vdwg.mxu0
  %9456 = vmatpush.msra.mxu0 0.0
  %9457 = vmatpush.msra.mxu0 0.0
  %9458 = vmatpush.msra.mxu0 0.0
  %9459 = vmatpush.msra.mxu0 0.0
  %9460 = vmatpush.msra.mxu0 0.0
  %9461 = vmatpush.msra.mxu0 0.0
  %9462 = vmatpush.msra.mxu0 0.0
  %9463 = vmatpush.msra.mxu0 0.0
  %9464 = vmatpush.msra.mxu0 0.0
  %9465 = vmatpush.msra.mxu0 0.0
  %9466 = vmatpush.msra.mxu0 0.0
  %9467 = vmatpush.msra.mxu0 0.0
  %9468 = vmatpush.msra.mxu0 %v9390
  %9469 = vmatpush.msra.mxu0 %v9389
  %9470 = vmatpush.msra.mxu0 %v9388
  %9471 = vmatpush.msra.mxu0 %v9387
  %9472 = vmatmul.f32.gmra.mxu0 %v9194
  %v9473 = vpop.f32.mrf.mxu0
  %v9474 = vadd.f32 %v9409, %v9473
  %9475 = vmatmul.f32.gmra.mxu0 %v9197
  %v9476 = vpop.f32.mrf.mxu0
  %v9477 = vadd.f32 %v9412, %v9476
  %9478 = vmatmul.f32.gmra.mxu0 %v9200
  %v9479 = vpop.f32.mrf.mxu0
  %v9480 = vadd.f32 %v9415, %v9479
  %9481 = vmatmul.f32.gmra.mxu0 %v9203
  %v9482 = vpop.f32.mrf.mxu0
  %v9483 = vadd.f32 %v9418, %v9482
  %9484 = vmatmul.f32.gmra.mxu0 %v9206
  %v9485 = vpop.f32.mrf.mxu0
  %v9486 = vadd.f32 %v9421, %v9485
  %9487 = vmatmul.f32.gmra.mxu0 %v9209
  %v9488 = vpop.f32.mrf.mxu0
  %v9489 = vadd.f32 %v9424, %v9488
  %9490 = vmatmul.f32.gmra.mxu0 %v9212
  %v9491 = vpop.f32.mrf.mxu0
  %v9492 = vadd.f32 %v9427, %v9491
  %9493 = vmatmul.f32.gmra.mxu0 %v9215
  %v9494 = vpop.f32.mrf.mxu0
  %v9495 = vadd.f32 %v9430, %v9494
  %9496 = vmatmul.f32.gmra.mxu0 %v9218
  %v9497 = vpop.f32.mrf.mxu0
  %v9498 = vadd.f32 %v9433, %v9497
  %9499 = vmatmul.f32.gmra.mxu0 %v9221
  %v9500 = vpop.f32.mrf.mxu0
  %v9501 = vadd.f32 %v9436, %v9500
  %9502 = vmatmul.f32.gmra.mxu0 %v9224
  %v9503 = vpop.f32.mrf.mxu0
  %v9504 = vadd.f32 %v9439, %v9503
  %9505 = vmatmul.f32.gmra.mxu0 %v9227
  %v9506 = vpop.f32.mrf.mxu0
  %v9507 = vadd.f32 %v9442, %v9506
  %9508 = vmatmul.f32.gmra.mxu0 %v9230
  %v9509 = vpop.f32.mrf.mxu0
  %v9510 = vadd.f32 %v9445, %v9509
  %9511 = vmatmul.f32.gmra.mxu0 %v9233
  %v9512 = vpop.f32.mrf.mxu0
  %v9513 = vadd.f32 %v9448, %v9512
  %9514 = vmatmul.f32.gmra.mxu0 %v9236
  %v9515 = vpop.f32.mrf.mxu0
  %v9516 = vadd.f32 %v9451, %v9515
  %9517 = vmatmul.f32.gmra.mxu0 %v9239
  %v9518 = vpop.f32.mrf.mxu0
  %v9519 = vadd.f32 %v9454, %v9518
  %9520 = vdwg.mxu0
  %v9521 = vmax.f32 %v9324, %v9474
  %v9522 = vmax.f32 %v9327, %v9477
  %v9523 = vmax.f32 %v9330, %v9480
  %v9524 = vmax.f32 %v9333, %v9483
  %v9525 = vmax.f32 %v9336, %v9486
  %v9526 = vmax.f32 %v9339, %v9489
  %v9527 = vmax.f32 %v9342, %v9492
  %v9528 = vmax.f32 %v9345, %v9495
  %v9529 = vmax.f32 %v9348, %v9498
  %v9530 = vmax.f32 %v9351, %v9501
  %v9531 = vmax.f32 %v9354, %v9504
  %v9532 = vmax.f32 %v9357, %v9507
  %v9533 = vmax.f32 %v9360, %v9510
  %v9534 = vmax.f32 %v9363, %v9513
  %v9535 = vmax.f32 %v9366, %v9516
  %v9536 = vmax.f32 %v9369, %v9519
  %9537 = vst.msk [vmem:[%s9 + $0x80] sm:$0xff] %vm6919, %v9521
  %9538 = vst.msk [vmem:[%s9 + $0x88] sm:$0xff] %vm6919, %v9522
  %9539 = vst.msk [vmem:[%s9 + $0x90] sm:$0xff] %vm6919, %v9523
  %9540 = vst.msk [vmem:[%s9 + $0x98] sm:$0xff] %vm6919, %v9524
  %9541 = vst.msk [vmem:[%s9 + $0xa0] sm:$0xff] %vm6919, %v9525
  %9542 = vst.msk [vmem:[%s9 + $0xa8] sm:$0xff] %vm6919, %v9526
  %9543 = vst.msk [vmem:[%s9 + $0xb0] sm:$0xff] %vm6919, %v9527
  %9544 = vst.msk [vmem:[%s9 + $0xb8] sm:$0xff] %vm6919, %v9528
  %9545 = vst.msk [vmem:[%s9 + $0xc0] sm:$0xff] %vm6919, %v9529
  %9546 = vst.msk [vmem:[%s9 + $0xc8] sm:$0xff] %vm6919, %v9530
  %9547 = vst.msk [vmem:[%s9 + $0xd0] sm:$0xff] %vm6919, %v9531
  %9548 = vst.msk [vmem:[%s9 + $0xd8] sm:$0xff] %vm6919, %v9532
  %9549 = vst.msk [vmem:[%s9 + $0xe0] sm:$0xff] %vm6919, %v9533
  %9550 = vst.msk [vmem:[%s9 + $0xe8] sm:$0xff] %vm6919, %v9534
  %9551 = vst.msk [vmem:[%s9 + $0xf0] sm:$0xff] %vm6919, %v9535
  %9552 = vst.msk [vmem:[%s9 + $0xf8] sm:$0xff] %vm6919, %v9536
  %v9553 = vld [vmem:[#allocation2 + $0x80] sm:$0xf]
  %v9554 = vld [vmem:[#allocation2 + $0x84] sm:$0xf]
  %v9555 = vld [vmem:[#allocation2 + $0x88] sm:$0xf]
  %v9556 = vld [vmem:[#allocation2 + $0x8c] sm:$0xf]
  %v9557 = vld [vmem:[#allocation2 + $0x90] sm:$0xf]
  %v9558 = vld [vmem:[#allocation2 + $0x94] sm:$0xf]
  %v9559 = vld [vmem:[#allocation2 + $0x98] sm:$0xf]
  %v9560 = vld [vmem:[#allocation2 + $0x9c] sm:$0xf]
  %v9561 = vld [vmem:[#allocation2 + $0xa0] sm:$0xf]
  %v9562 = vld [vmem:[#allocation2 + $0xa4] sm:$0xf]
  %v9563 = vld [vmem:[#allocation2 + $0xa8] sm:$0xf]
  %v9564 = vld [vmem:[#allocation2 + $0xac] sm:$0xf]
  %v9565 = vld [vmem:[#allocation2 + $0xb0] sm:$0xf]
  %v9566 = vld [vmem:[#allocation2 + $0xb4] sm:$0xf]
  %v9567 = vld [vmem:[#allocation2 + $0xb8] sm:$0xf]
  %v9568 = vld [vmem:[#allocation2 + $0xbc] sm:$0xf]
  %v9569 = vld [vmem:[#allocation2 + $0xc0] sm:$0x1]
  %v9570 = vld [vmem:[#allocation2 + $0x80] sm:$0xe]
  %v9571 = vld [vmem:[#allocation2 + $0xc0] sm:$0x3]
  %v9572 = vld [vmem:[#allocation2 + $0x80] sm:$0xc]
  %v9589 = vunpack.c.l.b16 %v9553
  %v9590 = vunpack.c.l.b16 %v9554
  %v9591 = vunpack.c.l.b16 %v9555
  %v9592 = vunpack.c.l.b16 %v9556
  %v9593 = vunpack.c.l.b16 %v9557
  %v9594 = vunpack.c.l.b16 %v9558
  %v9595 = vunpack.c.l.b16 %v9559
  %v9596 = vunpack.c.l.b16 %v9560
  %v9597 = vunpack.c.l.b16 %v9561
  %v9598 = vunpack.c.l.b16 %v9562
  %v9599 = vunpack.c.l.b16 %v9563
  %v9600 = vunpack.c.l.b16 %v9564
  %v9601 = vunpack.c.l.b16 %v9565
  %v9602 = vunpack.c.l.b16 %v9566
  %v9603 = vunpack.c.l.b16 %v9567
  %v9604 = vunpack.c.l.b16 %v9568
  %v9605 = vpack.c.b16 %v9590, %v9589
  %v9606 = vpack.c.b16 %v9592, %v9591
  %v9607 = vpack.c.b16 %v9594, %v9593
  %v9608 = vpack.c.b16 %v9596, %v9595
  %v9609 = vpack.c.b16 %v9598, %v9597
  %v9610 = vpack.c.b16 %v9600, %v9599
  %v9611 = vpack.c.b16 %v9602, %v9601
  %v9612 = vpack.c.b16 %v9604, %v9603
  %v9614 = vunpack.c.l.b16 %v9569
  %v9615 = vpack.c.b16 %v9614, %v9614
  %v9617 = vshrl.u32 %v9605, 16
  %v9619 = vshll.u32 %v9605, 16
  %v9621 = vrot.slane %v9619, 1
  %v9622 = vor.u32 %v9617, %v9621
  %v9624 = vshll.u32 %v9606, 16
  %v9626 = vrot.slane %v9624, 1
  %v9627 = vsel %vm6629, %v9622, %v9626
  %v9628 = vshrl.u32 %v9606, 16
  %v9630 = vor.u32 %v9628, %v9626
  %v9632 = vshll.u32 %v9607, 16
  %v9634 = vrot.slane %v9632, 1
  %v9635 = vsel %vm6629, %v9630, %v9634
  %v9636 = vshrl.u32 %v9607, 16
  %v9638 = vor.u32 %v9636, %v9634
  %v9640 = vshll.u32 %v9608, 16
  %v9642 = vrot.slane %v9640, 1
  %v9643 = vsel %vm6629, %v9638, %v9642
  %v9644 = vshrl.u32 %v9608, 16
  %v9646 = vor.u32 %v9644, %v9642
  %v9648 = vshll.u32 %v9609, 16
  %v9650 = vrot.slane %v9648, 1
  %v9651 = vsel %vm6629, %v9646, %v9650
  %v9652 = vshrl.u32 %v9609, 16
  %v9654 = vor.u32 %v9652, %v9650
  %v9656 = vshll.u32 %v9610, 16
  %v9658 = vrot.slane %v9656, 1
  %v9659 = vsel %vm6629, %v9654, %v9658
  %v9660 = vshrl.u32 %v9610, 16
  %v9662 = vor.u32 %v9660, %v9658
  %v9664 = vshll.u32 %v9611, 16
  %v9666 = vrot.slane %v9664, 1
  %v9667 = vsel %vm6629, %v9662, %v9666
  %v9668 = vshrl.u32 %v9611, 16
  %v9670 = vor.u32 %v9668, %v9666
  %v9672 = vshll.u32 %v9612, 16
  %v9674 = vrot.slane %v9672, 1
  %v9675 = vsel %vm6629, %v9670, %v9674
  %v9676 = vshrl.u32 %v9612, 16
  %v9678 = vor.u32 %v9676, %v9674
  %v9680 = vshll.u32 %v9615, 16
  %v9682 = vrot.slane %v9680, 1
  %v9683 = vsel %vm6629, %v9678, %v9682
  %9684 = vrot.lane.b32.xlu0 %v9627, 84
  %v9685 = vpop.permute.xlu0 %9684
  %9686 = vrot.lane.b32.xlu0 %v9635, 84
  %v9687 = vpop.permute.xlu0 %9686
  %9688 = vrot.lane.b32.xlu0 %v9643, 84
  %v9689 = vpop.permute.xlu0 %9688
  %9690 = vrot.lane.b32.xlu0 %v9651, 84
  %v9691 = vpop.permute.xlu0 %9690
  %9692 = vrot.lane.b32.xlu0 %v9659, 84
  %v9693 = vpop.permute.xlu0 %9692
  %9694 = vrot.lane.b32.xlu0 %v9667, 84
  %v9695 = vpop.permute.xlu0 %9694
  %9696 = vrot.lane.b32.xlu0 %v9675, 84
  %v9697 = vpop.permute.xlu0 %9696
  %9698 = vrot.lane.b32.xlu0 %v9683, 84
  %v9699 = vpop.permute.xlu0 %9698
  %v9701 = vunpack.c.l.b16 %v9570
  %v9702 = vpack.c.b16 %v9590, %v9701
  %v9703 = vrot.slane %v9702, 1
  %v9704 = vrot.slane %v9606, 1
  %v9705 = vsel %vm6717, %v9703, %v9704
  %v9706 = vrot.slane %v9607, 1
  %v9707 = vsel %vm6717, %v9704, %v9706
  %v9708 = vrot.slane %v9608, 1
  %v9709 = vsel %vm6717, %v9706, %v9708
  %v9710 = vrot.slane %v9609, 1
  %v9711 = vsel %vm6717, %v9708, %v9710
  %v9712 = vrot.slane %v9610, 1
  %v9713 = vsel %vm6717, %v9710, %v9712
  %v9714 = vrot.slane %v9611, 1
  %v9715 = vsel %vm6717, %v9712, %v9714
  %v9716 = vrot.slane %v9612, 1
  %v9717 = vsel %vm6717, %v9714, %v9716
  %v9718 = vrot.slane %v9615, 1
  %v9719 = vsel %vm6717, %v9716, %v9718
  %9720 = vrot.lane.b32.xlu0 %v9705, 40
  %v9721 = vpop.permute.xlu0 %9720
  %9722 = vrot.lane.b32.xlu0 %v9707, 40
  %v9723 = vpop.permute.xlu0 %9722
  %9724 = vrot.lane.b32.xlu0 %v9709, 40
  %v9725 = vpop.permute.xlu0 %9724
  %9726 = vrot.lane.b32.xlu0 %v9711, 40
  %v9727 = vpop.permute.xlu0 %9726
  %9728 = vrot.lane.b32.xlu0 %v9713, 40
  %v9729 = vpop.permute.xlu0 %9728
  %9730 = vrot.lane.b32.xlu0 %v9715, 40
  %v9731 = vpop.permute.xlu0 %9730
  %9732 = vrot.lane.b32.xlu0 %v9717, 40
  %v9733 = vpop.permute.xlu0 %9732
  %9734 = vrot.lane.b32.xlu0 %v9719, 40
  %v9735 = vpop.permute.xlu0 %9734
  %v9737 = vunpack.c.l.b16 %v9571
  %v9738 = vpack.c.b16 %v9737, %v9737
  %v9740 = vshrl.u32 %v9702, 16
  %v9742 = vrot.slane %v9740, 1
  %v9743 = vshll.u32 %v9702, 16
  %v9745 = vrot.slane %v9743, 2
  %v9746 = vor.u32 %v9742, %v9745
  %v9747 = vrot.slane %v9628, 1
  %v9748 = vrot.slane %v9624, 2
  %v9749 = vor.u32 %v9747, %v9748
  %v9750 = vsel %vm6754, %v9746, %v9749
  %v9751 = vrot.slane %v9636, 1
  %v9752 = vrot.slane %v9632, 2
  %v9753 = vor.u32 %v9751, %v9752
  %v9754 = vsel %vm6754, %v9749, %v9753
  %v9755 = vrot.slane %v9644, 1
  %v9756 = vrot.slane %v9640, 2
  %v9757 = vor.u32 %v9755, %v9756
  %v9758 = vsel %vm6754, %v9753, %v9757
  %v9759 = vrot.slane %v9652, 1
  %v9760 = vrot.slane %v9648, 2
  %v9761 = vor.u32 %v9759, %v9760
  %v9762 = vsel %vm6754, %v9757, %v9761
  %v9763 = vrot.slane %v9660, 1
  %v9764 = vrot.slane %v9656, 2
  %v9765 = vor.u32 %v9763, %v9764
  %v9766 = vsel %vm6754, %v9761, %v9765
  %v9767 = vrot.slane %v9668, 1
  %v9768 = vrot.slane %v9664, 2
  %v9769 = vor.u32 %v9767, %v9768
  %v9770 = vsel %vm6754, %v9765, %v9769
  %v9771 = vrot.slane %v9676, 1
  %v9772 = vrot.slane %v9672, 2
  %v9773 = vor.u32 %v9771, %v9772
  %v9774 = vsel %vm6754, %v9769, %v9773
  %v9776 = vshrl.u32 %v9738, 16
  %v9778 = vrot.slane %v9776, 1
  %v9779 = vshll.u32 %v9738, 16
  %v9781 = vrot.slane %v9779, 2
  %v9782 = vor.u32 %v9778, %v9781
  %v9783 = vsel %vm6754, %v9773, %v9782
  %9784 = vrot.lane.b32.xlu0 %v9750, 124
  %v9785 = vpop.permute.xlu0 %9784
  %9786 = vrot.lane.b32.xlu0 %v9754, 124
  %v9787 = vpop.permute.xlu0 %9786
  %9788 = vrot.lane.b32.xlu0 %v9758, 124
  %v9789 = vpop.permute.xlu0 %9788
  %9790 = vrot.lane.b32.xlu0 %v9762, 124
  %v9791 = vpop.permute.xlu0 %9790
  %9792 = vrot.lane.b32.xlu0 %v9766, 124
  %v9793 = vpop.permute.xlu0 %9792
  %9794 = vrot.lane.b32.xlu0 %v9770, 124
  %v9795 = vpop.permute.xlu0 %9794
  %9796 = vrot.lane.b32.xlu0 %v9774, 124
  %v9797 = vpop.permute.xlu0 %9796
  %9798 = vrot.lane.b32.xlu0 %v9783, 124
  %v9799 = vpop.permute.xlu0 %9798
  %v9801 = vunpack.c.l.b16 %v9572
  %v9802 = vpack.c.b16 %v9590, %v9801
  %v9803 = vrot.slane %v9802, 2
  %v9804 = vrot.slane %v9606, 2
  %v9805 = vsel %vm6819, %v9803, %v9804
  %v9806 = vrot.slane %v9607, 2
  %v9807 = vsel %vm6819, %v9804, %v9806
  %v9808 = vrot.slane %v9608, 2
  %v9809 = vsel %vm6819, %v9806, %v9808
  %v9810 = vrot.slane %v9609, 2
  %v9811 = vsel %vm6819, %v9808, %v9810
  %v9812 = vrot.slane %v9610, 2
  %v9813 = vsel %vm6819, %v9810, %v9812
  %v9814 = vrot.slane %v9611, 2
  %v9815 = vsel %vm6819, %v9812, %v9814
  %v9816 = vrot.slane %v9612, 2
  %v9817 = vsel %vm6819, %v9814, %v9816
  %v9818 = vrot.slane %v9738, 2
  %v9819 = vsel %vm6819, %v9816, %v9818
  %9820 = vrot.lane.b32.xlu0 %v9805, 80
  %v9821 = vpop.permute.xlu0 %9820
  %9822 = vrot.lane.b32.xlu0 %v9807, 80
  %v9823 = vpop.permute.xlu0 %9822
  %9824 = vrot.lane.b32.xlu0 %v9809, 80
  %v9825 = vpop.permute.xlu0 %9824
  %9826 = vrot.lane.b32.xlu0 %v9811, 80
  %v9827 = vpop.permute.xlu0 %9826
  %9828 = vrot.lane.b32.xlu0 %v9813, 80
  %v9829 = vpop.permute.xlu0 %9828
  %9830 = vrot.lane.b32.xlu0 %v9815, 80
  %v9831 = vpop.permute.xlu0 %9830
  %9832 = vrot.lane.b32.xlu0 %v9817, 80
  %v9833 = vpop.permute.xlu0 %9832
  %9834 = vrot.lane.b32.xlu0 %v9819, 80
  %v9835 = vpop.permute.xlu0 %9834
  %v9837 = vsel %vm6853, %v9605, %v9685
  %v9840 = vsel %vm6853, %v9606, %v9687
  %v9843 = vsel %vm6853, %v9607, %v9689
  %v9846 = vsel %vm6853, %v9608, %v9691
  %v9849 = vsel %vm6853, %v9609, %v9693
  %v9852 = vsel %vm6853, %v9610, %v9695
  %v9855 = vsel %vm6853, %v9611, %v9697
  %v9858 = vsel %vm6853, %v9612, %v9699
  %v9861 = vsel %vm610, %v9685, %v9721
  %v9863 = vsel %vm610, %v9687, %v9723
  %v9865 = vsel %vm610, %v9689, %v9725
  %v9867 = vsel %vm610, %v9691, %v9727
  %v9869 = vsel %vm610, %v9693, %v9729
  %v9871 = vsel %vm610, %v9695, %v9731
  %v9873 = vsel %vm610, %v9697, %v9733
  %v9875 = vsel %vm610, %v9699, %v9735
  %v9877 = vsel %vm6894, %v9861, %v9785
  %v9880 = vsel %vm6894, %v9863, %v9787
  %v9883 = vsel %vm6894, %v9865, %v9789
  %v9886 = vsel %vm6894, %v9867, %v9791
  %v9889 = vsel %vm6894, %v9869, %v9793
  %v9892 = vsel %vm6894, %v9871, %v9795
  %v9895 = vsel %vm6894, %v9873, %v9797
  %v9898 = vsel %vm6894, %v9875, %v9799
  %v9901 = vsel %vm6919, %v9785, %v9821
  %v9904 = vsel %vm6919, %v9787, %v9823
  %v9907 = vsel %vm6919, %v9789, %v9825
  %v9910 = vsel %vm6919, %v9791, %v9827
  %v9913 = vsel %vm6919, %v9793, %v9829
  %v9916 = vsel %vm6919, %v9795, %v9831
  %v9919 = vsel %vm6919, %v9797, %v9833
  %v9922 = vsel %vm6919, %v9799, %v9835
  %v9924 = vld [vmem:[%s3] sm:$0xff]
  %v9925 = vld [vmem:[%s3 + $0x8] sm:$0xff]
  %v9926 = vld [vmem:[%s3 + $0x10] sm:$0xff]
  %v9927 = vld [vmem:[%s3 + $0x18] sm:$0xff]
  %v9928 = vld [vmem:[%s3 + $0x20] sm:$0xff]
  %v9929 = vld [vmem:[%s3 + $0x28] sm:$0xff]
  %v9930 = vld [vmem:[%s3 + $0x30] sm:$0xff]
  %v9931 = vld [vmem:[%s3 + $0x38] sm:$0xff]
  %v9932 = vld [vmem:[%s3 + $0x40] sm:$0xff]
  %v9933 = vld [vmem:[%s3 + $0x48] sm:$0xff]
  %v9934 = vld [vmem:[%s3 + $0x50] sm:$0xff]
  %v9935 = vld [vmem:[%s3 + $0x58] sm:$0xff]
  %v9936 = vld [vmem:[%s3 + $0x60] sm:$0xff]
  %v9937 = vld [vmem:[%s3 + $0x68] sm:$0xff]
  %v9938 = vld [vmem:[%s3 + $0x70] sm:$0xff]
  %v9939 = vld [vmem:[%s3 + $0x78] sm:$0xff]
  %v9940 = vld [vmem:[%s3 + $0x80] sm:$0xff]
  %v9941 = vld [vmem:[%s3 + $0x88] sm:$0xff]
  %v9942 = vld [vmem:[%s3 + $0x90] sm:$0xff]
  %v9943 = vld [vmem:[%s3 + $0x98] sm:$0xff]
  %v9944 = vld [vmem:[%s3 + $0xa0] sm:$0xff]
  %v9945 = vld [vmem:[%s3 + $0xa8] sm:$0xff]
  %v9946 = vld [vmem:[%s3 + $0xb0] sm:$0xff]
  %v9947 = vld [vmem:[%s3 + $0xb8] sm:$0xff]
  %v9948 = vld [vmem:[%s3 + $0xc0] sm:$0xff]
  %v9949 = vld [vmem:[%s3 + $0xc8] sm:$0xff]
  %v9950 = vld [vmem:[%s3 + $0xd0] sm:$0xff]
  %v9951 = vld [vmem:[%s3 + $0xd8] sm:$0xff]
  %v9952 = vld [vmem:[%s3 + $0xe0] sm:$0xff]
  %v9953 = vld [vmem:[%s3 + $0xe8] sm:$0xff]
  %v9954 = vld [vmem:[%s3 + $0xf0] sm:$0xff]
  %v9955 = vld [vmem:[%s3 + $0xf8] sm:$0xff]
  %v9956 = vld [vmem:[%s3 + $0x100] sm:$0xff]
  %v9957 = vld [vmem:[%s3 + $0x108] sm:$0xff]
  %v9958 = vld [vmem:[%s3 + $0x110] sm:$0xff]
  %v9959 = vld [vmem:[%s3 + $0x118] sm:$0xff]
  %v9960 = vld [vmem:[%s3 + $0x120] sm:$0xff]
  %v9961 = vld [vmem:[%s3 + $0x128] sm:$0xff]
  %v9962 = vld [vmem:[%s3 + $0x130] sm:$0xff]
  %v9963 = vld [vmem:[%s3 + $0x138] sm:$0xff]
  %v9964 = vld [vmem:[%s3 + $0x140] sm:$0xff]
  %v9965 = vld [vmem:[%s3 + $0x148] sm:$0xff]
  %v9966 = vld [vmem:[%s3 + $0x150] sm:$0xff]
  %v9967 = vld [vmem:[%s3 + $0x158] sm:$0xff]
  %v9968 = vld [vmem:[%s3 + $0x160] sm:$0xff]
  %v9969 = vld [vmem:[%s3 + $0x168] sm:$0xff]
  %v9970 = vld [vmem:[%s3 + $0x170] sm:$0xff]
  %v9971 = vld [vmem:[%s3 + $0x178] sm:$0xff]
  %v9972 = vld [vmem:[%s3 + $0x180] sm:$0xff]
  %v9973 = vld [vmem:[%s3 + $0x188] sm:$0xff]
  %v9974 = vld [vmem:[%s3 + $0x190] sm:$0xff]
  %v9975 = vld [vmem:[%s3 + $0x198] sm:$0xff]
  %v9976 = vld [vmem:[%s3 + $0x1a0] sm:$0x33]
  %v9977 = vld [vmem:[%s4] sm:$0x3]
  %v9979 = vperm.slane %v9977, 0
  %v9980 = vperm.slane %v9977, 1
  %v10036 = vunpack.c.l.b16 %v9924
  %v10037 = vunpack.c.h.b16 %v9924
  %v10038 = vunpack.c.l.b16 %v9925
  %v10039 = vunpack.c.h.b16 %v9925
  %v10040 = vunpack.c.l.b16 %v9926
  %v10041 = vunpack.c.h.b16 %v9926
  %v10042 = vunpack.c.l.b16 %v9927
  %v10043 = vunpack.c.h.b16 %v9927
  %v10044 = vunpack.c.l.b16 %v9928
  %v10045 = vunpack.c.h.b16 %v9928
  %v10046 = vunpack.c.l.b16 %v9929
  %v10047 = vunpack.c.h.b16 %v9929
  %v10048 = vunpack.c.l.b16 %v9930
  %v10049 = vunpack.c.h.b16 %v9930
  %v10050 = vunpack.c.l.b16 %v9931
  %v10051 = vunpack.c.h.b16 %v9931
  %v10052 = vunpack.c.l.b16 %v9932
  %v10053 = vunpack.c.h.b16 %v9932
  %v10054 = vunpack.c.l.b16 %v9933
  %v10055 = vunpack.c.h.b16 %v9933
  %v10056 = vunpack.c.l.b16 %v9934
  %v10057 = vunpack.c.h.b16 %v9934
  %v10058 = vunpack.c.l.b16 %v9935
  %v10059 = vunpack.c.h.b16 %v9935
  %v10060 = vunpack.c.l.b16 %v9936
  %v10061 = vunpack.c.h.b16 %v9936
  %v10062 = vunpack.c.l.b16 %v9937
  %v10063 = vunpack.c.h.b16 %v9937
  %v10064 = vunpack.c.l.b16 %v9938
  %v10065 = vunpack.c.h.b16 %v9938
  %v10066 = vunpack.c.l.b16 %v9939
  %v10067 = vunpack.c.h.b16 %v9939
  %v10068 = vunpack.c.l.b16 %v9940
  %v10069 = vunpack.c.h.b16 %v9940
  %v10070 = vunpack.c.l.b16 %v9941
  %v10071 = vunpack.c.h.b16 %v9941
  %v10072 = vunpack.c.l.b16 %v9942
  %v10073 = vunpack.c.h.b16 %v9942
  %v10074 = vunpack.c.l.b16 %v9943
  %v10075 = vunpack.c.h.b16 %v9943
  %v10076 = vunpack.c.l.b16 %v9944
  %v10077 = vunpack.c.h.b16 %v9944
  %v10078 = vunpack.c.l.b16 %v9945
  %v10079 = vunpack.c.h.b16 %v9945
  %v10080 = vunpack.c.l.b16 %v9946
  %v10081 = vunpack.c.h.b16 %v9946
  %v10082 = vunpack.c.l.b16 %v9947
  %v10083 = vunpack.c.h.b16 %v9947
  %v10084 = vunpack.c.l.b16 %v9948
  %v10085 = vunpack.c.h.b16 %v9948
  %v10086 = vunpack.c.l.b16 %v9949
  %v10087 = vunpack.c.h.b16 %v9949
  %v10088 = vunpack.c.l.b16 %v9950
  %v10089 = vunpack.c.h.b16 %v9950
  %v10090 = vunpack.c.l.b16 %v9951
  %v10091 = vunpack.c.h.b16 %v9951
  %v10092 = vunpack.c.l.b16 %v9952
  %v10093 = vunpack.c.h.b16 %v9952
  %v10094 = vunpack.c.l.b16 %v9953
  %v10095 = vunpack.c.h.b16 %v9953
  %v10096 = vunpack.c.l.b16 %v9954
  %v10097 = vunpack.c.h.b16 %v9954
  %v10098 = vunpack.c.l.b16 %v9955
  %v10099 = vunpack.c.h.b16 %v9955
  %v10100 = vunpack.c.l.b16 %v9956
  %v10101 = vunpack.c.h.b16 %v9956
  %v10102 = vunpack.c.l.b16 %v9957
  %v10103 = vunpack.c.h.b16 %v9957
  %v10104 = vunpack.c.l.b16 %v9958
  %v10105 = vunpack.c.h.b16 %v9958
  %v10106 = vunpack.c.l.b16 %v9959
  %v10107 = vunpack.c.h.b16 %v9959
  %v10108 = vunpack.c.l.b16 %v9960
  %v10109 = vunpack.c.h.b16 %v9960
  %v10110 = vunpack.c.l.b16 %v9961
  %v10111 = vunpack.c.h.b16 %v9961
  %v10112 = vunpack.c.l.b16 %v9962
  %v10113 = vunpack.c.h.b16 %v9962
  %v10114 = vunpack.c.l.b16 %v9963
  %v10115 = vunpack.c.h.b16 %v9963
  %v10116 = vunpack.c.l.b16 %v9964
  %v10117 = vunpack.c.h.b16 %v9964
  %v10118 = vunpack.c.l.b16 %v9965
  %v10119 = vunpack.c.h.b16 %v9965
  %v10120 = vunpack.c.l.b16 %v9966
  %v10121 = vunpack.c.h.b16 %v9966
  %v10122 = vunpack.c.l.b16 %v9967
  %v10123 = vunpack.c.h.b16 %v9967
  %v10124 = vunpack.c.l.b16 %v9968
  %v10125 = vunpack.c.h.b16 %v9968
  %v10126 = vunpack.c.l.b16 %v9969
  %v10127 = vunpack.c.h.b16 %v9969
  %v10128 = vunpack.c.l.b16 %v9970
  %v10129 = vunpack.c.h.b16 %v9970
  %v10130 = vunpack.c.l.b16 %v9971
  %v10131 = vunpack.c.h.b16 %v9971
  %v10132 = vunpack.c.l.b16 %v9972
  %v10133 = vunpack.c.h.b16 %v9972
  %v10134 = vunpack.c.l.b16 %v9973
  %v10135 = vunpack.c.h.b16 %v9973
  %v10136 = vunpack.c.l.b16 %v9974
  %v10137 = vunpack.c.h.b16 %v9974
  %v10138 = vunpack.c.l.b16 %v9975
  %v10139 = vunpack.c.h.b16 %v9975
  %v10140 = vunpack.c.l.b16 %v9976
  %v10141 = vunpack.c.h.b16 %v9976
  %v10142 = vpack.c.b16 %v10038, %v10036
  %v10143 = vpack.c.b16 %v10039, %v10037
  %v10144 = vpack.c.b16 %v10042, %v10040
  %v10145 = vpack.c.b16 %v10043, %v10041
  %v10146 = vpack.c.b16 %v10046, %v10044
  %v10147 = vpack.c.b16 %v10047, %v10045
  %v10148 = vpack.c.b16 %v10050, %v10048
  %v10149 = vpack.c.b16 %v10051, %v10049
  %v10150 = vpack.c.b16 %v10054, %v10052
  %v10151 = vpack.c.b16 %v10055, %v10053
  %v10152 = vpack.c.b16 %v10058, %v10056
  %v10153 = vpack.c.b16 %v10059, %v10057
  %v10154 = vpack.c.b16 %v10062, %v10060
  %v10155 = vpack.c.b16 %v10063, %v10061
  %v10156 = vpack.c.b16 %v10066, %v10064
  %v10157 = vpack.c.b16 %v10067, %v10065
  %v10158 = vpack.c.b16 %v10070, %v10068
  %v10159 = vpack.c.b16 %v10071, %v10069
  %v10160 = vpack.c.b16 %v10074, %v10072
  %v10161 = vpack.c.b16 %v10075, %v10073
  %v10162 = vpack.c.b16 %v10078, %v10076
  %v10163 = vpack.c.b16 %v10079, %v10077
  %v10164 = vpack.c.b16 %v10082, %v10080
  %v10165 = vpack.c.b16 %v10083, %v10081
  %v10166 = vpack.c.b16 %v10086, %v10084
  %v10167 = vpack.c.b16 %v10087, %v10085
  %v10168 = vpack.c.b16 %v10090, %v10088
  %v10169 = vpack.c.b16 %v10091, %v10089
  %v10170 = vpack.c.b16 %v10094, %v10092
  %v10171 = vpack.c.b16 %v10095, %v10093
  %v10172 = vpack.c.b16 %v10098, %v10096
  %v10173 = vpack.c.b16 %v10099, %v10097
  %v10174 = vpack.c.b16 %v10102, %v10100
  %v10175 = vpack.c.b16 %v10103, %v10101
  %v10176 = vpack.c.b16 %v10106, %v10104
  %v10177 = vpack.c.b16 %v10107, %v10105
  %v10178 = vpack.c.b16 %v10110, %v10108
  %v10179 = vpack.c.b16 %v10111, %v10109
  %v10180 = vpack.c.b16 %v10114, %v10112
  %v10181 = vpack.c.b16 %v10115, %v10113
  %v10182 = vpack.c.b16 %v10118, %v10116
  %v10183 = vpack.c.b16 %v10119, %v10117
  %v10184 = vpack.c.b16 %v10122, %v10120
  %v10185 = vpack.c.b16 %v10123, %v10121
  %v10186 = vpack.c.b16 %v10126, %v10124
  %v10187 = vpack.c.b16 %v10127, %v10125
  %v10188 = vpack.c.b16 %v10130, %v10128
  %v10189 = vpack.c.b16 %v10131, %v10129
  %v10190 = vpack.c.b16 %v10134, %v10132
  %v10191 = vpack.c.b16 %v10135, %v10133
  %v10192 = vpack.c.b16 %v10138, %v10136
  %v10193 = vpack.c.b16 %v10139, %v10137
  %v10194 = vpack.c.b16 %v10140, %v10140
  %v10195 = vpack.c.b16 %v10141, %v10141
  %v10248 = vsel %vm7268, %v9821, 0
  %v10250 = vsel %vm7268, %v9823, 0
  %v10252 = vsel %vm7268, %v9825, 0
  %v10254 = vsel %vm7268, %v9827, 0
  %v10256 = vsel %vm7268, %v9829, 0
  %v10258 = vsel %vm7268, %v9831, 0
  %v10260 = vsel %vm7268, %v9833, 0
  %v10262 = vsel %vm7268, %v9835, 0
  %v10265 = vsel %vm7285, %v10194, 0
  %v10268 = vsel %vm7285, %v10195, 0
  %10270 = vmatpush.bf16.msra.mxu0 %v10156
  %10271 = vmatpush.bf16.msra.mxu0 %v10154
  %10272 = vmatpush.bf16.msra.mxu0 %v10152
  %10273 = vmatpush.bf16.msra.mxu0 %v10150
  %10274 = vmatpush.bf16.msra.mxu0 %v10148
  %10275 = vmatpush.bf16.msra.mxu0 %v10146
  %10276 = vmatpush.bf16.msra.mxu0 %v10144
  %10277 = vmatpush.bf16.msra.mxu0 %v10142
  %10278 = vmatmul.bf16.gmra.mxu0 %v9837
  %v10279 = vpop.f32.mrf.mxu0
  %v10280 = vadd.f32 %v9979, %v10279
  %v10281 = vpop.f32.mrf.mxu0
  %v10282 = vadd.f32 %v9979, %v10281
  %10283 = vmatmul.bf16.gmra.mxu0 %v9840
  %v10284 = vpop.f32.mrf.mxu0
  %v10285 = vadd.f32 %v9979, %v10284
  %v10286 = vpop.f32.mrf.mxu0
  %v10287 = vadd.f32 %v9979, %v10286
  %10288 = vmatmul.bf16.gmra.mxu0 %v9843
  %v10289 = vpop.f32.mrf.mxu0
  %v10290 = vadd.f32 %v9979, %v10289
  %v10291 = vpop.f32.mrf.mxu0
  %v10292 = vadd.f32 %v9979, %v10291
  %10293 = vmatmul.bf16.gmra.mxu0 %v9846
  %v10294 = vpop.f32.mrf.mxu0
  %v10295 = vadd.f32 %v9979, %v10294
  %v10296 = vpop.f32.mrf.mxu0
  %v10297 = vadd.f32 %v9979, %v10296
  %10298 = vmatmul.bf16.gmra.mxu0 %v9849
  %v10299 = vpop.f32.mrf.mxu0
  %v10300 = vadd.f32 %v9979, %v10299
  %v10301 = vpop.f32.mrf.mxu0
  %v10302 = vadd.f32 %v9979, %v10301
  %10303 = vmatmul.bf16.gmra.mxu0 %v9852
  %v10304 = vpop.f32.mrf.mxu0
  %v10305 = vadd.f32 %v9979, %v10304
  %v10306 = vpop.f32.mrf.mxu0
  %v10307 = vadd.f32 %v9979, %v10306
  %10308 = vmatmul.bf16.gmra.mxu0 %v9855
  %v10309 = vpop.f32.mrf.mxu0
  %v10310 = vadd.f32 %v9979, %v10309
  %v10311 = vpop.f32.mrf.mxu0
  %v10312 = vadd.f32 %v9979, %v10311
  %10313 = vmatmul.bf16.gmra.mxu0 %v9858
  %v10314 = vpop.f32.mrf.mxu0
  %v10315 = vadd.f32 %v9979, %v10314
  %v10316 = vpop.f32.mrf.mxu0
  %v10317 = vadd.f32 %v9979, %v10316
  %10318 = vdwg.mxu0
  %10319 = vmatpush.bf16.msra.mxu0 %v10172
  %10320 = vmatpush.bf16.msra.mxu0 %v10170
  %10321 = vmatpush.bf16.msra.mxu0 %v10168
  %10322 = vmatpush.bf16.msra.mxu0 %v10166
  %10323 = vmatpush.bf16.msra.mxu0 %v10164
  %10324 = vmatpush.bf16.msra.mxu0 %v10162
  %10325 = vmatpush.bf16.msra.mxu0 %v10160
  %10326 = vmatpush.bf16.msra.mxu0 %v10158
  %10327 = vmatmul.bf16.gmra.mxu0 %v9877
  %v10328 = vpop.f32.mrf.mxu0
  %v10329 = vadd.f32 %v10280, %v10328
  %v10330 = vpop.f32.mrf.mxu0
  %v10331 = vadd.f32 %v10282, %v10330
  %10332 = vmatmul.bf16.gmra.mxu0 %v9880
  %v10333 = vpop.f32.mrf.mxu0
  %v10334 = vadd.f32 %v10285, %v10333
  %v10335 = vpop.f32.mrf.mxu0
  %v10336 = vadd.f32 %v10287, %v10335
  %10337 = vmatmul.bf16.gmra.mxu0 %v9883
  %v10338 = vpop.f32.mrf.mxu0
  %v10339 = vadd.f32 %v10290, %v10338
  %v10340 = vpop.f32.mrf.mxu0
  %v10341 = vadd.f32 %v10292, %v10340
  %10342 = vmatmul.bf16.gmra.mxu0 %v9886
  %v10343 = vpop.f32.mrf.mxu0
  %v10344 = vadd.f32 %v10295, %v10343
  %v10345 = vpop.f32.mrf.mxu0
  %v10346 = vadd.f32 %v10297, %v10345
  %10347 = vmatmul.bf16.gmra.mxu0 %v9889
  %v10348 = vpop.f32.mrf.mxu0
  %v10349 = vadd.f32 %v10300, %v10348
  %v10350 = vpop.f32.mrf.mxu0
  %v10351 = vadd.f32 %v10302, %v10350
  %10352 = vmatmul.bf16.gmra.mxu0 %v9892
  %v10353 = vpop.f32.mrf.mxu0
  %v10354 = vadd.f32 %v10305, %v10353
  %v10355 = vpop.f32.mrf.mxu0
  %v10356 = vadd.f32 %v10307, %v10355
  %10357 = vmatmul.bf16.gmra.mxu0 %v9895
  %v10358 = vpop.f32.mrf.mxu0
  %v10359 = vadd.f32 %v10310, %v10358
  %v10360 = vpop.f32.mrf.mxu0
  %v10361 = vadd.f32 %v10312, %v10360
  %10362 = vmatmul.bf16.gmra.mxu0 %v9898
  %v10363 = vpop.f32.mrf.mxu0
  %v10364 = vadd.f32 %v10315, %v10363
  %v10365 = vpop.f32.mrf.mxu0
  %v10366 = vadd.f32 %v10317, %v10365
  %10367 = vdwg.mxu0
  %10368 = vmatpush.bf16.msra.mxu0 %v10188
  %10369 = vmatpush.bf16.msra.mxu0 %v10186
  %10370 = vmatpush.bf16.msra.mxu0 %v10184
  %10371 = vmatpush.bf16.msra.mxu0 %v10182
  %10372 = vmatpush.bf16.msra.mxu0 %v10180
  %10373 = vmatpush.bf16.msra.mxu0 %v10178
  %10374 = vmatpush.bf16.msra.mxu0 %v10176
  %10375 = vmatpush.bf16.msra.mxu0 %v10174
  %10376 = vmatmul.bf16.gmra.mxu0 %v9901
  %v10377 = vpop.f32.mrf.mxu0
  %v10378 = vadd.f32 %v10329, %v10377
  %v10379 = vpop.f32.mrf.mxu0
  %v10380 = vadd.f32 %v10331, %v10379
  %10381 = vmatmul.bf16.gmra.mxu0 %v9904
  %v10382 = vpop.f32.mrf.mxu0
  %v10383 = vadd.f32 %v10334, %v10382
  %v10384 = vpop.f32.mrf.mxu0
  %v10385 = vadd.f32 %v10336, %v10384
  %10386 = vmatmul.bf16.gmra.mxu0 %v9907
  %v10387 = vpop.f32.mrf.mxu0
  %v10388 = vadd.f32 %v10339, %v10387
  %v10389 = vpop.f32.mrf.mxu0
  %v10390 = vadd.f32 %v10341, %v10389
  %10391 = vmatmul.bf16.gmra.mxu0 %v9910
  %v10392 = vpop.f32.mrf.mxu0
  %v10393 = vadd.f32 %v10344, %v10392
  %v10394 = vpop.f32.mrf.mxu0
  %v10395 = vadd.f32 %v10346, %v10394
  %10396 = vmatmul.bf16.gmra.mxu0 %v9913
  %v10397 = vpop.f32.mrf.mxu0
  %v10398 = vadd.f32 %v10349, %v10397
  %v10399 = vpop.f32.mrf.mxu0
  %v10400 = vadd.f32 %v10351, %v10399
  %10401 = vmatmul.bf16.gmra.mxu0 %v9916
  %v10402 = vpop.f32.mrf.mxu0
  %v10403 = vadd.f32 %v10354, %v10402
  %v10404 = vpop.f32.mrf.mxu0
  %v10405 = vadd.f32 %v10356, %v10404
  %10406 = vmatmul.bf16.gmra.mxu0 %v9919
  %v10407 = vpop.f32.mrf.mxu0
  %v10408 = vadd.f32 %v10359, %v10407
  %v10409 = vpop.f32.mrf.mxu0
  %v10410 = vadd.f32 %v10361, %v10409
  %10411 = vmatmul.bf16.gmra.mxu0 %v9922
  %v10412 = vpop.f32.mrf.mxu0
  %v10413 = vadd.f32 %v10364, %v10412
  %v10414 = vpop.f32.mrf.mxu0
  %v10415 = vadd.f32 %v10366, %v10414
  %10416 = vdwg.mxu0
  %10417 = vmatpush.bf16.msra.mxu0 0
  %10418 = vmatpush.bf16.msra.mxu0 0
  %10419 = vmatpush.bf16.msra.mxu0 0
  %10420 = vmatpush.bf16.msra.mxu0 0
  %10421 = vmatpush.bf16.msra.mxu0 0
  %10422 = vmatpush.bf16.msra.mxu0 %v10265
  %10423 = vmatpush.bf16.msra.mxu0 %v10192
  %10424 = vmatpush.bf16.msra.mxu0 %v10190
  %10425 = vmatmul.bf16.gmra.mxu0 %v10248
  %v10426 = vpop.f32.mrf.mxu0
  %v10427 = vadd.f32 %v10378, %v10426
  %v10428 = vpop.f32.mrf.mxu0
  %v10429 = vadd.f32 %v10380, %v10428
  %10430 = vmatmul.bf16.gmra.mxu0 %v10250
  %v10431 = vpop.f32.mrf.mxu0
  %v10432 = vadd.f32 %v10383, %v10431
  %v10433 = vpop.f32.mrf.mxu0
  %v10434 = vadd.f32 %v10385, %v10433
  %10435 = vmatmul.bf16.gmra.mxu0 %v10252
  %v10436 = vpop.f32.mrf.mxu0
  %v10437 = vadd.f32 %v10388, %v10436
  %v10438 = vpop.f32.mrf.mxu0
  %v10439 = vadd.f32 %v10390, %v10438
  %10440 = vmatmul.bf16.gmra.mxu0 %v10254
  %v10441 = vpop.f32.mrf.mxu0
  %v10442 = vadd.f32 %v10393, %v10441
  %v10443 = vpop.f32.mrf.mxu0
  %v10444 = vadd.f32 %v10395, %v10443
  %10445 = vmatmul.bf16.gmra.mxu0 %v10256
  %v10446 = vpop.f32.mrf.mxu0
  %v10447 = vadd.f32 %v10398, %v10446
  %v10448 = vpop.f32.mrf.mxu0
  %v10449 = vadd.f32 %v10400, %v10448
  %10450 = vmatmul.bf16.gmra.mxu0 %v10258
  %v10451 = vpop.f32.mrf.mxu0
  %v10452 = vadd.f32 %v10403, %v10451
  %v10453 = vpop.f32.mrf.mxu0
  %v10454 = vadd.f32 %v10405, %v10453
  %10455 = vmatmul.bf16.gmra.mxu0 %v10260
  %v10456 = vpop.f32.mrf.mxu0
  %v10457 = vadd.f32 %v10408, %v10456
  %v10458 = vpop.f32.mrf.mxu0
  %v10459 = vadd.f32 %v10410, %v10458
  %10460 = vmatmul.bf16.gmra.mxu0 %v10262
  %v10461 = vpop.f32.mrf.mxu0
  %v10462 = vadd.f32 %v10413, %v10461
  %v10463 = vpop.f32.mrf.mxu0
  %v10464 = vadd.f32 %v10415, %v10463
  %10465 = vdwg.mxu0
  %10466 = vmatpush.bf16.msra.mxu0 %v10157
  %10467 = vmatpush.bf16.msra.mxu0 %v10155
  %10468 = vmatpush.bf16.msra.mxu0 %v10153
  %10469 = vmatpush.bf16.msra.mxu0 %v10151
  %10470 = vmatpush.bf16.msra.mxu0 %v10149
  %10471 = vmatpush.bf16.msra.mxu0 %v10147
  %10472 = vmatpush.bf16.msra.mxu0 %v10145
  %10473 = vmatpush.bf16.msra.mxu0 %v10143
  %10474 = vmatmul.bf16.gmra.mxu0 %v9837
  %v10475 = vpop.f32.mrf.mxu0
  %v10476 = vadd.f32 %v9980, %v10475
  %v10477 = vpop.f32.mrf.mxu0
  %v10478 = vadd.f32 %v9980, %v10477
  %10479 = vmatmul.bf16.gmra.mxu0 %v9840
  %v10480 = vpop.f32.mrf.mxu0
  %v10481 = vadd.f32 %v9980, %v10480
  %v10482 = vpop.f32.mrf.mxu0
  %v10483 = vadd.f32 %v9980, %v10482
  %10484 = vmatmul.bf16.gmra.mxu0 %v9843
  %v10485 = vpop.f32.mrf.mxu0
  %v10486 = vadd.f32 %v9980, %v10485
  %v10487 = vpop.f32.mrf.mxu0
  %v10488 = vadd.f32 %v9980, %v10487
  %10489 = vmatmul.bf16.gmra.mxu0 %v9846
  %v10490 = vpop.f32.mrf.mxu0
  %v10491 = vadd.f32 %v9980, %v10490
  %v10492 = vpop.f32.mrf.mxu0
  %v10493 = vadd.f32 %v9980, %v10492
  %10494 = vmatmul.bf16.gmra.mxu0 %v9849
  %v10495 = vpop.f32.mrf.mxu0
  %v10496 = vadd.f32 %v9980, %v10495
  %v10497 = vpop.f32.mrf.mxu0
  %v10498 = vadd.f32 %v9980, %v10497
  %10499 = vmatmul.bf16.gmra.mxu0 %v9852
  %v10500 = vpop.f32.mrf.mxu0
  %v10501 = vadd.f32 %v9980, %v10500
  %v10502 = vpop.f32.mrf.mxu0
  %v10503 = vadd.f32 %v9980, %v10502
  %10504 = vmatmul.bf16.gmra.mxu0 %v9855
  %v10505 = vpop.f32.mrf.mxu0
  %v10506 = vadd.f32 %v9980, %v10505
  %v10507 = vpop.f32.mrf.mxu0
  %v10508 = vadd.f32 %v9980, %v10507
  %10509 = vmatmul.bf16.gmra.mxu0 %v9858
  %v10510 = vpop.f32.mrf.mxu0
  %v10511 = vadd.f32 %v9980, %v10510
  %v10512 = vpop.f32.mrf.mxu0
  %v10513 = vadd.f32 %v9980, %v10512
  %10514 = vdwg.mxu0
  %10515 = vmatpush.bf16.msra.mxu0 %v10173
  %10516 = vmatpush.bf16.msra.mxu0 %v10171
  %10517 = vmatpush.bf16.msra.mxu0 %v10169
  %10518 = vmatpush.bf16.msra.mxu0 %v10167
  %10519 = vmatpush.bf16.msra.mxu0 %v10165
  %10520 = vmatpush.bf16.msra.mxu0 %v10163
  %10521 = vmatpush.bf16.msra.mxu0 %v10161
  %10522 = vmatpush.bf16.msra.mxu0 %v10159
  %10523 = vmatmul.bf16.gmra.mxu0 %v9877
  %v10524 = vpop.f32.mrf.mxu0
  %v10525 = vadd.f32 %v10476, %v10524
  %v10526 = vpop.f32.mrf.mxu0
  %v10527 = vadd.f32 %v10478, %v10526
  %10528 = vmatmul.bf16.gmra.mxu0 %v9880
  %v10529 = vpop.f32.mrf.mxu0
  %v10530 = vadd.f32 %v10481, %v10529
  %v10531 = vpop.f32.mrf.mxu0
  %v10532 = vadd.f32 %v10483, %v10531
  %10533 = vmatmul.bf16.gmra.mxu0 %v9883
  %v10534 = vpop.f32.mrf.mxu0
  %v10535 = vadd.f32 %v10486, %v10534
  %v10536 = vpop.f32.mrf.mxu0
  %v10537 = vadd.f32 %v10488, %v10536
  %10538 = vmatmul.bf16.gmra.mxu0 %v9886
  %v10539 = vpop.f32.mrf.mxu0
  %v10540 = vadd.f32 %v10491, %v10539
  %v10541 = vpop.f32.mrf.mxu0
  %v10542 = vadd.f32 %v10493, %v10541
  %10543 = vmatmul.bf16.gmra.mxu0 %v9889
  %v10544 = vpop.f32.mrf.mxu0
  %v10545 = vadd.f32 %v10496, %v10544
  %v10546 = vpop.f32.mrf.mxu0
  %v10547 = vadd.f32 %v10498, %v10546
  %10548 = vmatmul.bf16.gmra.mxu0 %v9892
  %v10549 = vpop.f32.mrf.mxu0
  %v10550 = vadd.f32 %v10501, %v10549
  %v10551 = vpop.f32.mrf.mxu0
  %v10552 = vadd.f32 %v10503, %v10551
  %10553 = vmatmul.bf16.gmra.mxu0 %v9895
  %v10554 = vpop.f32.mrf.mxu0
  %v10555 = vadd.f32 %v10506, %v10554
  %v10556 = vpop.f32.mrf.mxu0
  %v10557 = vadd.f32 %v10508, %v10556
  %10558 = vmatmul.bf16.gmra.mxu0 %v9898
  %v10559 = vpop.f32.mrf.mxu0
  %v10560 = vadd.f32 %v10511, %v10559
  %v10561 = vpop.f32.mrf.mxu0
  %v10562 = vadd.f32 %v10513, %v10561
  %10563 = vdwg.mxu0
  %10564 = vmatpush.bf16.msra.mxu0 %v10189
  %10565 = vmatpush.bf16.msra.mxu0 %v10187
  %10566 = vmatpush.bf16.msra.mxu0 %v10185
  %10567 = vmatpush.bf16.msra.mxu0 %v10183
  %10568 = vmatpush.bf16.msra.mxu0 %v10181
  %10569 = vmatpush.bf16.msra.mxu0 %v10179
  %10570 = vmatpush.bf16.msra.mxu0 %v10177
  %10571 = vmatpush.bf16.msra.mxu0 %v10175
  %10572 = vmatmul.bf16.gmra.mxu0 %v9901
  %v10573 = vpop.f32.mrf.mxu0
  %v10574 = vadd.f32 %v10525, %v10573
  %v10575 = vpop.f32.mrf.mxu0
  %v10576 = vadd.f32 %v10527, %v10575
  %10577 = vmatmul.bf16.gmra.mxu0 %v9904
  %v10578 = vpop.f32.mrf.mxu0
  %v10579 = vadd.f32 %v10530, %v10578
  %v10580 = vpop.f32.mrf.mxu0
  %v10581 = vadd.f32 %v10532, %v10580
  %10582 = vmatmul.bf16.gmra.mxu0 %v9907
  %v10583 = vpop.f32.mrf.mxu0
  %v10584 = vadd.f32 %v10535, %v10583
  %v10585 = vpop.f32.mrf.mxu0
  %v10586 = vadd.f32 %v10537, %v10585
  %10587 = vmatmul.bf16.gmra.mxu0 %v9910
  %v10588 = vpop.f32.mrf.mxu0
  %v10589 = vadd.f32 %v10540, %v10588
  %v10590 = vpop.f32.mrf.mxu0
  %v10591 = vadd.f32 %v10542, %v10590
  %10592 = vmatmul.bf16.gmra.mxu0 %v9913
  %v10593 = vpop.f32.mrf.mxu0
  %v10594 = vadd.f32 %v10545, %v10593
  %v10595 = vpop.f32.mrf.mxu0
  %v10596 = vadd.f32 %v10547, %v10595
  %10597 = vmatmul.bf16.gmra.mxu0 %v9916
  %v10598 = vpop.f32.mrf.mxu0
  %v10599 = vadd.f32 %v10550, %v10598
  %v10600 = vpop.f32.mrf.mxu0
  %v10601 = vadd.f32 %v10552, %v10600
  %10602 = vmatmul.bf16.gmra.mxu0 %v9919
  %v10603 = vpop.f32.mrf.mxu0
  %v10604 = vadd.f32 %v10555, %v10603
  %v10605 = vpop.f32.mrf.mxu0
  %v10606 = vadd.f32 %v10557, %v10605
  %10607 = vmatmul.bf16.gmra.mxu0 %v9922
  %v10608 = vpop.f32.mrf.mxu0
  %v10609 = vadd.f32 %v10560, %v10608
  %v10610 = vpop.f32.mrf.mxu0
  %v10611 = vadd.f32 %v10562, %v10610
  %10612 = vdwg.mxu0
  %10613 = vmatpush.bf16.msra.mxu0 0
  %10614 = vmatpush.bf16.msra.mxu0 0
  %10615 = vmatpush.bf16.msra.mxu0 0
  %10616 = vmatpush.bf16.msra.mxu0 0
  %10617 = vmatpush.bf16.msra.mxu0 0
  %10618 = vmatpush.bf16.msra.mxu0 %v10268
  %10619 = vmatpush.bf16.msra.mxu0 %v10193
  %10620 = vmatpush.bf16.msra.mxu0 %v10191
  %10621 = vmatmul.bf16.gmra.mxu0 %v10248
  %v10622 = vpop.f32.mrf.mxu0
  %v10623 = vadd.f32 %v10574, %v10622
  %v10624 = vpop.f32.mrf.mxu0
  %v10625 = vadd.f32 %v10576, %v10624
  %10626 = vmatmul.bf16.gmra.mxu0 %v10250
  %v10627 = vpop.f32.mrf.mxu0
  %v10628 = vadd.f32 %v10579, %v10627
  %v10629 = vpop.f32.mrf.mxu0
  %v10630 = vadd.f32 %v10581, %v10629
  %10631 = vmatmul.bf16.gmra.mxu0 %v10252
  %v10632 = vpop.f32.mrf.mxu0
  %v10633 = vadd.f32 %v10584, %v10632
  %v10634 = vpop.f32.mrf.mxu0
  %v10635 = vadd.f32 %v10586, %v10634
  %10636 = vmatmul.bf16.gmra.mxu0 %v10254
  %v10637 = vpop.f32.mrf.mxu0
  %v10638 = vadd.f32 %v10589, %v10637
  %v10639 = vpop.f32.mrf.mxu0
  %v10640 = vadd.f32 %v10591, %v10639
  %10641 = vmatmul.bf16.gmra.mxu0 %v10256
  %v10642 = vpop.f32.mrf.mxu0
  %v10643 = vadd.f32 %v10594, %v10642
  %v10644 = vpop.f32.mrf.mxu0
  %v10645 = vadd.f32 %v10596, %v10644
  %10646 = vmatmul.bf16.gmra.mxu0 %v10258
  %v10647 = vpop.f32.mrf.mxu0
  %v10648 = vadd.f32 %v10599, %v10647
  %v10649 = vpop.f32.mrf.mxu0
  %v10650 = vadd.f32 %v10601, %v10649
  %10651 = vmatmul.bf16.gmra.mxu0 %v10260
  %v10652 = vpop.f32.mrf.mxu0
  %v10653 = vadd.f32 %v10604, %v10652
  %v10654 = vpop.f32.mrf.mxu0
  %v10655 = vadd.f32 %v10606, %v10654
  %10656 = vmatmul.bf16.gmra.mxu0 %v10262
  %v10657 = vpop.f32.mrf.mxu0
  %v10658 = vadd.f32 %v10609, %v10657
  %v10659 = vpop.f32.mrf.mxu0
  %v10660 = vadd.f32 %v10611, %v10659
  %10661 = vdwg.mxu0
  %v10662 = vld [vmem:[%s7] sm:$0xff]
  %v10663 = vld [vmem:[%s7 + $0x8] sm:$0xff]
  %v10664 = vld [vmem:[%s7 + $0x10] sm:$0xff]
  %v10665 = vld [vmem:[%s7 + $0x18] sm:$0xff]
  %v10666 = vld [vmem:[%s7 + $0x20] sm:$0xff]
  %v10667 = vld [vmem:[%s7 + $0x28] sm:$0xff]
  %v10668 = vld [vmem:[%s7 + $0x30] sm:$0xff]
  %v10669 = vld [vmem:[%s7 + $0x38] sm:$0xff]
  %v10670 = vld [vmem:[%s7 + $0x40] sm:$0xff]
  %v10671 = vld [vmem:[%s7 + $0x48] sm:$0xff]
  %v10672 = vld [vmem:[%s7 + $0x50] sm:$0xff]
  %v10673 = vld [vmem:[%s7 + $0x58] sm:$0xff]
  %v10674 = vld [vmem:[%s7 + $0x60] sm:$0xff]
  %v10675 = vld [vmem:[%s7 + $0x68] sm:$0xff]
  %v10676 = vld [vmem:[%s7 + $0x70] sm:$0xff]
  %v10677 = vld [vmem:[%s7 + $0x78] sm:$0xff]
  %v10678 = vld [vmem:[%s7 + $0x80] sm:$0xff]
  %v10679 = vld [vmem:[%s7 + $0x88] sm:$0xff]
  %v10680 = vld [vmem:[%s7 + $0x90] sm:$0xff]
  %v10681 = vld [vmem:[%s7 + $0x98] sm:$0xff]
  %v10683 = vsel %vm243, %v10623, 0
  %v10686 = vsel %vm243, %v10625, 0
  %v10689 = vsel %vm243, %v10628, 0
  %v10692 = vsel %vm243, %v10630, 0
  %v10695 = vsel %vm243, %v10633, 0
  %v10698 = vsel %vm243, %v10635, 0
  %v10701 = vsel %vm243, %v10638, 0
  %v10704 = vsel %vm243, %v10640, 0
  %v10707 = vsel %vm243, %v10643, 0
  %v10710 = vsel %vm243, %v10645, 0
  %v10713 = vsel %vm243, %v10648, 0
  %v10716 = vsel %vm243, %v10650, 0
  %v10719 = vsel %vm243, %v10653, 0
  %v10722 = vsel %vm243, %v10655, 0
  %v10725 = vsel %vm243, %v10658, 0
  %v10728 = vsel %vm243, %v10660, 0
  %10730 = vmatpush.msra.mxu0 %v10677
  %10731 = vmatpush.msra.mxu0 %v10676
  %10732 = vmatpush.msra.mxu0 %v10675
  %10733 = vmatpush.msra.mxu0 %v10674
  %10734 = vmatpush.msra.mxu0 %v10673
  %10735 = vmatpush.msra.mxu0 %v10672
  %10736 = vmatpush.msra.mxu0 %v10671
  %10737 = vmatpush.msra.mxu0 %v10670
  %10738 = vmatpush.msra.mxu0 %v10669
  %10739 = vmatpush.msra.mxu0 %v10668
  %10740 = vmatpush.msra.mxu0 %v10667
  %10741 = vmatpush.msra.mxu0 %v10666
  %10742 = vmatpush.msra.mxu0 %v10665
  %10743 = vmatpush.msra.mxu0 %v10664
  %10744 = vmatpush.msra.mxu0 %v10663
  %10745 = vmatpush.msra.mxu0 %v10662
  %10746 = vmatmul.f32.gmra.mxu0 %v10427
  %v10747 = vpop.f32.mrf.mxu0
  %v10748 = vadd.f32 0.0, %v10747
  %10749 = vmatmul.f32.gmra.mxu0 %v10429
  %v10750 = vpop.f32.mrf.mxu0
  %v10751 = vadd.f32 0.0, %v10750
  %10752 = vmatmul.f32.gmra.mxu0 %v10432
  %v10753 = vpop.f32.mrf.mxu0
  %v10754 = vadd.f32 0.0, %v10753
  %10755 = vmatmul.f32.gmra.mxu0 %v10434
  %v10756 = vpop.f32.mrf.mxu0
  %v10757 = vadd.f32 0.0, %v10756
  %10758 = vmatmul.f32.gmra.mxu0 %v10437
  %v10759 = vpop.f32.mrf.mxu0
  %v10760 = vadd.f32 0.0, %v10759
  %10761 = vmatmul.f32.gmra.mxu0 %v10439
  %v10762 = vpop.f32.mrf.mxu0
  %v10763 = vadd.f32 0.0, %v10762
  %10764 = vmatmul.f32.gmra.mxu0 %v10442
  %v10765 = vpop.f32.mrf.mxu0
  %v10766 = vadd.f32 0.0, %v10765
  %10767 = vmatmul.f32.gmra.mxu0 %v10444
  %v10768 = vpop.f32.mrf.mxu0
  %v10769 = vadd.f32 0.0, %v10768
  %10770 = vmatmul.f32.gmra.mxu0 %v10447
  %v10771 = vpop.f32.mrf.mxu0
  %v10772 = vadd.f32 0.0, %v10771
  %10773 = vmatmul.f32.gmra.mxu0 %v10449
  %v10774 = vpop.f32.mrf.mxu0
  %v10775 = vadd.f32 0.0, %v10774
  %10776 = vmatmul.f32.gmra.mxu0 %v10452
  %v10777 = vpop.f32.mrf.mxu0
  %v10778 = vadd.f32 0.0, %v10777
  %10779 = vmatmul.f32.gmra.mxu0 %v10454
  %v10780 = vpop.f32.mrf.mxu0
  %v10781 = vadd.f32 0.0, %v10780
  %10782 = vmatmul.f32.gmra.mxu0 %v10457
  %v10783 = vpop.f32.mrf.mxu0
  %v10784 = vadd.f32 0.0, %v10783
  %10785 = vmatmul.f32.gmra.mxu0 %v10459
  %v10786 = vpop.f32.mrf.mxu0
  %v10787 = vadd.f32 0.0, %v10786
  %10788 = vmatmul.f32.gmra.mxu0 %v10462
  %v10789 = vpop.f32.mrf.mxu0
  %v10790 = vadd.f32 0.0, %v10789
  %10791 = vmatmul.f32.gmra.mxu0 %v10464
  %v10792 = vpop.f32.mrf.mxu0
  %v10793 = vadd.f32 0.0, %v10792
  %10794 = vdwg.mxu0
  %10795 = vmatpush.msra.mxu0 0.0
  %10796 = vmatpush.msra.mxu0 0.0
  %10797 = vmatpush.msra.mxu0 0.0
  %10798 = vmatpush.msra.mxu0 0.0
  %10799 = vmatpush.msra.mxu0 0.0
  %10800 = vmatpush.msra.mxu0 0.0
  %10801 = vmatpush.msra.mxu0 0.0
  %10802 = vmatpush.msra.mxu0 0.0
  %10803 = vmatpush.msra.mxu0 0.0
  %10804 = vmatpush.msra.mxu0 0.0
  %10805 = vmatpush.msra.mxu0 0.0
  %10806 = vmatpush.msra.mxu0 0.0
  %10807 = vmatpush.msra.mxu0 %v10681
  %10808 = vmatpush.msra.mxu0 %v10680
  %10809 = vmatpush.msra.mxu0 %v10679
  %10810 = vmatpush.msra.mxu0 %v10678
  %10811 = vmatmul.f32.gmra.mxu0 %v10683
  %v10812 = vpop.f32.mrf.mxu0
  %v10813 = vadd.f32 %v10748, %v10812
  %10814 = vmatmul.f32.gmra.mxu0 %v10686
  %v10815 = vpop.f32.mrf.mxu0
  %v10816 = vadd.f32 %v10751, %v10815
  %10817 = vmatmul.f32.gmra.mxu0 %v10689
  %v10818 = vpop.f32.mrf.mxu0
  %v10819 = vadd.f32 %v10754, %v10818
  %10820 = vmatmul.f32.gmra.mxu0 %v10692
  %v10821 = vpop.f32.mrf.mxu0
  %v10822 = vadd.f32 %v10757, %v10821
  %10823 = vmatmul.f32.gmra.mxu0 %v10695
  %v10824 = vpop.f32.mrf.mxu0
  %v10825 = vadd.f32 %v10760, %v10824
  %10826 = vmatmul.f32.gmra.mxu0 %v10698
  %v10827 = vpop.f32.mrf.mxu0
  %v10828 = vadd.f32 %v10763, %v10827
  %10829 = vmatmul.f32.gmra.mxu0 %v10701
  %v10830 = vpop.f32.mrf.mxu0
  %v10831 = vadd.f32 %v10766, %v10830
  %10832 = vmatmul.f32.gmra.mxu0 %v10704
  %v10833 = vpop.f32.mrf.mxu0
  %v10834 = vadd.f32 %v10769, %v10833
  %10835 = vmatmul.f32.gmra.mxu0 %v10707
  %v10836 = vpop.f32.mrf.mxu0
  %v10837 = vadd.f32 %v10772, %v10836
  %10838 = vmatmul.f32.gmra.mxu0 %v10710
  %v10839 = vpop.f32.mrf.mxu0
  %v10840 = vadd.f32 %v10775, %v10839
  %10841 = vmatmul.f32.gmra.mxu0 %v10713
  %v10842 = vpop.f32.mrf.mxu0
  %v10843 = vadd.f32 %v10778, %v10842
  %10844 = vmatmul.f32.gmra.mxu0 %v10716
  %v10845 = vpop.f32.mrf.mxu0
  %v10846 = vadd.f32 %v10781, %v10845
  %10847 = vmatmul.f32.gmra.mxu0 %v10719
  %v10848 = vpop.f32.mrf.mxu0
  %v10849 = vadd.f32 %v10784, %v10848
  %10850 = vmatmul.f32.gmra.mxu0 %v10722
  %v10851 = vpop.f32.mrf.mxu0
  %v10852 = vadd.f32 %v10787, %v10851
  %10853 = vmatmul.f32.gmra.mxu0 %v10725
  %v10854 = vpop.f32.mrf.mxu0
  %v10855 = vadd.f32 %v10790, %v10854
  %10856 = vmatmul.f32.gmra.mxu0 %v10728
  %v10857 = vpop.f32.mrf.mxu0
  %v10858 = vadd.f32 %v10793, %v10857
  %10859 = vdwg.mxu0
  %v10860 = vld [vmem:[%s8] sm:$0xff]
  %v10861 = vld [vmem:[%s8 + $0x8] sm:$0xff]
  %v10862 = vld [vmem:[%s8 + $0x10] sm:$0xff]
  %v10863 = vld [vmem:[%s8 + $0x18] sm:$0xff]
  %v10864 = vld [vmem:[%s8 + $0x20] sm:$0xff]
  %v10865 = vld [vmem:[%s8 + $0x28] sm:$0xff]
  %v10866 = vld [vmem:[%s8 + $0x30] sm:$0xff]
  %v10867 = vld [vmem:[%s8 + $0x38] sm:$0xff]
  %v10868 = vld [vmem:[%s8 + $0x40] sm:$0xff]
  %v10869 = vld [vmem:[%s8 + $0x48] sm:$0xff]
  %v10870 = vld [vmem:[%s8 + $0x50] sm:$0xff]
  %v10871 = vld [vmem:[%s8 + $0x58] sm:$0xff]
  %v10872 = vld [vmem:[%s8 + $0x60] sm:$0xff]
  %v10873 = vld [vmem:[%s8 + $0x68] sm:$0xff]
  %v10874 = vld [vmem:[%s8 + $0x70] sm:$0xff]
  %v10875 = vld [vmem:[%s8 + $0x78] sm:$0xff]
  %v10876 = vld [vmem:[%s8 + $0x80] sm:$0xff]
  %v10877 = vld [vmem:[%s8 + $0x88] sm:$0xff]
  %v10878 = vld [vmem:[%s8 + $0x90] sm:$0xff]
  %v10879 = vld [vmem:[%s8 + $0x98] sm:$0xff]
  %10880 = vmatpush.msra.mxu0 %v10875
  %10881 = vmatpush.msra.mxu0 %v10874
  %10882 = vmatpush.msra.mxu0 %v10873
  %10883 = vmatpush.msra.mxu0 %v10872
  %10884 = vmatpush.msra.mxu0 %v10871
  %10885 = vmatpush.msra.mxu0 %v10870
  %10886 = vmatpush.msra.mxu0 %v10869
  %10887 = vmatpush.msra.mxu0 %v10868
  %10888 = vmatpush.msra.mxu0 %v10867
  %10889 = vmatpush.msra.mxu0 %v10866
  %10890 = vmatpush.msra.mxu0 %v10865
  %10891 = vmatpush.msra.mxu0 %v10864
  %10892 = vmatpush.msra.mxu0 %v10863
  %10893 = vmatpush.msra.mxu0 %v10862
  %10894 = vmatpush.msra.mxu0 %v10861
  %10895 = vmatpush.msra.mxu0 %v10860
  %10896 = vmatmul.f32.gmra.mxu0 %v10427
  %v10897 = vpop.f32.mrf.mxu0
  %v10898 = vadd.f32 0.0, %v10897
  %10899 = vmatmul.f32.gmra.mxu0 %v10429
  %v10900 = vpop.f32.mrf.mxu0
  %v10901 = vadd.f32 0.0, %v10900
  %10902 = vmatmul.f32.gmra.mxu0 %v10432
  %v10903 = vpop.f32.mrf.mxu0
  %v10904 = vadd.f32 0.0, %v10903
  %10905 = vmatmul.f32.gmra.mxu0 %v10434
  %v10906 = vpop.f32.mrf.mxu0
  %v10907 = vadd.f32 0.0, %v10906
  %10908 = vmatmul.f32.gmra.mxu0 %v10437
  %v10909 = vpop.f32.mrf.mxu0
  %v10910 = vadd.f32 0.0, %v10909
  %10911 = vmatmul.f32.gmra.mxu0 %v10439
  %v10912 = vpop.f32.mrf.mxu0
  %v10913 = vadd.f32 0.0, %v10912
  %10914 = vmatmul.f32.gmra.mxu0 %v10442
  %v10915 = vpop.f32.mrf.mxu0
  %v10916 = vadd.f32 0.0, %v10915
  %10917 = vmatmul.f32.gmra.mxu0 %v10444
  %v10918 = vpop.f32.mrf.mxu0
  %v10919 = vadd.f32 0.0, %v10918
  %10920 = vmatmul.f32.gmra.mxu0 %v10447
  %v10921 = vpop.f32.mrf.mxu0
  %v10922 = vadd.f32 0.0, %v10921
  %10923 = vmatmul.f32.gmra.mxu0 %v10449
  %v10924 = vpop.f32.mrf.mxu0
  %v10925 = vadd.f32 0.0, %v10924
  %10926 = vmatmul.f32.gmra.mxu0 %v10452
  %v10927 = vpop.f32.mrf.mxu0
  %v10928 = vadd.f32 0.0, %v10927
  %10929 = vmatmul.f32.gmra.mxu0 %v10454
  %v10930 = vpop.f32.mrf.mxu0
  %v10931 = vadd.f32 0.0, %v10930
  %10932 = vmatmul.f32.gmra.mxu0 %v10457
  %v10933 = vpop.f32.mrf.mxu0
  %v10934 = vadd.f32 0.0, %v10933
  %10935 = vmatmul.f32.gmra.mxu0 %v10459
  %v10936 = vpop.f32.mrf.mxu0
  %v10937 = vadd.f32 0.0, %v10936
  %10938 = vmatmul.f32.gmra.mxu0 %v10462
  %v10939 = vpop.f32.mrf.mxu0
  %v10940 = vadd.f32 0.0, %v10939
  %10941 = vmatmul.f32.gmra.mxu0 %v10464
  %v10942 = vpop.f32.mrf.mxu0
  %v10943 = vadd.f32 0.0, %v10942
  %10944 = vdwg.mxu0
  %10945 = vmatpush.msra.mxu0 0.0
  %10946 = vmatpush.msra.mxu0 0.0
  %10947 = vmatpush.msra.mxu0 0.0
  %10948 = vmatpush.msra.mxu0 0.0
  %10949 = vmatpush.msra.mxu0 0.0
  %10950 = vmatpush.msra.mxu0 0.0
  %10951 = vmatpush.msra.mxu0 0.0
  %10952 = vmatpush.msra.mxu0 0.0
  %10953 = vmatpush.msra.mxu0 0.0
  %10954 = vmatpush.msra.mxu0 0.0
  %10955 = vmatpush.msra.mxu0 0.0
  %10956 = vmatpush.msra.mxu0 0.0
  %10957 = vmatpush.msra.mxu0 %v10879
  %10958 = vmatpush.msra.mxu0 %v10878
  %10959 = vmatpush.msra.mxu0 %v10877
  %10960 = vmatpush.msra.mxu0 %v10876
  %10961 = vmatmul.f32.gmra.mxu0 %v10683
  %v10962 = vpop.f32.mrf.mxu0
  %v10963 = vadd.f32 %v10898, %v10962
  %10964 = vmatmul.f32.gmra.mxu0 %v10686
  %v10965 = vpop.f32.mrf.mxu0
  %v10966 = vadd.f32 %v10901, %v10965
  %10967 = vmatmul.f32.gmra.mxu0 %v10689
  %v10968 = vpop.f32.mrf.mxu0
  %v10969 = vadd.f32 %v10904, %v10968
  %10970 = vmatmul.f32.gmra.mxu0 %v10692
  %v10971 = vpop.f32.mrf.mxu0
  %v10972 = vadd.f32 %v10907, %v10971
  %10973 = vmatmul.f32.gmra.mxu0 %v10695
  %v10974 = vpop.f32.mrf.mxu0
  %v10975 = vadd.f32 %v10910, %v10974
  %10976 = vmatmul.f32.gmra.mxu0 %v10698
  %v10977 = vpop.f32.mrf.mxu0
  %v10978 = vadd.f32 %v10913, %v10977
  %10979 = vmatmul.f32.gmra.mxu0 %v10701
  %v10980 = vpop.f32.mrf.mxu0
  %v10981 = vadd.f32 %v10916, %v10980
  %10982 = vmatmul.f32.gmra.mxu0 %v10704
  %v10983 = vpop.f32.mrf.mxu0
  %v10984 = vadd.f32 %v10919, %v10983
  %10985 = vmatmul.f32.gmra.mxu0 %v10707
  %v10986 = vpop.f32.mrf.mxu0
  %v10987 = vadd.f32 %v10922, %v10986
  %10988 = vmatmul.f32.gmra.mxu0 %v10710
  %v10989 = vpop.f32.mrf.mxu0
  %v10990 = vadd.f32 %v10925, %v10989
  %10991 = vmatmul.f32.gmra.mxu0 %v10713
  %v10992 = vpop.f32.mrf.mxu0
  %v10993 = vadd.f32 %v10928, %v10992
  %10994 = vmatmul.f32.gmra.mxu0 %v10716
  %v10995 = vpop.f32.mrf.mxu0
  %v10996 = vadd.f32 %v10931, %v10995
  %10997 = vmatmul.f32.gmra.mxu0 %v10719
  %v10998 = vpop.f32.mrf.mxu0
  %v10999 = vadd.f32 %v10934, %v10998
  %11000 = vmatmul.f32.gmra.mxu0 %v10722
  %v11001 = vpop.f32.mrf.mxu0
  %v11002 = vadd.f32 %v10937, %v11001
  %11003 = vmatmul.f32.gmra.mxu0 %v10725
  %v11004 = vpop.f32.mrf.mxu0
  %v11005 = vadd.f32 %v10940, %v11004
  %11006 = vmatmul.f32.gmra.mxu0 %v10728
  %v11007 = vpop.f32.mrf.mxu0
  %v11008 = vadd.f32 %v10943, %v11007
  %11009 = vdwg.mxu0
  %v11010 = vmax.f32 %v10813, %v10963
  %v11011 = vmax.f32 %v10816, %v10966
  %v11012 = vmax.f32 %v10819, %v10969
  %v11013 = vmax.f32 %v10822, %v10972
  %v11014 = vmax.f32 %v10825, %v10975
  %v11015 = vmax.f32 %v10828, %v10978
  %v11016 = vmax.f32 %v10831, %v10981
  %v11017 = vmax.f32 %v10834, %v10984
  %v11018 = vmax.f32 %v10837, %v10987
  %v11019 = vmax.f32 %v10840, %v10990
  %v11020 = vmax.f32 %v10843, %v10993
  %v11021 = vmax.f32 %v10846, %v10996
  %v11022 = vmax.f32 %v10849, %v10999
  %v11023 = vmax.f32 %v10852, %v11002
  %v11024 = vmax.f32 %v10855, %v11005
  %v11025 = vmax.f32 %v10858, %v11008
  %11026 = vst.msk [vmem:[%s9 + $0x100] sm:$0xff] %vm6919, %v11010
  %11027 = vst.msk [vmem:[%s9 + $0x108] sm:$0xff] %vm6919, %v11011
  %11028 = vst.msk [vmem:[%s9 + $0x110] sm:$0xff] %vm6919, %v11012
  %11029 = vst.msk [vmem:[%s9 + $0x118] sm:$0xff] %vm6919, %v11013
  %11030 = vst.msk [vmem:[%s9 + $0x120] sm:$0xff] %vm6919, %v11014
  %11031 = vst.msk [vmem:[%s9 + $0x128] sm:$0xff] %vm6919, %v11015
  %11032 = vst.msk [vmem:[%s9 + $0x130] sm:$0xff] %vm6919, %v11016
  %11033 = vst.msk [vmem:[%s9 + $0x138] sm:$0xff] %vm6919, %v11017
  %11034 = vst.msk [vmem:[%s9 + $0x140] sm:$0xff] %vm6919, %v11018
  %11035 = vst.msk [vmem:[%s9 + $0x148] sm:$0xff] %vm6919, %v11019
  %11036 = vst.msk [vmem:[%s9 + $0x150] sm:$0xff] %vm6919, %v11020
  %11037 = vst.msk [vmem:[%s9 + $0x158] sm:$0xff] %vm6919, %v11021
  %11038 = vst.msk [vmem:[%s9 + $0x160] sm:$0xff] %vm6919, %v11022
  %11039 = vst.msk [vmem:[%s9 + $0x168] sm:$0xff] %vm6919, %v11023
  %11040 = vst.msk [vmem:[%s9 + $0x170] sm:$0xff] %vm6919, %v11024
  %11041 = vst.msk [vmem:[%s9 + $0x178] sm:$0xff] %vm6919, %v11025
  %v11042 = vld [vmem:[#allocation2 + $0xc0] sm:$0xf]
  %v11043 = vld [vmem:[#allocation2 + $0xc4] sm:$0xf]
  %v11044 = vld [vmem:[#allocation2 + $0xc8] sm:$0xf]
  %v11045 = vld [vmem:[#allocation2 + $0xcc] sm:$0xf]
  %v11046 = vld [vmem:[#allocation2 + $0xd0] sm:$0xf]
  %v11047 = vld [vmem:[#allocation2 + $0xd4] sm:$0xf]
  %v11048 = vld [vmem:[#allocation2 + $0xd8] sm:$0xf]
  %v11049 = vld [vmem:[#allocation2 + $0xdc] sm:$0xf]
  %v11050 = vld [vmem:[#allocation2 + $0xe0] sm:$0xf]
  %v11051 = vld [vmem:[#allocation2 + $0xe4] sm:$0xf]
  %v11052 = vld [vmem:[#allocation2 + $0xe8] sm:$0xf]
  %v11053 = vld [vmem:[#allocation2 + $0xec] sm:$0xf]
  %v11054 = vld [vmem:[#allocation2 + $0xf0] sm:$0xf]
  %v11055 = vld [vmem:[#allocation2 + $0xf4] sm:$0xf]
  %v11056 = vld [vmem:[#allocation2 + $0xf8] sm:$0xf]
  %v11057 = vld [vmem:[#allocation2 + $0xfc] sm:$0xf]
  %v11058 = vld [vmem:[#allocation2 + $0x100] sm:$0x1]
  %v11059 = vld [vmem:[#allocation2 + $0xc0] sm:$0xe]
  %v11060 = vld [vmem:[#allocation2 + $0x100] sm:$0x3]
  %v11061 = vld [vmem:[#allocation2 + $0xc0] sm:$0xc]
  %v11078 = vunpack.c.l.b16 %v11042
  %v11079 = vunpack.c.l.b16 %v11043
  %v11080 = vunpack.c.l.b16 %v11044
  %v11081 = vunpack.c.l.b16 %v11045
  %v11082 = vunpack.c.l.b16 %v11046
  %v11083 = vunpack.c.l.b16 %v11047
  %v11084 = vunpack.c.l.b16 %v11048
  %v11085 = vunpack.c.l.b16 %v11049
  %v11086 = vunpack.c.l.b16 %v11050
  %v11087 = vunpack.c.l.b16 %v11051
  %v11088 = vunpack.c.l.b16 %v11052
  %v11089 = vunpack.c.l.b16 %v11053
  %v11090 = vunpack.c.l.b16 %v11054
  %v11091 = vunpack.c.l.b16 %v11055
  %v11092 = vunpack.c.l.b16 %v11056
  %v11093 = vunpack.c.l.b16 %v11057
  %v11094 = vpack.c.b16 %v11079, %v11078
  %v11095 = vpack.c.b16 %v11081, %v11080
  %v11096 = vpack.c.b16 %v11083, %v11082
  %v11097 = vpack.c.b16 %v11085, %v11084
  %v11098 = vpack.c.b16 %v11087, %v11086
  %v11099 = vpack.c.b16 %v11089, %v11088
  %v11100 = vpack.c.b16 %v11091, %v11090
  %v11101 = vpack.c.b16 %v11093, %v11092
  %v11103 = vunpack.c.l.b16 %v11058
  %v11104 = vpack.c.b16 %v11103, %v11103
  %v11106 = vshrl.u32 %v11094, 16
  %v11108 = vshll.u32 %v11094, 16
  %v11110 = vrot.slane %v11108, 1
  %v11111 = vor.u32 %v11106, %v11110
  %v11113 = vshll.u32 %v11095, 16
  %v11115 = vrot.slane %v11113, 1
  %v11116 = vsel %vm6629, %v11111, %v11115
  %v11117 = vshrl.u32 %v11095, 16
  %v11119 = vor.u32 %v11117, %v11115
  %v11121 = vshll.u32 %v11096, 16
  %v11123 = vrot.slane %v11121, 1
  %v11124 = vsel %vm6629, %v11119, %v11123
  %v11125 = vshrl.u32 %v11096, 16
  %v11127 = vor.u32 %v11125, %v11123
  %v11129 = vshll.u32 %v11097, 16
  %v11131 = vrot.slane %v11129, 1
  %v11132 = vsel %vm6629, %v11127, %v11131
  %v11133 = vshrl.u32 %v11097, 16
  %v11135 = vor.u32 %v11133, %v11131
  %v11137 = vshll.u32 %v11098, 16
  %v11139 = vrot.slane %v11137, 1
  %v11140 = vsel %vm6629, %v11135, %v11139
  %v11141 = vshrl.u32 %v11098, 16
  %v11143 = vor.u32 %v11141, %v11139
  %v11145 = vshll.u32 %v11099, 16
  %v11147 = vrot.slane %v11145, 1
  %v11148 = vsel %vm6629, %v11143, %v11147
  %v11149 = vshrl.u32 %v11099, 16
  %v11151 = vor.u32 %v11149, %v11147
  %v11153 = vshll.u32 %v11100, 16
  %v11155 = vrot.slane %v11153, 1
  %v11156 = vsel %vm6629, %v11151, %v11155
  %v11157 = vshrl.u32 %v11100, 16
  %v11159 = vor.u32 %v11157, %v11155
  %v11161 = vshll.u32 %v11101, 16
  %v11163 = vrot.slane %v11161, 1
  %v11164 = vsel %vm6629, %v11159, %v11163
  %v11165 = vshrl.u32 %v11101, 16
  %v11167 = vor.u32 %v11165, %v11163
  %v11169 = vshll.u32 %v11104, 16
  %v11171 = vrot.slane %v11169, 1
  %v11172 = vsel %vm6629, %v11167, %v11171
  %11173 = vrot.lane.b32.xlu0 %v11116, 84
  %v11174 = vpop.permute.xlu0 %11173
  %11175 = vrot.lane.b32.xlu0 %v11124, 84
  %v11176 = vpop.permute.xlu0 %11175
  %11177 = vrot.lane.b32.xlu0 %v11132, 84
  %v11178 = vpop.permute.xlu0 %11177
  %11179 = vrot.lane.b32.xlu0 %v11140, 84
  %v11180 = vpop.permute.xlu0 %11179
  %11181 = vrot.lane.b32.xlu0 %v11148, 84
  %v11182 = vpop.permute.xlu0 %11181
  %11183 = vrot.lane.b32.xlu0 %v11156, 84
  %v11184 = vpop.permute.xlu0 %11183
  %11185 = vrot.lane.b32.xlu0 %v11164, 84
  %v11186 = vpop.permute.xlu0 %11185
  %11187 = vrot.lane.b32.xlu0 %v11172, 84
  %v11188 = vpop.permute.xlu0 %11187
  %v11190 = vunpack.c.l.b16 %v11059
  %v11191 = vpack.c.b16 %v11079, %v11190
  %v11192 = vrot.slane %v11191, 1
  %v11193 = vrot.slane %v11095, 1
  %v11194 = vsel %vm6717, %v11192, %v11193
  %v11195 = vrot.slane %v11096, 1
  %v11196 = vsel %vm6717, %v11193, %v11195
  %v11197 = vrot.slane %v11097, 1
  %v11198 = vsel %vm6717, %v11195, %v11197
  %v11199 = vrot.slane %v11098, 1
  %v11200 = vsel %vm6717, %v11197, %v11199
  %v11201 = vrot.slane %v11099, 1
  %v11202 = vsel %vm6717, %v11199, %v11201
  %v11203 = vrot.slane %v11100, 1
  %v11204 = vsel %vm6717, %v11201, %v11203
  %v11205 = vrot.slane %v11101, 1
  %v11206 = vsel %vm6717, %v11203, %v11205
  %v11207 = vrot.slane %v11104, 1
  %v11208 = vsel %vm6717, %v11205, %v11207
  %11209 = vrot.lane.b32.xlu0 %v11194, 40
  %v11210 = vpop.permute.xlu0 %11209
  %11211 = vrot.lane.b32.xlu0 %v11196, 40
  %v11212 = vpop.permute.xlu0 %11211
  %11213 = vrot.lane.b32.xlu0 %v11198, 40
  %v11214 = vpop.permute.xlu0 %11213
  %11215 = vrot.lane.b32.xlu0 %v11200, 40
  %v11216 = vpop.permute.xlu0 %11215
  %11217 = vrot.lane.b32.xlu0 %v11202, 40
  %v11218 = vpop.permute.xlu0 %11217
  %11219 = vrot.lane.b32.xlu0 %v11204, 40
  %v11220 = vpop.permute.xlu0 %11219
  %11221 = vrot.lane.b32.xlu0 %v11206, 40
  %v11222 = vpop.permute.xlu0 %11221
  %11223 = vrot.lane.b32.xlu0 %v11208, 40
  %v11224 = vpop.permute.xlu0 %11223
  %v11226 = vunpack.c.l.b16 %v11060
  %v11227 = vpack.c.b16 %v11226, %v11226
  %v11229 = vshrl.u32 %v11191, 16
  %v11231 = vrot.slane %v11229, 1
  %v11232 = vshll.u32 %v11191, 16
  %v11234 = vrot.slane %v11232, 2
  %v11235 = vor.u32 %v11231, %v11234
  %v11236 = vrot.slane %v11117, 1
  %v11237 = vrot.slane %v11113, 2
  %v11238 = vor.u32 %v11236, %v11237
  %v11239 = vsel %vm6754, %v11235, %v11238
  %v11240 = vrot.slane %v11125, 1
  %v11241 = vrot.slane %v11121, 2
  %v11242 = vor.u32 %v11240, %v11241
  %v11243 = vsel %vm6754, %v11238, %v11242
  %v11244 = vrot.slane %v11133, 1
  %v11245 = vrot.slane %v11129, 2
  %v11246 = vor.u32 %v11244, %v11245
  %v11247 = vsel %vm6754, %v11242, %v11246
  %v11248 = vrot.slane %v11141, 1
  %v11249 = vrot.slane %v11137, 2
  %v11250 = vor.u32 %v11248, %v11249
  %v11251 = vsel %vm6754, %v11246, %v11250
  %v11252 = vrot.slane %v11149, 1
  %v11253 = vrot.slane %v11145, 2
  %v11254 = vor.u32 %v11252, %v11253
  %v11255 = vsel %vm6754, %v11250, %v11254
  %v11256 = vrot.slane %v11157, 1
  %v11257 = vrot.slane %v11153, 2
  %v11258 = vor.u32 %v11256, %v11257
  %v11259 = vsel %vm6754, %v11254, %v11258
  %v11260 = vrot.slane %v11165, 1
  %v11261 = vrot.slane %v11161, 2
  %v11262 = vor.u32 %v11260, %v11261
  %v11263 = vsel %vm6754, %v11258, %v11262
  %v11265 = vshrl.u32 %v11227, 16
  %v11267 = vrot.slane %v11265, 1
  %v11268 = vshll.u32 %v11227, 16
  %v11270 = vrot.slane %v11268, 2
  %v11271 = vor.u32 %v11267, %v11270
  %v11272 = vsel %vm6754, %v11262, %v11271
  %11273 = vrot.lane.b32.xlu0 %v11239, 124
  %v11274 = vpop.permute.xlu0 %11273
  %11275 = vrot.lane.b32.xlu0 %v11243, 124
  %v11276 = vpop.permute.xlu0 %11275
  %11277 = vrot.lane.b32.xlu0 %v11247, 124
  %v11278 = vpop.permute.xlu0 %11277
  %11279 = vrot.lane.b32.xlu0 %v11251, 124
  %v11280 = vpop.permute.xlu0 %11279
  %11281 = vrot.lane.b32.xlu0 %v11255, 124
  %v11282 = vpop.permute.xlu0 %11281
  %11283 = vrot.lane.b32.xlu0 %v11259, 124
  %v11284 = vpop.permute.xlu0 %11283
  %11285 = vrot.lane.b32.xlu0 %v11263, 124
  %v11286 = vpop.permute.xlu0 %11285
  %11287 = vrot.lane.b32.xlu0 %v11272, 124
  %v11288 = vpop.permute.xlu0 %11287
  %v11290 = vunpack.c.l.b16 %v11061
  %v11291 = vpack.c.b16 %v11079, %v11290
  %v11292 = vrot.slane %v11291, 2
  %v11293 = vrot.slane %v11095, 2
  %v11294 = vsel %vm6819, %v11292, %v11293
  %v11295 = vrot.slane %v11096, 2
  %v11296 = vsel %vm6819, %v11293, %v11295
  %v11297 = vrot.slane %v11097, 2
  %v11298 = vsel %vm6819, %v11295, %v11297
  %v11299 = vrot.slane %v11098, 2
  %v11300 = vsel %vm6819, %v11297, %v11299
  %v11301 = vrot.slane %v11099, 2
  %v11302 = vsel %vm6819, %v11299, %v11301
  %v11303 = vrot.slane %v11100, 2
  %v11304 = vsel %vm6819, %v11301, %v11303
  %v11305 = vrot.slane %v11101, 2
  %v11306 = vsel %vm6819, %v11303, %v11305
  %v11307 = vrot.slane %v11227, 2
  %v11308 = vsel %vm6819, %v11305, %v11307
  %11309 = vrot.lane.b32.xlu0 %v11294, 80
  %v11310 = vpop.permute.xlu0 %11309
  %11311 = vrot.lane.b32.xlu0 %v11296, 80
  %v11312 = vpop.permute.xlu0 %11311
  %11313 = vrot.lane.b32.xlu0 %v11298, 80
  %v11314 = vpop.permute.xlu0 %11313
  %11315 = vrot.lane.b32.xlu0 %v11300, 80
  %v11316 = vpop.permute.xlu0 %11315
  %11317 = vrot.lane.b32.xlu0 %v11302, 80
  %v11318 = vpop.permute.xlu0 %11317
  %11319 = vrot.lane.b32.xlu0 %v11304, 80
  %v11320 = vpop.permute.xlu0 %11319
  %11321 = vrot.lane.b32.xlu0 %v11306, 80
  %v11322 = vpop.permute.xlu0 %11321
  %11323 = vrot.lane.b32.xlu0 %v11308, 80
  %v11324 = vpop.permute.xlu0 %11323
  %v11326 = vsel %vm6853, %v11094, %v11174
  %v11329 = vsel %vm6853, %v11095, %v11176
  %v11332 = vsel %vm6853, %v11096, %v11178
  %v11335 = vsel %vm6853, %v11097, %v11180
  %v11338 = vsel %vm6853, %v11098, %v11182
  %v11341 = vsel %vm6853, %v11099, %v11184
  %v11344 = vsel %vm6853, %v11100, %v11186
  %v11347 = vsel %vm6853, %v11101, %v11188
  %v11350 = vsel %vm610, %v11174, %v11210
  %v11352 = vsel %vm610, %v11176, %v11212
  %v11354 = vsel %vm610, %v11178, %v11214
  %v11356 = vsel %vm610, %v11180, %v11216
  %v11358 = vsel %vm610, %v11182, %v11218
  %v11360 = vsel %vm610, %v11184, %v11220
  %v11362 = vsel %vm610, %v11186, %v11222
  %v11364 = vsel %vm610, %v11188, %v11224
  %v11366 = vsel %vm6894, %v11350, %v11274
  %v11369 = vsel %vm6894, %v11352, %v11276
  %v11372 = vsel %vm6894, %v11354, %v11278
  %v11375 = vsel %vm6894, %v11356, %v11280
  %v11378 = vsel %vm6894, %v11358, %v11282
  %v11381 = vsel %vm6894, %v11360, %v11284
  %v11384 = vsel %vm6894, %v11362, %v11286
  %v11387 = vsel %vm6894, %v11364, %v11288
  %v11390 = vsel %vm6919, %v11274, %v11310
  %v11393 = vsel %vm6919, %v11276, %v11312
  %v11396 = vsel %vm6919, %v11278, %v11314
  %v11399 = vsel %vm6919, %v11280, %v11316
  %v11402 = vsel %vm6919, %v11282, %v11318
  %v11405 = vsel %vm6919, %v11284, %v11320
  %v11408 = vsel %vm6919, %v11286, %v11322
  %v11411 = vsel %vm6919, %v11288, %v11324
  %v11413 = vld [vmem:[%s3] sm:$0xff]
  %v11414 = vld [vmem:[%s3 + $0x8] sm:$0xff]
  %v11415 = vld [vmem:[%s3 + $0x10] sm:$0xff]
  %v11416 = vld [vmem:[%s3 + $0x18] sm:$0xff]
  %v11417 = vld [vmem:[%s3 + $0x20] sm:$0xff]
  %v11418 = vld [vmem:[%s3 + $0x28] sm:$0xff]
  %v11419 = vld [vmem:[%s3 + $0x30] sm:$0xff]
  %v11420 = vld [vmem:[%s3 + $0x38] sm:$0xff]
  %v11421 = vld [vmem:[%s3 + $0x40] sm:$0xff]
  %v11422 = vld [vmem:[%s3 + $0x48] sm:$0xff]
  %v11423 = vld [vmem:[%s3 + $0x50] sm:$0xff]
  %v11424 = vld [vmem:[%s3 + $0x58] sm:$0xff]
  %v11425 = vld [vmem:[%s3 + $0x60] sm:$0xff]
  %v11426 = vld [vmem:[%s3 + $0x68] sm:$0xff]
  %v11427 = vld [vmem:[%s3 + $0x70] sm:$0xff]
  %v11428 = vld [vmem:[%s3 + $0x78] sm:$0xff]
  %v11429 = vld [vmem:[%s3 + $0x80] sm:$0xff]
  %v11430 = vld [vmem:[%s3 + $0x88] sm:$0xff]
  %v11431 = vld [vmem:[%s3 + $0x90] sm:$0xff]
  %v11432 = vld [vmem:[%s3 + $0x98] sm:$0xff]
  %v11433 = vld [vmem:[%s3 + $0xa0] sm:$0xff]
  %v11434 = vld [vmem:[%s3 + $0xa8] sm:$0xff]
  %v11435 = vld [vmem:[%s3 + $0xb0] sm:$0xff]
  %v11436 = vld [vmem:[%s3 + $0xb8] sm:$0xff]
  %v11437 = vld [vmem:[%s3 + $0xc0] sm:$0xff]
  %v11438 = vld [vmem:[%s3 + $0xc8] sm:$0xff]
  %v11439 = vld [vmem:[%s3 + $0xd0] sm:$0xff]
  %v11440 = vld [vmem:[%s3 + $0xd8] sm:$0xff]
  %v11441 = vld [vmem:[%s3 + $0xe0] sm:$0xff]
  %v11442 = vld [vmem:[%s3 + $0xe8] sm:$0xff]
  %v11443 = vld [vmem:[%s3 + $0xf0] sm:$0xff]
  %v11444 = vld [vmem:[%s3 + $0xf8] sm:$0xff]
  %v11445 = vld [vmem:[%s3 + $0x100] sm:$0xff]
  %v11446 = vld [vmem:[%s3 + $0x108] sm:$0xff]
  %v11447 = vld [vmem:[%s3 + $0x110] sm:$0xff]
  %v11448 = vld [vmem:[%s3 + $0x118] sm:$0xff]
  %v11449 = vld [vmem:[%s3 + $0x120] sm:$0xff]
  %v11450 = vld [vmem:[%s3 + $0x128] sm:$0xff]
  %v11451 = vld [vmem:[%s3 + $0x130] sm:$0xff]
  %v11452 = vld [vmem:[%s3 + $0x138] sm:$0xff]
  %v11453 = vld [vmem:[%s3 + $0x140] sm:$0xff]
  %v11454 = vld [vmem:[%s3 + $0x148] sm:$0xff]
  %v11455 = vld [vmem:[%s3 + $0x150] sm:$0xff]
  %v11456 = vld [vmem:[%s3 + $0x158] sm:$0xff]
  %v11457 = vld [vmem:[%s3 + $0x160] sm:$0xff]
  %v11458 = vld [vmem:[%s3 + $0x168] sm:$0xff]
  %v11459 = vld [vmem:[%s3 + $0x170] sm:$0xff]
  %v11460 = vld [vmem:[%s3 + $0x178] sm:$0xff]
  %v11461 = vld [vmem:[%s3 + $0x180] sm:$0xff]
  %v11462 = vld [vmem:[%s3 + $0x188] sm:$0xff]
  %v11463 = vld [vmem:[%s3 + $0x190] sm:$0xff]
  %v11464 = vld [vmem:[%s3 + $0x198] sm:$0xff]
  %v11465 = vld [vmem:[%s3 + $0x1a0] sm:$0x33]
  %v11466 = vld [vmem:[%s4] sm:$0x3]
  %v11468 = vperm.slane %v11466, 0
  %v11469 = vperm.slane %v11466, 1
  %v11525 = vunpack.c.l.b16 %v11413
  %v11526 = vunpack.c.h.b16 %v11413
  %v11527 = vunpack.c.l.b16 %v11414
  %v11528 = vunpack.c.h.b16 %v11414
  %v11529 = vunpack.c.l.b16 %v11415
  %v11530 = vunpack.c.h.b16 %v11415
  %v11531 = vunpack.c.l.b16 %v11416
  %v11532 = vunpack.c.h.b16 %v11416
  %v11533 = vunpack.c.l.b16 %v11417
  %v11534 = vunpack.c.h.b16 %v11417
  %v11535 = vunpack.c.l.b16 %v11418
  %v11536 = vunpack.c.h.b16 %v11418
  %v11537 = vunpack.c.l.b16 %v11419
  %v11538 = vunpack.c.h.b16 %v11419
  %v11539 = vunpack.c.l.b16 %v11420
  %v11540 = vunpack.c.h.b16 %v11420
  %v11541 = vunpack.c.l.b16 %v11421
  %v11542 = vunpack.c.h.b16 %v11421
  %v11543 = vunpack.c.l.b16 %v11422
  %v11544 = vunpack.c.h.b16 %v11422
  %v11545 = vunpack.c.l.b16 %v11423
  %v11546 = vunpack.c.h.b16 %v11423
  %v11547 = vunpack.c.l.b16 %v11424
  %v11548 = vunpack.c.h.b16 %v11424
  %v11549 = vunpack.c.l.b16 %v11425
  %v11550 = vunpack.c.h.b16 %v11425
  %v11551 = vunpack.c.l.b16 %v11426
  %v11552 = vunpack.c.h.b16 %v11426
  %v11553 = vunpack.c.l.b16 %v11427
  %v11554 = vunpack.c.h.b16 %v11427
  %v11555 = vunpack.c.l.b16 %v11428
  %v11556 = vunpack.c.h.b16 %v11428
  %v11557 = vunpack.c.l.b16 %v11429
  %v11558 = vunpack.c.h.b16 %v11429
  %v11559 = vunpack.c.l.b16 %v11430
  %v11560 = vunpack.c.h.b16 %v11430
  %v11561 = vunpack.c.l.b16 %v11431
  %v11562 = vunpack.c.h.b16 %v11431
  %v11563 = vunpack.c.l.b16 %v11432
  %v11564 = vunpack.c.h.b16 %v11432
  %v11565 = vunpack.c.l.b16 %v11433
  %v11566 = vunpack.c.h.b16 %v11433
  %v11567 = vunpack.c.l.b16 %v11434
  %v11568 = vunpack.c.h.b16 %v11434
  %v11569 = vunpack.c.l.b16 %v11435
  %v11570 = vunpack.c.h.b16 %v11435
  %v11571 = vunpack.c.l.b16 %v11436
  %v11572 = vunpack.c.h.b16 %v11436
  %v11573 = vunpack.c.l.b16 %v11437
  %v11574 = vunpack.c.h.b16 %v11437
  %v11575 = vunpack.c.l.b16 %v11438
  %v11576 = vunpack.c.h.b16 %v11438
  %v11577 = vunpack.c.l.b16 %v11439
  %v11578 = vunpack.c.h.b16 %v11439
  %v11579 = vunpack.c.l.b16 %v11440
  %v11580 = vunpack.c.h.b16 %v11440
  %v11581 = vunpack.c.l.b16 %v11441
  %v11582 = vunpack.c.h.b16 %v11441
  %v11583 = vunpack.c.l.b16 %v11442
  %v11584 = vunpack.c.h.b16 %v11442
  %v11585 = vunpack.c.l.b16 %v11443
  %v11586 = vunpack.c.h.b16 %v11443
  %v11587 = vunpack.c.l.b16 %v11444
  %v11588 = vunpack.c.h.b16 %v11444
  %v11589 = vunpack.c.l.b16 %v11445
  %v11590 = vunpack.c.h.b16 %v11445
  %v11591 = vunpack.c.l.b16 %v11446
  %v11592 = vunpack.c.h.b16 %v11446
  %v11593 = vunpack.c.l.b16 %v11447
  %v11594 = vunpack.c.h.b16 %v11447
  %v11595 = vunpack.c.l.b16 %v11448
  %v11596 = vunpack.c.h.b16 %v11448
  %v11597 = vunpack.c.l.b16 %v11449
  %v11598 = vunpack.c.h.b16 %v11449
  %v11599 = vunpack.c.l.b16 %v11450
  %v11600 = vunpack.c.h.b16 %v11450
  %v11601 = vunpack.c.l.b16 %v11451
  %v11602 = vunpack.c.h.b16 %v11451
  %v11603 = vunpack.c.l.b16 %v11452
  %v11604 = vunpack.c.h.b16 %v11452
  %v11605 = vunpack.c.l.b16 %v11453
  %v11606 = vunpack.c.h.b16 %v11453
  %v11607 = vunpack.c.l.b16 %v11454
  %v11608 = vunpack.c.h.b16 %v11454
  %v11609 = vunpack.c.l.b16 %v11455
  %v11610 = vunpack.c.h.b16 %v11455
  %v11611 = vunpack.c.l.b16 %v11456
  %v11612 = vunpack.c.h.b16 %v11456
  %v11613 = vunpack.c.l.b16 %v11457
  %v11614 = vunpack.c.h.b16 %v11457
  %v11615 = vunpack.c.l.b16 %v11458
  %v11616 = vunpack.c.h.b16 %v11458
  %v11617 = vunpack.c.l.b16 %v11459
  %v11618 = vunpack.c.h.b16 %v11459
  %v11619 = vunpack.c.l.b16 %v11460
  %v11620 = vunpack.c.h.b16 %v11460
  %v11621 = vunpack.c.l.b16 %v11461
  %v11622 = vunpack.c.h.b16 %v11461
  %v11623 = vunpack.c.l.b16 %v11462
  %v11624 = vunpack.c.h.b16 %v11462
  %v11625 = vunpack.c.l.b16 %v11463
  %v11626 = vunpack.c.h.b16 %v11463
  %v11627 = vunpack.c.l.b16 %v11464
  %v11628 = vunpack.c.h.b16 %v11464
  %v11629 = vunpack.c.l.b16 %v11465
  %v11630 = vunpack.c.h.b16 %v11465
  %v11631 = vpack.c.b16 %v11527, %v11525
  %v11632 = vpack.c.b16 %v11528, %v11526
  %v11633 = vpack.c.b16 %v11531, %v11529
  %v11634 = vpack.c.b16 %v11532, %v11530
  %v11635 = vpack.c.b16 %v11535, %v11533
  %v11636 = vpack.c.b16 %v11536, %v11534
  %v11637 = vpack.c.b16 %v11539, %v11537
  %v11638 = vpack.c.b16 %v11540, %v11538
  %v11639 = vpack.c.b16 %v11543, %v11541
  %v11640 = vpack.c.b16 %v11544, %v11542
  %v11641 = vpack.c.b16 %v11547, %v11545
  %v11642 = vpack.c.b16 %v11548, %v11546
  %v11643 = vpack.c.b16 %v11551, %v11549
  %v11644 = vpack.c.b16 %v11552, %v11550
  %v11645 = vpack.c.b16 %v11555, %v11553
  %v11646 = vpack.c.b16 %v11556, %v11554
  %v11647 = vpack.c.b16 %v11559, %v11557
  %v11648 = vpack.c.b16 %v11560, %v11558
  %v11649 = vpack.c.b16 %v11563, %v11561
  %v11650 = vpack.c.b16 %v11564, %v11562
  %v11651 = vpack.c.b16 %v11567, %v11565
  %v11652 = vpack.c.b16 %v11568, %v11566
  %v11653 = vpack.c.b16 %v11571, %v11569
  %v11654 = vpack.c.b16 %v11572, %v11570
  %v11655 = vpack.c.b16 %v11575, %v11573
  %v11656 = vpack.c.b16 %v11576, %v11574
  %v11657 = vpack.c.b16 %v11579, %v11577
  %v11658 = vpack.c.b16 %v11580, %v11578
  %v11659 = vpack.c.b16 %v11583, %v11581
  %v11660 = vpack.c.b16 %v11584, %v11582
  %v11661 = vpack.c.b16 %v11587, %v11585
  %v11662 = vpack.c.b16 %v11588, %v11586
  %v11663 = vpack.c.b16 %v11591, %v11589
  %v11664 = vpack.c.b16 %v11592, %v11590
  %v11665 = vpack.c.b16 %v11595, %v11593
  %v11666 = vpack.c.b16 %v11596, %v11594
  %v11667 = vpack.c.b16 %v11599, %v11597
  %v11668 = vpack.c.b16 %v11600, %v11598
  %v11669 = vpack.c.b16 %v11603, %v11601
  %v11670 = vpack.c.b16 %v11604, %v11602
  %v11671 = vpack.c.b16 %v11607, %v11605
  %v11672 = vpack.c.b16 %v11608, %v11606
  %v11673 = vpack.c.b16 %v11611, %v11609
  %v11674 = vpack.c.b16 %v11612, %v11610
  %v11675 = vpack.c.b16 %v11615, %v11613
  %v11676 = vpack.c.b16 %v11616, %v11614
  %v11677 = vpack.c.b16 %v11619, %v11617
  %v11678 = vpack.c.b16 %v11620, %v11618
  %v11679 = vpack.c.b16 %v11623, %v11621
  %v11680 = vpack.c.b16 %v11624, %v11622
  %v11681 = vpack.c.b16 %v11627, %v11625
  %v11682 = vpack.c.b16 %v11628, %v11626
  %v11683 = vpack.c.b16 %v11629, %v11629
  %v11684 = vpack.c.b16 %v11630, %v11630
  %v11737 = vsel %vm7268, %v11310, 0
  %v11739 = vsel %vm7268, %v11312, 0
  %v11741 = vsel %vm7268, %v11314, 0
  %v11743 = vsel %vm7268, %v11316, 0
  %v11745 = vsel %vm7268, %v11318, 0
  %v11747 = vsel %vm7268, %v11320, 0
  %v11749 = vsel %vm7268, %v11322, 0
  %v11751 = vsel %vm7268, %v11324, 0
  %v11754 = vsel %vm7285, %v11683, 0
  %v11757 = vsel %vm7285, %v11684, 0
  %11759 = vmatpush.bf16.msra.mxu0 %v11645
  %11760 = vmatpush.bf16.msra.mxu0 %v11643
  %11761 = vmatpush.bf16.msra.mxu0 %v11641
  %11762 = vmatpush.bf16.msra.mxu0 %v11639
  %11763 = vmatpush.bf16.msra.mxu0 %v11637
  %11764 = vmatpush.bf16.msra.mxu0 %v11635
  %11765 = vmatpush.bf16.msra.mxu0 %v11633
  %11766 = vmatpush.bf16.msra.mxu0 %v11631
  %11767 = vmatmul.bf16.gmra.mxu0 %v11326
  %v11768 = vpop.f32.mrf.mxu0
  %v11769 = vadd.f32 %v11468, %v11768
  %v11770 = vpop.f32.mrf.mxu0
  %v11771 = vadd.f32 %v11468, %v11770
  %11772 = vmatmul.bf16.gmra.mxu0 %v11329
  %v11773 = vpop.f32.mrf.mxu0
  %v11774 = vadd.f32 %v11468, %v11773
  %v11775 = vpop.f32.mrf.mxu0
  %v11776 = vadd.f32 %v11468, %v11775
  %11777 = vmatmul.bf16.gmra.mxu0 %v11332
  %v11778 = vpop.f32.mrf.mxu0
  %v11779 = vadd.f32 %v11468, %v11778
  %v11780 = vpop.f32.mrf.mxu0
  %v11781 = vadd.f32 %v11468, %v11780
  %11782 = vmatmul.bf16.gmra.mxu0 %v11335
  %v11783 = vpop.f32.mrf.mxu0
  %v11784 = vadd.f32 %v11468, %v11783
  %v11785 = vpop.f32.mrf.mxu0
  %v11786 = vadd.f32 %v11468, %v11785
  %11787 = vmatmul.bf16.gmra.mxu0 %v11338
  %v11788 = vpop.f32.mrf.mxu0
  %v11789 = vadd.f32 %v11468, %v11788
  %v11790 = vpop.f32.mrf.mxu0
  %v11791 = vadd.f32 %v11468, %v11790
  %11792 = vmatmul.bf16.gmra.mxu0 %v11341
  %v11793 = vpop.f32.mrf.mxu0
  %v11794 = vadd.f32 %v11468, %v11793
  %v11795 = vpop.f32.mrf.mxu0
  %v11796 = vadd.f32 %v11468, %v11795
  %11797 = vmatmul.bf16.gmra.mxu0 %v11344
  %v11798 = vpop.f32.mrf.mxu0
  %v11799 = vadd.f32 %v11468, %v11798
  %v11800 = vpop.f32.mrf.mxu0
  %v11801 = vadd.f32 %v11468, %v11800
  %11802 = vmatmul.bf16.gmra.mxu0 %v11347
  %v11803 = vpop.f32.mrf.mxu0
  %v11804 = vadd.f32 %v11468, %v11803
  %v11805 = vpop.f32.mrf.mxu0
  %v11806 = vadd.f32 %v11468, %v11805
  %11807 = vdwg.mxu0
  %11808 = vmatpush.bf16.msra.mxu0 %v11661
  %11809 = vmatpush.bf16.msra.mxu0 %v11659
  %11810 = vmatpush.bf16.msra.mxu0 %v11657
  %11811 = vmatpush.bf16.msra.mxu0 %v11655
  %11812 = vmatpush.bf16.msra.mxu0 %v11653
  %11813 = vmatpush.bf16.msra.mxu0 %v11651
  %11814 = vmatpush.bf16.msra.mxu0 %v11649
  %11815 = vmatpush.bf16.msra.mxu0 %v11647
  %11816 = vmatmul.bf16.gmra.mxu0 %v11366
  %v11817 = vpop.f32.mrf.mxu0
  %v11818 = vadd.f32 %v11769, %v11817
  %v11819 = vpop.f32.mrf.mxu0
  %v11820 = vadd.f32 %v11771, %v11819
  %11821 = vmatmul.bf16.gmra.mxu0 %v11369
  %v11822 = vpop.f32.mrf.mxu0
  %v11823 = vadd.f32 %v11774, %v11822
  %v11824 = vpop.f32.mrf.mxu0
  %v11825 = vadd.f32 %v11776, %v11824
  %11826 = vmatmul.bf16.gmra.mxu0 %v11372
  %v11827 = vpop.f32.mrf.mxu0
  %v11828 = vadd.f32 %v11779, %v11827
  %v11829 = vpop.f32.mrf.mxu0
  %v11830 = vadd.f32 %v11781, %v11829
  %11831 = vmatmul.bf16.gmra.mxu0 %v11375
  %v11832 = vpop.f32.mrf.mxu0
  %v11833 = vadd.f32 %v11784, %v11832
  %v11834 = vpop.f32.mrf.mxu0
  %v11835 = vadd.f32 %v11786, %v11834
  %11836 = vmatmul.bf16.gmra.mxu0 %v11378
  %v11837 = vpop.f32.mrf.mxu0
  %v11838 = vadd.f32 %v11789, %v11837
  %v11839 = vpop.f32.mrf.mxu0
  %v11840 = vadd.f32 %v11791, %v11839
  %11841 = vmatmul.bf16.gmra.mxu0 %v11381
  %v11842 = vpop.f32.mrf.mxu0
  %v11843 = vadd.f32 %v11794, %v11842
  %v11844 = vpop.f32.mrf.mxu0
  %v11845 = vadd.f32 %v11796, %v11844
  %11846 = vmatmul.bf16.gmra.mxu0 %v11384
  %v11847 = vpop.f32.mrf.mxu0
  %v11848 = vadd.f32 %v11799, %v11847
  %v11849 = vpop.f32.mrf.mxu0
  %v11850 = vadd.f32 %v11801, %v11849
  %11851 = vmatmul.bf16.gmra.mxu0 %v11387
  %v11852 = vpop.f32.mrf.mxu0
  %v11853 = vadd.f32 %v11804, %v11852
  %v11854 = vpop.f32.mrf.mxu0
  %v11855 = vadd.f32 %v11806, %v11854
  %11856 = vdwg.mxu0
  %11857 = vmatpush.bf16.msra.mxu0 %v11677
  %11858 = vmatpush.bf16.msra.mxu0 %v11675
  %11859 = vmatpush.bf16.msra.mxu0 %v11673
  %11860 = vmatpush.bf16.msra.mxu0 %v11671
  %11861 = vmatpush.bf16.msra.mxu0 %v11669
  %11862 = vmatpush.bf16.msra.mxu0 %v11667
  %11863 = vmatpush.bf16.msra.mxu0 %v11665
  %11864 = vmatpush.bf16.msra.mxu0 %v11663
  %11865 = vmatmul.bf16.gmra.mxu0 %v11390
  %v11866 = vpop.f32.mrf.mxu0
  %v11867 = vadd.f32 %v11818, %v11866
  %v11868 = vpop.f32.mrf.mxu0
  %v11869 = vadd.f32 %v11820, %v11868
  %11870 = vmatmul.bf16.gmra.mxu0 %v11393
  %v11871 = vpop.f32.mrf.mxu0
  %v11872 = vadd.f32 %v11823, %v11871
  %v11873 = vpop.f32.mrf.mxu0
  %v11874 = vadd.f32 %v11825, %v11873
  %11875 = vmatmul.bf16.gmra.mxu0 %v11396
  %v11876 = vpop.f32.mrf.mxu0
  %v11877 = vadd.f32 %v11828, %v11876
  %v11878 = vpop.f32.mrf.mxu0
  %v11879 = vadd.f32 %v11830, %v11878
  %11880 = vmatmul.bf16.gmra.mxu0 %v11399
  %v11881 = vpop.f32.mrf.mxu0
  %v11882 = vadd.f32 %v11833, %v11881
  %v11883 = vpop.f32.mrf.mxu0
  %v11884 = vadd.f32 %v11835, %v11883
  %11885 = vmatmul.bf16.gmra.mxu0 %v11402
  %v11886 = vpop.f32.mrf.mxu0
  %v11887 = vadd.f32 %v11838, %v11886
  %v11888 = vpop.f32.mrf.mxu0
  %v11889 = vadd.f32 %v11840, %v11888
  %11890 = vmatmul.bf16.gmra.mxu0 %v11405
  %v11891 = vpop.f32.mrf.mxu0
  %v11892 = vadd.f32 %v11843, %v11891
  %v11893 = vpop.f32.mrf.mxu0
  %v11894 = vadd.f32 %v11845, %v11893
  %11895 = vmatmul.bf16.gmra.mxu0 %v11408
  %v11896 = vpop.f32.mrf.mxu0
  %v11897 = vadd.f32 %v11848, %v11896
  %v11898 = vpop.f32.mrf.mxu0
  %v11899 = vadd.f32 %v11850, %v11898
  %11900 = vmatmul.bf16.gmra.mxu0 %v11411
  %v11901 = vpop.f32.mrf.mxu0
  %v11902 = vadd.f32 %v11853, %v11901
  %v11903 = vpop.f32.mrf.mxu0
  %v11904 = vadd.f32 %v11855, %v11903
  %11905 = vdwg.mxu0
  %11906 = vmatpush.bf16.msra.mxu0 0
  %11907 = vmatpush.bf16.msra.mxu0 0
  %11908 = vmatpush.bf16.msra.mxu0 0
  %11909 = vmatpush.bf16.msra.mxu0 0
  %11910 = vmatpush.bf16.msra.mxu0 0
  %11911 = vmatpush.bf16.msra.mxu0 %v11754
  %11912 = vmatpush.bf16.msra.mxu0 %v11681
  %11913 = vmatpush.bf16.msra.mxu0 %v11679
  %11914 = vmatmul.bf16.gmra.mxu0 %v11737
  %v11915 = vpop.f32.mrf.mxu0
  %v11916 = vadd.f32 %v11867, %v11915
  %v11917 = vpop.f32.mrf.mxu0
  %v11918 = vadd.f32 %v11869, %v11917
  %11919 = vmatmul.bf16.gmra.mxu0 %v11739
  %v11920 = vpop.f32.mrf.mxu0
  %v11921 = vadd.f32 %v11872, %v11920
  %v11922 = vpop.f32.mrf.mxu0
  %v11923 = vadd.f32 %v11874, %v11922
  %11924 = vmatmul.bf16.gmra.mxu0 %v11741
  %v11925 = vpop.f32.mrf.mxu0
  %v11926 = vadd.f32 %v11877, %v11925
  %v11927 = vpop.f32.mrf.mxu0
  %v11928 = vadd.f32 %v11879, %v11927
  %11929 = vmatmul.bf16.gmra.mxu0 %v11743
  %v11930 = vpop.f32.mrf.mxu0
  %v11931 = vadd.f32 %v11882, %v11930
  %v11932 = vpop.f32.mrf.mxu0
  %v11933 = vadd.f32 %v11884, %v11932
  %11934 = vmatmul.bf16.gmra.mxu0 %v11745
  %v11935 = vpop.f32.mrf.mxu0
  %v11936 = vadd.f32 %v11887, %v11935
  %v11937 = vpop.f32.mrf.mxu0
  %v11938 = vadd.f32 %v11889, %v11937
  %11939 = vmatmul.bf16.gmra.mxu0 %v11747
  %v11940 = vpop.f32.mrf.mxu0
  %v11941 = vadd.f32 %v11892, %v11940
  %v11942 = vpop.f32.mrf.mxu0
  %v11943 = vadd.f32 %v11894, %v11942
  %11944 = vmatmul.bf16.gmra.mxu0 %v11749
  %v11945 = vpop.f32.mrf.mxu0
  %v11946 = vadd.f32 %v11897, %v11945
  %v11947 = vpop.f32.mrf.mxu0
  %v11948 = vadd.f32 %v11899, %v11947
  %11949 = vmatmul.bf16.gmra.mxu0 %v11751
  %v11950 = vpop.f32.mrf.mxu0
  %v11951 = vadd.f32 %v11902, %v11950
  %v11952 = vpop.f32.mrf.mxu0
  %v11953 = vadd.f32 %v11904, %v11952
  %11954 = vdwg.mxu0
  %11955 = vmatpush.bf16.msra.mxu0 %v11646
  %11956 = vmatpush.bf16.msra.mxu0 %v11644
  %11957 = vmatpush.bf16.msra.mxu0 %v11642
  %11958 = vmatpush.bf16.msra.mxu0 %v11640
  %11959 = vmatpush.bf16.msra.mxu0 %v11638
  %11960 = vmatpush.bf16.msra.mxu0 %v11636
  %11961 = vmatpush.bf16.msra.mxu0 %v11634
  %11962 = vmatpush.bf16.msra.mxu0 %v11632
  %11963 = vmatmul.bf16.gmra.mxu0 %v11326
  %v11964 = vpop.f32.mrf.mxu0
  %v11965 = vadd.f32 %v11469, %v11964
  %v11966 = vpop.f32.mrf.mxu0
  %v11967 = vadd.f32 %v11469, %v11966
  %11968 = vmatmul.bf16.gmra.mxu0 %v11329
  %v11969 = vpop.f32.mrf.mxu0
  %v11970 = vadd.f32 %v11469, %v11969
  %v11971 = vpop.f32.mrf.mxu0
  %v11972 = vadd.f32 %v11469, %v11971
  %11973 = vmatmul.bf16.gmra.mxu0 %v11332
  %v11974 = vpop.f32.mrf.mxu0
  %v11975 = vadd.f32 %v11469, %v11974
  %v11976 = vpop.f32.mrf.mxu0
  %v11977 = vadd.f32 %v11469, %v11976
  %11978 = vmatmul.bf16.gmra.mxu0 %v11335
  %v11979 = vpop.f32.mrf.mxu0
  %v11980 = vadd.f32 %v11469, %v11979
  %v11981 = vpop.f32.mrf.mxu0
  %v11982 = vadd.f32 %v11469, %v11981
  %11983 = vmatmul.bf16.gmra.mxu0 %v11338
  %v11984 = vpop.f32.mrf.mxu0
  %v11985 = vadd.f32 %v11469, %v11984
  %v11986 = vpop.f32.mrf.mxu0
  %v11987 = vadd.f32 %v11469, %v11986
  %11988 = vmatmul.bf16.gmra.mxu0 %v11341
  %v11989 = vpop.f32.mrf.mxu0
  %v11990 = vadd.f32 %v11469, %v11989
  %v11991 = vpop.f32.mrf.mxu0
  %v11992 = vadd.f32 %v11469, %v11991
  %11993 = vmatmul.bf16.gmra.mxu0 %v11344
  %v11994 = vpop.f32.mrf.mxu0
  %v11995 = vadd.f32 %v11469, %v11994
  %v11996 = vpop.f32.mrf.mxu0
  %v11997 = vadd.f32 %v11469, %v11996
  %11998 = vmatmul.bf16.gmra.mxu0 %v11347
  %v11999 = vpop.f32.mrf.mxu0
  %v12000 = vadd.f32 %v11469, %v11999
  %v12001 = vpop.f32.mrf.mxu0
  %v12002 = vadd.f32 %v11469, %v12001
  %12003 = vdwg.mxu0
  %12004 = vmatpush.bf16.msra.mxu0 %v11662
  %12005 = vmatpush.bf16.msra.mxu0 %v11660
  %12006 = vmatpush.bf16.msra.mxu0 %v11658
  %12007 = vmatpush.bf16.msra.mxu0 %v11656
  %12008 = vmatpush.bf16.msra.mxu0 %v11654
  %12009 = vmatpush.bf16.msra.mxu0 %v11652
  %12010 = vmatpush.bf16.msra.mxu0 %v11650
  %12011 = vmatpush.bf16.msra.mxu0 %v11648
  %12012 = vmatmul.bf16.gmra.mxu0 %v11366
  %v12013 = vpop.f32.mrf.mxu0
  %v12014 = vadd.f32 %v11965, %v12013
  %v12015 = vpop.f32.mrf.mxu0
  %v12016 = vadd.f32 %v11967, %v12015
  %12017 = vmatmul.bf16.gmra.mxu0 %v11369
  %v12018 = vpop.f32.mrf.mxu0
  %v12019 = vadd.f32 %v11970, %v12018
  %v12020 = vpop.f32.mrf.mxu0
  %v12021 = vadd.f32 %v11972, %v12020
  %12022 = vmatmul.bf16.gmra.mxu0 %v11372
  %v12023 = vpop.f32.mrf.mxu0
  %v12024 = vadd.f32 %v11975, %v12023
  %v12025 = vpop.f32.mrf.mxu0
  %v12026 = vadd.f32 %v11977, %v12025
  %12027 = vmatmul.bf16.gmra.mxu0 %v11375
  %v12028 = vpop.f32.mrf.mxu0
  %v12029 = vadd.f32 %v11980, %v12028
  %v12030 = vpop.f32.mrf.mxu0
  %v12031 = vadd.f32 %v11982, %v12030
  %12032 = vmatmul.bf16.gmra.mxu0 %v11378
  %v12033 = vpop.f32.mrf.mxu0
  %v12034 = vadd.f32 %v11985, %v12033
  %v12035 = vpop.f32.mrf.mxu0
  %v12036 = vadd.f32 %v11987, %v12035
  %12037 = vmatmul.bf16.gmra.mxu0 %v11381
  %v12038 = vpop.f32.mrf.mxu0
  %v12039 = vadd.f32 %v11990, %v12038
  %v12040 = vpop.f32.mrf.mxu0
  %v12041 = vadd.f32 %v11992, %v12040
  %12042 = vmatmul.bf16.gmra.mxu0 %v11384
  %v12043 = vpop.f32.mrf.mxu0
  %v12044 = vadd.f32 %v11995, %v12043
  %v12045 = vpop.f32.mrf.mxu0
  %v12046 = vadd.f32 %v11997, %v12045
  %12047 = vmatmul.bf16.gmra.mxu0 %v11387
  %v12048 = vpop.f32.mrf.mxu0
  %v12049 = vadd.f32 %v12000, %v12048
  %v12050 = vpop.f32.mrf.mxu0
  %v12051 = vadd.f32 %v12002, %v12050
  %12052 = vdwg.mxu0
  %12053 = vmatpush.bf16.msra.mxu0 %v11678
  %12054 = vmatpush.bf16.msra.mxu0 %v11676
  %12055 = vmatpush.bf16.msra.mxu0 %v11674
  %12056 = vmatpush.bf16.msra.mxu0 %v11672
  %12057 = vmatpush.bf16.msra.mxu0 %v11670
  %12058 = vmatpush.bf16.msra.mxu0 %v11668
  %12059 = vmatpush.bf16.msra.mxu0 %v11666
  %12060 = vmatpush.bf16.msra.mxu0 %v11664
  %12061 = vmatmul.bf16.gmra.mxu0 %v11390
  %v12062 = vpop.f32.mrf.mxu0
  %v12063 = vadd.f32 %v12014, %v12062
  %v12064 = vpop.f32.mrf.mxu0
  %v12065 = vadd.f32 %v12016, %v12064
  %12066 = vmatmul.bf16.gmra.mxu0 %v11393
  %v12067 = vpop.f32.mrf.mxu0
  %v12068 = vadd.f32 %v12019, %v12067
  %v12069 = vpop.f32.mrf.mxu0
  %v12070 = vadd.f32 %v12021, %v12069
  %12071 = vmatmul.bf16.gmra.mxu0 %v11396
  %v12072 = vpop.f32.mrf.mxu0
  %v12073 = vadd.f32 %v12024, %v12072
  %v12074 = vpop.f32.mrf.mxu0
  %v12075 = vadd.f32 %v12026, %v12074
  %12076 = vmatmul.bf16.gmra.mxu0 %v11399
  %v12077 = vpop.f32.mrf.mxu0
  %v12078 = vadd.f32 %v12029, %v12077
  %v12079 = vpop.f32.mrf.mxu0
  %v12080 = vadd.f32 %v12031, %v12079
  %12081 = vmatmul.bf16.gmra.mxu0 %v11402
  %v12082 = vpop.f32.mrf.mxu0
  %v12083 = vadd.f32 %v12034, %v12082
  %v12084 = vpop.f32.mrf.mxu0
  %v12085 = vadd.f32 %v12036, %v12084
  %12086 = vmatmul.bf16.gmra.mxu0 %v11405
  %v12087 = vpop.f32.mrf.mxu0
  %v12088 = vadd.f32 %v12039, %v12087
  %v12089 = vpop.f32.mrf.mxu0
  %v12090 = vadd.f32 %v12041, %v12089
  %12091 = vmatmul.bf16.gmra.mxu0 %v11408
  %v12092 = vpop.f32.mrf.mxu0
  %v12093 = vadd.f32 %v12044, %v12092
  %v12094 = vpop.f32.mrf.mxu0
  %v12095 = vadd.f32 %v12046, %v12094
  %12096 = vmatmul.bf16.gmra.mxu0 %v11411
  %v12097 = vpop.f32.mrf.mxu0
  %v12098 = vadd.f32 %v12049, %v12097
  %v12099 = vpop.f32.mrf.mxu0
  %v12100 = vadd.f32 %v12051, %v12099
  %12101 = vdwg.mxu0
  %12102 = vmatpush.bf16.msra.mxu0 0
  %12103 = vmatpush.bf16.msra.mxu0 0
  %12104 = vmatpush.bf16.msra.mxu0 0
  %12105 = vmatpush.bf16.msra.mxu0 0
  %12106 = vmatpush.bf16.msra.mxu0 0
  %12107 = vmatpush.bf16.msra.mxu0 %v11757
  %12108 = vmatpush.bf16.msra.mxu0 %v11682
  %12109 = vmatpush.bf16.msra.mxu0 %v11680
  %12110 = vmatmul.bf16.gmra.mxu0 %v11737
  %v12111 = vpop.f32.mrf.mxu0
  %v12112 = vadd.f32 %v12063, %v12111
  %v12113 = vpop.f32.mrf.mxu0
  %v12114 = vadd.f32 %v12065, %v12113
  %12115 = vmatmul.bf16.gmra.mxu0 %v11739
  %v12116 = vpop.f32.mrf.mxu0
  %v12117 = vadd.f32 %v12068, %v12116
  %v12118 = vpop.f32.mrf.mxu0
  %v12119 = vadd.f32 %v12070, %v12118
  %12120 = vmatmul.bf16.gmra.mxu0 %v11741
  %v12121 = vpop.f32.mrf.mxu0
  %v12122 = vadd.f32 %v12073, %v12121
  %v12123 = vpop.f32.mrf.mxu0
  %v12124 = vadd.f32 %v12075, %v12123
  %12125 = vmatmul.bf16.gmra.mxu0 %v11743
  %v12126 = vpop.f32.mrf.mxu0
  %v12127 = vadd.f32 %v12078, %v12126
  %v12128 = vpop.f32.mrf.mxu0
  %v12129 = vadd.f32 %v12080, %v12128
  %12130 = vmatmul.bf16.gmra.mxu0 %v11745
  %v12131 = vpop.f32.mrf.mxu0
  %v12132 = vadd.f32 %v12083, %v12131
  %v12133 = vpop.f32.mrf.mxu0
  %v12134 = vadd.f32 %v12085, %v12133
  %12135 = vmatmul.bf16.gmra.mxu0 %v11747
  %v12136 = vpop.f32.mrf.mxu0
  %v12137 = vadd.f32 %v12088, %v12136
  %v12138 = vpop.f32.mrf.mxu0
  %v12139 = vadd.f32 %v12090, %v12138
  %12140 = vmatmul.bf16.gmra.mxu0 %v11749
  %v12141 = vpop.f32.mrf.mxu0
  %v12142 = vadd.f32 %v12093, %v12141
  %v12143 = vpop.f32.mrf.mxu0
  %v12144 = vadd.f32 %v12095, %v12143
  %12145 = vmatmul.bf16.gmra.mxu0 %v11751
  %v12146 = vpop.f32.mrf.mxu0
  %v12147 = vadd.f32 %v12098, %v12146
  %v12148 = vpop.f32.mrf.mxu0
  %v12149 = vadd.f32 %v12100, %v12148
  %12150 = vdwg.mxu0
  %v12151 = vld [vmem:[%s7] sm:$0xff]
  %v12152 = vld [vmem:[%s7 + $0x8] sm:$0xff]
  %v12153 = vld [vmem:[%s7 + $0x10] sm:$0xff]
  %v12154 = vld [vmem:[%s7 + $0x18] sm:$0xff]
  %v12155 = vld [vmem:[%s7 + $0x20] sm:$0xff]
  %v12156 = vld [vmem:[%s7 + $0x28] sm:$0xff]
  %v12157 = vld [vmem:[%s7 + $0x30] sm:$0xff]
  %v12158 = vld [vmem:[%s7 + $0x38] sm:$0xff]
  %v12159 = vld [vmem:[%s7 + $0x40] sm:$0xff]
  %v12160 = vld [vmem:[%s7 + $0x48] sm:$0xff]
  %v12161 = vld [vmem:[%s7 + $0x50] sm:$0xff]
  %v12162 = vld [vmem:[%s7 + $0x58] sm:$0xff]
  %v12163 = vld [vmem:[%s7 + $0x60] sm:$0xff]
  %v12164 = vld [vmem:[%s7 + $0x68] sm:$0xff]
  %v12165 = vld [vmem:[%s7 + $0x70] sm:$0xff]
  %v12166 = vld [vmem:[%s7 + $0x78] sm:$0xff]
  %v12167 = vld [vmem:[%s7 + $0x80] sm:$0xff]
  %v12168 = vld [vmem:[%s7 + $0x88] sm:$0xff]
  %v12169 = vld [vmem:[%s7 + $0x90] sm:$0xff]
  %v12170 = vld [vmem:[%s7 + $0x98] sm:$0xff]
  %v12172 = vsel %vm243, %v12112, 0
  %v12175 = vsel %vm243, %v12114, 0
  %v12178 = vsel %vm243, %v12117, 0
  %v12181 = vsel %vm243, %v12119, 0
  %v12184 = vsel %vm243, %v12122, 0
  %v12187 = vsel %vm243, %v12124, 0
  %v12190 = vsel %vm243, %v12127, 0
  %v12193 = vsel %vm243, %v12129, 0
  %v12196 = vsel %vm243, %v12132, 0
  %v12199 = vsel %vm243, %v12134, 0
  %v12202 = vsel %vm243, %v12137, 0
  %v12205 = vsel %vm243, %v12139, 0
  %v12208 = vsel %vm243, %v12142, 0
  %v12211 = vsel %vm243, %v12144, 0
  %v12214 = vsel %vm243, %v12147, 0
  %v12217 = vsel %vm243, %v12149, 0
  %12219 = vmatpush.msra.mxu0 %v12166
  %12220 = vmatpush.msra.mxu0 %v12165
  %12221 = vmatpush.msra.mxu0 %v12164
  %12222 = vmatpush.msra.mxu0 %v12163
  %12223 = vmatpush.msra.mxu0 %v12162
  %12224 = vmatpush.msra.mxu0 %v12161
  %12225 = vmatpush.msra.mxu0 %v12160
  %12226 = vmatpush.msra.mxu0 %v12159
  %12227 = vmatpush.msra.mxu0 %v12158
  %12228 = vmatpush.msra.mxu0 %v12157
  %12229 = vmatpush.msra.mxu0 %v12156
  %12230 = vmatpush.msra.mxu0 %v12155
  %12231 = vmatpush.msra.mxu0 %v12154
  %12232 = vmatpush.msra.mxu0 %v12153
  %12233 = vmatpush.msra.mxu0 %v12152
  %12234 = vmatpush.msra.mxu0 %v12151
  %12235 = vmatmul.f32.gmra.mxu0 %v11916
  %v12236 = vpop.f32.mrf.mxu0
  %v12237 = vadd.f32 0.0, %v12236
  %12238 = vmatmul.f32.gmra.mxu0 %v11918
  %v12239 = vpop.f32.mrf.mxu0
  %v12240 = vadd.f32 0.0, %v12239
  %12241 = vmatmul.f32.gmra.mxu0 %v11921
  %v12242 = vpop.f32.mrf.mxu0
  %v12243 = vadd.f32 0.0, %v12242
  %12244 = vmatmul.f32.gmra.mxu0 %v11923
  %v12245 = vpop.f32.mrf.mxu0
  %v12246 = vadd.f32 0.0, %v12245
  %12247 = vmatmul.f32.gmra.mxu0 %v11926
  %v12248 = vpop.f32.mrf.mxu0
  %v12249 = vadd.f32 0.0, %v12248
  %12250 = vmatmul.f32.gmra.mxu0 %v11928
  %v12251 = vpop.f32.mrf.mxu0
  %v12252 = vadd.f32 0.0, %v12251
  %12253 = vmatmul.f32.gmra.mxu0 %v11931
  %v12254 = vpop.f32.mrf.mxu0
  %v12255 = vadd.f32 0.0, %v12254
  %12256 = vmatmul.f32.gmra.mxu0 %v11933
  %v12257 = vpop.f32.mrf.mxu0
  %v12258 = vadd.f32 0.0, %v12257
  %12259 = vmatmul.f32.gmra.mxu0 %v11936
  %v12260 = vpop.f32.mrf.mxu0
  %v12261 = vadd.f32 0.0, %v12260
  %12262 = vmatmul.f32.gmra.mxu0 %v11938
  %v12263 = vpop.f32.mrf.mxu0
  %v12264 = vadd.f32 0.0, %v12263
  %12265 = vmatmul.f32.gmra.mxu0 %v11941
  %v12266 = vpop.f32.mrf.mxu0
  %v12267 = vadd.f32 0.0, %v12266
  %12268 = vmatmul.f32.gmra.mxu0 %v11943
  %v12269 = vpop.f32.mrf.mxu0
  %v12270 = vadd.f32 0.0, %v12269
  %12271 = vmatmul.f32.gmra.mxu0 %v11946
  %v12272 = vpop.f32.mrf.mxu0
  %v12273 = vadd.f32 0.0, %v12272
  %12274 = vmatmul.f32.gmra.mxu0 %v11948
  %v12275 = vpop.f32.mrf.mxu0
  %v12276 = vadd.f32 0.0, %v12275
  %12277 = vmatmul.f32.gmra.mxu0 %v11951
  %v12278 = vpop.f32.mrf.mxu0
  %v12279 = vadd.f32 0.0, %v12278
  %12280 = vmatmul.f32.gmra.mxu0 %v11953
  %v12281 = vpop.f32.mrf.mxu0
  %v12282 = vadd.f32 0.0, %v12281
  %12283 = vdwg.mxu0
  %12284 = vmatpush.msra.mxu0 0.0
  %12285 = vmatpush.msra.mxu0 0.0
  %12286 = vmatpush.msra.mxu0 0.0
  %12287 = vmatpush.msra.mxu0 0.0
  %12288 = vmatpush.msra.mxu0 0.0
  %12289 = vmatpush.msra.mxu0 0.0
  %12290 = vmatpush.msra.mxu0 0.0
  %12291 = vmatpush.msra.mxu0 0.0
  %12292 = vmatpush.msra.mxu0 0.0
  %12293 = vmatpush.msra.mxu0 0.0
  %12294 = vmatpush.msra.mxu0 0.0
  %12295 = vmatpush.msra.mxu0 0.0
  %12296 = vmatpush.msra.mxu0 %v12170
  %12297 = vmatpush.msra.mxu0 %v12169
  %12298 = vmatpush.msra.mxu0 %v12168
  %12299 = vmatpush.msra.mxu0 %v12167
  %12300 = vmatmul.f32.gmra.mxu0 %v12172
  %v12301 = vpop.f32.mrf.mxu0
  %v12302 = vadd.f32 %v12237, %v12301
  %12303 = vmatmul.f32.gmra.mxu0 %v12175
  %v12304 = vpop.f32.mrf.mxu0
  %v12305 = vadd.f32 %v12240, %v12304
  %12306 = vmatmul.f32.gmra.mxu0 %v12178
  %v12307 = vpop.f32.mrf.mxu0
  %v12308 = vadd.f32 %v12243, %v12307
  %12309 = vmatmul.f32.gmra.mxu0 %v12181
  %v12310 = vpop.f32.mrf.mxu0
  %v12311 = vadd.f32 %v12246, %v12310
  %12312 = vmatmul.f32.gmra.mxu0 %v12184
  %v12313 = vpop.f32.mrf.mxu0
  %v12314 = vadd.f32 %v12249, %v12313
  %12315 = vmatmul.f32.gmra.mxu0 %v12187
  %v12316 = vpop.f32.mrf.mxu0
  %v12317 = vadd.f32 %v12252, %v12316
  %12318 = vmatmul.f32.gmra.mxu0 %v12190
  %v12319 = vpop.f32.mrf.mxu0
  %v12320 = vadd.f32 %v12255, %v12319
  %12321 = vmatmul.f32.gmra.mxu0 %v12193
  %v12322 = vpop.f32.mrf.mxu0
  %v12323 = vadd.f32 %v12258, %v12322
  %12324 = vmatmul.f32.gmra.mxu0 %v12196
  %v12325 = vpop.f32.mrf.mxu0
  %v12326 = vadd.f32 %v12261, %v12325
  %12327 = vmatmul.f32.gmra.mxu0 %v12199
  %v12328 = vpop.f32.mrf.mxu0
  %v12329 = vadd.f32 %v12264, %v12328
  %12330 = vmatmul.f32.gmra.mxu0 %v12202
  %v12331 = vpop.f32.mrf.mxu0
  %v12332 = vadd.f32 %v12267, %v12331
  %12333 = vmatmul.f32.gmra.mxu0 %v12205
  %v12334 = vpop.f32.mrf.mxu0
  %v12335 = vadd.f32 %v12270, %v12334
  %12336 = vmatmul.f32.gmra.mxu0 %v12208
  %v12337 = vpop.f32.mrf.mxu0
  %v12338 = vadd.f32 %v12273, %v12337
  %12339 = vmatmul.f32.gmra.mxu0 %v12211
  %v12340 = vpop.f32.mrf.mxu0
  %v12341 = vadd.f32 %v12276, %v12340
  %12342 = vmatmul.f32.gmra.mxu0 %v12214
  %v12343 = vpop.f32.mrf.mxu0
  %v12344 = vadd.f32 %v12279, %v12343
  %12345 = vmatmul.f32.gmra.mxu0 %v12217
  %v12346 = vpop.f32.mrf.mxu0
  %v12347 = vadd.f32 %v12282, %v12346
  %12348 = vdwg.mxu0
  %v12349 = vld [vmem:[%s8] sm:$0xff]
  %v12350 = vld [vmem:[%s8 + $0x8] sm:$0xff]
  %v12351 = vld [vmem:[%s8 + $0x10] sm:$0xff]
  %v12352 = vld [vmem:[%s8 + $0x18] sm:$0xff]
  %v12353 = vld [vmem:[%s8 + $0x20] sm:$0xff]
  %v12354 = vld [vmem:[%s8 + $0x28] sm:$0xff]
  %v12355 = vld [vmem:[%s8 + $0x30] sm:$0xff]
  %v12356 = vld [vmem:[%s8 + $0x38] sm:$0xff]
  %v12357 = vld [vmem:[%s8 + $0x40] sm:$0xff]
  %v12358 = vld [vmem:[%s8 + $0x48] sm:$0xff]
  %v12359 = vld [vmem:[%s8 + $0x50] sm:$0xff]
  %v12360 = vld [vmem:[%s8 + $0x58] sm:$0xff]
  %v12361 = vld [vmem:[%s8 + $0x60] sm:$0xff]
  %v12362 = vld [vmem:[%s8 + $0x68] sm:$0xff]
  %v12363 = vld [vmem:[%s8 + $0x70] sm:$0xff]
  %v12364 = vld [vmem:[%s8 + $0x78] sm:$0xff]
  %v12365 = vld [vmem:[%s8 + $0x80] sm:$0xff]
  %v12366 = vld [vmem:[%s8 + $0x88] sm:$0xff]
  %v12367 = vld [vmem:[%s8 + $0x90] sm:$0xff]
  %v12368 = vld [vmem:[%s8 + $0x98] sm:$0xff]
  %12369 = vmatpush.msra.mxu0 %v12364
  %12370 = vmatpush.msra.mxu0 %v12363
  %12371 = vmatpush.msra.mxu0 %v12362
  %12372 = vmatpush.msra.mxu0 %v12361
  %12373 = vmatpush.msra.mxu0 %v12360
  %12374 = vmatpush.msra.mxu0 %v12359
  %12375 = vmatpush.msra.mxu0 %v12358
  %12376 = vmatpush.msra.mxu0 %v12357
  %12377 = vmatpush.msra.mxu0 %v12356
  %12378 = vmatpush.msra.mxu0 %v12355
  %12379 = vmatpush.msra.mxu0 %v12354
  %12380 = vmatpush.msra.mxu0 %v12353
  %12381 = vmatpush.msra.mxu0 %v12352
  %12382 = vmatpush.msra.mxu0 %v12351
  %12383 = vmatpush.msra.mxu0 %v12350
  %12384 = vmatpush.msra.mxu0 %v12349
  %12385 = vmatmul.f32.gmra.mxu0 %v11916
  %v12386 = vpop.f32.mrf.mxu0
  %v12387 = vadd.f32 0.0, %v12386
  %12388 = vmatmul.f32.gmra.mxu0 %v11918
  %v12389 = vpop.f32.mrf.mxu0
  %v12390 = vadd.f32 0.0, %v12389
  %12391 = vmatmul.f32.gmra.mxu0 %v11921
  %v12392 = vpop.f32.mrf.mxu0
  %v12393 = vadd.f32 0.0, %v12392
  %12394 = vmatmul.f32.gmra.mxu0 %v11923
  %v12395 = vpop.f32.mrf.mxu0
  %v12396 = vadd.f32 0.0, %v12395
  %12397 = vmatmul.f32.gmra.mxu0 %v11926
  %v12398 = vpop.f32.mrf.mxu0
  %v12399 = vadd.f32 0.0, %v12398
  %12400 = vmatmul.f32.gmra.mxu0 %v11928
  %v12401 = vpop.f32.mrf.mxu0
  %v12402 = vadd.f32 0.0, %v12401
  %12403 = vmatmul.f32.gmra.mxu0 %v11931
  %v12404 = vpop.f32.mrf.mxu0
  %v12405 = vadd.f32 0.0, %v12404
  %12406 = vmatmul.f32.gmra.mxu0 %v11933
  %v12407 = vpop.f32.mrf.mxu0
  %v12408 = vadd.f32 0.0, %v12407
  %12409 = vmatmul.f32.gmra.mxu0 %v11936
  %v12410 = vpop.f32.mrf.mxu0
  %v12411 = vadd.f32 0.0, %v12410
  %12412 = vmatmul.f32.gmra.mxu0 %v11938
  %v12413 = vpop.f32.mrf.mxu0
  %v12414 = vadd.f32 0.0, %v12413
  %12415 = vmatmul.f32.gmra.mxu0 %v11941
  %v12416 = vpop.f32.mrf.mxu0
  %v12417 = vadd.f32 0.0, %v12416
  %12418 = vmatmul.f32.gmra.mxu0 %v11943
  %v12419 = vpop.f32.mrf.mxu0
  %v12420 = vadd.f32 0.0, %v12419
  %12421 = vmatmul.f32.gmra.mxu0 %v11946
  %v12422 = vpop.f32.mrf.mxu0
  %v12423 = vadd.f32 0.0, %v12422
  %12424 = vmatmul.f32.gmra.mxu0 %v11948
  %v12425 = vpop.f32.mrf.mxu0
  %v12426 = vadd.f32 0.0, %v12425
  %12427 = vmatmul.f32.gmra.mxu0 %v11951
  %v12428 = vpop.f32.mrf.mxu0
  %v12429 = vadd.f32 0.0, %v12428
  %12430 = vmatmul.f32.gmra.mxu0 %v11953
  %v12431 = vpop.f32.mrf.mxu0
  %v12432 = vadd.f32 0.0, %v12431
  %12433 = vdwg.mxu0
  %12434 = vmatpush.msra.mxu0 0.0
  %12435 = vmatpush.msra.mxu0 0.0
  %12436 = vmatpush.msra.mxu0 0.0
  %12437 = vmatpush.msra.mxu0 0.0
  %12438 = vmatpush.msra.mxu0 0.0
  %12439 = vmatpush.msra.mxu0 0.0
  %12440 = vmatpush.msra.mxu0 0.0
  %12441 = vmatpush.msra.mxu0 0.0
  %12442 = vmatpush.msra.mxu0 0.0
  %12443 = vmatpush.msra.mxu0 0.0
  %12444 = vmatpush.msra.mxu0 0.0
  %12445 = vmatpush.msra.mxu0 0.0
  %12446 = vmatpush.msra.mxu0 %v12368
  %12447 = vmatpush.msra.mxu0 %v12367
  %12448 = vmatpush.msra.mxu0 %v12366
  %12449 = vmatpush.msra.mxu0 %v12365
  %12450 = vmatmul.f32.gmra.mxu0 %v12172
  %v12451 = vpop.f32.mrf.mxu0
  %v12452 = vadd.f32 %v12387, %v12451
  %12453 = vmatmul.f32.gmra.mxu0 %v12175
  %v12454 = vpop.f32.mrf.mxu0
  %v12455 = vadd.f32 %v12390, %v12454
  %12456 = vmatmul.f32.gmra.mxu0 %v12178
  %v12457 = vpop.f32.mrf.mxu0
  %v12458 = vadd.f32 %v12393, %v12457
  %12459 = vmatmul.f32.gmra.mxu0 %v12181
  %v12460 = vpop.f32.mrf.mxu0
  %v12461 = vadd.f32 %v12396, %v12460
  %12462 = vmatmul.f32.gmra.mxu0 %v12184
  %v12463 = vpop.f32.mrf.mxu0
  %v12464 = vadd.f32 %v12399, %v12463
  %12465 = vmatmul.f32.gmra.mxu0 %v12187
  %v12466 = vpop.f32.mrf.mxu0
  %v12467 = vadd.f32 %v12402, %v12466
  %12468 = vmatmul.f32.gmra.mxu0 %v12190
  %v12469 = vpop.f32.mrf.mxu0
  %v12470 = vadd.f32 %v12405, %v12469
  %12471 = vmatmul.f32.gmra.mxu0 %v12193
  %v12472 = vpop.f32.mrf.mxu0
  %v12473 = vadd.f32 %v12408, %v12472
  %12474 = vmatmul.f32.gmra.mxu0 %v12196
  %v12475 = vpop.f32.mrf.mxu0
  %v12476 = vadd.f32 %v12411, %v12475
  %12477 = vmatmul.f32.gmra.mxu0 %v12199
  %v12478 = vpop.f32.mrf.mxu0
  %v12479 = vadd.f32 %v12414, %v12478
  %12480 = vmatmul.f32.gmra.mxu0 %v12202
  %v12481 = vpop.f32.mrf.mxu0
  %v12482 = vadd.f32 %v12417, %v12481
  %12483 = vmatmul.f32.gmra.mxu0 %v12205
  %v12484 = vpop.f32.mrf.mxu0
  %v12485 = vadd.f32 %v12420, %v12484
  %12486 = vmatmul.f32.gmra.mxu0 %v12208
  %v12487 = vpop.f32.mrf.mxu0
  %v12488 = vadd.f32 %v12423, %v12487
  %12489 = vmatmul.f32.gmra.mxu0 %v12211
  %v12490 = vpop.f32.mrf.mxu0
  %v12491 = vadd.f32 %v12426, %v12490
  %12492 = vmatmul.f32.gmra.mxu0 %v12214
  %v12493 = vpop.f32.mrf.mxu0
  %v12494 = vadd.f32 %v12429, %v12493
  %12495 = vmatmul.f32.gmra.mxu0 %v12217
  %v12496 = vpop.f32.mrf.mxu0
  %v12497 = vadd.f32 %v12432, %v12496
  %12498 = vdwg.mxu0
  %v12499 = vmax.f32 %v12302, %v12452
  %v12500 = vmax.f32 %v12305, %v12455
  %v12501 = vmax.f32 %v12308, %v12458
  %v12502 = vmax.f32 %v12311, %v12461
  %v12503 = vmax.f32 %v12314, %v12464
  %v12504 = vmax.f32 %v12317, %v12467
  %v12505 = vmax.f32 %v12320, %v12470
  %v12506 = vmax.f32 %v12323, %v12473
  %v12507 = vmax.f32 %v12326, %v12476
  %v12508 = vmax.f32 %v12329, %v12479
  %v12509 = vmax.f32 %v12332, %v12482
  %v12510 = vmax.f32 %v12335, %v12485
  %v12511 = vmax.f32 %v12338, %v12488
  %v12512 = vmax.f32 %v12341, %v12491
  %v12513 = vmax.f32 %v12344, %v12494
  %v12514 = vmax.f32 %v12347, %v12497
  %12515 = vst.msk [vmem:[%s9 + $0x180] sm:$0xff] %vm6919, %v12499
  %12516 = vst.msk [vmem:[%s9 + $0x188] sm:$0xff] %vm6919, %v12500
  %12517 = vst.msk [vmem:[%s9 + $0x190] sm:$0xff] %vm6919, %v12501
  %12518 = vst.msk [vmem:[%s9 + $0x198] sm:$0xff] %vm6919, %v12502
  %12519 = vst.msk [vmem:[%s9 + $0x1a0] sm:$0xff] %vm6919, %v12503
  %12520 = vst.msk [vmem:[%s9 + $0x1a8] sm:$0xff] %vm6919, %v12504
  %12521 = vst.msk [vmem:[%s9 + $0x1b0] sm:$0xff] %vm6919, %v12505
  %12522 = vst.msk [vmem:[%s9 + $0x1b8] sm:$0xff] %vm6919, %v12506
  %12523 = vst.msk [vmem:[%s9 + $0x1c0] sm:$0xff] %vm6919, %v12507
  %12524 = vst.msk [vmem:[%s9 + $0x1c8] sm:$0xff] %vm6919, %v12508
  %12525 = vst.msk [vmem:[%s9 + $0x1d0] sm:$0xff] %vm6919, %v12509
  %12526 = vst.msk [vmem:[%s9 + $0x1d8] sm:$0xff] %vm6919, %v12510
  %12527 = vst.msk [vmem:[%s9 + $0x1e0] sm:$0xff] %vm6919, %v12511
  %12528 = vst.msk [vmem:[%s9 + $0x1e8] sm:$0xff] %vm6919, %v12512
  %12529 = vst.msk [vmem:[%s9 + $0x1f0] sm:$0xff] %vm6919, %v12513
  %12530 = vst.msk [vmem:[%s9 + $0x1f8] sm:$0xff] %vm6919, %v12514
  // Predicated region
  $region38: #{ann_forward.1} parent=0 // pred_check
    _
  $region39: #{ann_forward.1} parent=0 // pred_check_branch
    %12532 = sbr.rel (0) target = $region41
  $region40: #{ann_forward.1} parent=0 // pred_region
    _
  $region41: #{ann_forward.1} parent=0 // pred_fallthru
    _
  // Predicated region
  $region42: #{ann_forward.1} parent=0 // pred_check
    _
  $region43: #{ann_forward.1} parent=0 // pred_check_branch
    %12534 = sbr.rel (0) target = $region45
  $region44: #{ann_forward.1} parent=0 // pred_region
    _
  $region45: #{ann_forward.1} parent=0 // pred_fallthru
    _

</llo_original>
